<compile_context>
chip_gen: v7x
topology: tpu7x:2x2x1
jax: 0.10.0
libtpu: 0.0.40
codegen_flags: <defaults>
</compile_context>

<pallas_src>
import functools

import jax
import jax.numpy as jnp
import numpy as np
from jax import lax
from jax.experimental import pallas as pl
from jax.experimental.pallas import tpu as pltpu


# ----------------------------------------------------------------------------
# One-time host-side parameter folding
# ----------------------------------------------------------------------------
def _round_up(a, b):
    return -(-a // b) * b


def _conv_bn_matrix(w, gamma, beta, mean, var, b, W, eps):
    """Same-padded 1-D conv along W with folded BN, as a (Cin*W, Cout*W) matrix
    acting on the channel-major lane layout col = c*W + w, plus (1, Cout*W) bias."""
    Cout, Cin, K = w.shape
    pad_l = (K - 1) // 2
    scale = gamma / np.sqrt(var + eps)
    shift = beta + scale * (b - mean)
    q = np.arange(W)[:, None]
    t = np.arange(W)[None, :]
    k = q - t + pad_l
    valid = (k >= 0) & (k < K)        # same-padding boundary handled here
    kc = np.clip(k, 0, K - 1)
    A = np.zeros((Cin * W, Cout * W), np.float64)
    for ci in range(Cin):
        for co in range(Cout):
            A[ci * W:(ci + 1) * W, co * W:(co + 1) * W] = (
                np.where(valid, w[co, ci, kc], 0.0) * scale[co])
    c = np.repeat(shift, W)[None, :]
    return A, c


def _pool_matrix(C, W):
    """AvgPool2d((1,2)) as a (C*W, C*(W//2)) block-diagonal matrix."""
    Wh = W // 2
    blk = np.zeros((W, Wh), np.float64)
    j = np.arange(Wh)
    blk[2 * j, j] = 0.5
    blk[2 * j + 1, j] = 0.5
    P = np.zeros((C * W, C * Wh), np.float64)
    for c in range(C):
        P[c * W:(c + 1) * W, c * Wh:(c + 1) * Wh] = blk
    return P


def _upsample_matrix(wt, W):
    """ConvTranspose2d(k=1, stride=2, output_padding=(0,1)) along W as a
    (Cin*W, Cout*2W) matrix (channel-mixed values land at even W positions)."""
    Cin, Cout = wt.shape
    M = np.zeros((Cin * W, Cout * 2 * W), np.float64)
    q = np.arange(W)
    for ci in range(Cin):
        for co in range(Cout):
            M[ci * W + q, co * 2 * W + 2 * q] = wt[ci, co]
    return M


def fold_params(params, W0, eps=1e-5):
    """Fold the whole network into 6 homogeneous, lane-dense affine stages.

    Stage i is a (ipad_i, opad_i) matrix P_i (widths are multiples of 128):
      columns [0, out_i)   : conv+BN(+pool/upsample) linear map,
      row     in_i         : folded bias (multiplies the constant-1 lane),
      entry  (in_i, out_i) : 1.0 so the constant-1 lane propagates,
      everything else      : 0 (lane padding).
    The kernel then only does `a = relu?(a @ P_i)` per stage.
    """
    g = lambda a: np.asarray(a, np.float64)
    C = int(np.asarray(params["e1"]["w"]).shape[0])
    assert W0 % 8 == 0, "W must be divisible by 8 (three AvgPool(1,2) stages)"
    # TODO(synk): dense folding is O((C*W)^2); for C*W > 512 the six resident
    # matrices would not fit comfortably in VMEM -- use a banded/tiled conv
    # kernel instead of dense folding in that regime.
    assert C * W0 <= 512, "dense-folded matrices too large for VMEM residency"

    raw = []                 # (A, bias_row, relu?) per stage, f64
    prev_lin = None          # linear op (pool) prepended to the next stage
    W = W0
    # --- encoder: Conv2dSame + BN + ReLU + AvgPool(1,2) (+ Dropout = id) ---
    for i in range(3):
        p = params[f"e{i + 1}"]
        Cin = 1 if i == 0 else C
        w = g(p["w"]).reshape(C, Cin, -1)
        A, c = _conv_bn_matrix(w, g(p["gamma"]), g(p["beta"]), g(p["mean"]),
                               g(p["var"]), g(p["b"]), W, eps)
        if prev_lin is not None:
            A = prev_lin @ A
        raw.append((A, c, True))
        prev_lin = _pool_matrix(C, W)   # pool (after ReLU) folds into next stage
        W //= 2
    # --- decoder: ConvTranspose(1, s=2, outpad(0,1)) + Conv same + BN (+ReLU) ---
    for i in range(3):
        p = params[f"d{i + 1}"]
        cout_t = C if i < 2 else 1
        wt = g(p["wt"]).reshape(C, cout_t)
        M = _upsample_matrix(wt, W)                       # (C*W, cout_t*2W)
        btl = np.repeat(g(p["bt"]), 2 * W)[None, :]
        W *= 2
        w = g(p["w"]).reshape(cout_t, cout_t, -1)
        B, shift = _conv_bn_matrix(w, g(p["gamma"]), g(p["beta"]), g(p["mean"]),
                                   g(p["var"]), g(p["b"]), W, eps)
        lin = M @ B
        bias = btl @ B + shift
        if prev_lin is not None:          # pool after e3 folds into d1
            lin = prev_lin @ lin
            prev_lin = None
        raw.append((lin, bias, i < 2))

    # --- homogeneous-coordinate + lane-dense (multiple of 128) padding ---
    mats, relus = [], []
    ipad = _round_up(W0 + 1, 128)
    for (A, c, r) in raw:
        k_in, k_out = A.shape
        opad = _round_up(k_out + 1, 128)
        P = np.zeros((ipad, opad), np.float64)
        P[:k_in, :k_out] = A
        P[k_in, :k_out] = c[0]            # bias row (multiplies constant-1 lane)
        P[k_in, k_out] = 1.0              # propagate the constant-1 lane
        mats.append(jnp.asarray(P.astype(np.float32)))
        relus.append(r)
        ipad = opad
    return mats, tuple(relus), W0


# ----------------------------------------------------------------------------
# Fused Pallas kernel: row-tiled grid, 6 VMEM-resident homogeneous matmuls
# ----------------------------------------------------------------------------
_MAX_ROW_TILE = 256   # VMEM-safe on v5e / v6e / v7x (weights ~1 MiB resident)


def _make_fused_kernel(n_stages, relu_flags):
    def kernel(*refs):
        # refs = (x_ref, P_0..P_{n-1}, o_ref); weights VMEM-resident across grid.
        x_ref = refs[0]
        w_refs = refs[1:1 + n_stages]
        o_ref = refs[-1]
        a = x_ref[...]                                    # (TR, ipad0), lane-dense
        for i in range(n_stages):
            # Bias is folded in as an extra contraction row (homogeneous coords).
            # Precision: Mosaic only lowers DEFAULT/HIGHEST; DEFAULT (1-pass
            # bf16) fails the f32 reference tolerance, so HIGHEST is kept.
            a = jnp.dot(a, w_refs[i][...],
                        precision=lax.Precision.HIGHEST,
                        preferred_element_type=jnp.float32)
            if relu_flags[i]:
                a = jnp.maximum(a, 0.0)
        o_ref[...] = a                                    # dense 128-lane store
    return kernel


@functools.partial(jax.jit, static_argnames=("relu_flags", "w0"))
def fused_forward(xf, mats, relu_flags, w0):
    n = len(mats)
    R = xf.shape[0]
    ipad0 = mats[0].shape[0]
    opad_out = mats[-1].shape[1]

    row_tile = min(_MAX_ROW_TILE, _round_up(max(R, 1), 8))
    r_pad = _round_up(max(R, 1), row_tile)

    # Homogeneous-augmented, lane-dense input block: [:, :w0] = data,
    # [:, w0] = 1 (bias lane), rest zero.  Padded rows stay all-zero.
    x_aug = jnp.zeros((r_pad, ipad0), jnp.float32)
    x_aug = x_aug.at[:R, :w0].set(xf)
    x_aug = x_aug.at[:R, w0].set(1.0)

    kernel = _make_fused_kernel(n, relu_flags)
    out = pl.pallas_call(
        kernel,
        grid=(r_pad // row_tile,),
        in_specs=[pl.BlockSpec((row_tile, ipad0), lambda i: (i, 0))]
                 + [pl.BlockSpec(m.shape, lambda i: (0, 0)) for m in mats],
        out_specs=pl.BlockSpec((row_tile, opad_out), lambda i: (i, 0)),
        out_shape=jax.ShapeDtypeStruct((r_pad, opad_out), jnp.float32),
        compiler_params=pltpu.CompilerParams(
            dimension_semantics=("parallel",),          # v7x: shard across 2 TCs
            vmem_limit_bytes=32 * 1024 * 1024,
        ),
    )(x_aug, *mats)
    return out[:R, :w0]


def model_forward(x, folded):
    mats, relu_flags, w0 = folded
    N, Cin, H, W0 = x.shape
    # TODO(synk): fused path assumes H == 1 (the decoder's stride-2 H-axis
    # upsampling is not folded); general H is out of scope for this kernel.
    assert Cin == 1 and H == 1, "fused Pallas path expects input (N, 1, 1, W)"
    assert W0 == w0
    out = fused_forward(x.reshape(N, W0).astype(jnp.float32),
                        tuple(mats), relu_flags=relu_flags, w0=W0)
    return out.reshape(N, 1, 1, W0)


# ----------------------------------------------------------------------------
# Deterministic parameter init (synthetic, eval-mode BN stats)
# ----------------------------------------------------------------------------
def init_params(key, n_out, kernel_size, kernel_size2):
    C = n_out[0]          # decoder hard-codes 4 channels, so n_out[0] must be 4
    params = {}
    keys = iter(jax.random.split(key, 64))

    def nrm(shape, s=0.3):
        return s * jax.random.normal(next(keys), shape, jnp.float32)

    enc_io = [(1, C, kernel_size[0]), (C, C, kernel_size[1]),
              (C, C, kernel_size[2])]
    for i, (cin, cout, k) in enumerate(enc_io):
        params[f"e{i + 1}"] = dict(
            w=nrm((cout, cin, 1, k)),
            b=nrm((cout,), 0.1),
            gamma=1.0 + nrm((cout,), 0.1),
            beta=nrm((cout,), 0.1),
            mean=jnp.zeros((cout,), jnp.float32),
            var=jnp.ones((cout,), jnp.float32),
        )
    dec_io = [(C, C, kernel_size2[0]), (C, C, kernel_size2[1]),
              (C, 1, kernel_size2[2])]
    for i, (cin, cout, k) in enumerate(dec_io):
        params[f"d{i + 1}"] = dict(
            wt=nrm((cin, cout, 1, 1)),
            bt=nrm((cout,), 0.1),
            w=nrm((cout, cout, 1, k)),
            b=nrm((cout,), 0.1),
            gamma=1.0 + nrm((cout,), 0.1),
            beta=nrm((cout,), 0.1),
            mean=jnp.zeros((cout,), jnp.float32),
            var=jnp.ones((cout,), jnp.float32),
        )
    return params


# ----------------------------------------------------------------------------
# Pure-JAX reference (mirrors the PyTorch module op-by-op, eval mode)
# ----------------------------------------------------------------------------
def ref_conv_same_w(x, w, b):
    K = w.shape[-1]
    pad_l = (K - 1) // 2
    pad_r = K - 1 - pad_l
    y = lax.conv_general_dilated(
        x, w, (1, 1), ((0, 0), (pad_l, pad_r)),
        dimension_numbers=("NCHW", "OIHW", "NCHW"),
        precision=lax.Precision.HIGHEST)
    return y + b[None, :, None, None]


def ref_bn(x, gamma, beta, mean, var, eps=1e-5):
    s = gamma / jnp.sqrt(var + eps)
    return x * s[None, :, None, None] + (beta - mean * s)[None, :, None, None]


def ref_pool(x):
    N, C, H, W = x.shape
    return x.reshape(N, C, H, W // 2, 2).mean(-1)


def ref_convt(x, wt, bt):
    N, Cin, H, W = x.shape
    Cout = wt.shape[1]
    y = jnp.einsum("nchw,cd->ndhw", x, wt[:, :, 0, 0],
                   precision=lax.Precision.HIGHEST)
    out = jnp.zeros((N, Cout, 2 * H - 1, 2 * W), jnp.float32)
    out = out.at[:, :, ::2, ::2].set(y)
    return out + bt[None, :, None, None]


def ref_forward(x, params):
    for i in range(3):
        p = params[f"e{i + 1}"]
        x = ref_conv_same_w(x, p["w"], p["b"])
        x = ref_bn(x, p["gamma"], p["beta"], p["mean"], p["var"])
        x = jnp.maximum(x, 0.0)
        x = ref_pool(x)
    for i in range(3):
        p = params[f"d{i + 1}"]
        x = ref_convt(x, p["wt"], p["bt"])
        x = ref_conv_same_w(x, p["w"], p["b"])
        x = ref_bn(x, p["gamma"], p["beta"], p["mean"], p["var"])
        if i < 2:
            x = jnp.maximum(x, 0.0)
    return x


# ----------------------------------------------------------------------------
if __name__ == "__main__":
    key = jax.random.PRNGKey(0)
    n_out = [4]                    # decoder channels are hard-coded to 4
    kernel_size = [7, 5, 3]
    kernel_size2 = [3, 5, 7]
    dropout_ratio = 0.5            # Dropout is identity in inference mode

    kp, kx = jax.random.split(key)
    params = init_params(kp, n_out, kernel_size, kernel_size2)

    N, H, W = 2, 1, 64             # NCHW input (N, 1, H, W); W divisible by 8
    x = jax.random.normal(kx, (N, 1, H, W), jnp.float32)

    folded = fold_params(params, W)          # one-time host-side folding
    out = jax.block_until_ready(model_forward(x, folded))
    ref = jax.block_until_ready(ref_forward(x, params))

    assert out.shape == (N, 1, H, W), out.shape
    np.testing.assert_allclose(np.asarray(out), np.asarray(ref),
                               atol=1e-4, rtol=1e-3)
    print("KERNEL_OK")
</pallas_src>

<mosaic_0001>
module attributes {stable_mosaic.version = 11 : i64} {
  func.func @kernel(%arg0: i32, %arg1: memref<8x128xf32, #tpu.memory_space<vmem>>, %arg2: memref<128x384xf32, #tpu.memory_space<vmem>>, %arg3: memref<384x256xf32, #tpu.memory_space<vmem>>, %arg4: memref<256x128xf32, #tpu.memory_space<vmem>>, %arg5: memref<128x128xf32, #tpu.memory_space<vmem>>, %arg6: memref<128x256xf32, #tpu.memory_space<vmem>>, %arg7: memref<256x128xf32, #tpu.memory_space<vmem>>, %arg8: memref<8x128xf32, #tpu.memory_space<vmem>>) attributes {dimension_semantics = [#tpu.dimension_semantics<parallel>], iteration_bounds = array<i64: 1>, scalar_prefetch = 0 : i64, scratch_operands = 0 : i64, tpu.core_type = #tpu.core_type<tc>, window_params = [{transform_indices = @transform_0, window_bounds = array<i64: 8, 128>}, {pipeline_mode = #tpu.pipeline_mode<synchronous>, transform_indices = @transform_1, window_bounds = array<i64: 128, 384>}, {pipeline_mode = #tpu.pipeline_mode<synchronous>, transform_indices = @transform_2, window_bounds = array<i64: 384, 256>}, {pipeline_mode = #tpu.pipeline_mode<synchronous>, transform_indices = @transform_3, window_bounds = array<i64: 256, 128>}, {pipeline_mode = #tpu.pipeline_mode<synchronous>, transform_indices = @transform_4, window_bounds = array<i64: 128, 128>}, {pipeline_mode = #tpu.pipeline_mode<synchronous>, transform_indices = @transform_5, window_bounds = array<i64: 128, 256>}, {pipeline_mode = #tpu.pipeline_mode<synchronous>, transform_indices = @transform_6, window_bounds = array<i64: 256, 128>}, {transform_indices = @transform_7, window_bounds = array<i64: 8, 128>}]} {
    %c0 = arith.constant 0 : index
    %c0_0 = arith.constant 0 : index
    %0 = vector.load %arg1[%c0, %c0_0] : memref<8x128xf32, #tpu.memory_space<vmem>>, vector<8x128xf32>
    %c0_1 = arith.constant 0 : index
    %c0_2 = arith.constant 0 : index
    %1 = vector.load %arg2[%c0_1, %c0_2] : memref<128x384xf32, #tpu.memory_space<vmem>>, vector<128x384xf32>
    %cst = arith.constant dense<0.000000e+00> : vector<8x384xf32>
    %2 = tpu.matmul %0, %1, %cst {dimension_numbers = #tpu.dot_dimension_numbers<[1], [0], [0], [1], [0, 0, 1, 1], [], []>, precision = #tpu.contract_precision<fp32>} : vector<8x128xf32>, vector<128x384xf32>, vector<8x384xf32> -> vector<8x384xf32>
    %cst_3 = arith.constant 0.000000e+00 : f32
    %3 = vector.broadcast %cst_3 : f32 to vector<8x384xf32>
    %4 = arith.maximumf %2, %3 : vector<8x384xf32>
    %c0_4 = arith.constant 0 : index
    %c0_5 = arith.constant 0 : index
    %5 = vector.load %arg3[%c0_4, %c0_5] : memref<384x256xf32, #tpu.memory_space<vmem>>, vector<384x256xf32>
    %cst_6 = arith.constant dense<0.000000e+00> : vector<8x256xf32>
    %6 = tpu.matmul %4, %5, %cst_6 {dimension_numbers = #tpu.dot_dimension_numbers<[1], [0], [0], [1], [0, 0, 1, 1], [], []>, precision = #tpu.contract_precision<fp32>} : vector<8x384xf32>, vector<384x256xf32>, vector<8x256xf32> -> vector<8x256xf32>
    %cst_7 = arith.constant 0.000000e+00 : f32
    %7 = vector.broadcast %cst_7 : f32 to vector<8x256xf32>
    %8 = arith.maximumf %6, %7 : vector<8x256xf32>
    %c0_8 = arith.constant 0 : index
    %c0_9 = arith.constant 0 : index
    %9 = vector.load %arg4[%c0_8, %c0_9] : memref<256x128xf32, #tpu.memory_space<vmem>>, vector<256x128xf32>
    %cst_10 = arith.constant dense<0.000000e+00> : vector<8x128xf32>
    %10 = tpu.matmul %8, %9, %cst_10 {dimension_numbers = #tpu.dot_dimension_numbers<[1], [0], [0], [1], [0, 0, 1, 1], [], []>, precision = #tpu.contract_precision<fp32>} : vector<8x256xf32>, vector<256x128xf32>, vector<8x128xf32> -> vector<8x128xf32>
    %cst_11 = arith.constant 0.000000e+00 : f32
    %11 = vector.broadcast %cst_11 : f32 to vector<8x128xf32>
    %12 = arith.maximumf %10, %11 : vector<8x128xf32>
    %c0_12 = arith.constant 0 : index
    %c0_13 = arith.constant 0 : index
    %13 = vector.load %arg5[%c0_12, %c0_13] : memref<128x128xf32, #tpu.memory_space<vmem>>, vector<128x128xf32>
    %cst_14 = arith.constant dense<0.000000e+00> : vector<8x128xf32>
    %14 = tpu.matmul %12, %13, %cst_14 {dimension_numbers = #tpu.dot_dimension_numbers<[1], [0], [0], [1], [0, 0, 1, 1], [], []>, precision = #tpu.contract_precision<fp32>} : vector<8x128xf32>, vector<128x128xf32>, vector<8x128xf32> -> vector<8x128xf32>
    %cst_15 = arith.constant 0.000000e+00 : f32
    %15 = vector.broadcast %cst_15 : f32 to vector<8x128xf32>
    %16 = arith.maximumf %14, %15 : vector<8x128xf32>
    %c0_16 = arith.constant 0 : index
    %c0_17 = arith.constant 0 : index
    %17 = vector.load %arg6[%c0_16, %c0_17] : memref<128x256xf32, #tpu.memory_space<vmem>>, vector<128x256xf32>
    %cst_18 = arith.constant dense<0.000000e+00> : vector<8x256xf32>
    %18 = tpu.matmul %16, %17, %cst_18 {dimension_numbers = #tpu.dot_dimension_numbers<[1], [0], [0], [1], [0, 0, 1, 1], [], []>, precision = #tpu.contract_precision<fp32>} : vector<8x128xf32>, vector<128x256xf32>, vector<8x256xf32> -> vector<8x256xf32>
    %cst_19 = arith.constant 0.000000e+00 : f32
    %19 = vector.broadcast %cst_19 : f32 to vector<8x256xf32>
    %20 = arith.maximumf %18, %19 : vector<8x256xf32>
    %c0_20 = arith.constant 0 : index
    %c0_21 = arith.constant 0 : index
    %21 = vector.load %arg7[%c0_20, %c0_21] : memref<256x128xf32, #tpu.memory_space<vmem>>, vector<256x128xf32>
    %cst_22 = arith.constant dense<0.000000e+00> : vector<8x128xf32>
    %22 = tpu.matmul %20, %21, %cst_22 {dimension_numbers = #tpu.dot_dimension_numbers<[1], [0], [0], [1], [0, 0, 1, 1], [], []>, precision = #tpu.contract_precision<fp32>} : vector<8x256xf32>, vector<256x128xf32>, vector<8x128xf32> -> vector<8x128xf32>
    %c0_23 = arith.constant 0 : index
    %c0_24 = arith.constant 0 : index
    %23 = vector.load %arg8[%c0_23, %c0_24] : memref<8x128xf32, #tpu.memory_space<vmem>>, vector<8x128xf32>
    tpu.vector_store %arg8[%c0_23, %c0_24], %22 {strides = array<i32>} : memref<8x128xf32, #tpu.memory_space<vmem>>, vector<8x128xf32>,
    return
  }
  func.func @transform_0(%arg0: i32) -> (i32, i32) {
    %c0_i32 = arith.constant 0 : i32
    %c0_i32_0 = arith.constant 0 : i32
    return %arg0, %c0_i32 : i32, i32
  }
  func.func @transform_1(%arg0: i32) -> (i32, i32) {
    %c0_i32 = arith.constant 0 : i32
    %c0_i32_0 = arith.constant 0 : i32
    %c0_i32_1 = arith.constant 0 : i32
    return %c0_i32, %c0_i32_0 : i32, i32
  }
  func.func @transform_2(%arg0: i32) -> (i32, i32) {
    %c0_i32 = arith.constant 0 : i32
    %c0_i32_0 = arith.constant 0 : i32
    %c0_i32_1 = arith.constant 0 : i32
    return %c0_i32, %c0_i32_0 : i32, i32
  }
  func.func @transform_3(%arg0: i32) -> (i32, i32) {
    %c0_i32 = arith.constant 0 : i32
    %c0_i32_0 = arith.constant 0 : i32
    %c0_i32_1 = arith.constant 0 : i32
    return %c0_i32, %c0_i32_0 : i32, i32
  }
  func.func @transform_4(%arg0: i32) -> (i32, i32) {
    %c0_i32 = arith.constant 0 : i32
    %c0_i32_0 = arith.constant 0 : i32
    %c0_i32_1 = arith.constant 0 : i32
    return %c0_i32, %c0_i32_0 : i32, i32
  }
  func.func @transform_5(%arg0: i32) -> (i32, i32) {
    %c0_i32 = arith.constant 0 : i32
    %c0_i32_0 = arith.constant 0 : i32
    %c0_i32_1 = arith.constant 0 : i32
    return %c0_i32, %c0_i32_0 : i32, i32
  }
  func.func @transform_6(%arg0: i32) -> (i32, i32) {
    %c0_i32 = arith.constant 0 : i32
    %c0_i32_0 = arith.constant 0 : i32
    %c0_i32_1 = arith.constant 0 : i32
    return %c0_i32, %c0_i32_0 : i32, i32
  }
  func.func @transform_7(%arg0: i32) -> (i32, i32) {
    %c0_i32 = arith.constant 0 : i32
    %c0_i32_0 = arith.constant 0 : i32
    return %arg0, %c0_i32 : i32, i32
  }
}

</mosaic_0001>

<llo_original>
// kernel: fused_forward.1
$region0: #{fused_forward.1}
  #allocation0 [shape = 'u32[]', space=smem, size = 0x4, offset = 0x4, fixed_abs, tag = 'smem constant byte address 0x4 - core index']
  #allocation1 [shape = 'u32[144,128]{1,0:T(1,128)}', space=vmem, size = 0x12000, scoped, tag = 'internal scratch']
  %s0 = inlined_call_operand.vmem [shape: f32[8,128], index: 0, kind: input, shape index: {}]
  %s1 = inlined_call_operand.hbm [shape: f32[128,384], index: 1, kind: input, shape index: {}]
  %s2 = inlined_call_operand.hbm [shape: f32[384,256], index: 2, kind: input, shape index: {}]
  %s3 = inlined_call_operand.hbm [shape: f32[256,128], index: 3, kind: input, shape index: {}]
  %s4 = inlined_call_operand.hbm [shape: f32[128,128], index: 4, kind: input, shape index: {}]
  %s5 = inlined_call_operand.hbm [shape: f32[128,256], index: 5, kind: input, shape index: {}]
  %s6 = inlined_call_operand.hbm [shape: f32[256,128], index: 6, kind: input, shape index: {}]
  %s7 = inlined_call_operand.vmem [shape: f32[8,128], index: 7, kind: output, shape index: {}]
  %s8 = sld [smem:[#allocation0]]
  $region62: #{fused_forward.1} parent=0
    _
  %s10 = ssub.s32 1, %s8
  %s11 = scalar_select 0, %s10, %s8
  $region1: #{fused_forward.1} parent=0
    #allocation2 [shape = 'u8[196608]{0}', space=vmem, size = 0x30000, scoped, tag = 'input window, operand 1, single buffered']
    #allocation3 [shape = 's32[1]{0}', space=sflag, size = 0x4, scoped, tag = 'scoped memory for fused_forward.1']
    #allocation4 [shape = 'u8[393216]{0}', space=vmem, size = 0x60000, scoped, tag = 'input window, operand 2, single buffered']
    #allocation5 [shape = 's32[1]{0}', space=sflag, size = 0x4, scoped, tag = 'scoped memory for fused_forward.1']
    #allocation6 [shape = 'u8[131072]{0}', space=vmem, size = 0x20000, scoped, tag = 'input window, operand 3, single buffered']
    #allocation7 [shape = 'u8[65536]{0}', space=vmem, size = 0x10000, scoped, tag = 'input window, operand 4, single buffered']
    #allocation8 [shape = 's32[1]{0}', space=sflag, size = 0x4, scoped, tag = 'scoped memory for fused_forward.1']
    #allocation9 [shape = 'u8[131072]{0}', space=vmem, size = 0x20000, scoped, tag = 'input window, operand 5, single buffered']
    #allocation10 [shape = 'u8[131072]{0}', space=vmem, size = 0x20000, scoped, tag = 'input window, operand 6, single buffered']
    #allocation11 [shape = 's32[1]{0}', space=sflag, size = 0x4, scoped, tag = 'scoped memory for fused_forward.1']
    %12 = vsyncpa [#allocation3], 0
    %13 = vsyncpa [#allocation5], 0
    %14 = vsyncpa [#allocation8], 0
    %15 = vsyncpa [#allocation11], 0
    // Predicated region
    $region2: #{fused_forward.1} parent=1 // pred_check
      _
    $region3: #{fused_forward.1} parent=1 // pred_check_branch
      %17 = sbr.rel (0) target = $region5
    $region4: #{fused_forward.1} parent=1 // pred_region
      _
    $region5: #{fused_forward.1} parent=1 // pred_fallthru
      _
    // Predicated region
    $region6: #{fused_forward.1} parent=1 // pred_check
      _
    $region7: #{fused_forward.1} parent=1 // pred_check_branch
      %19 = sbr.rel (0) target = $region9
    $region8: #{fused_forward.1} parent=1 // pred_region
      %s21 = ssub.s32 6144, 6144
      %22 = vsyncadd [#allocation3], %s21
      %s23 = sshll.u32 [#allocation2], 4
      %s24 = int_to_ptr.vmem [resolvable:$true] %s23
      %29 = dma.hbm_to_vmem [thread:$0]  %s1, 6144, %s24, [#allocation3], 384, 384, 24
    $region9: #{fused_forward.1} parent=1 // pred_fallthru
      _
    // Predicated region
    $region10: #{fused_forward.1} parent=1 // pred_check
      _
    $region11: #{fused_forward.1} parent=1 // pred_check_branch
      %31 = sbr.rel (0) target = $region13
    $region12: #{fused_forward.1} parent=1 // pred_region
      %s33 = ssub.s32 12288, 12288
      %34 = vsyncadd [#allocation5], %s33
      %s35 = sshll.u32 [#allocation4], 4
      %s36 = int_to_ptr.vmem [resolvable:$true] %s35
      %41 = dma.hbm_to_vmem [thread:$0]  %s2, 12288, %s36, [#allocation5], 256, 256, 16
    $region13: #{fused_forward.1} parent=1 // pred_fallthru
      _
    // Predicated region
    $region14: #{fused_forward.1} parent=1 // pred_check
      _
    $region15: #{fused_forward.1} parent=1 // pred_check_branch
      %43 = sbr.rel (0) target = $region17
    $region16: #{fused_forward.1} parent=1 // pred_region
      %s45 = ssub.s32 4096, 4096
      %46 = vsyncadd [#allocation5], %s45
      %s47 = sshll.u32 [#allocation6], 4
      %s48 = int_to_ptr.vmem [resolvable:$true] %s47
      %53 = dma.hbm_to_vmem [thread:$0]  %s3, 4096, %s48, [#allocation5], 128, 128, 8
    $region17: #{fused_forward.1} parent=1 // pred_fallthru
      _
    // Predicated region
    $region18: #{fused_forward.1} parent=1 // pred_check
      _
    $region19: #{fused_forward.1} parent=1 // pred_check_branch
      %55 = sbr.rel (0) target = $region21
    $region20: #{fused_forward.1} parent=1 // pred_region
      %s57 = ssub.s32 2048, 2048
      %58 = vsyncadd [#allocation8], %s57
      %s59 = sshll.u32 [#allocation7], 4
      %s60 = int_to_ptr.vmem [resolvable:$true] %s59
      %65 = dma.hbm_to_vmem [thread:$0]  %s4, 2048, %s60, [#allocation8], 128, 128, 8
    $region21: #{fused_forward.1} parent=1 // pred_fallthru
      _
    // Predicated region
    $region22: #{fused_forward.1} parent=1 // pred_check
      _
    $region23: #{fused_forward.1} parent=1 // pred_check_branch
      %67 = sbr.rel (0) target = $region25
    $region24: #{fused_forward.1} parent=1 // pred_region
      %s69 = ssub.s32 4096, 4096
      %70 = vsyncadd [#allocation8], %s69
      %s71 = sshll.u32 [#allocation9], 4
      %s72 = int_to_ptr.vmem [resolvable:$true] %s71
      %77 = dma.hbm_to_vmem [thread:$0]  %s5, 4096, %s72, [#allocation8], 256, 256, 16
    $region25: #{fused_forward.1} parent=1 // pred_fallthru
      _
    // Predicated region
    $region26: #{fused_forward.1} parent=1 // pred_check
      _
    $region27: #{fused_forward.1} parent=1 // pred_check_branch
      %79 = sbr.rel (0) target = $region29
    $region28: #{fused_forward.1} parent=1 // pred_region
      %s81 = ssub.s32 4096, 4096
      %82 = vsyncadd [#allocation11], %s81
      %s83 = sshll.u32 [#allocation10], 4
      %s84 = int_to_ptr.vmem [resolvable:$true] %s83
      %89 = dma.hbm_to_vmem [thread:$0]  %s6, 4096, %s84, [#allocation11], 128, 128, 8
    $region29: #{fused_forward.1} parent=1 // pred_fallthru
      _
    // Predicated region
    $region30: #{fused_forward.1} parent=1 // pred_check
      _
    $region31: #{fused_forward.1} parent=1 // pred_check_branch
      %91 = sbr.rel (0) target = $region33
    $region32: #{fused_forward.1} parent=1 // pred_region
      %92 = dma.done [#allocation3], 6144
    $region33: #{fused_forward.1} parent=1 // pred_fallthru
      _
    // Predicated region
    $region34: #{fused_forward.1} parent=1 // pred_check
      _
    $region35: #{fused_forward.1} parent=1 // pred_check_branch
      %94 = sbr.rel (0) target = $region37
    $region36: #{fused_forward.1} parent=1 // pred_region
      %95 = dma.done [#allocation5], 12288
    $region37: #{fused_forward.1} parent=1 // pred_fallthru
      _
    // Predicated region
    $region38: #{fused_forward.1} parent=1 // pred_check
      _
    $region39: #{fused_forward.1} parent=1 // pred_check_branch
      %97 = sbr.rel (0) target = $region41
    $region40: #{fused_forward.1} parent=1 // pred_region
      %98 = dma.done [#allocation5], 4096
    $region41: #{fused_forward.1} parent=1 // pred_fallthru
      _
    // Predicated region
    $region42: #{fused_forward.1} parent=1 // pred_check
      _
    $region43: #{fused_forward.1} parent=1 // pred_check_branch
      %100 = sbr.rel (0) target = $region45
    $region44: #{fused_forward.1} parent=1 // pred_region
      %101 = dma.done [#allocation8], 2048
    $region45: #{fused_forward.1} parent=1 // pred_fallthru
      _
    // Predicated region
    $region46: #{fused_forward.1} parent=1 // pred_check
      _
    $region47: #{fused_forward.1} parent=1 // pred_check_branch
      %103 = sbr.rel (0) target = $region49
    $region48: #{fused_forward.1} parent=1 // pred_region
      %104 = dma.done [#allocation8], 4096
    $region49: #{fused_forward.1} parent=1 // pred_fallthru
      _
    // Predicated region
    $region50: #{fused_forward.1} parent=1 // pred_check
      _
    $region51: #{fused_forward.1} parent=1 // pred_check_branch
      %106 = sbr.rel (0) target = $region53
    $region52: #{fused_forward.1} parent=1 // pred_region
      %107 = dma.done [#allocation11], 4096
    $region53: #{fused_forward.1} parent=1 // pred_fallthru
      _
    %v108 = vld [vmem:[%s0] sm:$0xff]
    %v109 = vld [vmem:[#allocation2] sm:$0xff]
    %v110 = vld [vmem:[#allocation2 + $0x8] sm:$0xff]
    %v111 = vld [vmem:[#allocation2 + $0x10] sm:$0xff]
    %v112 = vld [vmem:[#allocation2 + $0x18] sm:$0xff]
    %v113 = vld [vmem:[#allocation2 + $0x20] sm:$0xff]
    %v114 = vld [vmem:[#allocation2 + $0x28] sm:$0xff]
    %v115 = vld [vmem:[#allocation2 + $0x30] sm:$0xff]
    %v116 = vld [vmem:[#allocation2 + $0x38] sm:$0xff]
    %v117 = vld [vmem:[#allocation2 + $0x40] sm:$0xff]
    %v118 = vld [vmem:[#allocation2 + $0x48] sm:$0xff]
    %v119 = vld [vmem:[#allocation2 + $0x50] sm:$0xff]
    %v120 = vld [vmem:[#allocation2 + $0x58] sm:$0xff]
    %v121 = vld [vmem:[#allocation2 + $0x60] sm:$0xff]
    %v122 = vld [vmem:[#allocation2 + $0x68] sm:$0xff]
    %v123 = vld [vmem:[#allocation2 + $0x70] sm:$0xff]
    %v124 = vld [vmem:[#allocation2 + $0x78] sm:$0xff]
    %v125 = vld [vmem:[#allocation2 + $0x80] sm:$0xff]
    %v126 = vld [vmem:[#allocation2 + $0x88] sm:$0xff]
    %v127 = vld [vmem:[#allocation2 + $0x90] sm:$0xff]
    %v128 = vld [vmem:[#allocation2 + $0x98] sm:$0xff]
    %v129 = vld [vmem:[#allocation2 + $0xa0] sm:$0xff]
    %v130 = vld [vmem:[#allocation2 + $0xa8] sm:$0xff]
    %v131 = vld [vmem:[#allocation2 + $0xb0] sm:$0xff]
    %v132 = vld [vmem:[#allocation2 + $0xb8] sm:$0xff]
    %v133 = vld [vmem:[#allocation2 + $0xc0] sm:$0xff]
    %v134 = vld [vmem:[#allocation2 + $0xc8] sm:$0xff]
    %v135 = vld [vmem:[#allocation2 + $0xd0] sm:$0xff]
    %v136 = vld [vmem:[#allocation2 + $0xd8] sm:$0xff]
    %v137 = vld [vmem:[#allocation2 + $0xe0] sm:$0xff]
    %v138 = vld [vmem:[#allocation2 + $0xe8] sm:$0xff]
    %v139 = vld [vmem:[#allocation2 + $0xf0] sm:$0xff]
    %v140 = vld [vmem:[#allocation2 + $0xf8] sm:$0xff]
    %v141 = vld [vmem:[#allocation2 + $0x100] sm:$0xff]
    %v142 = vld [vmem:[#allocation2 + $0x108] sm:$0xff]
    %v143 = vld [vmem:[#allocation2 + $0x110] sm:$0xff]
    %v144 = vld [vmem:[#allocation2 + $0x118] sm:$0xff]
    %v145 = vld [vmem:[#allocation2 + $0x120] sm:$0xff]
    %v146 = vld [vmem:[#allocation2 + $0x128] sm:$0xff]
    %v147 = vld [vmem:[#allocation2 + $0x130] sm:$0xff]
    %v148 = vld [vmem:[#allocation2 + $0x138] sm:$0xff]
    %v149 = vld [vmem:[#allocation2 + $0x140] sm:$0xff]
    %v150 = vld [vmem:[#allocation2 + $0x148] sm:$0xff]
    %v151 = vld [vmem:[#allocation2 + $0x150] sm:$0xff]
    %v152 = vld [vmem:[#allocation2 + $0x158] sm:$0xff]
    %v153 = vld [vmem:[#allocation2 + $0x160] sm:$0xff]
    %v154 = vld [vmem:[#allocation2 + $0x168] sm:$0xff]
    %v155 = vld [vmem:[#allocation2 + $0x170] sm:$0xff]
    %v156 = vld [vmem:[#allocation2 + $0x178] sm:$0xff]
    %v157 = vand.u32 %v110, 4294901760
    %158 = vmatprep.subr.mxu0 %v157
    %v159 = vand.u32 %v109, 4294901760
    %160 = vmatpush1.msra.mxu0 %v159
    %v161 = vand.u32 %v113, 4294901760
    %162 = vmatprep.subr.mxu0 %v161
    %v163 = vand.u32 %v112, 4294901760
    %164 = vmatpush1.msra.mxu0 %v163
    %v165 = vand.u32 %v116, 4294901760
    %166 = vmatprep.subr.mxu0 %v165
    %v167 = vand.u32 %v115, 4294901760
    %168 = vmatpush1.msra.mxu0 %v167
    %v169 = vand.u32 %v119, 4294901760
    %170 = vmatprep.subr.mxu0 %v169
    %v171 = vand.u32 %v118, 4294901760
    %172 = vmatpush1.msra.mxu0 %v171
    %v173 = vand.u32 %v122, 4294901760
    %174 = vmatprep.subr.mxu0 %v173
    %v175 = vand.u32 %v121, 4294901760
    %176 = vmatpush1.msra.mxu0 %v175
    %v177 = vand.u32 %v125, 4294901760
    %178 = vmatprep.subr.mxu0 %v177
    %v179 = vand.u32 %v124, 4294901760
    %180 = vmatpush1.msra.mxu0 %v179
    %v181 = vand.u32 %v128, 4294901760
    %182 = vmatprep.subr.mxu0 %v181
    %v183 = vand.u32 %v127, 4294901760
    %184 = vmatpush1.msra.mxu0 %v183
    %v185 = vand.u32 %v131, 4294901760
    %186 = vmatprep.subr.mxu0 %v185
    %v187 = vand.u32 %v130, 4294901760
    %188 = vmatpush1.msra.mxu0 %v187
    %v189 = vand.u32 %v134, 4294901760
    %190 = vmatprep.subr.mxu0 %v189
    %v191 = vand.u32 %v133, 4294901760
    %192 = vmatpush1.msra.mxu0 %v191
    %v193 = vand.u32 %v137, 4294901760
    %194 = vmatprep.subr.mxu0 %v193
    %v195 = vand.u32 %v136, 4294901760
    %196 = vmatpush1.msra.mxu0 %v195
    %v197 = vand.u32 %v140, 4294901760
    %198 = vmatprep.subr.mxu0 %v197
    %v199 = vand.u32 %v139, 4294901760
    %200 = vmatpush1.msra.mxu0 %v199
    %v201 = vand.u32 %v143, 4294901760
    %202 = vmatprep.subr.mxu0 %v201
    %v203 = vand.u32 %v142, 4294901760
    %204 = vmatpush1.msra.mxu0 %v203
    %v205 = vand.u32 %v146, 4294901760
    %206 = vmatprep.subr.mxu0 %v205
    %v207 = vand.u32 %v145, 4294901760
    %208 = vmatpush1.msra.mxu0 %v207
    %v209 = vand.u32 %v149, 4294901760
    %210 = vmatprep.subr.mxu0 %v209
    %v211 = vand.u32 %v148, 4294901760
    %212 = vmatpush1.msra.mxu0 %v211
    %v213 = vand.u32 %v152, 4294901760
    %214 = vmatprep.subr.mxu0 %v213
    %v215 = vand.u32 %v151, 4294901760
    %216 = vmatpush1.msra.mxu0 %v215
    %v217 = vand.u32 %v155, 4294901760
    %218 = vmatprep.subr.mxu0 %v217
    %v219 = vand.u32 %v154, 4294901760
    %220 = vmatpush1.msra.mxu0 %v219
    %221 = vmatprep.subr.mxu0 0.0
    %222 = vmatpush1.msra.mxu0 0.0
    %223 = vmatprep.subr.mxu0 0.0
    %224 = vmatpush1.msra.mxu0 0.0
    %225 = vmatprep.subr.mxu0 0.0
    %226 = vmatpush1.msra.mxu0 0.0
    %227 = vmatprep.subr.mxu0 0.0
    %228 = vmatpush1.msra.mxu0 0.0
    %229 = vmatprep.subr.mxu0 0.0
    %230 = vmatpush1.msra.mxu0 0.0
    %231 = vmatprep.subr.mxu0 0.0
    %232 = vmatpush1.msra.mxu0 0.0
    %233 = vmatprep.subr.mxu0 0.0
    %234 = vmatpush1.msra.mxu0 0.0
    %235 = vmatprep.subr.mxu0 0.0
    %236 = vmatpush1.msra.mxu0 0.0
    %237 = vmatprep.subr.mxu0 0.0
    %238 = vmatpush1.msra.mxu0 0.0
    %239 = vmatprep.subr.mxu0 0.0
    %240 = vmatpush1.msra.mxu0 0.0
    %241 = vmatprep.subr.mxu0 0.0
    %242 = vmatpush1.msra.mxu0 0.0
    %243 = vmatprep.subr.mxu0 0.0
    %244 = vmatpush1.msra.mxu0 0.0
    %245 = vmatprep.subr.mxu0 0.0
    %246 = vmatpush1.msra.mxu0 0.0
    %247 = vmatprep.subr.mxu0 0.0
    %248 = vmatpush1.msra.mxu0 0.0
    %249 = vmatprep.subr.mxu0 0.0
    %250 = vmatpush1.msra.mxu0 0.0
    %251 = vmatprep.subr.mxu0 0.0
    %252 = vmatpush1.msra.mxu0 0.0
    %253 = vmatprep.mubr.f32.mxu0 0.0
    %v254 = vand.u32 %v108, 4294901760
    %v255 = vsub.f32 %v108, %v254
    %v256 = vand.u32 %v255, 4294901760
    %v257 = vsub.f32 %v255, %v256
    %v258 = vand.u32 %v257, 4294901760
    %259 = vmatmul.mubr.f32.gmra.mrb[0].mxu0 %v258
    %v260 = vpop.f32.mrb[0].mxu0
    %v261 = vadd.f32 0.0, %v260
    %v262 = vpop.f32.mrb[0].mxu0
    %v263 = vadd.f32 0.0, %v262
    %264 = vdwg.mxu0
    %v265 = vand.u32 %v110, 4294901760
    %v266 = vsub.f32 %v110, %v265
    %v267 = vand.u32 %v266, 4294901760
    %v268 = vsub.f32 %v266, %v267
    %v269 = vand.u32 %v268, 4294901760
    %270 = vmatprep.subr.mxu0 %v269
    %v271 = vand.u32 %v109, 4294901760
    %v272 = vsub.f32 %v109, %v271
    %v273 = vand.u32 %v272, 4294901760
    %v274 = vsub.f32 %v272, %v273
    %v275 = vand.u32 %v274, 4294901760
    %276 = vmatpush1.msra.mxu0 %v275
    %v277 = vand.u32 %v113, 4294901760
    %v278 = vsub.f32 %v113, %v277
    %v279 = vand.u32 %v278, 4294901760
    %v280 = vsub.f32 %v278, %v279
    %v281 = vand.u32 %v280, 4294901760
    %282 = vmatprep.subr.mxu0 %v281
    %v283 = vand.u32 %v112, 4294901760
    %v284 = vsub.f32 %v112, %v283
    %v285 = vand.u32 %v284, 4294901760
    %v286 = vsub.f32 %v284, %v285
    %v287 = vand.u32 %v286, 4294901760
    %288 = vmatpush1.msra.mxu0 %v287
    %v289 = vand.u32 %v116, 4294901760
    %v290 = vsub.f32 %v116, %v289
    %v291 = vand.u32 %v290, 4294901760
    %v292 = vsub.f32 %v290, %v291
    %v293 = vand.u32 %v292, 4294901760
    %294 = vmatprep.subr.mxu0 %v293
    %v295 = vand.u32 %v115, 4294901760
    %v296 = vsub.f32 %v115, %v295
    %v297 = vand.u32 %v296, 4294901760
    %v298 = vsub.f32 %v296, %v297
    %v299 = vand.u32 %v298, 4294901760
    %300 = vmatpush1.msra.mxu0 %v299
    %v301 = vand.u32 %v119, 4294901760
    %v302 = vsub.f32 %v119, %v301
    %v303 = vand.u32 %v302, 4294901760
    %v304 = vsub.f32 %v302, %v303
    %v305 = vand.u32 %v304, 4294901760
    %306 = vmatprep.subr.mxu0 %v305
    %v307 = vand.u32 %v118, 4294901760
    %v308 = vsub.f32 %v118, %v307
    %v309 = vand.u32 %v308, 4294901760
    %v310 = vsub.f32 %v308, %v309
    %v311 = vand.u32 %v310, 4294901760
    %312 = vmatpush1.msra.mxu0 %v311
    %v313 = vand.u32 %v122, 4294901760
    %v314 = vsub.f32 %v122, %v313
    %v315 = vand.u32 %v314, 4294901760
    %v316 = vsub.f32 %v314, %v315
    %v317 = vand.u32 %v316, 4294901760
    %318 = vmatprep.subr.mxu0 %v317
    %v319 = vand.u32 %v121, 4294901760
    %v320 = vsub.f32 %v121, %v319
    %v321 = vand.u32 %v320, 4294901760
    %v322 = vsub.f32 %v320, %v321
    %v323 = vand.u32 %v322, 4294901760
    %324 = vmatpush1.msra.mxu0 %v323
    %v325 = vand.u32 %v125, 4294901760
    %v326 = vsub.f32 %v125, %v325
    %v327 = vand.u32 %v326, 4294901760
    %v328 = vsub.f32 %v326, %v327
    %v329 = vand.u32 %v328, 4294901760
    %330 = vmatprep.subr.mxu0 %v329
    %v331 = vand.u32 %v124, 4294901760
    %v332 = vsub.f32 %v124, %v331
    %v333 = vand.u32 %v332, 4294901760
    %v334 = vsub.f32 %v332, %v333
    %v335 = vand.u32 %v334, 4294901760
    %336 = vmatpush1.msra.mxu0 %v335
    %v337 = vand.u32 %v128, 4294901760
    %v338 = vsub.f32 %v128, %v337
    %v339 = vand.u32 %v338, 4294901760
    %v340 = vsub.f32 %v338, %v339
    %v341 = vand.u32 %v340, 4294901760
    %342 = vmatprep.subr.mxu0 %v341
    %v343 = vand.u32 %v127, 4294901760
    %v344 = vsub.f32 %v127, %v343
    %v345 = vand.u32 %v344, 4294901760
    %v346 = vsub.f32 %v344, %v345
    %v347 = vand.u32 %v346, 4294901760
    %348 = vmatpush1.msra.mxu0 %v347
    %v349 = vand.u32 %v131, 4294901760
    %v350 = vsub.f32 %v131, %v349
    %v351 = vand.u32 %v350, 4294901760
    %v352 = vsub.f32 %v350, %v351
    %v353 = vand.u32 %v352, 4294901760
    %354 = vmatprep.subr.mxu0 %v353
    %v355 = vand.u32 %v130, 4294901760
    %v356 = vsub.f32 %v130, %v355
    %v357 = vand.u32 %v356, 4294901760
    %v358 = vsub.f32 %v356, %v357
    %v359 = vand.u32 %v358, 4294901760
    %360 = vmatpush1.msra.mxu0 %v359
    %v361 = vand.u32 %v134, 4294901760
    %v362 = vsub.f32 %v134, %v361
    %v363 = vand.u32 %v362, 4294901760
    %v364 = vsub.f32 %v362, %v363
    %v365 = vand.u32 %v364, 4294901760
    %366 = vmatprep.subr.mxu0 %v365
    %v367 = vand.u32 %v133, 4294901760
    %v368 = vsub.f32 %v133, %v367
    %v369 = vand.u32 %v368, 4294901760
    %v370 = vsub.f32 %v368, %v369
    %v371 = vand.u32 %v370, 4294901760
    %372 = vmatpush1.msra.mxu0 %v371
    %v373 = vand.u32 %v137, 4294901760
    %v374 = vsub.f32 %v137, %v373
    %v375 = vand.u32 %v374, 4294901760
    %v376 = vsub.f32 %v374, %v375
    %v377 = vand.u32 %v376, 4294901760
    %378 = vmatprep.subr.mxu0 %v377
    %v379 = vand.u32 %v136, 4294901760
    %v380 = vsub.f32 %v136, %v379
    %v381 = vand.u32 %v380, 4294901760
    %v382 = vsub.f32 %v380, %v381
    %v383 = vand.u32 %v382, 4294901760
    %384 = vmatpush1.msra.mxu0 %v383
    %v385 = vand.u32 %v140, 4294901760
    %v386 = vsub.f32 %v140, %v385
    %v387 = vand.u32 %v386, 4294901760
    %v388 = vsub.f32 %v386, %v387
    %v389 = vand.u32 %v388, 4294901760
    %390 = vmatprep.subr.mxu0 %v389
    %v391 = vand.u32 %v139, 4294901760
    %v392 = vsub.f32 %v139, %v391
    %v393 = vand.u32 %v392, 4294901760
    %v394 = vsub.f32 %v392, %v393
    %v395 = vand.u32 %v394, 4294901760
    %396 = vmatpush1.msra.mxu0 %v395
    %v397 = vand.u32 %v143, 4294901760
    %v398 = vsub.f32 %v143, %v397
    %v399 = vand.u32 %v398, 4294901760
    %v400 = vsub.f32 %v398, %v399
    %v401 = vand.u32 %v400, 4294901760
    %402 = vmatprep.subr.mxu0 %v401
    %v403 = vand.u32 %v142, 4294901760
    %v404 = vsub.f32 %v142, %v403
    %v405 = vand.u32 %v404, 4294901760
    %v406 = vsub.f32 %v404, %v405
    %v407 = vand.u32 %v406, 4294901760
    %408 = vmatpush1.msra.mxu0 %v407
    %v409 = vand.u32 %v146, 4294901760
    %v410 = vsub.f32 %v146, %v409
    %v411 = vand.u32 %v410, 4294901760
    %v412 = vsub.f32 %v410, %v411
    %v413 = vand.u32 %v412, 4294901760
    %414 = vmatprep.subr.mxu0 %v413
    %v415 = vand.u32 %v145, 4294901760
    %v416 = vsub.f32 %v145, %v415
    %v417 = vand.u32 %v416, 4294901760
    %v418 = vsub.f32 %v416, %v417
    %v419 = vand.u32 %v418, 4294901760
    %420 = vmatpush1.msra.mxu0 %v419
    %v421 = vand.u32 %v149, 4294901760
    %v422 = vsub.f32 %v149, %v421
    %v423 = vand.u32 %v422, 4294901760
    %v424 = vsub.f32 %v422, %v423
    %v425 = vand.u32 %v424, 4294901760
    %426 = vmatprep.subr.mxu0 %v425
    %v427 = vand.u32 %v148, 4294901760
    %v428 = vsub.f32 %v148, %v427
    %v429 = vand.u32 %v428, 4294901760
    %v430 = vsub.f32 %v428, %v429
    %v431 = vand.u32 %v430, 4294901760
    %432 = vmatpush1.msra.mxu0 %v431
    %v433 = vand.u32 %v152, 4294901760
    %v434 = vsub.f32 %v152, %v433
    %v435 = vand.u32 %v434, 4294901760
    %v436 = vsub.f32 %v434, %v435
    %v437 = vand.u32 %v436, 4294901760
    %438 = vmatprep.subr.mxu0 %v437
    %v439 = vand.u32 %v151, 4294901760
    %v440 = vsub.f32 %v151, %v439
    %v441 = vand.u32 %v440, 4294901760
    %v442 = vsub.f32 %v440, %v441
    %v443 = vand.u32 %v442, 4294901760
    %444 = vmatpush1.msra.mxu0 %v443
    %v445 = vand.u32 %v155, 4294901760
    %v446 = vsub.f32 %v155, %v445
    %v447 = vand.u32 %v446, 4294901760
    %v448 = vsub.f32 %v446, %v447
    %v449 = vand.u32 %v448, 4294901760
    %450 = vmatprep.subr.mxu0 %v449
    %v451 = vand.u32 %v154, 4294901760
    %v452 = vsub.f32 %v154, %v451
    %v453 = vand.u32 %v452, 4294901760
    %v454 = vsub.f32 %v452, %v453
    %v455 = vand.u32 %v454, 4294901760
    %456 = vmatpush1.msra.mxu0 %v455
    %457 = vmatprep.subr.mxu0 0.0
    %458 = vmatpush1.msra.mxu0 0.0
    %459 = vmatprep.subr.mxu0 0.0
    %460 = vmatpush1.msra.mxu0 0.0
    %461 = vmatprep.subr.mxu0 0.0
    %462 = vmatpush1.msra.mxu0 0.0
    %463 = vmatprep.subr.mxu0 0.0
    %464 = vmatpush1.msra.mxu0 0.0
    %465 = vmatprep.subr.mxu0 0.0
    %466 = vmatpush1.msra.mxu0 0.0
    %467 = vmatprep.subr.mxu0 0.0
    %468 = vmatpush1.msra.mxu0 0.0
    %469 = vmatprep.subr.mxu0 0.0
    %470 = vmatpush1.msra.mxu0 0.0
    %471 = vmatprep.subr.mxu0 0.0
    %472 = vmatpush1.msra.mxu0 0.0
    %473 = vmatprep.subr.mxu0 0.0
    %474 = vmatpush1.msra.mxu0 0.0
    %475 = vmatprep.subr.mxu0 0.0
    %476 = vmatpush1.msra.mxu0 0.0
    %477 = vmatprep.subr.mxu0 0.0
    %478 = vmatpush1.msra.mxu0 0.0
    %479 = vmatprep.subr.mxu0 0.0
    %480 = vmatpush1.msra.mxu0 0.0
    %481 = vmatprep.subr.mxu0 0.0
    %482 = vmatpush1.msra.mxu0 0.0
    %483 = vmatprep.subr.mxu0 0.0
    %484 = vmatpush1.msra.mxu0 0.0
    %485 = vmatprep.subr.mxu0 0.0
    %486 = vmatpush1.msra.mxu0 0.0
    %487 = vmatprep.subr.mxu0 0.0
    %488 = vmatpush1.msra.mxu0 0.0
    %489 = vmatprep.mubr.f32.mxu0 0.0
    %v490 = vand.u32 %v108, 4294901760
    %491 = vmatmul.mubr.f32.gmra.mrb[0].mxu0 %v490
    %v492 = vpop.f32.mrb[0].mxu0
    %v493 = vadd.f32 %v261, %v492
    %v494 = vpop.f32.mrb[0].mxu0
    %v495 = vadd.f32 %v263, %v494
    %496 = vdwg.mxu0
    %v497 = vand.u32 %v110, 4294901760
    %v498 = vsub.f32 %v110, %v497
    %499 = vmatprep.subr.mxu0 %v498
    %v500 = vand.u32 %v109, 4294901760
    %v501 = vsub.f32 %v109, %v500
    %502 = vmatpush1.msra.mxu0 %v501
    %v503 = vand.u32 %v113, 4294901760
    %v504 = vsub.f32 %v113, %v503
    %505 = vmatprep.subr.mxu0 %v504
    %v506 = vand.u32 %v112, 4294901760
    %v507 = vsub.f32 %v112, %v506
    %508 = vmatpush1.msra.mxu0 %v507
    %v509 = vand.u32 %v116, 4294901760
    %v510 = vsub.f32 %v116, %v509
    %511 = vmatprep.subr.mxu0 %v510
    %v512 = vand.u32 %v115, 4294901760
    %v513 = vsub.f32 %v115, %v512
    %514 = vmatpush1.msra.mxu0 %v513
    %v515 = vand.u32 %v119, 4294901760
    %v516 = vsub.f32 %v119, %v515
    %517 = vmatprep.subr.mxu0 %v516
    %v518 = vand.u32 %v118, 4294901760
    %v519 = vsub.f32 %v118, %v518
    %520 = vmatpush1.msra.mxu0 %v519
    %v521 = vand.u32 %v122, 4294901760
    %v522 = vsub.f32 %v122, %v521
    %523 = vmatprep.subr.mxu0 %v522
    %v524 = vand.u32 %v121, 4294901760
    %v525 = vsub.f32 %v121, %v524
    %526 = vmatpush1.msra.mxu0 %v525
    %v527 = vand.u32 %v125, 4294901760
    %v528 = vsub.f32 %v125, %v527
    %529 = vmatprep.subr.mxu0 %v528
    %v530 = vand.u32 %v124, 4294901760
    %v531 = vsub.f32 %v124, %v530
    %532 = vmatpush1.msra.mxu0 %v531
    %v533 = vand.u32 %v128, 4294901760
    %v534 = vsub.f32 %v128, %v533
    %535 = vmatprep.subr.mxu0 %v534
    %v536 = vand.u32 %v127, 4294901760
    %v537 = vsub.f32 %v127, %v536
    %538 = vmatpush1.msra.mxu0 %v537
    %v539 = vand.u32 %v131, 4294901760
    %v540 = vsub.f32 %v131, %v539
    %541 = vmatprep.subr.mxu0 %v540
    %v542 = vand.u32 %v130, 4294901760
    %v543 = vsub.f32 %v130, %v542
    %544 = vmatpush1.msra.mxu0 %v543
    %v545 = vand.u32 %v134, 4294901760
    %v546 = vsub.f32 %v134, %v545
    %547 = vmatprep.subr.mxu0 %v546
    %v548 = vand.u32 %v133, 4294901760
    %v549 = vsub.f32 %v133, %v548
    %550 = vmatpush1.msra.mxu0 %v549
    %v551 = vand.u32 %v137, 4294901760
    %v552 = vsub.f32 %v137, %v551
    %553 = vmatprep.subr.mxu0 %v552
    %v554 = vand.u32 %v136, 4294901760
    %v555 = vsub.f32 %v136, %v554
    %556 = vmatpush1.msra.mxu0 %v555
    %v557 = vand.u32 %v140, 4294901760
    %v558 = vsub.f32 %v140, %v557
    %559 = vmatprep.subr.mxu0 %v558
    %v560 = vand.u32 %v139, 4294901760
    %v561 = vsub.f32 %v139, %v560
    %562 = vmatpush1.msra.mxu0 %v561
    %v563 = vand.u32 %v143, 4294901760
    %v564 = vsub.f32 %v143, %v563
    %565 = vmatprep.subr.mxu0 %v564
    %v566 = vand.u32 %v142, 4294901760
    %v567 = vsub.f32 %v142, %v566
    %568 = vmatpush1.msra.mxu0 %v567
    %v569 = vand.u32 %v146, 4294901760
    %v570 = vsub.f32 %v146, %v569
    %571 = vmatprep.subr.mxu0 %v570
    %v572 = vand.u32 %v145, 4294901760
    %v573 = vsub.f32 %v145, %v572
    %574 = vmatpush1.msra.mxu0 %v573
    %v575 = vand.u32 %v149, 4294901760
    %v576 = vsub.f32 %v149, %v575
    %577 = vmatprep.subr.mxu0 %v576
    %v578 = vand.u32 %v148, 4294901760
    %v579 = vsub.f32 %v148, %v578
    %580 = vmatpush1.msra.mxu0 %v579
    %v581 = vand.u32 %v152, 4294901760
    %v582 = vsub.f32 %v152, %v581
    %583 = vmatprep.subr.mxu0 %v582
    %v584 = vand.u32 %v151, 4294901760
    %v585 = vsub.f32 %v151, %v584
    %586 = vmatpush1.msra.mxu0 %v585
    %v587 = vand.u32 %v155, 4294901760
    %v588 = vsub.f32 %v155, %v587
    %589 = vmatprep.subr.mxu0 %v588
    %v590 = vand.u32 %v154, 4294901760
    %v591 = vsub.f32 %v154, %v590
    %592 = vmatpush1.msra.mxu0 %v591
    %593 = vmatprep.subr.mxu0 0.0
    %594 = vmatpush1.msra.mxu0 0.0
    %595 = vmatprep.subr.mxu0 0.0
    %596 = vmatpush1.msra.mxu0 0.0
    %597 = vmatprep.subr.mxu0 0.0
    %598 = vmatpush1.msra.mxu0 0.0
    %599 = vmatprep.subr.mxu0 0.0
    %600 = vmatpush1.msra.mxu0 0.0
    %601 = vmatprep.subr.mxu0 0.0
    %602 = vmatpush1.msra.mxu0 0.0
    %603 = vmatprep.subr.mxu0 0.0
    %604 = vmatpush1.msra.mxu0 0.0
    %605 = vmatprep.subr.mxu0 0.0
    %606 = vmatpush1.msra.mxu0 0.0
    %607 = vmatprep.subr.mxu0 0.0
    %608 = vmatpush1.msra.mxu0 0.0
    %609 = vmatprep.subr.mxu0 0.0
    %610 = vmatpush1.msra.mxu0 0.0
    %611 = vmatprep.subr.mxu0 0.0
    %612 = vmatpush1.msra.mxu0 0.0
    %613 = vmatprep.subr.mxu0 0.0
    %614 = vmatpush1.msra.mxu0 0.0
    %615 = vmatprep.subr.mxu0 0.0
    %616 = vmatpush1.msra.mxu0 0.0
    %617 = vmatprep.subr.mxu0 0.0
    %618 = vmatpush1.msra.mxu0 0.0
    %619 = vmatprep.subr.mxu0 0.0
    %620 = vmatpush1.msra.mxu0 0.0
    %621 = vmatprep.subr.mxu0 0.0
    %622 = vmatpush1.msra.mxu0 0.0
    %623 = vmatprep.subr.mxu0 0.0
    %624 = vmatpush1.msra.mxu0 0.0
    %625 = vmatprep.mubr.f32.mxu0 0.0
    %v626 = vand.u32 %v108, 4294901760
    %v627 = vsub.f32 %v108, %v626
    %628 = vmatmul.mubr.f32.gmra.mrb[0].mxu0 %v627
    %v629 = vpop.f32.mrb[0].mxu0
    %v630 = vadd.f32 %v493, %v629
    %v631 = vpop.f32.mrb[0].mxu0
    %v632 = vadd.f32 %v495, %v631
    %633 = vdwg.mxu0
    %v634 = vand.u32 %v110, 4294901760
    %635 = vmatprep.subr.mxu0 %v634
    %v636 = vand.u32 %v109, 4294901760
    %637 = vmatpush1.msra.mxu0 %v636
    %v638 = vand.u32 %v113, 4294901760
    %639 = vmatprep.subr.mxu0 %v638
    %v640 = vand.u32 %v112, 4294901760
    %641 = vmatpush1.msra.mxu0 %v640
    %v642 = vand.u32 %v116, 4294901760
    %643 = vmatprep.subr.mxu0 %v642
    %v644 = vand.u32 %v115, 4294901760
    %645 = vmatpush1.msra.mxu0 %v644
    %v646 = vand.u32 %v119, 4294901760
    %647 = vmatprep.subr.mxu0 %v646
    %v648 = vand.u32 %v118, 4294901760
    %649 = vmatpush1.msra.mxu0 %v648
    %v650 = vand.u32 %v122, 4294901760
    %651 = vmatprep.subr.mxu0 %v650
    %v652 = vand.u32 %v121, 4294901760
    %653 = vmatpush1.msra.mxu0 %v652
    %v654 = vand.u32 %v125, 4294901760
    %655 = vmatprep.subr.mxu0 %v654
    %v656 = vand.u32 %v124, 4294901760
    %657 = vmatpush1.msra.mxu0 %v656
    %v658 = vand.u32 %v128, 4294901760
    %659 = vmatprep.subr.mxu0 %v658
    %v660 = vand.u32 %v127, 4294901760
    %661 = vmatpush1.msra.mxu0 %v660
    %v662 = vand.u32 %v131, 4294901760
    %663 = vmatprep.subr.mxu0 %v662
    %v664 = vand.u32 %v130, 4294901760
    %665 = vmatpush1.msra.mxu0 %v664
    %v666 = vand.u32 %v134, 4294901760
    %667 = vmatprep.subr.mxu0 %v666
    %v668 = vand.u32 %v133, 4294901760
    %669 = vmatpush1.msra.mxu0 %v668
    %v670 = vand.u32 %v137, 4294901760
    %671 = vmatprep.subr.mxu0 %v670
    %v672 = vand.u32 %v136, 4294901760
    %673 = vmatpush1.msra.mxu0 %v672
    %v674 = vand.u32 %v140, 4294901760
    %675 = vmatprep.subr.mxu0 %v674
    %v676 = vand.u32 %v139, 4294901760
    %677 = vmatpush1.msra.mxu0 %v676
    %v678 = vand.u32 %v143, 4294901760
    %679 = vmatprep.subr.mxu0 %v678
    %v680 = vand.u32 %v142, 4294901760
    %681 = vmatpush1.msra.mxu0 %v680
    %v682 = vand.u32 %v146, 4294901760
    %683 = vmatprep.subr.mxu0 %v682
    %v684 = vand.u32 %v145, 4294901760
    %685 = vmatpush1.msra.mxu0 %v684
    %v686 = vand.u32 %v149, 4294901760
    %687 = vmatprep.subr.mxu0 %v686
    %v688 = vand.u32 %v148, 4294901760
    %689 = vmatpush1.msra.mxu0 %v688
    %v690 = vand.u32 %v152, 4294901760
    %691 = vmatprep.subr.mxu0 %v690
    %v692 = vand.u32 %v151, 4294901760
    %693 = vmatpush1.msra.mxu0 %v692
    %v694 = vand.u32 %v155, 4294901760
    %695 = vmatprep.subr.mxu0 %v694
    %v696 = vand.u32 %v154, 4294901760
    %697 = vmatpush1.msra.mxu0 %v696
    %698 = vmatprep.subr.mxu0 0.0
    %699 = vmatpush1.msra.mxu0 0.0
    %700 = vmatprep.subr.mxu0 0.0
    %701 = vmatpush1.msra.mxu0 0.0
    %702 = vmatprep.subr.mxu0 0.0
    %703 = vmatpush1.msra.mxu0 0.0
    %704 = vmatprep.subr.mxu0 0.0
    %705 = vmatpush1.msra.mxu0 0.0
    %706 = vmatprep.subr.mxu0 0.0
    %707 = vmatpush1.msra.mxu0 0.0
    %708 = vmatprep.subr.mxu0 0.0
    %709 = vmatpush1.msra.mxu0 0.0
    %710 = vmatprep.subr.mxu0 0.0
    %711 = vmatpush1.msra.mxu0 0.0
    %712 = vmatprep.subr.mxu0 0.0
    %713 = vmatpush1.msra.mxu0 0.0
    %714 = vmatprep.subr.mxu0 0.0
    %715 = vmatpush1.msra.mxu0 0.0
    %716 = vmatprep.subr.mxu0 0.0
    %717 = vmatpush1.msra.mxu0 0.0
    %718 = vmatprep.subr.mxu0 0.0
    %719 = vmatpush1.msra.mxu0 0.0
    %720 = vmatprep.subr.mxu0 0.0
    %721 = vmatpush1.msra.mxu0 0.0
    %722 = vmatprep.subr.mxu0 0.0
    %723 = vmatpush1.msra.mxu0 0.0
    %724 = vmatprep.subr.mxu0 0.0
    %725 = vmatpush1.msra.mxu0 0.0
    %726 = vmatprep.subr.mxu0 0.0
    %727 = vmatpush1.msra.mxu0 0.0
    %728 = vmatprep.subr.mxu0 0.0
    %729 = vmatpush1.msra.mxu0 0.0
    %730 = vmatprep.mubr.f32.mxu0 0.0
    %v731 = vand.u32 %v108, 4294901760
    %v732 = vsub.f32 %v108, %v731
    %v733 = vand.u32 %v732, 4294901760
    %734 = vmatmul.mubr.f32.gmra.mrb[0].mxu0 %v733
    %v735 = vpop.f32.mrb[0].mxu0
    %v736 = vadd.f32 %v630, %v735
    %v737 = vpop.f32.mrb[0].mxu0
    %v738 = vadd.f32 %v632, %v737
    %739 = vdwg.mxu0
    %v740 = vand.u32 %v110, 4294901760
    %v741 = vsub.f32 %v110, %v740
    %v742 = vand.u32 %v741, 4294901760
    %743 = vmatprep.subr.mxu0 %v742
    %v744 = vand.u32 %v109, 4294901760
    %v745 = vsub.f32 %v109, %v744
    %v746 = vand.u32 %v745, 4294901760
    %747 = vmatpush1.msra.mxu0 %v746
    %v748 = vand.u32 %v113, 4294901760
    %v749 = vsub.f32 %v113, %v748
    %v750 = vand.u32 %v749, 4294901760
    %751 = vmatprep.subr.mxu0 %v750
    %v752 = vand.u32 %v112, 4294901760
    %v753 = vsub.f32 %v112, %v752
    %v754 = vand.u32 %v753, 4294901760
    %755 = vmatpush1.msra.mxu0 %v754
    %v756 = vand.u32 %v116, 4294901760
    %v757 = vsub.f32 %v116, %v756
    %v758 = vand.u32 %v757, 4294901760
    %759 = vmatprep.subr.mxu0 %v758
    %v760 = vand.u32 %v115, 4294901760
    %v761 = vsub.f32 %v115, %v760
    %v762 = vand.u32 %v761, 4294901760
    %763 = vmatpush1.msra.mxu0 %v762
    %v764 = vand.u32 %v119, 4294901760
    %v765 = vsub.f32 %v119, %v764
    %v766 = vand.u32 %v765, 4294901760
    %767 = vmatprep.subr.mxu0 %v766
    %v768 = vand.u32 %v118, 4294901760
    %v769 = vsub.f32 %v118, %v768
    %v770 = vand.u32 %v769, 4294901760
    %771 = vmatpush1.msra.mxu0 %v770
    %v772 = vand.u32 %v122, 4294901760
    %v773 = vsub.f32 %v122, %v772
    %v774 = vand.u32 %v773, 4294901760
    %775 = vmatprep.subr.mxu0 %v774
    %v776 = vand.u32 %v121, 4294901760
    %v777 = vsub.f32 %v121, %v776
    %v778 = vand.u32 %v777, 4294901760
    %779 = vmatpush1.msra.mxu0 %v778
    %v780 = vand.u32 %v125, 4294901760
    %v781 = vsub.f32 %v125, %v780
    %v782 = vand.u32 %v781, 4294901760
    %783 = vmatprep.subr.mxu0 %v782
    %v784 = vand.u32 %v124, 4294901760
    %v785 = vsub.f32 %v124, %v784
    %v786 = vand.u32 %v785, 4294901760
    %787 = vmatpush1.msra.mxu0 %v786
    %v788 = vand.u32 %v128, 4294901760
    %v789 = vsub.f32 %v128, %v788
    %v790 = vand.u32 %v789, 4294901760
    %791 = vmatprep.subr.mxu0 %v790
    %v792 = vand.u32 %v127, 4294901760
    %v793 = vsub.f32 %v127, %v792
    %v794 = vand.u32 %v793, 4294901760
    %795 = vmatpush1.msra.mxu0 %v794
    %v796 = vand.u32 %v131, 4294901760
    %v797 = vsub.f32 %v131, %v796
    %v798 = vand.u32 %v797, 4294901760
    %799 = vmatprep.subr.mxu0 %v798
    %v800 = vand.u32 %v130, 4294901760
    %v801 = vsub.f32 %v130, %v800
    %v802 = vand.u32 %v801, 4294901760
    %803 = vmatpush1.msra.mxu0 %v802
    %v804 = vand.u32 %v134, 4294901760
    %v805 = vsub.f32 %v134, %v804
    %v806 = vand.u32 %v805, 4294901760
    %807 = vmatprep.subr.mxu0 %v806
    %v808 = vand.u32 %v133, 4294901760
    %v809 = vsub.f32 %v133, %v808
    %v810 = vand.u32 %v809, 4294901760
    %811 = vmatpush1.msra.mxu0 %v810
    %v812 = vand.u32 %v137, 4294901760
    %v813 = vsub.f32 %v137, %v812
    %v814 = vand.u32 %v813, 4294901760
    %815 = vmatprep.subr.mxu0 %v814
    %v816 = vand.u32 %v136, 4294901760
    %v817 = vsub.f32 %v136, %v816
    %v818 = vand.u32 %v817, 4294901760
    %819 = vmatpush1.msra.mxu0 %v818
    %v820 = vand.u32 %v140, 4294901760
    %v821 = vsub.f32 %v140, %v820
    %v822 = vand.u32 %v821, 4294901760
    %823 = vmatprep.subr.mxu0 %v822
    %v824 = vand.u32 %v139, 4294901760
    %v825 = vsub.f32 %v139, %v824
    %v826 = vand.u32 %v825, 4294901760
    %827 = vmatpush1.msra.mxu0 %v826
    %v828 = vand.u32 %v143, 4294901760
    %v829 = vsub.f32 %v143, %v828
    %v830 = vand.u32 %v829, 4294901760
    %831 = vmatprep.subr.mxu0 %v830
    %v832 = vand.u32 %v142, 4294901760
    %v833 = vsub.f32 %v142, %v832
    %v834 = vand.u32 %v833, 4294901760
    %835 = vmatpush1.msra.mxu0 %v834
    %v836 = vand.u32 %v146, 4294901760
    %v837 = vsub.f32 %v146, %v836
    %v838 = vand.u32 %v837, 4294901760
    %839 = vmatprep.subr.mxu0 %v838
    %v840 = vand.u32 %v145, 4294901760
    %v841 = vsub.f32 %v145, %v840
    %v842 = vand.u32 %v841, 4294901760
    %843 = vmatpush1.msra.mxu0 %v842
    %v844 = vand.u32 %v149, 4294901760
    %v845 = vsub.f32 %v149, %v844
    %v846 = vand.u32 %v845, 4294901760
    %847 = vmatprep.subr.mxu0 %v846
    %v848 = vand.u32 %v148, 4294901760
    %v849 = vsub.f32 %v148, %v848
    %v850 = vand.u32 %v849, 4294901760
    %851 = vmatpush1.msra.mxu0 %v850
    %v852 = vand.u32 %v152, 4294901760
    %v853 = vsub.f32 %v152, %v852
    %v854 = vand.u32 %v853, 4294901760
    %855 = vmatprep.subr.mxu0 %v854
    %v856 = vand.u32 %v151, 4294901760
    %v857 = vsub.f32 %v151, %v856
    %v858 = vand.u32 %v857, 4294901760
    %859 = vmatpush1.msra.mxu0 %v858
    %v860 = vand.u32 %v155, 4294901760
    %v861 = vsub.f32 %v155, %v860
    %v862 = vand.u32 %v861, 4294901760
    %863 = vmatprep.subr.mxu0 %v862
    %v864 = vand.u32 %v154, 4294901760
    %v865 = vsub.f32 %v154, %v864
    %v866 = vand.u32 %v865, 4294901760
    %867 = vmatpush1.msra.mxu0 %v866
    %868 = vmatprep.subr.mxu0 0.0
    %869 = vmatpush1.msra.mxu0 0.0
    %870 = vmatprep.subr.mxu0 0.0
    %871 = vmatpush1.msra.mxu0 0.0
    %872 = vmatprep.subr.mxu0 0.0
    %873 = vmatpush1.msra.mxu0 0.0
    %874 = vmatprep.subr.mxu0 0.0
    %875 = vmatpush1.msra.mxu0 0.0
    %876 = vmatprep.subr.mxu0 0.0
    %877 = vmatpush1.msra.mxu0 0.0
    %878 = vmatprep.subr.mxu0 0.0
    %879 = vmatpush1.msra.mxu0 0.0
    %880 = vmatprep.subr.mxu0 0.0
    %881 = vmatpush1.msra.mxu0 0.0
    %882 = vmatprep.subr.mxu0 0.0
    %883 = vmatpush1.msra.mxu0 0.0
    %884 = vmatprep.subr.mxu0 0.0
    %885 = vmatpush1.msra.mxu0 0.0
    %886 = vmatprep.subr.mxu0 0.0
    %887 = vmatpush1.msra.mxu0 0.0
    %888 = vmatprep.subr.mxu0 0.0
    %889 = vmatpush1.msra.mxu0 0.0
    %890 = vmatprep.subr.mxu0 0.0
    %891 = vmatpush1.msra.mxu0 0.0
    %892 = vmatprep.subr.mxu0 0.0
    %893 = vmatpush1.msra.mxu0 0.0
    %894 = vmatprep.subr.mxu0 0.0
    %895 = vmatpush1.msra.mxu0 0.0
    %896 = vmatprep.subr.mxu0 0.0
    %897 = vmatpush1.msra.mxu0 0.0
    %898 = vmatprep.subr.mxu0 0.0
    %899 = vmatpush1.msra.mxu0 0.0
    %900 = vmatprep.mubr.f32.mxu0 0.0
    %v901 = vand.u32 %v108, 4294901760
    %902 = vmatmul.mubr.f32.gmra.mrb[0].mxu0 %v901
    %v903 = vpop.f32.mrb[0].mxu0
    %v904 = vadd.f32 %v736, %v903
    %v905 = vpop.f32.mrb[0].mxu0
    %v906 = vadd.f32 %v738, %v905
    %907 = vdwg.mxu0
    %v908 = vand.u32 %v110, 4294901760
    %909 = vmatprep.subr.mxu0 %v908
    %v910 = vand.u32 %v109, 4294901760
    %911 = vmatpush1.msra.mxu0 %v910
    %v912 = vand.u32 %v113, 4294901760
    %913 = vmatprep.subr.mxu0 %v912
    %v914 = vand.u32 %v112, 4294901760
    %915 = vmatpush1.msra.mxu0 %v914
    %v916 = vand.u32 %v116, 4294901760
    %917 = vmatprep.subr.mxu0 %v916
    %v918 = vand.u32 %v115, 4294901760
    %919 = vmatpush1.msra.mxu0 %v918
    %v920 = vand.u32 %v119, 4294901760
    %921 = vmatprep.subr.mxu0 %v920
    %v922 = vand.u32 %v118, 4294901760
    %923 = vmatpush1.msra.mxu0 %v922
    %v924 = vand.u32 %v122, 4294901760
    %925 = vmatprep.subr.mxu0 %v924
    %v926 = vand.u32 %v121, 4294901760
    %927 = vmatpush1.msra.mxu0 %v926
    %v928 = vand.u32 %v125, 4294901760
    %929 = vmatprep.subr.mxu0 %v928
    %v930 = vand.u32 %v124, 4294901760
    %931 = vmatpush1.msra.mxu0 %v930
    %v932 = vand.u32 %v128, 4294901760
    %933 = vmatprep.subr.mxu0 %v932
    %v934 = vand.u32 %v127, 4294901760
    %935 = vmatpush1.msra.mxu0 %v934
    %v936 = vand.u32 %v131, 4294901760
    %937 = vmatprep.subr.mxu0 %v936
    %v938 = vand.u32 %v130, 4294901760
    %939 = vmatpush1.msra.mxu0 %v938
    %v940 = vand.u32 %v134, 4294901760
    %941 = vmatprep.subr.mxu0 %v940
    %v942 = vand.u32 %v133, 4294901760
    %943 = vmatpush1.msra.mxu0 %v942
    %v944 = vand.u32 %v137, 4294901760
    %945 = vmatprep.subr.mxu0 %v944
    %v946 = vand.u32 %v136, 4294901760
    %947 = vmatpush1.msra.mxu0 %v946
    %v948 = vand.u32 %v140, 4294901760
    %949 = vmatprep.subr.mxu0 %v948
    %v950 = vand.u32 %v139, 4294901760
    %951 = vmatpush1.msra.mxu0 %v950
    %v952 = vand.u32 %v143, 4294901760
    %953 = vmatprep.subr.mxu0 %v952
    %v954 = vand.u32 %v142, 4294901760
    %955 = vmatpush1.msra.mxu0 %v954
    %v956 = vand.u32 %v146, 4294901760
    %957 = vmatprep.subr.mxu0 %v956
    %v958 = vand.u32 %v145, 4294901760
    %959 = vmatpush1.msra.mxu0 %v958
    %v960 = vand.u32 %v149, 4294901760
    %961 = vmatprep.subr.mxu0 %v960
    %v962 = vand.u32 %v148, 4294901760
    %963 = vmatpush1.msra.mxu0 %v962
    %v964 = vand.u32 %v152, 4294901760
    %965 = vmatprep.subr.mxu0 %v964
    %v966 = vand.u32 %v151, 4294901760
    %967 = vmatpush1.msra.mxu0 %v966
    %v968 = vand.u32 %v155, 4294901760
    %969 = vmatprep.subr.mxu0 %v968
    %v970 = vand.u32 %v154, 4294901760
    %971 = vmatpush1.msra.mxu0 %v970
    %972 = vmatprep.subr.mxu0 0.0
    %973 = vmatpush1.msra.mxu0 0.0
    %974 = vmatprep.subr.mxu0 0.0
    %975 = vmatpush1.msra.mxu0 0.0
    %976 = vmatprep.subr.mxu0 0.0
    %977 = vmatpush1.msra.mxu0 0.0
    %978 = vmatprep.subr.mxu0 0.0
    %979 = vmatpush1.msra.mxu0 0.0
    %980 = vmatprep.subr.mxu0 0.0
    %981 = vmatpush1.msra.mxu0 0.0
    %982 = vmatprep.subr.mxu0 0.0
    %983 = vmatpush1.msra.mxu0 0.0
    %984 = vmatprep.subr.mxu0 0.0
    %985 = vmatpush1.msra.mxu0 0.0
    %986 = vmatprep.subr.mxu0 0.0
    %987 = vmatpush1.msra.mxu0 0.0
    %988 = vmatprep.subr.mxu0 0.0
    %989 = vmatpush1.msra.mxu0 0.0
    %990 = vmatprep.subr.mxu0 0.0
    %991 = vmatpush1.msra.mxu0 0.0
    %992 = vmatprep.subr.mxu0 0.0
    %993 = vmatpush1.msra.mxu0 0.0
    %994 = vmatprep.subr.mxu0 0.0
    %995 = vmatpush1.msra.mxu0 0.0
    %996 = vmatprep.subr.mxu0 0.0
    %997 = vmatpush1.msra.mxu0 0.0
    %998 = vmatprep.subr.mxu0 0.0
    %999 = vmatpush1.msra.mxu0 0.0
    %1000 = vmatprep.subr.mxu0 0.0
    %1001 = vmatpush1.msra.mxu0 0.0
    %1002 = vmatprep.subr.mxu0 0.0
    %1003 = vmatpush1.msra.mxu0 0.0
    %1004 = vmatprep.mubr.f32.mxu0 0.0
    %v1005 = vand.u32 %v108, 4294901760
    %1006 = vmatmul.mubr.f32.gmra.mrb[0].mxu0 %v1005
    %v1007 = vpop.f32.mrb[0].mxu0
    %v1008 = vadd.f32 %v904, %v1007
    %v1009 = vpop.f32.mrb[0].mxu0
    %v1010 = vadd.f32 %v906, %v1009
    %1011 = vdwg.mxu0
    %1012 = vmatprep.subr.mxu0 0.0
    %v1013 = vand.u32 %v111, 4294901760
    %1014 = vmatpush1.msra.mxu0 %v1013
    %1015 = vmatprep.subr.mxu0 0.0
    %v1016 = vand.u32 %v114, 4294901760
    %1017 = vmatpush1.msra.mxu0 %v1016
    %1018 = vmatprep.subr.mxu0 0.0
    %v1019 = vand.u32 %v117, 4294901760
    %1020 = vmatpush1.msra.mxu0 %v1019
    %1021 = vmatprep.subr.mxu0 0.0
    %v1022 = vand.u32 %v120, 4294901760
    %1023 = vmatpush1.msra.mxu0 %v1022
    %1024 = vmatprep.subr.mxu0 0.0
    %v1025 = vand.u32 %v123, 4294901760
    %1026 = vmatpush1.msra.mxu0 %v1025
    %1027 = vmatprep.subr.mxu0 0.0
    %v1028 = vand.u32 %v126, 4294901760
    %1029 = vmatpush1.msra.mxu0 %v1028
    %1030 = vmatprep.subr.mxu0 0.0
    %v1031 = vand.u32 %v129, 4294901760
    %1032 = vmatpush1.msra.mxu0 %v1031
    %1033 = vmatprep.subr.mxu0 0.0
    %v1034 = vand.u32 %v132, 4294901760
    %1035 = vmatpush1.msra.mxu0 %v1034
    %1036 = vmatprep.subr.mxu0 0.0
    %v1037 = vand.u32 %v135, 4294901760
    %1038 = vmatpush1.msra.mxu0 %v1037
    %1039 = vmatprep.subr.mxu0 0.0
    %v1040 = vand.u32 %v138, 4294901760
    %1041 = vmatpush1.msra.mxu0 %v1040
    %1042 = vmatprep.subr.mxu0 0.0
    %v1043 = vand.u32 %v141, 4294901760
    %1044 = vmatpush1.msra.mxu0 %v1043
    %1045 = vmatprep.subr.mxu0 0.0
    %v1046 = vand.u32 %v144, 4294901760
    %1047 = vmatpush1.msra.mxu0 %v1046
    %1048 = vmatprep.subr.mxu0 0.0
    %v1049 = vand.u32 %v147, 4294901760
    %1050 = vmatpush1.msra.mxu0 %v1049
    %1051 = vmatprep.subr.mxu0 0.0
    %v1052 = vand.u32 %v150, 4294901760
    %1053 = vmatpush1.msra.mxu0 %v1052
    %1054 = vmatprep.subr.mxu0 0.0
    %v1055 = vand.u32 %v153, 4294901760
    %1056 = vmatpush1.msra.mxu0 %v1055
    %1057 = vmatprep.subr.mxu0 0.0
    %v1058 = vand.u32 %v156, 4294901760
    %1059 = vmatpush1.msra.mxu0 %v1058
    %1060 = vmatprep.subr.mxu0 0.0
    %1061 = vmatpush1.msra.mxu0 0.0
    %1062 = vmatprep.subr.mxu0 0.0
    %1063 = vmatpush1.msra.mxu0 0.0
    %1064 = vmatprep.subr.mxu0 0.0
    %1065 = vmatpush1.msra.mxu0 0.0
    %1066 = vmatprep.subr.mxu0 0.0
    %1067 = vmatpush1.msra.mxu0 0.0
    %1068 = vmatprep.subr.mxu0 0.0
    %1069 = vmatpush1.msra.mxu0 0.0
    %1070 = vmatprep.subr.mxu0 0.0
    %1071 = vmatpush1.msra.mxu0 0.0
    %1072 = vmatprep.subr.mxu0 0.0
    %1073 = vmatpush1.msra.mxu0 0.0
    %1074 = vmatprep.subr.mxu0 0.0
    %1075 = vmatpush1.msra.mxu0 0.0
    %1076 = vmatprep.subr.mxu0 0.0
    %1077 = vmatpush1.msra.mxu0 0.0
    %1078 = vmatprep.subr.mxu0 0.0
    %1079 = vmatpush1.msra.mxu0 0.0
    %1080 = vmatprep.subr.mxu0 0.0
    %1081 = vmatpush1.msra.mxu0 0.0
    %1082 = vmatprep.subr.mxu0 0.0
    %1083 = vmatpush1.msra.mxu0 0.0
    %1084 = vmatprep.subr.mxu0 0.0
    %1085 = vmatpush1.msra.mxu0 0.0
    %1086 = vmatprep.subr.mxu0 0.0
    %1087 = vmatpush1.msra.mxu0 0.0
    %1088 = vmatprep.subr.mxu0 0.0
    %1089 = vmatpush1.msra.mxu0 0.0
    %1090 = vmatprep.subr.mxu0 0.0
    %1091 = vmatpush1.msra.mxu0 0.0
    %1092 = vmatprep.mubr.f32.mxu0 0.0
    %v1093 = vand.u32 %v108, 4294901760
    %v1094 = vsub.f32 %v108, %v1093
    %v1095 = vand.u32 %v1094, 4294901760
    %v1096 = vsub.f32 %v1094, %v1095
    %v1097 = vand.u32 %v1096, 4294901760
    %1098 = vmatmul.mubr.f32.gmra.mrb[0].mxu0 %v1097
    %v1099 = vpop.f32.mrb[0].mxu0
    %v1100 = vadd.f32 0.0, %v1099
    %v1101 = vpop.f32.mrb[0].mxu0
    %1102 = vdwg.mxu0
    %1103 = vmatprep.subr.mxu0 0.0
    %v1104 = vand.u32 %v111, 4294901760
    %v1105 = vsub.f32 %v111, %v1104
    %v1106 = vand.u32 %v1105, 4294901760
    %v1107 = vsub.f32 %v1105, %v1106
    %v1108 = vand.u32 %v1107, 4294901760
    %1109 = vmatpush1.msra.mxu0 %v1108
    %1110 = vmatprep.subr.mxu0 0.0
    %v1111 = vand.u32 %v114, 4294901760
    %v1112 = vsub.f32 %v114, %v1111
    %v1113 = vand.u32 %v1112, 4294901760
    %v1114 = vsub.f32 %v1112, %v1113
    %v1115 = vand.u32 %v1114, 4294901760
    %1116 = vmatpush1.msra.mxu0 %v1115
    %1117 = vmatprep.subr.mxu0 0.0
    %v1118 = vand.u32 %v117, 4294901760
    %v1119 = vsub.f32 %v117, %v1118
    %v1120 = vand.u32 %v1119, 4294901760
    %v1121 = vsub.f32 %v1119, %v1120
    %v1122 = vand.u32 %v1121, 4294901760
    %1123 = vmatpush1.msra.mxu0 %v1122
    %1124 = vmatprep.subr.mxu0 0.0
    %v1125 = vand.u32 %v120, 4294901760
    %v1126 = vsub.f32 %v120, %v1125
    %v1127 = vand.u32 %v1126, 4294901760
    %v1128 = vsub.f32 %v1126, %v1127
    %v1129 = vand.u32 %v1128, 4294901760
    %1130 = vmatpush1.msra.mxu0 %v1129
    %1131 = vmatprep.subr.mxu0 0.0
    %v1132 = vand.u32 %v123, 4294901760
    %v1133 = vsub.f32 %v123, %v1132
    %v1134 = vand.u32 %v1133, 4294901760
    %v1135 = vsub.f32 %v1133, %v1134
    %v1136 = vand.u32 %v1135, 4294901760
    %1137 = vmatpush1.msra.mxu0 %v1136
    %1138 = vmatprep.subr.mxu0 0.0
    %v1139 = vand.u32 %v126, 4294901760
    %v1140 = vsub.f32 %v126, %v1139
    %v1141 = vand.u32 %v1140, 4294901760
    %v1142 = vsub.f32 %v1140, %v1141
    %v1143 = vand.u32 %v1142, 4294901760
    %1144 = vmatpush1.msra.mxu0 %v1143
    %1145 = vmatprep.subr.mxu0 0.0
    %v1146 = vand.u32 %v129, 4294901760
    %v1147 = vsub.f32 %v129, %v1146
    %v1148 = vand.u32 %v1147, 4294901760
    %v1149 = vsub.f32 %v1147, %v1148
    %v1150 = vand.u32 %v1149, 4294901760
    %1151 = vmatpush1.msra.mxu0 %v1150
    %1152 = vmatprep.subr.mxu0 0.0
    %v1153 = vand.u32 %v132, 4294901760
    %v1154 = vsub.f32 %v132, %v1153
    %v1155 = vand.u32 %v1154, 4294901760
    %v1156 = vsub.f32 %v1154, %v1155
    %v1157 = vand.u32 %v1156, 4294901760
    %1158 = vmatpush1.msra.mxu0 %v1157
    %1159 = vmatprep.subr.mxu0 0.0
    %v1160 = vand.u32 %v135, 4294901760
    %v1161 = vsub.f32 %v135, %v1160
    %v1162 = vand.u32 %v1161, 4294901760
    %v1163 = vsub.f32 %v1161, %v1162
    %v1164 = vand.u32 %v1163, 4294901760
    %1165 = vmatpush1.msra.mxu0 %v1164
    %1166 = vmatprep.subr.mxu0 0.0
    %v1167 = vand.u32 %v138, 4294901760
    %v1168 = vsub.f32 %v138, %v1167
    %v1169 = vand.u32 %v1168, 4294901760
    %v1170 = vsub.f32 %v1168, %v1169
    %v1171 = vand.u32 %v1170, 4294901760
    %1172 = vmatpush1.msra.mxu0 %v1171
    %1173 = vmatprep.subr.mxu0 0.0
    %v1174 = vand.u32 %v141, 4294901760
    %v1175 = vsub.f32 %v141, %v1174
    %v1176 = vand.u32 %v1175, 4294901760
    %v1177 = vsub.f32 %v1175, %v1176
    %v1178 = vand.u32 %v1177, 4294901760
    %1179 = vmatpush1.msra.mxu0 %v1178
    %1180 = vmatprep.subr.mxu0 0.0
    %v1181 = vand.u32 %v144, 4294901760
    %v1182 = vsub.f32 %v144, %v1181
    %v1183 = vand.u32 %v1182, 4294901760
    %v1184 = vsub.f32 %v1182, %v1183
    %v1185 = vand.u32 %v1184, 4294901760
    %1186 = vmatpush1.msra.mxu0 %v1185
    %1187 = vmatprep.subr.mxu0 0.0
    %v1188 = vand.u32 %v147, 4294901760
    %v1189 = vsub.f32 %v147, %v1188
    %v1190 = vand.u32 %v1189, 4294901760
    %v1191 = vsub.f32 %v1189, %v1190
    %v1192 = vand.u32 %v1191, 4294901760
    %1193 = vmatpush1.msra.mxu0 %v1192
    %1194 = vmatprep.subr.mxu0 0.0
    %v1195 = vand.u32 %v150, 4294901760
    %v1196 = vsub.f32 %v150, %v1195
    %v1197 = vand.u32 %v1196, 4294901760
    %v1198 = vsub.f32 %v1196, %v1197
    %v1199 = vand.u32 %v1198, 4294901760
    %1200 = vmatpush1.msra.mxu0 %v1199
    %1201 = vmatprep.subr.mxu0 0.0
    %v1202 = vand.u32 %v153, 4294901760
    %v1203 = vsub.f32 %v153, %v1202
    %v1204 = vand.u32 %v1203, 4294901760
    %v1205 = vsub.f32 %v1203, %v1204
    %v1206 = vand.u32 %v1205, 4294901760
    %1207 = vmatpush1.msra.mxu0 %v1206
    %1208 = vmatprep.subr.mxu0 0.0
    %v1209 = vand.u32 %v156, 4294901760
    %v1210 = vsub.f32 %v156, %v1209
    %v1211 = vand.u32 %v1210, 4294901760
    %v1212 = vsub.f32 %v1210, %v1211
    %v1213 = vand.u32 %v1212, 4294901760
    %1214 = vmatpush1.msra.mxu0 %v1213
    %1215 = vmatprep.subr.mxu0 0.0
    %1216 = vmatpush1.msra.mxu0 0.0
    %1217 = vmatprep.subr.mxu0 0.0
    %1218 = vmatpush1.msra.mxu0 0.0
    %1219 = vmatprep.subr.mxu0 0.0
    %1220 = vmatpush1.msra.mxu0 0.0
    %1221 = vmatprep.subr.mxu0 0.0
    %1222 = vmatpush1.msra.mxu0 0.0
    %1223 = vmatprep.subr.mxu0 0.0
    %1224 = vmatpush1.msra.mxu0 0.0
    %1225 = vmatprep.subr.mxu0 0.0
    %1226 = vmatpush1.msra.mxu0 0.0
    %1227 = vmatprep.subr.mxu0 0.0
    %1228 = vmatpush1.msra.mxu0 0.0
    %1229 = vmatprep.subr.mxu0 0.0
    %1230 = vmatpush1.msra.mxu0 0.0
    %1231 = vmatprep.subr.mxu0 0.0
    %1232 = vmatpush1.msra.mxu0 0.0
    %1233 = vmatprep.subr.mxu0 0.0
    %1234 = vmatpush1.msra.mxu0 0.0
    %1235 = vmatprep.subr.mxu0 0.0
    %1236 = vmatpush1.msra.mxu0 0.0
    %1237 = vmatprep.subr.mxu0 0.0
    %1238 = vmatpush1.msra.mxu0 0.0
    %1239 = vmatprep.subr.mxu0 0.0
    %1240 = vmatpush1.msra.mxu0 0.0
    %1241 = vmatprep.subr.mxu0 0.0
    %1242 = vmatpush1.msra.mxu0 0.0
    %1243 = vmatprep.subr.mxu0 0.0
    %1244 = vmatpush1.msra.mxu0 0.0
    %1245 = vmatprep.subr.mxu0 0.0
    %1246 = vmatpush1.msra.mxu0 0.0
    %1247 = vmatprep.mubr.f32.mxu0 0.0
    %v1248 = vand.u32 %v108, 4294901760
    %1249 = vmatmul.mubr.f32.gmra.mrb[0].mxu0 %v1248
    %v1250 = vpop.f32.mrb[0].mxu0
    %v1251 = vadd.f32 %v1100, %v1250
    %v1252 = vpop.f32.mrb[0].mxu0
    %1253 = vdwg.mxu0
    %1254 = vmatprep.subr.mxu0 0.0
    %v1255 = vand.u32 %v111, 4294901760
    %v1256 = vsub.f32 %v111, %v1255
    %1257 = vmatpush1.msra.mxu0 %v1256
    %1258 = vmatprep.subr.mxu0 0.0
    %v1259 = vand.u32 %v114, 4294901760
    %v1260 = vsub.f32 %v114, %v1259
    %1261 = vmatpush1.msra.mxu0 %v1260
    %1262 = vmatprep.subr.mxu0 0.0
    %v1263 = vand.u32 %v117, 4294901760
    %v1264 = vsub.f32 %v117, %v1263
    %1265 = vmatpush1.msra.mxu0 %v1264
    %1266 = vmatprep.subr.mxu0 0.0
    %v1267 = vand.u32 %v120, 4294901760
    %v1268 = vsub.f32 %v120, %v1267
    %1269 = vmatpush1.msra.mxu0 %v1268
    %1270 = vmatprep.subr.mxu0 0.0
    %v1271 = vand.u32 %v123, 4294901760
    %v1272 = vsub.f32 %v123, %v1271
    %1273 = vmatpush1.msra.mxu0 %v1272
    %1274 = vmatprep.subr.mxu0 0.0
    %v1275 = vand.u32 %v126, 4294901760
    %v1276 = vsub.f32 %v126, %v1275
    %1277 = vmatpush1.msra.mxu0 %v1276
    %1278 = vmatprep.subr.mxu0 0.0
    %v1279 = vand.u32 %v129, 4294901760
    %v1280 = vsub.f32 %v129, %v1279
    %1281 = vmatpush1.msra.mxu0 %v1280
    %1282 = vmatprep.subr.mxu0 0.0
    %v1283 = vand.u32 %v132, 4294901760
    %v1284 = vsub.f32 %v132, %v1283
    %1285 = vmatpush1.msra.mxu0 %v1284
    %1286 = vmatprep.subr.mxu0 0.0
    %v1287 = vand.u32 %v135, 4294901760
    %v1288 = vsub.f32 %v135, %v1287
    %1289 = vmatpush1.msra.mxu0 %v1288
    %1290 = vmatprep.subr.mxu0 0.0
    %v1291 = vand.u32 %v138, 4294901760
    %v1292 = vsub.f32 %v138, %v1291
    %1293 = vmatpush1.msra.mxu0 %v1292
    %1294 = vmatprep.subr.mxu0 0.0
    %v1295 = vand.u32 %v141, 4294901760
    %v1296 = vsub.f32 %v141, %v1295
    %1297 = vmatpush1.msra.mxu0 %v1296
    %1298 = vmatprep.subr.mxu0 0.0
    %v1299 = vand.u32 %v144, 4294901760
    %v1300 = vsub.f32 %v144, %v1299
    %1301 = vmatpush1.msra.mxu0 %v1300
    %1302 = vmatprep.subr.mxu0 0.0
    %v1303 = vand.u32 %v147, 4294901760
    %v1304 = vsub.f32 %v147, %v1303
    %1305 = vmatpush1.msra.mxu0 %v1304
    %1306 = vmatprep.subr.mxu0 0.0
    %v1307 = vand.u32 %v150, 4294901760
    %v1308 = vsub.f32 %v150, %v1307
    %1309 = vmatpush1.msra.mxu0 %v1308
    %1310 = vmatprep.subr.mxu0 0.0
    %v1311 = vand.u32 %v153, 4294901760
    %v1312 = vsub.f32 %v153, %v1311
    %1313 = vmatpush1.msra.mxu0 %v1312
    %1314 = vmatprep.subr.mxu0 0.0
    %v1315 = vand.u32 %v156, 4294901760
    %v1316 = vsub.f32 %v156, %v1315
    %1317 = vmatpush1.msra.mxu0 %v1316
    %1318 = vmatprep.subr.mxu0 0.0
    %1319 = vmatpush1.msra.mxu0 0.0
    %1320 = vmatprep.subr.mxu0 0.0
    %1321 = vmatpush1.msra.mxu0 0.0
    %1322 = vmatprep.subr.mxu0 0.0
    %1323 = vmatpush1.msra.mxu0 0.0
    %1324 = vmatprep.subr.mxu0 0.0
    %1325 = vmatpush1.msra.mxu0 0.0
    %1326 = vmatprep.subr.mxu0 0.0
    %1327 = vmatpush1.msra.mxu0 0.0
    %1328 = vmatprep.subr.mxu0 0.0
    %1329 = vmatpush1.msra.mxu0 0.0
    %1330 = vmatprep.subr.mxu0 0.0
    %1331 = vmatpush1.msra.mxu0 0.0
    %1332 = vmatprep.subr.mxu0 0.0
    %1333 = vmatpush1.msra.mxu0 0.0
    %1334 = vmatprep.subr.mxu0 0.0
    %1335 = vmatpush1.msra.mxu0 0.0
    %1336 = vmatprep.subr.mxu0 0.0
    %1337 = vmatpush1.msra.mxu0 0.0
    %1338 = vmatprep.subr.mxu0 0.0
    %1339 = vmatpush1.msra.mxu0 0.0
    %1340 = vmatprep.subr.mxu0 0.0
    %1341 = vmatpush1.msra.mxu0 0.0
    %1342 = vmatprep.subr.mxu0 0.0
    %1343 = vmatpush1.msra.mxu0 0.0
    %1344 = vmatprep.subr.mxu0 0.0
    %1345 = vmatpush1.msra.mxu0 0.0
    %1346 = vmatprep.subr.mxu0 0.0
    %1347 = vmatpush1.msra.mxu0 0.0
    %1348 = vmatprep.subr.mxu0 0.0
    %1349 = vmatpush1.msra.mxu0 0.0
    %1350 = vmatprep.mubr.f32.mxu0 0.0
    %v1351 = vand.u32 %v108, 4294901760
    %v1352 = vsub.f32 %v108, %v1351
    %1353 = vmatmul.mubr.f32.gmra.mrb[0].mxu0 %v1352
    %v1354 = vpop.f32.mrb[0].mxu0
    %v1355 = vadd.f32 %v1251, %v1354
    %v1356 = vpop.f32.mrb[0].mxu0
    %1357 = vdwg.mxu0
    %1358 = vmatprep.subr.mxu0 0.0
    %v1359 = vand.u32 %v111, 4294901760
    %1360 = vmatpush1.msra.mxu0 %v1359
    %1361 = vmatprep.subr.mxu0 0.0
    %v1362 = vand.u32 %v114, 4294901760
    %1363 = vmatpush1.msra.mxu0 %v1362
    %1364 = vmatprep.subr.mxu0 0.0
    %v1365 = vand.u32 %v117, 4294901760
    %1366 = vmatpush1.msra.mxu0 %v1365
    %1367 = vmatprep.subr.mxu0 0.0
    %v1368 = vand.u32 %v120, 4294901760
    %1369 = vmatpush1.msra.mxu0 %v1368
    %1370 = vmatprep.subr.mxu0 0.0
    %v1371 = vand.u32 %v123, 4294901760
    %1372 = vmatpush1.msra.mxu0 %v1371
    %1373 = vmatprep.subr.mxu0 0.0
    %v1374 = vand.u32 %v126, 4294901760
    %1375 = vmatpush1.msra.mxu0 %v1374
    %1376 = vmatprep.subr.mxu0 0.0
    %v1377 = vand.u32 %v129, 4294901760
    %1378 = vmatpush1.msra.mxu0 %v1377
    %1379 = vmatprep.subr.mxu0 0.0
    %v1380 = vand.u32 %v132, 4294901760
    %1381 = vmatpush1.msra.mxu0 %v1380
    %1382 = vmatprep.subr.mxu0 0.0
    %v1383 = vand.u32 %v135, 4294901760
    %1384 = vmatpush1.msra.mxu0 %v1383
    %1385 = vmatprep.subr.mxu0 0.0
    %v1386 = vand.u32 %v138, 4294901760
    %1387 = vmatpush1.msra.mxu0 %v1386
    %1388 = vmatprep.subr.mxu0 0.0
    %v1389 = vand.u32 %v141, 4294901760
    %1390 = vmatpush1.msra.mxu0 %v1389
    %1391 = vmatprep.subr.mxu0 0.0
    %v1392 = vand.u32 %v144, 4294901760
    %1393 = vmatpush1.msra.mxu0 %v1392
    %1394 = vmatprep.subr.mxu0 0.0
    %v1395 = vand.u32 %v147, 4294901760
    %1396 = vmatpush1.msra.mxu0 %v1395
    %1397 = vmatprep.subr.mxu0 0.0
    %v1398 = vand.u32 %v150, 4294901760
    %1399 = vmatpush1.msra.mxu0 %v1398
    %1400 = vmatprep.subr.mxu0 0.0
    %v1401 = vand.u32 %v153, 4294901760
    %1402 = vmatpush1.msra.mxu0 %v1401
    %1403 = vmatprep.subr.mxu0 0.0
    %v1404 = vand.u32 %v156, 4294901760
    %1405 = vmatpush1.msra.mxu0 %v1404
    %1406 = vmatprep.subr.mxu0 0.0
    %1407 = vmatpush1.msra.mxu0 0.0
    %1408 = vmatprep.subr.mxu0 0.0
    %1409 = vmatpush1.msra.mxu0 0.0
    %1410 = vmatprep.subr.mxu0 0.0
    %1411 = vmatpush1.msra.mxu0 0.0
    %1412 = vmatprep.subr.mxu0 0.0
    %1413 = vmatpush1.msra.mxu0 0.0
    %1414 = vmatprep.subr.mxu0 0.0
    %1415 = vmatpush1.msra.mxu0 0.0
    %1416 = vmatprep.subr.mxu0 0.0
    %1417 = vmatpush1.msra.mxu0 0.0
    %1418 = vmatprep.subr.mxu0 0.0
    %1419 = vmatpush1.msra.mxu0 0.0
    %1420 = vmatprep.subr.mxu0 0.0
    %1421 = vmatpush1.msra.mxu0 0.0
    %1422 = vmatprep.subr.mxu0 0.0
    %1423 = vmatpush1.msra.mxu0 0.0
    %1424 = vmatprep.subr.mxu0 0.0
    %1425 = vmatpush1.msra.mxu0 0.0
    %1426 = vmatprep.subr.mxu0 0.0
    %1427 = vmatpush1.msra.mxu0 0.0
    %1428 = vmatprep.subr.mxu0 0.0
    %1429 = vmatpush1.msra.mxu0 0.0
    %1430 = vmatprep.subr.mxu0 0.0
    %1431 = vmatpush1.msra.mxu0 0.0
    %1432 = vmatprep.subr.mxu0 0.0
    %1433 = vmatpush1.msra.mxu0 0.0
    %1434 = vmatprep.subr.mxu0 0.0
    %1435 = vmatpush1.msra.mxu0 0.0
    %1436 = vmatprep.subr.mxu0 0.0
    %1437 = vmatpush1.msra.mxu0 0.0
    %1438 = vmatprep.mubr.f32.mxu0 0.0
    %v1439 = vand.u32 %v108, 4294901760
    %v1440 = vsub.f32 %v108, %v1439
    %v1441 = vand.u32 %v1440, 4294901760
    %1442 = vmatmul.mubr.f32.gmra.mrb[0].mxu0 %v1441
    %v1443 = vpop.f32.mrb[0].mxu0
    %v1444 = vadd.f32 %v1355, %v1443
    %v1445 = vpop.f32.mrb[0].mxu0
    %1446 = vdwg.mxu0
    %1447 = vmatprep.subr.mxu0 0.0
    %v1448 = vand.u32 %v111, 4294901760
    %v1449 = vsub.f32 %v111, %v1448
    %v1450 = vand.u32 %v1449, 4294901760
    %1451 = vmatpush1.msra.mxu0 %v1450
    %1452 = vmatprep.subr.mxu0 0.0
    %v1453 = vand.u32 %v114, 4294901760
    %v1454 = vsub.f32 %v114, %v1453
    %v1455 = vand.u32 %v1454, 4294901760
    %1456 = vmatpush1.msra.mxu0 %v1455
    %1457 = vmatprep.subr.mxu0 0.0
    %v1458 = vand.u32 %v117, 4294901760
    %v1459 = vsub.f32 %v117, %v1458
    %v1460 = vand.u32 %v1459, 4294901760
    %1461 = vmatpush1.msra.mxu0 %v1460
    %1462 = vmatprep.subr.mxu0 0.0
    %v1463 = vand.u32 %v120, 4294901760
    %v1464 = vsub.f32 %v120, %v1463
    %v1465 = vand.u32 %v1464, 4294901760
    %1466 = vmatpush1.msra.mxu0 %v1465
    %1467 = vmatprep.subr.mxu0 0.0
    %v1468 = vand.u32 %v123, 4294901760
    %v1469 = vsub.f32 %v123, %v1468
    %v1470 = vand.u32 %v1469, 4294901760
    %1471 = vmatpush1.msra.mxu0 %v1470
    %1472 = vmatprep.subr.mxu0 0.0
    %v1473 = vand.u32 %v126, 4294901760
    %v1474 = vsub.f32 %v126, %v1473
    %v1475 = vand.u32 %v1474, 4294901760
    %1476 = vmatpush1.msra.mxu0 %v1475
    %1477 = vmatprep.subr.mxu0 0.0
    %v1478 = vand.u32 %v129, 4294901760
    %v1479 = vsub.f32 %v129, %v1478
    %v1480 = vand.u32 %v1479, 4294901760
    %1481 = vmatpush1.msra.mxu0 %v1480
    %1482 = vmatprep.subr.mxu0 0.0
    %v1483 = vand.u32 %v132, 4294901760
    %v1484 = vsub.f32 %v132, %v1483
    %v1485 = vand.u32 %v1484, 4294901760
    %1486 = vmatpush1.msra.mxu0 %v1485
    %1487 = vmatprep.subr.mxu0 0.0
    %v1488 = vand.u32 %v135, 4294901760
    %v1489 = vsub.f32 %v135, %v1488
    %v1490 = vand.u32 %v1489, 4294901760
    %1491 = vmatpush1.msra.mxu0 %v1490
    %1492 = vmatprep.subr.mxu0 0.0
    %v1493 = vand.u32 %v138, 4294901760
    %v1494 = vsub.f32 %v138, %v1493
    %v1495 = vand.u32 %v1494, 4294901760
    %1496 = vmatpush1.msra.mxu0 %v1495
    %1497 = vmatprep.subr.mxu0 0.0
    %v1498 = vand.u32 %v141, 4294901760
    %v1499 = vsub.f32 %v141, %v1498
    %v1500 = vand.u32 %v1499, 4294901760
    %1501 = vmatpush1.msra.mxu0 %v1500
    %1502 = vmatprep.subr.mxu0 0.0
    %v1503 = vand.u32 %v144, 4294901760
    %v1504 = vsub.f32 %v144, %v1503
    %v1505 = vand.u32 %v1504, 4294901760
    %1506 = vmatpush1.msra.mxu0 %v1505
    %1507 = vmatprep.subr.mxu0 0.0
    %v1508 = vand.u32 %v147, 4294901760
    %v1509 = vsub.f32 %v147, %v1508
    %v1510 = vand.u32 %v1509, 4294901760
    %1511 = vmatpush1.msra.mxu0 %v1510
    %1512 = vmatprep.subr.mxu0 0.0
    %v1513 = vand.u32 %v150, 4294901760
    %v1514 = vsub.f32 %v150, %v1513
    %v1515 = vand.u32 %v1514, 4294901760
    %1516 = vmatpush1.msra.mxu0 %v1515
    %1517 = vmatprep.subr.mxu0 0.0
    %v1518 = vand.u32 %v153, 4294901760
    %v1519 = vsub.f32 %v153, %v1518
    %v1520 = vand.u32 %v1519, 4294901760
    %1521 = vmatpush1.msra.mxu0 %v1520
    %1522 = vmatprep.subr.mxu0 0.0
    %v1523 = vand.u32 %v156, 4294901760
    %v1524 = vsub.f32 %v156, %v1523
    %v1525 = vand.u32 %v1524, 4294901760
    %1526 = vmatpush1.msra.mxu0 %v1525
    %1527 = vmatprep.subr.mxu0 0.0
    %1528 = vmatpush1.msra.mxu0 0.0
    %1529 = vmatprep.subr.mxu0 0.0
    %1530 = vmatpush1.msra.mxu0 0.0
    %1531 = vmatprep.subr.mxu0 0.0
    %1532 = vmatpush1.msra.mxu0 0.0
    %1533 = vmatprep.subr.mxu0 0.0
    %1534 = vmatpush1.msra.mxu0 0.0
    %1535 = vmatprep.subr.mxu0 0.0
    %1536 = vmatpush1.msra.mxu0 0.0
    %1537 = vmatprep.subr.mxu0 0.0
    %1538 = vmatpush1.msra.mxu0 0.0
    %1539 = vmatprep.subr.mxu0 0.0
    %1540 = vmatpush1.msra.mxu0 0.0
    %1541 = vmatprep.subr.mxu0 0.0
    %1542 = vmatpush1.msra.mxu0 0.0
    %1543 = vmatprep.subr.mxu0 0.0
    %1544 = vmatpush1.msra.mxu0 0.0
    %1545 = vmatprep.subr.mxu0 0.0
    %1546 = vmatpush1.msra.mxu0 0.0
    %1547 = vmatprep.subr.mxu0 0.0
    %1548 = vmatpush1.msra.mxu0 0.0
    %1549 = vmatprep.subr.mxu0 0.0
    %1550 = vmatpush1.msra.mxu0 0.0
    %1551 = vmatprep.subr.mxu0 0.0
    %1552 = vmatpush1.msra.mxu0 0.0
    %1553 = vmatprep.subr.mxu0 0.0
    %1554 = vmatpush1.msra.mxu0 0.0
    %1555 = vmatprep.subr.mxu0 0.0
    %1556 = vmatpush1.msra.mxu0 0.0
    %1557 = vmatprep.subr.mxu0 0.0
    %1558 = vmatpush1.msra.mxu0 0.0
    %1559 = vmatprep.mubr.f32.mxu0 0.0
    %v1560 = vand.u32 %v108, 4294901760
    %1561 = vmatmul.mubr.f32.gmra.mrb[0].mxu0 %v1560
    %v1562 = vpop.f32.mrb[0].mxu0
    %v1563 = vadd.f32 %v1444, %v1562
    %v1564 = vpop.f32.mrb[0].mxu0
    %1565 = vdwg.mxu0
    %1566 = vmatprep.subr.mxu0 0.0
    %v1567 = vand.u32 %v111, 4294901760
    %1568 = vmatpush1.msra.mxu0 %v1567
    %1569 = vmatprep.subr.mxu0 0.0
    %v1570 = vand.u32 %v114, 4294901760
    %1571 = vmatpush1.msra.mxu0 %v1570
    %1572 = vmatprep.subr.mxu0 0.0
    %v1573 = vand.u32 %v117, 4294901760
    %1574 = vmatpush1.msra.mxu0 %v1573
    %1575 = vmatprep.subr.mxu0 0.0
    %v1576 = vand.u32 %v120, 4294901760
    %1577 = vmatpush1.msra.mxu0 %v1576
    %1578 = vmatprep.subr.mxu0 0.0
    %v1579 = vand.u32 %v123, 4294901760
    %1580 = vmatpush1.msra.mxu0 %v1579
    %1581 = vmatprep.subr.mxu0 0.0
    %v1582 = vand.u32 %v126, 4294901760
    %1583 = vmatpush1.msra.mxu0 %v1582
    %1584 = vmatprep.subr.mxu0 0.0
    %v1585 = vand.u32 %v129, 4294901760
    %1586 = vmatpush1.msra.mxu0 %v1585
    %1587 = vmatprep.subr.mxu0 0.0
    %v1588 = vand.u32 %v132, 4294901760
    %1589 = vmatpush1.msra.mxu0 %v1588
    %1590 = vmatprep.subr.mxu0 0.0
    %v1591 = vand.u32 %v135, 4294901760
    %1592 = vmatpush1.msra.mxu0 %v1591
    %1593 = vmatprep.subr.mxu0 0.0
    %v1594 = vand.u32 %v138, 4294901760
    %1595 = vmatpush1.msra.mxu0 %v1594
    %1596 = vmatprep.subr.mxu0 0.0
    %v1597 = vand.u32 %v141, 4294901760
    %1598 = vmatpush1.msra.mxu0 %v1597
    %1599 = vmatprep.subr.mxu0 0.0
    %v1600 = vand.u32 %v144, 4294901760
    %1601 = vmatpush1.msra.mxu0 %v1600
    %1602 = vmatprep.subr.mxu0 0.0
    %v1603 = vand.u32 %v147, 4294901760
    %1604 = vmatpush1.msra.mxu0 %v1603
    %1605 = vmatprep.subr.mxu0 0.0
    %v1606 = vand.u32 %v150, 4294901760
    %1607 = vmatpush1.msra.mxu0 %v1606
    %1608 = vmatprep.subr.mxu0 0.0
    %v1609 = vand.u32 %v153, 4294901760
    %1610 = vmatpush1.msra.mxu0 %v1609
    %1611 = vmatprep.subr.mxu0 0.0
    %v1612 = vand.u32 %v156, 4294901760
    %1613 = vmatpush1.msra.mxu0 %v1612
    %1614 = vmatprep.subr.mxu0 0.0
    %1615 = vmatpush1.msra.mxu0 0.0
    %1616 = vmatprep.subr.mxu0 0.0
    %1617 = vmatpush1.msra.mxu0 0.0
    %1618 = vmatprep.subr.mxu0 0.0
    %1619 = vmatpush1.msra.mxu0 0.0
    %1620 = vmatprep.subr.mxu0 0.0
    %1621 = vmatpush1.msra.mxu0 0.0
    %1622 = vmatprep.subr.mxu0 0.0
    %1623 = vmatpush1.msra.mxu0 0.0
    %1624 = vmatprep.subr.mxu0 0.0
    %1625 = vmatpush1.msra.mxu0 0.0
    %1626 = vmatprep.subr.mxu0 0.0
    %1627 = vmatpush1.msra.mxu0 0.0
    %1628 = vmatprep.subr.mxu0 0.0
    %1629 = vmatpush1.msra.mxu0 0.0
    %1630 = vmatprep.subr.mxu0 0.0
    %1631 = vmatpush1.msra.mxu0 0.0
    %1632 = vmatprep.subr.mxu0 0.0
    %1633 = vmatpush1.msra.mxu0 0.0
    %1634 = vmatprep.subr.mxu0 0.0
    %1635 = vmatpush1.msra.mxu0 0.0
    %1636 = vmatprep.subr.mxu0 0.0
    %1637 = vmatpush1.msra.mxu0 0.0
    %1638 = vmatprep.subr.mxu0 0.0
    %1639 = vmatpush1.msra.mxu0 0.0
    %1640 = vmatprep.subr.mxu0 0.0
    %1641 = vmatpush1.msra.mxu0 0.0
    %1642 = vmatprep.subr.mxu0 0.0
    %1643 = vmatpush1.msra.mxu0 0.0
    %1644 = vmatprep.subr.mxu0 0.0
    %1645 = vmatpush1.msra.mxu0 0.0
    %1646 = vmatprep.mubr.f32.mxu0 0.0
    %v1647 = vand.u32 %v108, 4294901760
    %1648 = vmatmul.mubr.f32.gmra.mrb[0].mxu0 %v1647
    %v1649 = vpop.f32.mrb[0].mxu0
    %v1650 = vadd.f32 %v1563, %v1649
    %v1651 = vpop.f32.mrb[0].mxu0
    %1652 = vdwg.mxu0
    %v1653 = vmax.f32 %v1008, 0.0
    %v1654 = vmax.f32 %v1010, 0.0
    %v1655 = vmax.f32 %v1650, 0.0
    %v1656 = vld [vmem:[#allocation4] sm:$0xff]
    %v1657 = vld [vmem:[#allocation4 + $0x8] sm:$0xff]
    %v1658 = vld [vmem:[#allocation4 + $0x10] sm:$0xff]
    %v1659 = vld [vmem:[#allocation4 + $0x18] sm:$0xff]
    %v1660 = vld [vmem:[#allocation4 + $0x20] sm:$0xff]
    %v1661 = vld [vmem:[#allocation4 + $0x28] sm:$0xff]
    %v1662 = vld [vmem:[#allocation4 + $0x30] sm:$0xff]
    %v1663 = vld [vmem:[#allocation4 + $0x38] sm:$0xff]
    %v1664 = vld [vmem:[#allocation4 + $0x40] sm:$0xff]
    %v1665 = vld [vmem:[#allocation4 + $0x48] sm:$0xff]
    %v1666 = vld [vmem:[#allocation4 + $0x50] sm:$0xff]
    %v1667 = vld [vmem:[#allocation4 + $0x58] sm:$0xff]
    %v1668 = vld [vmem:[#allocation4 + $0x60] sm:$0xff]
    %v1669 = vld [vmem:[#allocation4 + $0x68] sm:$0xff]
    %v1670 = vld [vmem:[#allocation4 + $0x70] sm:$0xff]
    %v1671 = vld [vmem:[#allocation4 + $0x78] sm:$0xff]
    %v1672 = vld [vmem:[#allocation4 + $0x80] sm:$0xff]
    %v1673 = vld [vmem:[#allocation4 + $0x88] sm:$0xff]
    %v1674 = vld [vmem:[#allocation4 + $0x90] sm:$0xff]
    %v1675 = vld [vmem:[#allocation4 + $0x98] sm:$0xff]
    %v1676 = vld [vmem:[#allocation4 + $0xa0] sm:$0xff]
    %v1677 = vld [vmem:[#allocation4 + $0xa8] sm:$0xff]
    %v1678 = vld [vmem:[#allocation4 + $0xb0] sm:$0xff]
    %v1679 = vld [vmem:[#allocation4 + $0xb8] sm:$0xff]
    %v1680 = vld [vmem:[#allocation4 + $0xc0] sm:$0xff]
    %v1681 = vld [vmem:[#allocation4 + $0xc8] sm:$0xff]
    %v1682 = vld [vmem:[#allocation4 + $0xd0] sm:$0xff]
    %v1683 = vld [vmem:[#allocation4 + $0xd8] sm:$0xff]
    %v1684 = vld [vmem:[#allocation4 + $0xe0] sm:$0xff]
    %v1685 = vld [vmem:[#allocation4 + $0xe8] sm:$0xff]
    %v1686 = vld [vmem:[#allocation4 + $0xf0] sm:$0xff]
    %v1687 = vld [vmem:[#allocation4 + $0xf8] sm:$0xff]
    %v1688 = vld [vmem:[#allocation4 + $0x100] sm:$0xff]
    %v1689 = vld [vmem:[#allocation4 + $0x108] sm:$0xff]
    %v1690 = vld [vmem:[#allocation4 + $0x110] sm:$0xff]
    %v1691 = vld [vmem:[#allocation4 + $0x118] sm:$0xff]
    %v1692 = vld [vmem:[#allocation4 + $0x120] sm:$0xff]
    %v1693 = vld [vmem:[#allocation4 + $0x128] sm:$0xff]
    %v1694 = vld [vmem:[#allocation4 + $0x130] sm:$0xff]
    %v1695 = vld [vmem:[#allocation4 + $0x138] sm:$0xff]
    %v1696 = vld [vmem:[#allocation4 + $0x140] sm:$0xff]
    %v1697 = vld [vmem:[#allocation4 + $0x148] sm:$0xff]
    %v1698 = vld [vmem:[#allocation4 + $0x150] sm:$0xff]
    %v1699 = vld [vmem:[#allocation4 + $0x158] sm:$0xff]
    %v1700 = vld [vmem:[#allocation4 + $0x160] sm:$0xff]
    %v1701 = vld [vmem:[#allocation4 + $0x168] sm:$0xff]
    %v1702 = vld [vmem:[#allocation4 + $0x170] sm:$0xff]
    %v1703 = vld [vmem:[#allocation4 + $0x178] sm:$0xff]
    %v1704 = vld [vmem:[#allocation4 + $0x180] sm:$0xff]
    %v1705 = vld [vmem:[#allocation4 + $0x188] sm:$0xff]
    %v1706 = vld [vmem:[#allocation4 + $0x190] sm:$0xff]
    %v1707 = vld [vmem:[#allocation4 + $0x198] sm:$0xff]
    %v1708 = vld [vmem:[#allocation4 + $0x1a0] sm:$0xff]
    %v1709 = vld [vmem:[#allocation4 + $0x1a8] sm:$0xff]
    %v1710 = vld [vmem:[#allocation4 + $0x1b0] sm:$0xff]
    %v1711 = vld [vmem:[#allocation4 + $0x1b8] sm:$0xff]
    %v1712 = vld [vmem:[#allocation4 + $0x1c0] sm:$0xff]
    %v1713 = vld [vmem:[#allocation4 + $0x1c8] sm:$0xff]
    %v1714 = vld [vmem:[#allocation4 + $0x1d0] sm:$0xff]
    %v1715 = vld [vmem:[#allocation4 + $0x1d8] sm:$0xff]
    %v1716 = vld [vmem:[#allocation4 + $0x1e0] sm:$0xff]
    %v1717 = vld [vmem:[#allocation4 + $0x1e8] sm:$0xff]
    %v1718 = vld [vmem:[#allocation4 + $0x1f0] sm:$0xff]
    %v1719 = vld [vmem:[#allocation4 + $0x1f8] sm:$0xff]
    %v1720 = vld [vmem:[#allocation4 + $0x200] sm:$0xff]
    %v1721 = vld [vmem:[#allocation4 + $0x208] sm:$0xff]
    %v1722 = vld [vmem:[#allocation4 + $0x210] sm:$0xff]
    %v1723 = vld [vmem:[#allocation4 + $0x218] sm:$0xff]
    %v1724 = vld [vmem:[#allocation4 + $0x220] sm:$0xff]
    %v1725 = vld [vmem:[#allocation4 + $0x228] sm:$0xff]
    %v1726 = vld [vmem:[#allocation4 + $0x230] sm:$0xff]
    %v1727 = vld [vmem:[#allocation4 + $0x238] sm:$0xff]
    %v1728 = vld [vmem:[#allocation4 + $0x240] sm:$0xff]
    %v1729 = vld [vmem:[#allocation4 + $0x248] sm:$0xff]
    %v1730 = vld [vmem:[#allocation4 + $0x250] sm:$0xff]
    %v1731 = vld [vmem:[#allocation4 + $0x258] sm:$0xff]
    %v1732 = vld [vmem:[#allocation4 + $0x260] sm:$0xff]
    %v1733 = vld [vmem:[#allocation4 + $0x268] sm:$0xff]
    %v1734 = vld [vmem:[#allocation4 + $0x270] sm:$0xff]
    %v1735 = vld [vmem:[#allocation4 + $0x278] sm:$0xff]
    %v1736 = vld [vmem:[#allocation4 + $0x280] sm:$0xff]
    %v1737 = vld [vmem:[#allocation4 + $0x288] sm:$0xff]
    %v1738 = vld [vmem:[#allocation4 + $0x290] sm:$0xff]
    %v1739 = vld [vmem:[#allocation4 + $0x298] sm:$0xff]
    %v1740 = vld [vmem:[#allocation4 + $0x2a0] sm:$0xff]
    %v1741 = vld [vmem:[#allocation4 + $0x2a8] sm:$0xff]
    %v1742 = vld [vmem:[#allocation4 + $0x2b0] sm:$0xff]
    %v1743 = vld [vmem:[#allocation4 + $0x2b8] sm:$0xff]
    %v1744 = vld [vmem:[#allocation4 + $0x2c0] sm:$0xff]
    %v1745 = vld [vmem:[#allocation4 + $0x2c8] sm:$0xff]
    %v1746 = vld [vmem:[#allocation4 + $0x2d0] sm:$0xff]
    %v1747 = vld [vmem:[#allocation4 + $0x2d8] sm:$0xff]
    %v1748 = vld [vmem:[#allocation4 + $0x2e0] sm:$0xff]
    %v1749 = vld [vmem:[#allocation4 + $0x2e8] sm:$0xff]
    %v1750 = vld [vmem:[#allocation4 + $0x2f0] sm:$0xff]
    %v1751 = vld [vmem:[#allocation4 + $0x2f8] sm:$0xff]
    %v1752 = vand.u32 %v1657, 4294901760
    %1753 = vmatprep.subr.mxu0 %v1752
    %v1754 = vand.u32 %v1656, 4294901760
    %1755 = vmatpush1.msra.mxu0 %v1754
    %v1756 = vand.u32 %v1659, 4294901760
    %1757 = vmatprep.subr.mxu0 %v1756
    %v1758 = vand.u32 %v1658, 4294901760
    %1759 = vmatpush1.msra.mxu0 %v1758
    %v1760 = vand.u32 %v1661, 4294901760
    %1761 = vmatprep.subr.mxu0 %v1760
    %v1762 = vand.u32 %v1660, 4294901760
    %1763 = vmatpush1.msra.mxu0 %v1762
    %v1764 = vand.u32 %v1663, 4294901760
    %1765 = vmatprep.subr.mxu0 %v1764
    %v1766 = vand.u32 %v1662, 4294901760
    %1767 = vmatpush1.msra.mxu0 %v1766
    %v1768 = vand.u32 %v1665, 4294901760
    %1769 = vmatprep.subr.mxu0 %v1768
    %v1770 = vand.u32 %v1664, 4294901760
    %1771 = vmatpush1.msra.mxu0 %v1770
    %v1772 = vand.u32 %v1667, 4294901760
    %1773 = vmatprep.subr.mxu0 %v1772
    %v1774 = vand.u32 %v1666, 4294901760
    %1775 = vmatpush1.msra.mxu0 %v1774
    %v1776 = vand.u32 %v1669, 4294901760
    %1777 = vmatprep.subr.mxu0 %v1776
    %v1778 = vand.u32 %v1668, 4294901760
    %1779 = vmatpush1.msra.mxu0 %v1778
    %v1780 = vand.u32 %v1671, 4294901760
    %1781 = vmatprep.subr.mxu0 %v1780
    %v1782 = vand.u32 %v1670, 4294901760
    %1783 = vmatpush1.msra.mxu0 %v1782
    %v1784 = vand.u32 %v1673, 4294901760
    %1785 = vmatprep.subr.mxu0 %v1784
    %v1786 = vand.u32 %v1672, 4294901760
    %1787 = vmatpush1.msra.mxu0 %v1786
    %v1788 = vand.u32 %v1675, 4294901760
    %1789 = vmatprep.subr.mxu0 %v1788
    %v1790 = vand.u32 %v1674, 4294901760
    %1791 = vmatpush1.msra.mxu0 %v1790
    %v1792 = vand.u32 %v1677, 4294901760
    %1793 = vmatprep.subr.mxu0 %v1792
    %v1794 = vand.u32 %v1676, 4294901760
    %1795 = vmatpush1.msra.mxu0 %v1794
    %v1796 = vand.u32 %v1679, 4294901760
    %1797 = vmatprep.subr.mxu0 %v1796
    %v1798 = vand.u32 %v1678, 4294901760
    %1799 = vmatpush1.msra.mxu0 %v1798
    %v1800 = vand.u32 %v1681, 4294901760
    %1801 = vmatprep.subr.mxu0 %v1800
    %v1802 = vand.u32 %v1680, 4294901760
    %1803 = vmatpush1.msra.mxu0 %v1802
    %v1804 = vand.u32 %v1683, 4294901760
    %1805 = vmatprep.subr.mxu0 %v1804
    %v1806 = vand.u32 %v1682, 4294901760
    %1807 = vmatpush1.msra.mxu0 %v1806
    %v1808 = vand.u32 %v1685, 4294901760
    %1809 = vmatprep.subr.mxu0 %v1808
    %v1810 = vand.u32 %v1684, 4294901760
    %1811 = vmatpush1.msra.mxu0 %v1810
    %v1812 = vand.u32 %v1687, 4294901760
    %1813 = vmatprep.subr.mxu0 %v1812
    %v1814 = vand.u32 %v1686, 4294901760
    %1815 = vmatpush1.msra.mxu0 %v1814
    %v1816 = vand.u32 %v1689, 4294901760
    %1817 = vmatprep.subr.mxu0 %v1816
    %v1818 = vand.u32 %v1688, 4294901760
    %1819 = vmatpush1.msra.mxu0 %v1818
    %v1820 = vand.u32 %v1691, 4294901760
    %1821 = vmatprep.subr.mxu0 %v1820
    %v1822 = vand.u32 %v1690, 4294901760
    %1823 = vmatpush1.msra.mxu0 %v1822
    %v1824 = vand.u32 %v1693, 4294901760
    %1825 = vmatprep.subr.mxu0 %v1824
    %v1826 = vand.u32 %v1692, 4294901760
    %1827 = vmatpush1.msra.mxu0 %v1826
    %v1828 = vand.u32 %v1695, 4294901760
    %1829 = vmatprep.subr.mxu0 %v1828
    %v1830 = vand.u32 %v1694, 4294901760
    %1831 = vmatpush1.msra.mxu0 %v1830
    %v1832 = vand.u32 %v1697, 4294901760
    %1833 = vmatprep.subr.mxu0 %v1832
    %v1834 = vand.u32 %v1696, 4294901760
    %1835 = vmatpush1.msra.mxu0 %v1834
    %v1836 = vand.u32 %v1699, 4294901760
    %1837 = vmatprep.subr.mxu0 %v1836
    %v1838 = vand.u32 %v1698, 4294901760
    %1839 = vmatpush1.msra.mxu0 %v1838
    %v1840 = vand.u32 %v1701, 4294901760
    %1841 = vmatprep.subr.mxu0 %v1840
    %v1842 = vand.u32 %v1700, 4294901760
    %1843 = vmatpush1.msra.mxu0 %v1842
    %v1844 = vand.u32 %v1703, 4294901760
    %1845 = vmatprep.subr.mxu0 %v1844
    %v1846 = vand.u32 %v1702, 4294901760
    %1847 = vmatpush1.msra.mxu0 %v1846
    %v1848 = vand.u32 %v1705, 4294901760
    %1849 = vmatprep.subr.mxu0 %v1848
    %v1850 = vand.u32 %v1704, 4294901760
    %1851 = vmatpush1.msra.mxu0 %v1850
    %v1852 = vand.u32 %v1707, 4294901760
    %1853 = vmatprep.subr.mxu0 %v1852
    %v1854 = vand.u32 %v1706, 4294901760
    %1855 = vmatpush1.msra.mxu0 %v1854
    %v1856 = vand.u32 %v1709, 4294901760
    %1857 = vmatprep.subr.mxu0 %v1856
    %v1858 = vand.u32 %v1708, 4294901760
    %1859 = vmatpush1.msra.mxu0 %v1858
    %v1860 = vand.u32 %v1711, 4294901760
    %1861 = vmatprep.subr.mxu0 %v1860
    %v1862 = vand.u32 %v1710, 4294901760
    %1863 = vmatpush1.msra.mxu0 %v1862
    %v1864 = vand.u32 %v1713, 4294901760
    %1865 = vmatprep.subr.mxu0 %v1864
    %v1866 = vand.u32 %v1712, 4294901760
    %1867 = vmatpush1.msra.mxu0 %v1866
    %v1868 = vand.u32 %v1715, 4294901760
    %1869 = vmatprep.subr.mxu0 %v1868
    %v1870 = vand.u32 %v1714, 4294901760
    %1871 = vmatpush1.msra.mxu0 %v1870
    %v1872 = vand.u32 %v1717, 4294901760
    %1873 = vmatprep.subr.mxu0 %v1872
    %v1874 = vand.u32 %v1716, 4294901760
    %1875 = vmatpush1.msra.mxu0 %v1874
    %v1876 = vand.u32 %v1719, 4294901760
    %1877 = vmatprep.subr.mxu0 %v1876
    %v1878 = vand.u32 %v1718, 4294901760
    %1879 = vmatpush1.msra.mxu0 %v1878
    %v1880 = vand.u32 %v1654, 4294901760
    %v1881 = vsub.f32 %v1654, %v1880
    %v1882 = vand.u32 %v1881, 4294901760
    %v1883 = vsub.f32 %v1881, %v1882
    %v1884 = vand.u32 %v1883, 4294901760
    %1885 = vmatprep.mubr.f32.mxu0 %v1884
    %v1886 = vand.u32 %v1653, 4294901760
    %v1887 = vsub.f32 %v1653, %v1886
    %v1888 = vand.u32 %v1887, 4294901760
    %v1889 = vsub.f32 %v1887, %v1888
    %v1890 = vand.u32 %v1889, 4294901760
    %1891 = vmatmul.mubr.f32.gmra.mrb[0].mxu0 %v1890
    %v1892 = vpop.f32.mrb[0].mxu0
    %v1893 = vadd.f32 0.0, %v1892
    %v1894 = vpop.f32.mrb[0].mxu0
    %v1895 = vadd.f32 0.0, %v1894
    %1896 = vdwg.mxu0
    %v1897 = vand.u32 %v1657, 4294901760
    %v1898 = vsub.f32 %v1657, %v1897
    %v1899 = vand.u32 %v1898, 4294901760
    %v1900 = vsub.f32 %v1898, %v1899
    %v1901 = vand.u32 %v1900, 4294901760
    %1902 = vmatprep.subr.mxu0 %v1901
    %v1903 = vand.u32 %v1656, 4294901760
    %v1904 = vsub.f32 %v1656, %v1903
    %v1905 = vand.u32 %v1904, 4294901760
    %v1906 = vsub.f32 %v1904, %v1905
    %v1907 = vand.u32 %v1906, 4294901760
    %1908 = vmatpush1.msra.mxu0 %v1907
    %v1909 = vand.u32 %v1659, 4294901760
    %v1910 = vsub.f32 %v1659, %v1909
    %v1911 = vand.u32 %v1910, 4294901760
    %v1912 = vsub.f32 %v1910, %v1911
    %v1913 = vand.u32 %v1912, 4294901760
    %1914 = vmatprep.subr.mxu0 %v1913
    %v1915 = vand.u32 %v1658, 4294901760
    %v1916 = vsub.f32 %v1658, %v1915
    %v1917 = vand.u32 %v1916, 4294901760
    %v1918 = vsub.f32 %v1916, %v1917
    %v1919 = vand.u32 %v1918, 4294901760
    %1920 = vmatpush1.msra.mxu0 %v1919
    %v1921 = vand.u32 %v1661, 4294901760
    %v1922 = vsub.f32 %v1661, %v1921
    %v1923 = vand.u32 %v1922, 4294901760
    %v1924 = vsub.f32 %v1922, %v1923
    %v1925 = vand.u32 %v1924, 4294901760
    %1926 = vmatprep.subr.mxu0 %v1925
    %v1927 = vand.u32 %v1660, 4294901760
    %v1928 = vsub.f32 %v1660, %v1927
    %v1929 = vand.u32 %v1928, 4294901760
    %v1930 = vsub.f32 %v1928, %v1929
    %v1931 = vand.u32 %v1930, 4294901760
    %1932 = vmatpush1.msra.mxu0 %v1931
    %v1933 = vand.u32 %v1663, 4294901760
    %v1934 = vsub.f32 %v1663, %v1933
    %v1935 = vand.u32 %v1934, 4294901760
    %v1936 = vsub.f32 %v1934, %v1935
    %v1937 = vand.u32 %v1936, 4294901760
    %1938 = vmatprep.subr.mxu0 %v1937
    %v1939 = vand.u32 %v1662, 4294901760
    %v1940 = vsub.f32 %v1662, %v1939
    %v1941 = vand.u32 %v1940, 4294901760
    %v1942 = vsub.f32 %v1940, %v1941
    %v1943 = vand.u32 %v1942, 4294901760
    %1944 = vmatpush1.msra.mxu0 %v1943
    %v1945 = vand.u32 %v1665, 4294901760
    %v1946 = vsub.f32 %v1665, %v1945
    %v1947 = vand.u32 %v1946, 4294901760
    %v1948 = vsub.f32 %v1946, %v1947
    %v1949 = vand.u32 %v1948, 4294901760
    %1950 = vmatprep.subr.mxu0 %v1949
    %v1951 = vand.u32 %v1664, 4294901760
    %v1952 = vsub.f32 %v1664, %v1951
    %v1953 = vand.u32 %v1952, 4294901760
    %v1954 = vsub.f32 %v1952, %v1953
    %v1955 = vand.u32 %v1954, 4294901760
    %1956 = vmatpush1.msra.mxu0 %v1955
    %v1957 = vand.u32 %v1667, 4294901760
    %v1958 = vsub.f32 %v1667, %v1957
    %v1959 = vand.u32 %v1958, 4294901760
    %v1960 = vsub.f32 %v1958, %v1959
    %v1961 = vand.u32 %v1960, 4294901760
    %1962 = vmatprep.subr.mxu0 %v1961
    %v1963 = vand.u32 %v1666, 4294901760
    %v1964 = vsub.f32 %v1666, %v1963
    %v1965 = vand.u32 %v1964, 4294901760
    %v1966 = vsub.f32 %v1964, %v1965
    %v1967 = vand.u32 %v1966, 4294901760
    %1968 = vmatpush1.msra.mxu0 %v1967
    %v1969 = vand.u32 %v1669, 4294901760
    %v1970 = vsub.f32 %v1669, %v1969
    %v1971 = vand.u32 %v1970, 4294901760
    %v1972 = vsub.f32 %v1970, %v1971
    %v1973 = vand.u32 %v1972, 4294901760
    %1974 = vmatprep.subr.mxu0 %v1973
    %v1975 = vand.u32 %v1668, 4294901760
    %v1976 = vsub.f32 %v1668, %v1975
    %v1977 = vand.u32 %v1976, 4294901760
    %v1978 = vsub.f32 %v1976, %v1977
    %v1979 = vand.u32 %v1978, 4294901760
    %1980 = vmatpush1.msra.mxu0 %v1979
    %v1981 = vand.u32 %v1671, 4294901760
    %v1982 = vsub.f32 %v1671, %v1981
    %v1983 = vand.u32 %v1982, 4294901760
    %v1984 = vsub.f32 %v1982, %v1983
    %v1985 = vand.u32 %v1984, 4294901760
    %1986 = vmatprep.subr.mxu0 %v1985
    %v1987 = vand.u32 %v1670, 4294901760
    %v1988 = vsub.f32 %v1670, %v1987
    %v1989 = vand.u32 %v1988, 4294901760
    %v1990 = vsub.f32 %v1988, %v1989
    %v1991 = vand.u32 %v1990, 4294901760
    %1992 = vmatpush1.msra.mxu0 %v1991
    %v1993 = vand.u32 %v1673, 4294901760
    %v1994 = vsub.f32 %v1673, %v1993
    %v1995 = vand.u32 %v1994, 4294901760
    %v1996 = vsub.f32 %v1994, %v1995
    %v1997 = vand.u32 %v1996, 4294901760
    %1998 = vmatprep.subr.mxu0 %v1997
    %v1999 = vand.u32 %v1672, 4294901760
    %v2000 = vsub.f32 %v1672, %v1999
    %v2001 = vand.u32 %v2000, 4294901760
    %v2002 = vsub.f32 %v2000, %v2001
    %v2003 = vand.u32 %v2002, 4294901760
    %2004 = vmatpush1.msra.mxu0 %v2003
    %v2005 = vand.u32 %v1675, 4294901760
    %v2006 = vsub.f32 %v1675, %v2005
    %v2007 = vand.u32 %v2006, 4294901760
    %v2008 = vsub.f32 %v2006, %v2007
    %v2009 = vand.u32 %v2008, 4294901760
    %2010 = vmatprep.subr.mxu0 %v2009
    %v2011 = vand.u32 %v1674, 4294901760
    %v2012 = vsub.f32 %v1674, %v2011
    %v2013 = vand.u32 %v2012, 4294901760
    %v2014 = vsub.f32 %v2012, %v2013
    %v2015 = vand.u32 %v2014, 4294901760
    %2016 = vmatpush1.msra.mxu0 %v2015
    %v2017 = vand.u32 %v1677, 4294901760
    %v2018 = vsub.f32 %v1677, %v2017
    %v2019 = vand.u32 %v2018, 4294901760
    %v2020 = vsub.f32 %v2018, %v2019
    %v2021 = vand.u32 %v2020, 4294901760
    %2022 = vmatprep.subr.mxu0 %v2021
    %v2023 = vand.u32 %v1676, 4294901760
    %v2024 = vsub.f32 %v1676, %v2023
    %v2025 = vand.u32 %v2024, 4294901760
    %v2026 = vsub.f32 %v2024, %v2025
    %v2027 = vand.u32 %v2026, 4294901760
    %2028 = vmatpush1.msra.mxu0 %v2027
    %v2029 = vand.u32 %v1679, 4294901760
    %v2030 = vsub.f32 %v1679, %v2029
    %v2031 = vand.u32 %v2030, 4294901760
    %v2032 = vsub.f32 %v2030, %v2031
    %v2033 = vand.u32 %v2032, 4294901760
    %2034 = vmatprep.subr.mxu0 %v2033
    %v2035 = vand.u32 %v1678, 4294901760
    %v2036 = vsub.f32 %v1678, %v2035
    %v2037 = vand.u32 %v2036, 4294901760
    %v2038 = vsub.f32 %v2036, %v2037
    %v2039 = vand.u32 %v2038, 4294901760
    %2040 = vmatpush1.msra.mxu0 %v2039
    %v2041 = vand.u32 %v1681, 4294901760
    %v2042 = vsub.f32 %v1681, %v2041
    %v2043 = vand.u32 %v2042, 4294901760
    %v2044 = vsub.f32 %v2042, %v2043
    %v2045 = vand.u32 %v2044, 4294901760
    %2046 = vmatprep.subr.mxu0 %v2045
    %v2047 = vand.u32 %v1680, 4294901760
    %v2048 = vsub.f32 %v1680, %v2047
    %v2049 = vand.u32 %v2048, 4294901760
    %v2050 = vsub.f32 %v2048, %v2049
    %v2051 = vand.u32 %v2050, 4294901760
    %2052 = vmatpush1.msra.mxu0 %v2051
    %v2053 = vand.u32 %v1683, 4294901760
    %v2054 = vsub.f32 %v1683, %v2053
    %v2055 = vand.u32 %v2054, 4294901760
    %v2056 = vsub.f32 %v2054, %v2055
    %v2057 = vand.u32 %v2056, 4294901760
    %2058 = vmatprep.subr.mxu0 %v2057
    %v2059 = vand.u32 %v1682, 4294901760
    %v2060 = vsub.f32 %v1682, %v2059
    %v2061 = vand.u32 %v2060, 4294901760
    %v2062 = vsub.f32 %v2060, %v2061
    %v2063 = vand.u32 %v2062, 4294901760
    %2064 = vmatpush1.msra.mxu0 %v2063
    %v2065 = vand.u32 %v1685, 4294901760
    %v2066 = vsub.f32 %v1685, %v2065
    %v2067 = vand.u32 %v2066, 4294901760
    %v2068 = vsub.f32 %v2066, %v2067
    %v2069 = vand.u32 %v2068, 4294901760
    %2070 = vmatprep.subr.mxu0 %v2069
    %v2071 = vand.u32 %v1684, 4294901760
    %v2072 = vsub.f32 %v1684, %v2071
    %v2073 = vand.u32 %v2072, 4294901760
    %v2074 = vsub.f32 %v2072, %v2073
    %v2075 = vand.u32 %v2074, 4294901760
    %2076 = vmatpush1.msra.mxu0 %v2075
    %v2077 = vand.u32 %v1687, 4294901760
    %v2078 = vsub.f32 %v1687, %v2077
    %v2079 = vand.u32 %v2078, 4294901760
    %v2080 = vsub.f32 %v2078, %v2079
    %v2081 = vand.u32 %v2080, 4294901760
    %2082 = vmatprep.subr.mxu0 %v2081
    %v2083 = vand.u32 %v1686, 4294901760
    %v2084 = vsub.f32 %v1686, %v2083
    %v2085 = vand.u32 %v2084, 4294901760
    %v2086 = vsub.f32 %v2084, %v2085
    %v2087 = vand.u32 %v2086, 4294901760
    %2088 = vmatpush1.msra.mxu0 %v2087
    %v2089 = vand.u32 %v1689, 4294901760
    %v2090 = vsub.f32 %v1689, %v2089
    %v2091 = vand.u32 %v2090, 4294901760
    %v2092 = vsub.f32 %v2090, %v2091
    %v2093 = vand.u32 %v2092, 4294901760
    %2094 = vmatprep.subr.mxu0 %v2093
    %v2095 = vand.u32 %v1688, 4294901760
    %v2096 = vsub.f32 %v1688, %v2095
    %v2097 = vand.u32 %v2096, 4294901760
    %v2098 = vsub.f32 %v2096, %v2097
    %v2099 = vand.u32 %v2098, 4294901760
    %2100 = vmatpush1.msra.mxu0 %v2099
    %v2101 = vand.u32 %v1691, 4294901760
    %v2102 = vsub.f32 %v1691, %v2101
    %v2103 = vand.u32 %v2102, 4294901760
    %v2104 = vsub.f32 %v2102, %v2103
    %v2105 = vand.u32 %v2104, 4294901760
    %2106 = vmatprep.subr.mxu0 %v2105
    %v2107 = vand.u32 %v1690, 4294901760
    %v2108 = vsub.f32 %v1690, %v2107
    %v2109 = vand.u32 %v2108, 4294901760
    %v2110 = vsub.f32 %v2108, %v2109
    %v2111 = vand.u32 %v2110, 4294901760
    %2112 = vmatpush1.msra.mxu0 %v2111
    %v2113 = vand.u32 %v1693, 4294901760
    %v2114 = vsub.f32 %v1693, %v2113
    %v2115 = vand.u32 %v2114, 4294901760
    %v2116 = vsub.f32 %v2114, %v2115
    %v2117 = vand.u32 %v2116, 4294901760
    %2118 = vmatprep.subr.mxu0 %v2117
    %v2119 = vand.u32 %v1692, 4294901760
    %v2120 = vsub.f32 %v1692, %v2119
    %v2121 = vand.u32 %v2120, 4294901760
    %v2122 = vsub.f32 %v2120, %v2121
    %v2123 = vand.u32 %v2122, 4294901760
    %2124 = vmatpush1.msra.mxu0 %v2123
    %v2125 = vand.u32 %v1695, 4294901760
    %v2126 = vsub.f32 %v1695, %v2125
    %v2127 = vand.u32 %v2126, 4294901760
    %v2128 = vsub.f32 %v2126, %v2127
    %v2129 = vand.u32 %v2128, 4294901760
    %2130 = vmatprep.subr.mxu0 %v2129
    %v2131 = vand.u32 %v1694, 4294901760
    %v2132 = vsub.f32 %v1694, %v2131
    %v2133 = vand.u32 %v2132, 4294901760
    %v2134 = vsub.f32 %v2132, %v2133
    %v2135 = vand.u32 %v2134, 4294901760
    %2136 = vmatpush1.msra.mxu0 %v2135
    %v2137 = vand.u32 %v1697, 4294901760
    %v2138 = vsub.f32 %v1697, %v2137
    %v2139 = vand.u32 %v2138, 4294901760
    %v2140 = vsub.f32 %v2138, %v2139
    %v2141 = vand.u32 %v2140, 4294901760
    %2142 = vmatprep.subr.mxu0 %v2141
    %v2143 = vand.u32 %v1696, 4294901760
    %v2144 = vsub.f32 %v1696, %v2143
    %v2145 = vand.u32 %v2144, 4294901760
    %v2146 = vsub.f32 %v2144, %v2145
    %v2147 = vand.u32 %v2146, 4294901760
    %2148 = vmatpush1.msra.mxu0 %v2147
    %v2149 = vand.u32 %v1699, 4294901760
    %v2150 = vsub.f32 %v1699, %v2149
    %v2151 = vand.u32 %v2150, 4294901760
    %v2152 = vsub.f32 %v2150, %v2151
    %v2153 = vand.u32 %v2152, 4294901760
    %2154 = vmatprep.subr.mxu0 %v2153
    %v2155 = vand.u32 %v1698, 4294901760
    %v2156 = vsub.f32 %v1698, %v2155
    %v2157 = vand.u32 %v2156, 4294901760
    %v2158 = vsub.f32 %v2156, %v2157
    %v2159 = vand.u32 %v2158, 4294901760
    %2160 = vmatpush1.msra.mxu0 %v2159
    %v2161 = vand.u32 %v1701, 4294901760
    %v2162 = vsub.f32 %v1701, %v2161
    %v2163 = vand.u32 %v2162, 4294901760
    %v2164 = vsub.f32 %v2162, %v2163
    %v2165 = vand.u32 %v2164, 4294901760
    %2166 = vmatprep.subr.mxu0 %v2165
    %v2167 = vand.u32 %v1700, 4294901760
    %v2168 = vsub.f32 %v1700, %v2167
    %v2169 = vand.u32 %v2168, 4294901760
    %v2170 = vsub.f32 %v2168, %v2169
    %v2171 = vand.u32 %v2170, 4294901760
    %2172 = vmatpush1.msra.mxu0 %v2171
    %v2173 = vand.u32 %v1703, 4294901760
    %v2174 = vsub.f32 %v1703, %v2173
    %v2175 = vand.u32 %v2174, 4294901760
    %v2176 = vsub.f32 %v2174, %v2175
    %v2177 = vand.u32 %v2176, 4294901760
    %2178 = vmatprep.subr.mxu0 %v2177
    %v2179 = vand.u32 %v1702, 4294901760
    %v2180 = vsub.f32 %v1702, %v2179
    %v2181 = vand.u32 %v2180, 4294901760
    %v2182 = vsub.f32 %v2180, %v2181
    %v2183 = vand.u32 %v2182, 4294901760
    %2184 = vmatpush1.msra.mxu0 %v2183
    %v2185 = vand.u32 %v1705, 4294901760
    %v2186 = vsub.f32 %v1705, %v2185
    %v2187 = vand.u32 %v2186, 4294901760
    %v2188 = vsub.f32 %v2186, %v2187
    %v2189 = vand.u32 %v2188, 4294901760
    %2190 = vmatprep.subr.mxu0 %v2189
    %v2191 = vand.u32 %v1704, 4294901760
    %v2192 = vsub.f32 %v1704, %v2191
    %v2193 = vand.u32 %v2192, 4294901760
    %v2194 = vsub.f32 %v2192, %v2193
    %v2195 = vand.u32 %v2194, 4294901760
    %2196 = vmatpush1.msra.mxu0 %v2195
    %v2197 = vand.u32 %v1707, 4294901760
    %v2198 = vsub.f32 %v1707, %v2197
    %v2199 = vand.u32 %v2198, 4294901760
    %v2200 = vsub.f32 %v2198, %v2199
    %v2201 = vand.u32 %v2200, 4294901760
    %2202 = vmatprep.subr.mxu0 %v2201
    %v2203 = vand.u32 %v1706, 4294901760
    %v2204 = vsub.f32 %v1706, %v2203
    %v2205 = vand.u32 %v2204, 4294901760
    %v2206 = vsub.f32 %v2204, %v2205
    %v2207 = vand.u32 %v2206, 4294901760
    %2208 = vmatpush1.msra.mxu0 %v2207
    %v2209 = vand.u32 %v1709, 4294901760
    %v2210 = vsub.f32 %v1709, %v2209
    %v2211 = vand.u32 %v2210, 4294901760
    %v2212 = vsub.f32 %v2210, %v2211
    %v2213 = vand.u32 %v2212, 4294901760
    %2214 = vmatprep.subr.mxu0 %v2213
    %v2215 = vand.u32 %v1708, 4294901760
    %v2216 = vsub.f32 %v1708, %v2215
    %v2217 = vand.u32 %v2216, 4294901760
    %v2218 = vsub.f32 %v2216, %v2217
    %v2219 = vand.u32 %v2218, 4294901760
    %2220 = vmatpush1.msra.mxu0 %v2219
    %v2221 = vand.u32 %v1711, 4294901760
    %v2222 = vsub.f32 %v1711, %v2221
    %v2223 = vand.u32 %v2222, 4294901760
    %v2224 = vsub.f32 %v2222, %v2223
    %v2225 = vand.u32 %v2224, 4294901760
    %2226 = vmatprep.subr.mxu0 %v2225
    %v2227 = vand.u32 %v1710, 4294901760
    %v2228 = vsub.f32 %v1710, %v2227
    %v2229 = vand.u32 %v2228, 4294901760
    %v2230 = vsub.f32 %v2228, %v2229
    %v2231 = vand.u32 %v2230, 4294901760
    %2232 = vmatpush1.msra.mxu0 %v2231
    %v2233 = vand.u32 %v1713, 4294901760
    %v2234 = vsub.f32 %v1713, %v2233
    %v2235 = vand.u32 %v2234, 4294901760
    %v2236 = vsub.f32 %v2234, %v2235
    %v2237 = vand.u32 %v2236, 4294901760
    %2238 = vmatprep.subr.mxu0 %v2237
    %v2239 = vand.u32 %v1712, 4294901760
    %v2240 = vsub.f32 %v1712, %v2239
    %v2241 = vand.u32 %v2240, 4294901760
    %v2242 = vsub.f32 %v2240, %v2241
    %v2243 = vand.u32 %v2242, 4294901760
    %2244 = vmatpush1.msra.mxu0 %v2243
    %v2245 = vand.u32 %v1715, 4294901760
    %v2246 = vsub.f32 %v1715, %v2245
    %v2247 = vand.u32 %v2246, 4294901760
    %v2248 = vsub.f32 %v2246, %v2247
    %v2249 = vand.u32 %v2248, 4294901760
    %2250 = vmatprep.subr.mxu0 %v2249
    %v2251 = vand.u32 %v1714, 4294901760
    %v2252 = vsub.f32 %v1714, %v2251
    %v2253 = vand.u32 %v2252, 4294901760
    %v2254 = vsub.f32 %v2252, %v2253
    %v2255 = vand.u32 %v2254, 4294901760
    %2256 = vmatpush1.msra.mxu0 %v2255
    %v2257 = vand.u32 %v1717, 4294901760
    %v2258 = vsub.f32 %v1717, %v2257
    %v2259 = vand.u32 %v2258, 4294901760
    %v2260 = vsub.f32 %v2258, %v2259
    %v2261 = vand.u32 %v2260, 4294901760
    %2262 = vmatprep.subr.mxu0 %v2261
    %v2263 = vand.u32 %v1716, 4294901760
    %v2264 = vsub.f32 %v1716, %v2263
    %v2265 = vand.u32 %v2264, 4294901760
    %v2266 = vsub.f32 %v2264, %v2265
    %v2267 = vand.u32 %v2266, 4294901760
    %2268 = vmatpush1.msra.mxu0 %v2267
    %v2269 = vand.u32 %v1719, 4294901760
    %v2270 = vsub.f32 %v1719, %v2269
    %v2271 = vand.u32 %v2270, 4294901760
    %v2272 = vsub.f32 %v2270, %v2271
    %v2273 = vand.u32 %v2272, 4294901760
    %2274 = vmatprep.subr.mxu0 %v2273
    %v2275 = vand.u32 %v1718, 4294901760
    %v2276 = vsub.f32 %v1718, %v2275
    %v2277 = vand.u32 %v2276, 4294901760
    %v2278 = vsub.f32 %v2276, %v2277
    %v2279 = vand.u32 %v2278, 4294901760
    %2280 = vmatpush1.msra.mxu0 %v2279
    %v2281 = vand.u32 %v1654, 4294901760
    %2282 = vmatprep.mubr.f32.mxu0 %v2281
    %v2283 = vand.u32 %v1653, 4294901760
    %2284 = vmatmul.mubr.f32.gmra.mrb[0].mxu0 %v2283
    %v2285 = vpop.f32.mrb[0].mxu0
    %v2286 = vadd.f32 %v1893, %v2285
    %v2287 = vpop.f32.mrb[0].mxu0
    %v2288 = vadd.f32 %v1895, %v2287
    %2289 = vdwg.mxu0
    %v2290 = vand.u32 %v1657, 4294901760
    %v2291 = vsub.f32 %v1657, %v2290
    %2292 = vmatprep.subr.mxu0 %v2291
    %v2293 = vand.u32 %v1656, 4294901760
    %v2294 = vsub.f32 %v1656, %v2293
    %2295 = vmatpush1.msra.mxu0 %v2294
    %v2296 = vand.u32 %v1659, 4294901760
    %v2297 = vsub.f32 %v1659, %v2296
    %2298 = vmatprep.subr.mxu0 %v2297
    %v2299 = vand.u32 %v1658, 4294901760
    %v2300 = vsub.f32 %v1658, %v2299
    %2301 = vmatpush1.msra.mxu0 %v2300
    %v2302 = vand.u32 %v1661, 4294901760
    %v2303 = vsub.f32 %v1661, %v2302
    %2304 = vmatprep.subr.mxu0 %v2303
    %v2305 = vand.u32 %v1660, 4294901760
    %v2306 = vsub.f32 %v1660, %v2305
    %2307 = vmatpush1.msra.mxu0 %v2306
    %v2308 = vand.u32 %v1663, 4294901760
    %v2309 = vsub.f32 %v1663, %v2308
    %2310 = vmatprep.subr.mxu0 %v2309
    %v2311 = vand.u32 %v1662, 4294901760
    %v2312 = vsub.f32 %v1662, %v2311
    %2313 = vmatpush1.msra.mxu0 %v2312
    %v2314 = vand.u32 %v1665, 4294901760
    %v2315 = vsub.f32 %v1665, %v2314
    %2316 = vmatprep.subr.mxu0 %v2315
    %v2317 = vand.u32 %v1664, 4294901760
    %v2318 = vsub.f32 %v1664, %v2317
    %2319 = vmatpush1.msra.mxu0 %v2318
    %v2320 = vand.u32 %v1667, 4294901760
    %v2321 = vsub.f32 %v1667, %v2320
    %2322 = vmatprep.subr.mxu0 %v2321
    %v2323 = vand.u32 %v1666, 4294901760
    %v2324 = vsub.f32 %v1666, %v2323
    %2325 = vmatpush1.msra.mxu0 %v2324
    %v2326 = vand.u32 %v1669, 4294901760
    %v2327 = vsub.f32 %v1669, %v2326
    %2328 = vmatprep.subr.mxu0 %v2327
    %v2329 = vand.u32 %v1668, 4294901760
    %v2330 = vsub.f32 %v1668, %v2329
    %2331 = vmatpush1.msra.mxu0 %v2330
    %v2332 = vand.u32 %v1671, 4294901760
    %v2333 = vsub.f32 %v1671, %v2332
    %2334 = vmatprep.subr.mxu0 %v2333
    %v2335 = vand.u32 %v1670, 4294901760
    %v2336 = vsub.f32 %v1670, %v2335
    %2337 = vmatpush1.msra.mxu0 %v2336
    %v2338 = vand.u32 %v1673, 4294901760
    %v2339 = vsub.f32 %v1673, %v2338
    %2340 = vmatprep.subr.mxu0 %v2339
    %v2341 = vand.u32 %v1672, 4294901760
    %v2342 = vsub.f32 %v1672, %v2341
    %2343 = vmatpush1.msra.mxu0 %v2342
    %v2344 = vand.u32 %v1675, 4294901760
    %v2345 = vsub.f32 %v1675, %v2344
    %2346 = vmatprep.subr.mxu0 %v2345
    %v2347 = vand.u32 %v1674, 4294901760
    %v2348 = vsub.f32 %v1674, %v2347
    %2349 = vmatpush1.msra.mxu0 %v2348
    %v2350 = vand.u32 %v1677, 4294901760
    %v2351 = vsub.f32 %v1677, %v2350
    %2352 = vmatprep.subr.mxu0 %v2351
    %v2353 = vand.u32 %v1676, 4294901760
    %v2354 = vsub.f32 %v1676, %v2353
    %2355 = vmatpush1.msra.mxu0 %v2354
    %v2356 = vand.u32 %v1679, 4294901760
    %v2357 = vsub.f32 %v1679, %v2356
    %2358 = vmatprep.subr.mxu0 %v2357
    %v2359 = vand.u32 %v1678, 4294901760
    %v2360 = vsub.f32 %v1678, %v2359
    %2361 = vmatpush1.msra.mxu0 %v2360
    %v2362 = vand.u32 %v1681, 4294901760
    %v2363 = vsub.f32 %v1681, %v2362
    %2364 = vmatprep.subr.mxu0 %v2363
    %v2365 = vand.u32 %v1680, 4294901760
    %v2366 = vsub.f32 %v1680, %v2365
    %2367 = vmatpush1.msra.mxu0 %v2366
    %v2368 = vand.u32 %v1683, 4294901760
    %v2369 = vsub.f32 %v1683, %v2368
    %2370 = vmatprep.subr.mxu0 %v2369
    %v2371 = vand.u32 %v1682, 4294901760
    %v2372 = vsub.f32 %v1682, %v2371
    %2373 = vmatpush1.msra.mxu0 %v2372
    %v2374 = vand.u32 %v1685, 4294901760
    %v2375 = vsub.f32 %v1685, %v2374
    %2376 = vmatprep.subr.mxu0 %v2375
    %v2377 = vand.u32 %v1684, 4294901760
    %v2378 = vsub.f32 %v1684, %v2377
    %2379 = vmatpush1.msra.mxu0 %v2378
    %v2380 = vand.u32 %v1687, 4294901760
    %v2381 = vsub.f32 %v1687, %v2380
    %2382 = vmatprep.subr.mxu0 %v2381
    %v2383 = vand.u32 %v1686, 4294901760
    %v2384 = vsub.f32 %v1686, %v2383
    %2385 = vmatpush1.msra.mxu0 %v2384
    %v2386 = vand.u32 %v1689, 4294901760
    %v2387 = vsub.f32 %v1689, %v2386
    %2388 = vmatprep.subr.mxu0 %v2387
    %v2389 = vand.u32 %v1688, 4294901760
    %v2390 = vsub.f32 %v1688, %v2389
    %2391 = vmatpush1.msra.mxu0 %v2390
    %v2392 = vand.u32 %v1691, 4294901760
    %v2393 = vsub.f32 %v1691, %v2392
    %2394 = vmatprep.subr.mxu0 %v2393
    %v2395 = vand.u32 %v1690, 4294901760
    %v2396 = vsub.f32 %v1690, %v2395
    %2397 = vmatpush1.msra.mxu0 %v2396
    %v2398 = vand.u32 %v1693, 4294901760
    %v2399 = vsub.f32 %v1693, %v2398
    %2400 = vmatprep.subr.mxu0 %v2399
    %v2401 = vand.u32 %v1692, 4294901760
    %v2402 = vsub.f32 %v1692, %v2401
    %2403 = vmatpush1.msra.mxu0 %v2402
    %v2404 = vand.u32 %v1695, 4294901760
    %v2405 = vsub.f32 %v1695, %v2404
    %2406 = vmatprep.subr.mxu0 %v2405
    %v2407 = vand.u32 %v1694, 4294901760
    %v2408 = vsub.f32 %v1694, %v2407
    %2409 = vmatpush1.msra.mxu0 %v2408
    %v2410 = vand.u32 %v1697, 4294901760
    %v2411 = vsub.f32 %v1697, %v2410
    %2412 = vmatprep.subr.mxu0 %v2411
    %v2413 = vand.u32 %v1696, 4294901760
    %v2414 = vsub.f32 %v1696, %v2413
    %2415 = vmatpush1.msra.mxu0 %v2414
    %v2416 = vand.u32 %v1699, 4294901760
    %v2417 = vsub.f32 %v1699, %v2416
    %2418 = vmatprep.subr.mxu0 %v2417
    %v2419 = vand.u32 %v1698, 4294901760
    %v2420 = vsub.f32 %v1698, %v2419
    %2421 = vmatpush1.msra.mxu0 %v2420
    %v2422 = vand.u32 %v1701, 4294901760
    %v2423 = vsub.f32 %v1701, %v2422
    %2424 = vmatprep.subr.mxu0 %v2423
    %v2425 = vand.u32 %v1700, 4294901760
    %v2426 = vsub.f32 %v1700, %v2425
    %2427 = vmatpush1.msra.mxu0 %v2426
    %v2428 = vand.u32 %v1703, 4294901760
    %v2429 = vsub.f32 %v1703, %v2428
    %2430 = vmatprep.subr.mxu0 %v2429
    %v2431 = vand.u32 %v1702, 4294901760
    %v2432 = vsub.f32 %v1702, %v2431
    %2433 = vmatpush1.msra.mxu0 %v2432
    %v2434 = vand.u32 %v1705, 4294901760
    %v2435 = vsub.f32 %v1705, %v2434
    %2436 = vmatprep.subr.mxu0 %v2435
    %v2437 = vand.u32 %v1704, 4294901760
    %v2438 = vsub.f32 %v1704, %v2437
    %2439 = vmatpush1.msra.mxu0 %v2438
    %v2440 = vand.u32 %v1707, 4294901760
    %v2441 = vsub.f32 %v1707, %v2440
    %2442 = vmatprep.subr.mxu0 %v2441
    %v2443 = vand.u32 %v1706, 4294901760
    %v2444 = vsub.f32 %v1706, %v2443
    %2445 = vmatpush1.msra.mxu0 %v2444
    %v2446 = vand.u32 %v1709, 4294901760
    %v2447 = vsub.f32 %v1709, %v2446
    %2448 = vmatprep.subr.mxu0 %v2447
    %v2449 = vand.u32 %v1708, 4294901760
    %v2450 = vsub.f32 %v1708, %v2449
    %2451 = vmatpush1.msra.mxu0 %v2450
    %v2452 = vand.u32 %v1711, 4294901760
    %v2453 = vsub.f32 %v1711, %v2452
    %2454 = vmatprep.subr.mxu0 %v2453
    %v2455 = vand.u32 %v1710, 4294901760
    %v2456 = vsub.f32 %v1710, %v2455
    %2457 = vmatpush1.msra.mxu0 %v2456
    %v2458 = vand.u32 %v1713, 4294901760
    %v2459 = vsub.f32 %v1713, %v2458
    %2460 = vmatprep.subr.mxu0 %v2459
    %v2461 = vand.u32 %v1712, 4294901760
    %v2462 = vsub.f32 %v1712, %v2461
    %2463 = vmatpush1.msra.mxu0 %v2462
    %v2464 = vand.u32 %v1715, 4294901760
    %v2465 = vsub.f32 %v1715, %v2464
    %2466 = vmatprep.subr.mxu0 %v2465
    %v2467 = vand.u32 %v1714, 4294901760
    %v2468 = vsub.f32 %v1714, %v2467
    %2469 = vmatpush1.msra.mxu0 %v2468
    %v2470 = vand.u32 %v1717, 4294901760
    %v2471 = vsub.f32 %v1717, %v2470
    %2472 = vmatprep.subr.mxu0 %v2471
    %v2473 = vand.u32 %v1716, 4294901760
    %v2474 = vsub.f32 %v1716, %v2473
    %2475 = vmatpush1.msra.mxu0 %v2474
    %v2476 = vand.u32 %v1719, 4294901760
    %v2477 = vsub.f32 %v1719, %v2476
    %2478 = vmatprep.subr.mxu0 %v2477
    %v2479 = vand.u32 %v1718, 4294901760
    %v2480 = vsub.f32 %v1718, %v2479
    %2481 = vmatpush1.msra.mxu0 %v2480
    %v2482 = vand.u32 %v1654, 4294901760
    %v2483 = vsub.f32 %v1654, %v2482
    %2484 = vmatprep.mubr.f32.mxu0 %v2483
    %v2485 = vand.u32 %v1653, 4294901760
    %v2486 = vsub.f32 %v1653, %v2485
    %2487 = vmatmul.mubr.f32.gmra.mrb[0].mxu0 %v2486
    %v2488 = vpop.f32.mrb[0].mxu0
    %v2489 = vadd.f32 %v2286, %v2488
    %v2490 = vpop.f32.mrb[0].mxu0
    %v2491 = vadd.f32 %v2288, %v2490
    %2492 = vdwg.mxu0
    %v2493 = vand.u32 %v1657, 4294901760
    %2494 = vmatprep.subr.mxu0 %v2493
    %v2495 = vand.u32 %v1656, 4294901760
    %2496 = vmatpush1.msra.mxu0 %v2495
    %v2497 = vand.u32 %v1659, 4294901760
    %2498 = vmatprep.subr.mxu0 %v2497
    %v2499 = vand.u32 %v1658, 4294901760
    %2500 = vmatpush1.msra.mxu0 %v2499
    %v2501 = vand.u32 %v1661, 4294901760
    %2502 = vmatprep.subr.mxu0 %v2501
    %v2503 = vand.u32 %v1660, 4294901760
    %2504 = vmatpush1.msra.mxu0 %v2503
    %v2505 = vand.u32 %v1663, 4294901760
    %2506 = vmatprep.subr.mxu0 %v2505
    %v2507 = vand.u32 %v1662, 4294901760
    %2508 = vmatpush1.msra.mxu0 %v2507
    %v2509 = vand.u32 %v1665, 4294901760
    %2510 = vmatprep.subr.mxu0 %v2509
    %v2511 = vand.u32 %v1664, 4294901760
    %2512 = vmatpush1.msra.mxu0 %v2511
    %v2513 = vand.u32 %v1667, 4294901760
    %2514 = vmatprep.subr.mxu0 %v2513
    %v2515 = vand.u32 %v1666, 4294901760
    %2516 = vmatpush1.msra.mxu0 %v2515
    %v2517 = vand.u32 %v1669, 4294901760
    %2518 = vmatprep.subr.mxu0 %v2517
    %v2519 = vand.u32 %v1668, 4294901760
    %2520 = vmatpush1.msra.mxu0 %v2519
    %v2521 = vand.u32 %v1671, 4294901760
    %2522 = vmatprep.subr.mxu0 %v2521
    %v2523 = vand.u32 %v1670, 4294901760
    %2524 = vmatpush1.msra.mxu0 %v2523
    %v2525 = vand.u32 %v1673, 4294901760
    %2526 = vmatprep.subr.mxu0 %v2525
    %v2527 = vand.u32 %v1672, 4294901760
    %2528 = vmatpush1.msra.mxu0 %v2527
    %v2529 = vand.u32 %v1675, 4294901760
    %2530 = vmatprep.subr.mxu0 %v2529
    %v2531 = vand.u32 %v1674, 4294901760
    %2532 = vmatpush1.msra.mxu0 %v2531
    %v2533 = vand.u32 %v1677, 4294901760
    %2534 = vmatprep.subr.mxu0 %v2533
    %v2535 = vand.u32 %v1676, 4294901760
    %2536 = vmatpush1.msra.mxu0 %v2535
    %v2537 = vand.u32 %v1679, 4294901760
    %2538 = vmatprep.subr.mxu0 %v2537
    %v2539 = vand.u32 %v1678, 4294901760
    %2540 = vmatpush1.msra.mxu0 %v2539
    %v2541 = vand.u32 %v1681, 4294901760
    %2542 = vmatprep.subr.mxu0 %v2541
    %v2543 = vand.u32 %v1680, 4294901760
    %2544 = vmatpush1.msra.mxu0 %v2543
    %v2545 = vand.u32 %v1683, 4294901760
    %2546 = vmatprep.subr.mxu0 %v2545
    %v2547 = vand.u32 %v1682, 4294901760
    %2548 = vmatpush1.msra.mxu0 %v2547
    %v2549 = vand.u32 %v1685, 4294901760
    %2550 = vmatprep.subr.mxu0 %v2549
    %v2551 = vand.u32 %v1684, 4294901760
    %2552 = vmatpush1.msra.mxu0 %v2551
    %v2553 = vand.u32 %v1687, 4294901760
    %2554 = vmatprep.subr.mxu0 %v2553
    %v2555 = vand.u32 %v1686, 4294901760
    %2556 = vmatpush1.msra.mxu0 %v2555
    %v2557 = vand.u32 %v1689, 4294901760
    %2558 = vmatprep.subr.mxu0 %v2557
    %v2559 = vand.u32 %v1688, 4294901760
    %2560 = vmatpush1.msra.mxu0 %v2559
    %v2561 = vand.u32 %v1691, 4294901760
    %2562 = vmatprep.subr.mxu0 %v2561
    %v2563 = vand.u32 %v1690, 4294901760
    %2564 = vmatpush1.msra.mxu0 %v2563
    %v2565 = vand.u32 %v1693, 4294901760
    %2566 = vmatprep.subr.mxu0 %v2565
    %v2567 = vand.u32 %v1692, 4294901760
    %2568 = vmatpush1.msra.mxu0 %v2567
    %v2569 = vand.u32 %v1695, 4294901760
    %2570 = vmatprep.subr.mxu0 %v2569
    %v2571 = vand.u32 %v1694, 4294901760
    %2572 = vmatpush1.msra.mxu0 %v2571
    %v2573 = vand.u32 %v1697, 4294901760
    %2574 = vmatprep.subr.mxu0 %v2573
    %v2575 = vand.u32 %v1696, 4294901760
    %2576 = vmatpush1.msra.mxu0 %v2575
    %v2577 = vand.u32 %v1699, 4294901760
    %2578 = vmatprep.subr.mxu0 %v2577
    %v2579 = vand.u32 %v1698, 4294901760
    %2580 = vmatpush1.msra.mxu0 %v2579
    %v2581 = vand.u32 %v1701, 4294901760
    %2582 = vmatprep.subr.mxu0 %v2581
    %v2583 = vand.u32 %v1700, 4294901760
    %2584 = vmatpush1.msra.mxu0 %v2583
    %v2585 = vand.u32 %v1703, 4294901760
    %2586 = vmatprep.subr.mxu0 %v2585
    %v2587 = vand.u32 %v1702, 4294901760
    %2588 = vmatpush1.msra.mxu0 %v2587
    %v2589 = vand.u32 %v1705, 4294901760
    %2590 = vmatprep.subr.mxu0 %v2589
    %v2591 = vand.u32 %v1704, 4294901760
    %2592 = vmatpush1.msra.mxu0 %v2591
    %v2593 = vand.u32 %v1707, 4294901760
    %2594 = vmatprep.subr.mxu0 %v2593
    %v2595 = vand.u32 %v1706, 4294901760
    %2596 = vmatpush1.msra.mxu0 %v2595
    %v2597 = vand.u32 %v1709, 4294901760
    %2598 = vmatprep.subr.mxu0 %v2597
    %v2599 = vand.u32 %v1708, 4294901760
    %2600 = vmatpush1.msra.mxu0 %v2599
    %v2601 = vand.u32 %v1711, 4294901760
    %2602 = vmatprep.subr.mxu0 %v2601
    %v2603 = vand.u32 %v1710, 4294901760
    %2604 = vmatpush1.msra.mxu0 %v2603
    %v2605 = vand.u32 %v1713, 4294901760
    %2606 = vmatprep.subr.mxu0 %v2605
    %v2607 = vand.u32 %v1712, 4294901760
    %2608 = vmatpush1.msra.mxu0 %v2607
    %v2609 = vand.u32 %v1715, 4294901760
    %2610 = vmatprep.subr.mxu0 %v2609
    %v2611 = vand.u32 %v1714, 4294901760
    %2612 = vmatpush1.msra.mxu0 %v2611
    %v2613 = vand.u32 %v1717, 4294901760
    %2614 = vmatprep.subr.mxu0 %v2613
    %v2615 = vand.u32 %v1716, 4294901760
    %2616 = vmatpush1.msra.mxu0 %v2615
    %v2617 = vand.u32 %v1719, 4294901760
    %2618 = vmatprep.subr.mxu0 %v2617
    %v2619 = vand.u32 %v1718, 4294901760
    %2620 = vmatpush1.msra.mxu0 %v2619
    %v2621 = vand.u32 %v1654, 4294901760
    %v2622 = vsub.f32 %v1654, %v2621
    %v2623 = vand.u32 %v2622, 4294901760
    %2624 = vmatprep.mubr.f32.mxu0 %v2623
    %v2625 = vand.u32 %v1653, 4294901760
    %v2626 = vsub.f32 %v1653, %v2625
    %v2627 = vand.u32 %v2626, 4294901760
    %2628 = vmatmul.mubr.f32.gmra.mrb[0].mxu0 %v2627
    %v2629 = vpop.f32.mrb[0].mxu0
    %v2630 = vadd.f32 %v2489, %v2629
    %v2631 = vpop.f32.mrb[0].mxu0
    %v2632 = vadd.f32 %v2491, %v2631
    %2633 = vdwg.mxu0
    %v2634 = vand.u32 %v1657, 4294901760
    %v2635 = vsub.f32 %v1657, %v2634
    %v2636 = vand.u32 %v2635, 4294901760
    %2637 = vmatprep.subr.mxu0 %v2636
    %v2638 = vand.u32 %v1656, 4294901760
    %v2639 = vsub.f32 %v1656, %v2638
    %v2640 = vand.u32 %v2639, 4294901760
    %2641 = vmatpush1.msra.mxu0 %v2640
    %v2642 = vand.u32 %v1659, 4294901760
    %v2643 = vsub.f32 %v1659, %v2642
    %v2644 = vand.u32 %v2643, 4294901760
    %2645 = vmatprep.subr.mxu0 %v2644
    %v2646 = vand.u32 %v1658, 4294901760
    %v2647 = vsub.f32 %v1658, %v2646
    %v2648 = vand.u32 %v2647, 4294901760
    %2649 = vmatpush1.msra.mxu0 %v2648
    %v2650 = vand.u32 %v1661, 4294901760
    %v2651 = vsub.f32 %v1661, %v2650
    %v2652 = vand.u32 %v2651, 4294901760
    %2653 = vmatprep.subr.mxu0 %v2652
    %v2654 = vand.u32 %v1660, 4294901760
    %v2655 = vsub.f32 %v1660, %v2654
    %v2656 = vand.u32 %v2655, 4294901760
    %2657 = vmatpush1.msra.mxu0 %v2656
    %v2658 = vand.u32 %v1663, 4294901760
    %v2659 = vsub.f32 %v1663, %v2658
    %v2660 = vand.u32 %v2659, 4294901760
    %2661 = vmatprep.subr.mxu0 %v2660
    %v2662 = vand.u32 %v1662, 4294901760
    %v2663 = vsub.f32 %v1662, %v2662
    %v2664 = vand.u32 %v2663, 4294901760
    %2665 = vmatpush1.msra.mxu0 %v2664
    %v2666 = vand.u32 %v1665, 4294901760
    %v2667 = vsub.f32 %v1665, %v2666
    %v2668 = vand.u32 %v2667, 4294901760
    %2669 = vmatprep.subr.mxu0 %v2668
    %v2670 = vand.u32 %v1664, 4294901760
    %v2671 = vsub.f32 %v1664, %v2670
    %v2672 = vand.u32 %v2671, 4294901760
    %2673 = vmatpush1.msra.mxu0 %v2672
    %v2674 = vand.u32 %v1667, 4294901760
    %v2675 = vsub.f32 %v1667, %v2674
    %v2676 = vand.u32 %v2675, 4294901760
    %2677 = vmatprep.subr.mxu0 %v2676
    %v2678 = vand.u32 %v1666, 4294901760
    %v2679 = vsub.f32 %v1666, %v2678
    %v2680 = vand.u32 %v2679, 4294901760
    %2681 = vmatpush1.msra.mxu0 %v2680
    %v2682 = vand.u32 %v1669, 4294901760
    %v2683 = vsub.f32 %v1669, %v2682
    %v2684 = vand.u32 %v2683, 4294901760
    %2685 = vmatprep.subr.mxu0 %v2684
    %v2686 = vand.u32 %v1668, 4294901760
    %v2687 = vsub.f32 %v1668, %v2686
    %v2688 = vand.u32 %v2687, 4294901760
    %2689 = vmatpush1.msra.mxu0 %v2688
    %v2690 = vand.u32 %v1671, 4294901760
    %v2691 = vsub.f32 %v1671, %v2690
    %v2692 = vand.u32 %v2691, 4294901760
    %2693 = vmatprep.subr.mxu0 %v2692
    %v2694 = vand.u32 %v1670, 4294901760
    %v2695 = vsub.f32 %v1670, %v2694
    %v2696 = vand.u32 %v2695, 4294901760
    %2697 = vmatpush1.msra.mxu0 %v2696
    %v2698 = vand.u32 %v1673, 4294901760
    %v2699 = vsub.f32 %v1673, %v2698
    %v2700 = vand.u32 %v2699, 4294901760
    %2701 = vmatprep.subr.mxu0 %v2700
    %v2702 = vand.u32 %v1672, 4294901760
    %v2703 = vsub.f32 %v1672, %v2702
    %v2704 = vand.u32 %v2703, 4294901760
    %2705 = vmatpush1.msra.mxu0 %v2704
    %v2706 = vand.u32 %v1675, 4294901760
    %v2707 = vsub.f32 %v1675, %v2706
    %v2708 = vand.u32 %v2707, 4294901760
    %2709 = vmatprep.subr.mxu0 %v2708
    %v2710 = vand.u32 %v1674, 4294901760
    %v2711 = vsub.f32 %v1674, %v2710
    %v2712 = vand.u32 %v2711, 4294901760
    %2713 = vmatpush1.msra.mxu0 %v2712
    %v2714 = vand.u32 %v1677, 4294901760
    %v2715 = vsub.f32 %v1677, %v2714
    %v2716 = vand.u32 %v2715, 4294901760
    %2717 = vmatprep.subr.mxu0 %v2716
    %v2718 = vand.u32 %v1676, 4294901760
    %v2719 = vsub.f32 %v1676, %v2718
    %v2720 = vand.u32 %v2719, 4294901760
    %2721 = vmatpush1.msra.mxu0 %v2720
    %v2722 = vand.u32 %v1679, 4294901760
    %v2723 = vsub.f32 %v1679, %v2722
    %v2724 = vand.u32 %v2723, 4294901760
    %2725 = vmatprep.subr.mxu0 %v2724
    %v2726 = vand.u32 %v1678, 4294901760
    %v2727 = vsub.f32 %v1678, %v2726
    %v2728 = vand.u32 %v2727, 4294901760
    %2729 = vmatpush1.msra.mxu0 %v2728
    %v2730 = vand.u32 %v1681, 4294901760
    %v2731 = vsub.f32 %v1681, %v2730
    %v2732 = vand.u32 %v2731, 4294901760
    %2733 = vmatprep.subr.mxu0 %v2732
    %v2734 = vand.u32 %v1680, 4294901760
    %v2735 = vsub.f32 %v1680, %v2734
    %v2736 = vand.u32 %v2735, 4294901760
    %2737 = vmatpush1.msra.mxu0 %v2736
    %v2738 = vand.u32 %v1683, 4294901760
    %v2739 = vsub.f32 %v1683, %v2738
    %v2740 = vand.u32 %v2739, 4294901760
    %2741 = vmatprep.subr.mxu0 %v2740
    %v2742 = vand.u32 %v1682, 4294901760
    %v2743 = vsub.f32 %v1682, %v2742
    %v2744 = vand.u32 %v2743, 4294901760
    %2745 = vmatpush1.msra.mxu0 %v2744
    %v2746 = vand.u32 %v1685, 4294901760
    %v2747 = vsub.f32 %v1685, %v2746
    %v2748 = vand.u32 %v2747, 4294901760
    %2749 = vmatprep.subr.mxu0 %v2748
    %v2750 = vand.u32 %v1684, 4294901760
    %v2751 = vsub.f32 %v1684, %v2750
    %v2752 = vand.u32 %v2751, 4294901760
    %2753 = vmatpush1.msra.mxu0 %v2752
    %v2754 = vand.u32 %v1687, 4294901760
    %v2755 = vsub.f32 %v1687, %v2754
    %v2756 = vand.u32 %v2755, 4294901760
    %2757 = vmatprep.subr.mxu0 %v2756
    %v2758 = vand.u32 %v1686, 4294901760
    %v2759 = vsub.f32 %v1686, %v2758
    %v2760 = vand.u32 %v2759, 4294901760
    %2761 = vmatpush1.msra.mxu0 %v2760
    %v2762 = vand.u32 %v1689, 4294901760
    %v2763 = vsub.f32 %v1689, %v2762
    %v2764 = vand.u32 %v2763, 4294901760
    %2765 = vmatprep.subr.mxu0 %v2764
    %v2766 = vand.u32 %v1688, 4294901760
    %v2767 = vsub.f32 %v1688, %v2766
    %v2768 = vand.u32 %v2767, 4294901760
    %2769 = vmatpush1.msra.mxu0 %v2768
    %v2770 = vand.u32 %v1691, 4294901760
    %v2771 = vsub.f32 %v1691, %v2770
    %v2772 = vand.u32 %v2771, 4294901760
    %2773 = vmatprep.subr.mxu0 %v2772
    %v2774 = vand.u32 %v1690, 4294901760
    %v2775 = vsub.f32 %v1690, %v2774
    %v2776 = vand.u32 %v2775, 4294901760
    %2777 = vmatpush1.msra.mxu0 %v2776
    %v2778 = vand.u32 %v1693, 4294901760
    %v2779 = vsub.f32 %v1693, %v2778
    %v2780 = vand.u32 %v2779, 4294901760
    %2781 = vmatprep.subr.mxu0 %v2780
    %v2782 = vand.u32 %v1692, 4294901760
    %v2783 = vsub.f32 %v1692, %v2782
    %v2784 = vand.u32 %v2783, 4294901760
    %2785 = vmatpush1.msra.mxu0 %v2784
    %v2786 = vand.u32 %v1695, 4294901760
    %v2787 = vsub.f32 %v1695, %v2786
    %v2788 = vand.u32 %v2787, 4294901760
    %2789 = vmatprep.subr.mxu0 %v2788
    %v2790 = vand.u32 %v1694, 4294901760
    %v2791 = vsub.f32 %v1694, %v2790
    %v2792 = vand.u32 %v2791, 4294901760
    %2793 = vmatpush1.msra.mxu0 %v2792
    %v2794 = vand.u32 %v1697, 4294901760
    %v2795 = vsub.f32 %v1697, %v2794
    %v2796 = vand.u32 %v2795, 4294901760
    %2797 = vmatprep.subr.mxu0 %v2796
    %v2798 = vand.u32 %v1696, 4294901760
    %v2799 = vsub.f32 %v1696, %v2798
    %v2800 = vand.u32 %v2799, 4294901760
    %2801 = vmatpush1.msra.mxu0 %v2800
    %v2802 = vand.u32 %v1699, 4294901760
    %v2803 = vsub.f32 %v1699, %v2802
    %v2804 = vand.u32 %v2803, 4294901760
    %2805 = vmatprep.subr.mxu0 %v2804
    %v2806 = vand.u32 %v1698, 4294901760
    %v2807 = vsub.f32 %v1698, %v2806
    %v2808 = vand.u32 %v2807, 4294901760
    %2809 = vmatpush1.msra.mxu0 %v2808
    %v2810 = vand.u32 %v1701, 4294901760
    %v2811 = vsub.f32 %v1701, %v2810
    %v2812 = vand.u32 %v2811, 4294901760
    %2813 = vmatprep.subr.mxu0 %v2812
    %v2814 = vand.u32 %v1700, 4294901760
    %v2815 = vsub.f32 %v1700, %v2814
    %v2816 = vand.u32 %v2815, 4294901760
    %2817 = vmatpush1.msra.mxu0 %v2816
    %v2818 = vand.u32 %v1703, 4294901760
    %v2819 = vsub.f32 %v1703, %v2818
    %v2820 = vand.u32 %v2819, 4294901760
    %2821 = vmatprep.subr.mxu0 %v2820
    %v2822 = vand.u32 %v1702, 4294901760
    %v2823 = vsub.f32 %v1702, %v2822
    %v2824 = vand.u32 %v2823, 4294901760
    %2825 = vmatpush1.msra.mxu0 %v2824
    %v2826 = vand.u32 %v1705, 4294901760
    %v2827 = vsub.f32 %v1705, %v2826
    %v2828 = vand.u32 %v2827, 4294901760
    %2829 = vmatprep.subr.mxu0 %v2828
    %v2830 = vand.u32 %v1704, 4294901760
    %v2831 = vsub.f32 %v1704, %v2830
    %v2832 = vand.u32 %v2831, 4294901760
    %2833 = vmatpush1.msra.mxu0 %v2832
    %v2834 = vand.u32 %v1707, 4294901760
    %v2835 = vsub.f32 %v1707, %v2834
    %v2836 = vand.u32 %v2835, 4294901760
    %2837 = vmatprep.subr.mxu0 %v2836
    %v2838 = vand.u32 %v1706, 4294901760
    %v2839 = vsub.f32 %v1706, %v2838
    %v2840 = vand.u32 %v2839, 4294901760
    %2841 = vmatpush1.msra.mxu0 %v2840
    %v2842 = vand.u32 %v1709, 4294901760
    %v2843 = vsub.f32 %v1709, %v2842
    %v2844 = vand.u32 %v2843, 4294901760
    %2845 = vmatprep.subr.mxu0 %v2844
    %v2846 = vand.u32 %v1708, 4294901760
    %v2847 = vsub.f32 %v1708, %v2846
    %v2848 = vand.u32 %v2847, 4294901760
    %2849 = vmatpush1.msra.mxu0 %v2848
    %v2850 = vand.u32 %v1711, 4294901760
    %v2851 = vsub.f32 %v1711, %v2850
    %v2852 = vand.u32 %v2851, 4294901760
    %2853 = vmatprep.subr.mxu0 %v2852
    %v2854 = vand.u32 %v1710, 4294901760
    %v2855 = vsub.f32 %v1710, %v2854
    %v2856 = vand.u32 %v2855, 4294901760
    %2857 = vmatpush1.msra.mxu0 %v2856
    %v2858 = vand.u32 %v1713, 4294901760
    %v2859 = vsub.f32 %v1713, %v2858
    %v2860 = vand.u32 %v2859, 4294901760
    %2861 = vmatprep.subr.mxu0 %v2860
    %v2862 = vand.u32 %v1712, 4294901760
    %v2863 = vsub.f32 %v1712, %v2862
    %v2864 = vand.u32 %v2863, 4294901760
    %2865 = vmatpush1.msra.mxu0 %v2864
    %v2866 = vand.u32 %v1715, 4294901760
    %v2867 = vsub.f32 %v1715, %v2866
    %v2868 = vand.u32 %v2867, 4294901760
    %2869 = vmatprep.subr.mxu0 %v2868
    %v2870 = vand.u32 %v1714, 4294901760
    %v2871 = vsub.f32 %v1714, %v2870
    %v2872 = vand.u32 %v2871, 4294901760
    %2873 = vmatpush1.msra.mxu0 %v2872
    %v2874 = vand.u32 %v1717, 4294901760
    %v2875 = vsub.f32 %v1717, %v2874
    %v2876 = vand.u32 %v2875, 4294901760
    %2877 = vmatprep.subr.mxu0 %v2876
    %v2878 = vand.u32 %v1716, 4294901760
    %v2879 = vsub.f32 %v1716, %v2878
    %v2880 = vand.u32 %v2879, 4294901760
    %2881 = vmatpush1.msra.mxu0 %v2880
    %v2882 = vand.u32 %v1719, 4294901760
    %v2883 = vsub.f32 %v1719, %v2882
    %v2884 = vand.u32 %v2883, 4294901760
    %2885 = vmatprep.subr.mxu0 %v2884
    %v2886 = vand.u32 %v1718, 4294901760
    %v2887 = vsub.f32 %v1718, %v2886
    %v2888 = vand.u32 %v2887, 4294901760
    %2889 = vmatpush1.msra.mxu0 %v2888
    %v2890 = vand.u32 %v1654, 4294901760
    %2891 = vmatprep.mubr.f32.mxu0 %v2890
    %v2892 = vand.u32 %v1653, 4294901760
    %2893 = vmatmul.mubr.f32.gmra.mrb[0].mxu0 %v2892
    %v2894 = vpop.f32.mrb[0].mxu0
    %v2895 = vadd.f32 %v2630, %v2894
    %v2896 = vpop.f32.mrb[0].mxu0
    %v2897 = vadd.f32 %v2632, %v2896
    %2898 = vdwg.mxu0
    %v2899 = vand.u32 %v1657, 4294901760
    %2900 = vmatprep.subr.mxu0 %v2899
    %v2901 = vand.u32 %v1656, 4294901760
    %2902 = vmatpush1.msra.mxu0 %v2901
    %v2903 = vand.u32 %v1659, 4294901760
    %2904 = vmatprep.subr.mxu0 %v2903
    %v2905 = vand.u32 %v1658, 4294901760
    %2906 = vmatpush1.msra.mxu0 %v2905
    %v2907 = vand.u32 %v1661, 4294901760
    %2908 = vmatprep.subr.mxu0 %v2907
    %v2909 = vand.u32 %v1660, 4294901760
    %2910 = vmatpush1.msra.mxu0 %v2909
    %v2911 = vand.u32 %v1663, 4294901760
    %2912 = vmatprep.subr.mxu0 %v2911
    %v2913 = vand.u32 %v1662, 4294901760
    %2914 = vmatpush1.msra.mxu0 %v2913
    %v2915 = vand.u32 %v1665, 4294901760
    %2916 = vmatprep.subr.mxu0 %v2915
    %v2917 = vand.u32 %v1664, 4294901760
    %2918 = vmatpush1.msra.mxu0 %v2917
    %v2919 = vand.u32 %v1667, 4294901760
    %2920 = vmatprep.subr.mxu0 %v2919
    %v2921 = vand.u32 %v1666, 4294901760
    %2922 = vmatpush1.msra.mxu0 %v2921
    %v2923 = vand.u32 %v1669, 4294901760
    %2924 = vmatprep.subr.mxu0 %v2923
    %v2925 = vand.u32 %v1668, 4294901760
    %2926 = vmatpush1.msra.mxu0 %v2925
    %v2927 = vand.u32 %v1671, 4294901760
    %2928 = vmatprep.subr.mxu0 %v2927
    %v2929 = vand.u32 %v1670, 4294901760
    %2930 = vmatpush1.msra.mxu0 %v2929
    %v2931 = vand.u32 %v1673, 4294901760
    %2932 = vmatprep.subr.mxu0 %v2931
    %v2933 = vand.u32 %v1672, 4294901760
    %2934 = vmatpush1.msra.mxu0 %v2933
    %v2935 = vand.u32 %v1675, 4294901760
    %2936 = vmatprep.subr.mxu0 %v2935
    %v2937 = vand.u32 %v1674, 4294901760
    %2938 = vmatpush1.msra.mxu0 %v2937
    %v2939 = vand.u32 %v1677, 4294901760
    %2940 = vmatprep.subr.mxu0 %v2939
    %v2941 = vand.u32 %v1676, 4294901760
    %2942 = vmatpush1.msra.mxu0 %v2941
    %v2943 = vand.u32 %v1679, 4294901760
    %2944 = vmatprep.subr.mxu0 %v2943
    %v2945 = vand.u32 %v1678, 4294901760
    %2946 = vmatpush1.msra.mxu0 %v2945
    %v2947 = vand.u32 %v1681, 4294901760
    %2948 = vmatprep.subr.mxu0 %v2947
    %v2949 = vand.u32 %v1680, 4294901760
    %2950 = vmatpush1.msra.mxu0 %v2949
    %v2951 = vand.u32 %v1683, 4294901760
    %2952 = vmatprep.subr.mxu0 %v2951
    %v2953 = vand.u32 %v1682, 4294901760
    %2954 = vmatpush1.msra.mxu0 %v2953
    %v2955 = vand.u32 %v1685, 4294901760
    %2956 = vmatprep.subr.mxu0 %v2955
    %v2957 = vand.u32 %v1684, 4294901760
    %2958 = vmatpush1.msra.mxu0 %v2957
    %v2959 = vand.u32 %v1687, 4294901760
    %2960 = vmatprep.subr.mxu0 %v2959
    %v2961 = vand.u32 %v1686, 4294901760
    %2962 = vmatpush1.msra.mxu0 %v2961
    %v2963 = vand.u32 %v1689, 4294901760
    %2964 = vmatprep.subr.mxu0 %v2963
    %v2965 = vand.u32 %v1688, 4294901760
    %2966 = vmatpush1.msra.mxu0 %v2965
    %v2967 = vand.u32 %v1691, 4294901760
    %2968 = vmatprep.subr.mxu0 %v2967
    %v2969 = vand.u32 %v1690, 4294901760
    %2970 = vmatpush1.msra.mxu0 %v2969
    %v2971 = vand.u32 %v1693, 4294901760
    %2972 = vmatprep.subr.mxu0 %v2971
    %v2973 = vand.u32 %v1692, 4294901760
    %2974 = vmatpush1.msra.mxu0 %v2973
    %v2975 = vand.u32 %v1695, 4294901760
    %2976 = vmatprep.subr.mxu0 %v2975
    %v2977 = vand.u32 %v1694, 4294901760
    %2978 = vmatpush1.msra.mxu0 %v2977
    %v2979 = vand.u32 %v1697, 4294901760
    %2980 = vmatprep.subr.mxu0 %v2979
    %v2981 = vand.u32 %v1696, 4294901760
    %2982 = vmatpush1.msra.mxu0 %v2981
    %v2983 = vand.u32 %v1699, 4294901760
    %2984 = vmatprep.subr.mxu0 %v2983
    %v2985 = vand.u32 %v1698, 4294901760
    %2986 = vmatpush1.msra.mxu0 %v2985
    %v2987 = vand.u32 %v1701, 4294901760
    %2988 = vmatprep.subr.mxu0 %v2987
    %v2989 = vand.u32 %v1700, 4294901760
    %2990 = vmatpush1.msra.mxu0 %v2989
    %v2991 = vand.u32 %v1703, 4294901760
    %2992 = vmatprep.subr.mxu0 %v2991
    %v2993 = vand.u32 %v1702, 4294901760
    %2994 = vmatpush1.msra.mxu0 %v2993
    %v2995 = vand.u32 %v1705, 4294901760
    %2996 = vmatprep.subr.mxu0 %v2995
    %v2997 = vand.u32 %v1704, 4294901760
    %2998 = vmatpush1.msra.mxu0 %v2997
    %v2999 = vand.u32 %v1707, 4294901760
    %3000 = vmatprep.subr.mxu0 %v2999
    %v3001 = vand.u32 %v1706, 4294901760
    %3002 = vmatpush1.msra.mxu0 %v3001
    %v3003 = vand.u32 %v1709, 4294901760
    %3004 = vmatprep.subr.mxu0 %v3003
    %v3005 = vand.u32 %v1708, 4294901760
    %3006 = vmatpush1.msra.mxu0 %v3005
    %v3007 = vand.u32 %v1711, 4294901760
    %3008 = vmatprep.subr.mxu0 %v3007
    %v3009 = vand.u32 %v1710, 4294901760
    %3010 = vmatpush1.msra.mxu0 %v3009
    %v3011 = vand.u32 %v1713, 4294901760
    %3012 = vmatprep.subr.mxu0 %v3011
    %v3013 = vand.u32 %v1712, 4294901760
    %3014 = vmatpush1.msra.mxu0 %v3013
    %v3015 = vand.u32 %v1715, 4294901760
    %3016 = vmatprep.subr.mxu0 %v3015
    %v3017 = vand.u32 %v1714, 4294901760
    %3018 = vmatpush1.msra.mxu0 %v3017
    %v3019 = vand.u32 %v1717, 4294901760
    %3020 = vmatprep.subr.mxu0 %v3019
    %v3021 = vand.u32 %v1716, 4294901760
    %3022 = vmatpush1.msra.mxu0 %v3021
    %v3023 = vand.u32 %v1719, 4294901760
    %3024 = vmatprep.subr.mxu0 %v3023
    %v3025 = vand.u32 %v1718, 4294901760
    %3026 = vmatpush1.msra.mxu0 %v3025
    %v3027 = vand.u32 %v1654, 4294901760
    %3028 = vmatprep.mubr.f32.mxu0 %v3027
    %v3029 = vand.u32 %v1653, 4294901760
    %3030 = vmatmul.mubr.f32.gmra.mrb[0].mxu0 %v3029
    %v3031 = vpop.f32.mrb[0].mxu0
    %v3032 = vadd.f32 %v2895, %v3031
    %v3033 = vpop.f32.mrb[0].mxu0
    %v3034 = vadd.f32 %v2897, %v3033
    %3035 = vdwg.mxu0
    %v3036 = vand.u32 %v1721, 4294901760
    %3037 = vmatprep.subr.mxu0 %v3036
    %v3038 = vand.u32 %v1720, 4294901760
    %3039 = vmatpush1.msra.mxu0 %v3038
    %v3040 = vand.u32 %v1723, 4294901760
    %3041 = vmatprep.subr.mxu0 %v3040
    %v3042 = vand.u32 %v1722, 4294901760
    %3043 = vmatpush1.msra.mxu0 %v3042
    %v3044 = vand.u32 %v1725, 4294901760
    %3045 = vmatprep.subr.mxu0 %v3044
    %v3046 = vand.u32 %v1724, 4294901760
    %3047 = vmatpush1.msra.mxu0 %v3046
    %v3048 = vand.u32 %v1727, 4294901760
    %3049 = vmatprep.subr.mxu0 %v3048
    %v3050 = vand.u32 %v1726, 4294901760
    %3051 = vmatpush1.msra.mxu0 %v3050
    %v3052 = vand.u32 %v1729, 4294901760
    %3053 = vmatprep.subr.mxu0 %v3052
    %v3054 = vand.u32 %v1728, 4294901760
    %3055 = vmatpush1.msra.mxu0 %v3054
    %v3056 = vand.u32 %v1731, 4294901760
    %3057 = vmatprep.subr.mxu0 %v3056
    %v3058 = vand.u32 %v1730, 4294901760
    %3059 = vmatpush1.msra.mxu0 %v3058
    %v3060 = vand.u32 %v1733, 4294901760
    %3061 = vmatprep.subr.mxu0 %v3060
    %v3062 = vand.u32 %v1732, 4294901760
    %3063 = vmatpush1.msra.mxu0 %v3062
    %v3064 = vand.u32 %v1735, 4294901760
    %3065 = vmatprep.subr.mxu0 %v3064
    %v3066 = vand.u32 %v1734, 4294901760
    %3067 = vmatpush1.msra.mxu0 %v3066
    %v3068 = vand.u32 %v1737, 4294901760
    %3069 = vmatprep.subr.mxu0 %v3068
    %v3070 = vand.u32 %v1736, 4294901760
    %3071 = vmatpush1.msra.mxu0 %v3070
    %v3072 = vand.u32 %v1739, 4294901760
    %3073 = vmatprep.subr.mxu0 %v3072
    %v3074 = vand.u32 %v1738, 4294901760
    %3075 = vmatpush1.msra.mxu0 %v3074
    %v3076 = vand.u32 %v1741, 4294901760
    %3077 = vmatprep.subr.mxu0 %v3076
    %v3078 = vand.u32 %v1740, 4294901760
    %3079 = vmatpush1.msra.mxu0 %v3078
    %v3080 = vand.u32 %v1743, 4294901760
    %3081 = vmatprep.subr.mxu0 %v3080
    %v3082 = vand.u32 %v1742, 4294901760
    %3083 = vmatpush1.msra.mxu0 %v3082
    %v3084 = vand.u32 %v1745, 4294901760
    %3085 = vmatprep.subr.mxu0 %v3084
    %v3086 = vand.u32 %v1744, 4294901760
    %3087 = vmatpush1.msra.mxu0 %v3086
    %v3088 = vand.u32 %v1747, 4294901760
    %3089 = vmatprep.subr.mxu0 %v3088
    %v3090 = vand.u32 %v1746, 4294901760
    %3091 = vmatpush1.msra.mxu0 %v3090
    %v3092 = vand.u32 %v1749, 4294901760
    %3093 = vmatprep.subr.mxu0 %v3092
    %v3094 = vand.u32 %v1748, 4294901760
    %3095 = vmatpush1.msra.mxu0 %v3094
    %v3096 = vand.u32 %v1751, 4294901760
    %3097 = vmatprep.subr.mxu0 %v3096
    %v3098 = vand.u32 %v1750, 4294901760
    %3099 = vmatpush1.msra.mxu0 %v3098
    %3100 = vmatprep.subr.mxu0 0.0
    %3101 = vmatpush1.msra.mxu0 0.0
    %3102 = vmatprep.subr.mxu0 0.0
    %3103 = vmatpush1.msra.mxu0 0.0
    %3104 = vmatprep.subr.mxu0 0.0
    %3105 = vmatpush1.msra.mxu0 0.0
    %3106 = vmatprep.subr.mxu0 0.0
    %3107 = vmatpush1.msra.mxu0 0.0
    %3108 = vmatprep.subr.mxu0 0.0
    %3109 = vmatpush1.msra.mxu0 0.0
    %3110 = vmatprep.subr.mxu0 0.0
    %3111 = vmatpush1.msra.mxu0 0.0
    %3112 = vmatprep.subr.mxu0 0.0
    %3113 = vmatpush1.msra.mxu0 0.0
    %3114 = vmatprep.subr.mxu0 0.0
    %3115 = vmatpush1.msra.mxu0 0.0
    %3116 = vmatprep.subr.mxu0 0.0
    %3117 = vmatpush1.msra.mxu0 0.0
    %3118 = vmatprep.subr.mxu0 0.0
    %3119 = vmatpush1.msra.mxu0 0.0
    %3120 = vmatprep.subr.mxu0 0.0
    %3121 = vmatpush1.msra.mxu0 0.0
    %3122 = vmatprep.subr.mxu0 0.0
    %3123 = vmatpush1.msra.mxu0 0.0
    %3124 = vmatprep.subr.mxu0 0.0
    %3125 = vmatpush1.msra.mxu0 0.0
    %3126 = vmatprep.subr.mxu0 0.0
    %3127 = vmatpush1.msra.mxu0 0.0
    %3128 = vmatprep.subr.mxu0 0.0
    %3129 = vmatpush1.msra.mxu0 0.0
    %3130 = vmatprep.subr.mxu0 0.0
    %3131 = vmatpush1.msra.mxu0 0.0
    %3132 = vmatprep.mubr.f32.mxu0 0.0
    %v3133 = vand.u32 %v1655, 4294901760
    %v3134 = vsub.f32 %v1655, %v3133
    %v3135 = vand.u32 %v3134, 4294901760
    %v3136 = vsub.f32 %v3134, %v3135
    %v3137 = vand.u32 %v3136, 4294901760
    %3138 = vmatmul.mubr.f32.gmra.mrb[0].mxu0 %v3137
    %v3139 = vpop.f32.mrb[0].mxu0
    %v3140 = vadd.f32 %v3032, %v3139
    %v3141 = vpop.f32.mrb[0].mxu0
    %v3142 = vadd.f32 %v3034, %v3141
    %3143 = vdwg.mxu0
    %v3144 = vand.u32 %v1721, 4294901760
    %v3145 = vsub.f32 %v1721, %v3144
    %v3146 = vand.u32 %v3145, 4294901760
    %v3147 = vsub.f32 %v3145, %v3146
    %v3148 = vand.u32 %v3147, 4294901760
    %3149 = vmatprep.subr.mxu0 %v3148
    %v3150 = vand.u32 %v1720, 4294901760
    %v3151 = vsub.f32 %v1720, %v3150
    %v3152 = vand.u32 %v3151, 4294901760
    %v3153 = vsub.f32 %v3151, %v3152
    %v3154 = vand.u32 %v3153, 4294901760
    %3155 = vmatpush1.msra.mxu0 %v3154
    %v3156 = vand.u32 %v1723, 4294901760
    %v3157 = vsub.f32 %v1723, %v3156
    %v3158 = vand.u32 %v3157, 4294901760
    %v3159 = vsub.f32 %v3157, %v3158
    %v3160 = vand.u32 %v3159, 4294901760
    %3161 = vmatprep.subr.mxu0 %v3160
    %v3162 = vand.u32 %v1722, 4294901760
    %v3163 = vsub.f32 %v1722, %v3162
    %v3164 = vand.u32 %v3163, 4294901760
    %v3165 = vsub.f32 %v3163, %v3164
    %v3166 = vand.u32 %v3165, 4294901760
    %3167 = vmatpush1.msra.mxu0 %v3166
    %v3168 = vand.u32 %v1725, 4294901760
    %v3169 = vsub.f32 %v1725, %v3168
    %v3170 = vand.u32 %v3169, 4294901760
    %v3171 = vsub.f32 %v3169, %v3170
    %v3172 = vand.u32 %v3171, 4294901760
    %3173 = vmatprep.subr.mxu0 %v3172
    %v3174 = vand.u32 %v1724, 4294901760
    %v3175 = vsub.f32 %v1724, %v3174
    %v3176 = vand.u32 %v3175, 4294901760
    %v3177 = vsub.f32 %v3175, %v3176
    %v3178 = vand.u32 %v3177, 4294901760
    %3179 = vmatpush1.msra.mxu0 %v3178
    %v3180 = vand.u32 %v1727, 4294901760
    %v3181 = vsub.f32 %v1727, %v3180
    %v3182 = vand.u32 %v3181, 4294901760
    %v3183 = vsub.f32 %v3181, %v3182
    %v3184 = vand.u32 %v3183, 4294901760
    %3185 = vmatprep.subr.mxu0 %v3184
    %v3186 = vand.u32 %v1726, 4294901760
    %v3187 = vsub.f32 %v1726, %v3186
    %v3188 = vand.u32 %v3187, 4294901760
    %v3189 = vsub.f32 %v3187, %v3188
    %v3190 = vand.u32 %v3189, 4294901760
    %3191 = vmatpush1.msra.mxu0 %v3190
    %v3192 = vand.u32 %v1729, 4294901760
    %v3193 = vsub.f32 %v1729, %v3192
    %v3194 = vand.u32 %v3193, 4294901760
    %v3195 = vsub.f32 %v3193, %v3194
    %v3196 = vand.u32 %v3195, 4294901760
    %3197 = vmatprep.subr.mxu0 %v3196
    %v3198 = vand.u32 %v1728, 4294901760
    %v3199 = vsub.f32 %v1728, %v3198
    %v3200 = vand.u32 %v3199, 4294901760
    %v3201 = vsub.f32 %v3199, %v3200
    %v3202 = vand.u32 %v3201, 4294901760
    %3203 = vmatpush1.msra.mxu0 %v3202
    %v3204 = vand.u32 %v1731, 4294901760
    %v3205 = vsub.f32 %v1731, %v3204
    %v3206 = vand.u32 %v3205, 4294901760
    %v3207 = vsub.f32 %v3205, %v3206
    %v3208 = vand.u32 %v3207, 4294901760
    %3209 = vmatprep.subr.mxu0 %v3208
    %v3210 = vand.u32 %v1730, 4294901760
    %v3211 = vsub.f32 %v1730, %v3210
    %v3212 = vand.u32 %v3211, 4294901760
    %v3213 = vsub.f32 %v3211, %v3212
    %v3214 = vand.u32 %v3213, 4294901760
    %3215 = vmatpush1.msra.mxu0 %v3214
    %v3216 = vand.u32 %v1733, 4294901760
    %v3217 = vsub.f32 %v1733, %v3216
    %v3218 = vand.u32 %v3217, 4294901760
    %v3219 = vsub.f32 %v3217, %v3218
    %v3220 = vand.u32 %v3219, 4294901760
    %3221 = vmatprep.subr.mxu0 %v3220
    %v3222 = vand.u32 %v1732, 4294901760
    %v3223 = vsub.f32 %v1732, %v3222
    %v3224 = vand.u32 %v3223, 4294901760
    %v3225 = vsub.f32 %v3223, %v3224
    %v3226 = vand.u32 %v3225, 4294901760
    %3227 = vmatpush1.msra.mxu0 %v3226
    %v3228 = vand.u32 %v1735, 4294901760
    %v3229 = vsub.f32 %v1735, %v3228
    %v3230 = vand.u32 %v3229, 4294901760
    %v3231 = vsub.f32 %v3229, %v3230
    %v3232 = vand.u32 %v3231, 4294901760
    %3233 = vmatprep.subr.mxu0 %v3232
    %v3234 = vand.u32 %v1734, 4294901760
    %v3235 = vsub.f32 %v1734, %v3234
    %v3236 = vand.u32 %v3235, 4294901760
    %v3237 = vsub.f32 %v3235, %v3236
    %v3238 = vand.u32 %v3237, 4294901760
    %3239 = vmatpush1.msra.mxu0 %v3238
    %v3240 = vand.u32 %v1737, 4294901760
    %v3241 = vsub.f32 %v1737, %v3240
    %v3242 = vand.u32 %v3241, 4294901760
    %v3243 = vsub.f32 %v3241, %v3242
    %v3244 = vand.u32 %v3243, 4294901760
    %3245 = vmatprep.subr.mxu0 %v3244
    %v3246 = vand.u32 %v1736, 4294901760
    %v3247 = vsub.f32 %v1736, %v3246
    %v3248 = vand.u32 %v3247, 4294901760
    %v3249 = vsub.f32 %v3247, %v3248
    %v3250 = vand.u32 %v3249, 4294901760
    %3251 = vmatpush1.msra.mxu0 %v3250
    %v3252 = vand.u32 %v1739, 4294901760
    %v3253 = vsub.f32 %v1739, %v3252
    %v3254 = vand.u32 %v3253, 4294901760
    %v3255 = vsub.f32 %v3253, %v3254
    %v3256 = vand.u32 %v3255, 4294901760
    %3257 = vmatprep.subr.mxu0 %v3256
    %v3258 = vand.u32 %v1738, 4294901760
    %v3259 = vsub.f32 %v1738, %v3258
    %v3260 = vand.u32 %v3259, 4294901760
    %v3261 = vsub.f32 %v3259, %v3260
    %v3262 = vand.u32 %v3261, 4294901760
    %3263 = vmatpush1.msra.mxu0 %v3262
    %v3264 = vand.u32 %v1741, 4294901760
    %v3265 = vsub.f32 %v1741, %v3264
    %v3266 = vand.u32 %v3265, 4294901760
    %v3267 = vsub.f32 %v3265, %v3266
    %v3268 = vand.u32 %v3267, 4294901760
    %3269 = vmatprep.subr.mxu0 %v3268
    %v3270 = vand.u32 %v1740, 4294901760
    %v3271 = vsub.f32 %v1740, %v3270
    %v3272 = vand.u32 %v3271, 4294901760
    %v3273 = vsub.f32 %v3271, %v3272
    %v3274 = vand.u32 %v3273, 4294901760
    %3275 = vmatpush1.msra.mxu0 %v3274
    %v3276 = vand.u32 %v1743, 4294901760
    %v3277 = vsub.f32 %v1743, %v3276
    %v3278 = vand.u32 %v3277, 4294901760
    %v3279 = vsub.f32 %v3277, %v3278
    %v3280 = vand.u32 %v3279, 4294901760
    %3281 = vmatprep.subr.mxu0 %v3280
    %v3282 = vand.u32 %v1742, 4294901760
    %v3283 = vsub.f32 %v1742, %v3282
    %v3284 = vand.u32 %v3283, 4294901760
    %v3285 = vsub.f32 %v3283, %v3284
    %v3286 = vand.u32 %v3285, 4294901760
    %3287 = vmatpush1.msra.mxu0 %v3286
    %v3288 = vand.u32 %v1745, 4294901760
    %v3289 = vsub.f32 %v1745, %v3288
    %v3290 = vand.u32 %v3289, 4294901760
    %v3291 = vsub.f32 %v3289, %v3290
    %v3292 = vand.u32 %v3291, 4294901760
    %3293 = vmatprep.subr.mxu0 %v3292
    %v3294 = vand.u32 %v1744, 4294901760
    %v3295 = vsub.f32 %v1744, %v3294
    %v3296 = vand.u32 %v3295, 4294901760
    %v3297 = vsub.f32 %v3295, %v3296
    %v3298 = vand.u32 %v3297, 4294901760
    %3299 = vmatpush1.msra.mxu0 %v3298
    %v3300 = vand.u32 %v1747, 4294901760
    %v3301 = vsub.f32 %v1747, %v3300
    %v3302 = vand.u32 %v3301, 4294901760
    %v3303 = vsub.f32 %v3301, %v3302
    %v3304 = vand.u32 %v3303, 4294901760
    %3305 = vmatprep.subr.mxu0 %v3304
    %v3306 = vand.u32 %v1746, 4294901760
    %v3307 = vsub.f32 %v1746, %v3306
    %v3308 = vand.u32 %v3307, 4294901760
    %v3309 = vsub.f32 %v3307, %v3308
    %v3310 = vand.u32 %v3309, 4294901760
    %3311 = vmatpush1.msra.mxu0 %v3310
    %v3312 = vand.u32 %v1749, 4294901760
    %v3313 = vsub.f32 %v1749, %v3312
    %v3314 = vand.u32 %v3313, 4294901760
    %v3315 = vsub.f32 %v3313, %v3314
    %v3316 = vand.u32 %v3315, 4294901760
    %3317 = vmatprep.subr.mxu0 %v3316
    %v3318 = vand.u32 %v1748, 4294901760
    %v3319 = vsub.f32 %v1748, %v3318
    %v3320 = vand.u32 %v3319, 4294901760
    %v3321 = vsub.f32 %v3319, %v3320
    %v3322 = vand.u32 %v3321, 4294901760
    %3323 = vmatpush1.msra.mxu0 %v3322
    %v3324 = vand.u32 %v1751, 4294901760
    %v3325 = vsub.f32 %v1751, %v3324
    %v3326 = vand.u32 %v3325, 4294901760
    %v3327 = vsub.f32 %v3325, %v3326
    %v3328 = vand.u32 %v3327, 4294901760
    %3329 = vmatprep.subr.mxu0 %v3328
    %v3330 = vand.u32 %v1750, 4294901760
    %v3331 = vsub.f32 %v1750, %v3330
    %v3332 = vand.u32 %v3331, 4294901760
    %v3333 = vsub.f32 %v3331, %v3332
    %v3334 = vand.u32 %v3333, 4294901760
    %3335 = vmatpush1.msra.mxu0 %v3334
    %3336 = vmatprep.subr.mxu0 0.0
    %3337 = vmatpush1.msra.mxu0 0.0
    %3338 = vmatprep.subr.mxu0 0.0
    %3339 = vmatpush1.msra.mxu0 0.0
    %3340 = vmatprep.subr.mxu0 0.0
    %3341 = vmatpush1.msra.mxu0 0.0
    %3342 = vmatprep.subr.mxu0 0.0
    %3343 = vmatpush1.msra.mxu0 0.0
    %3344 = vmatprep.subr.mxu0 0.0
    %3345 = vmatpush1.msra.mxu0 0.0
    %3346 = vmatprep.subr.mxu0 0.0
    %3347 = vmatpush1.msra.mxu0 0.0
    %3348 = vmatprep.subr.mxu0 0.0
    %3349 = vmatpush1.msra.mxu0 0.0
    %3350 = vmatprep.subr.mxu0 0.0
    %3351 = vmatpush1.msra.mxu0 0.0
    %3352 = vmatprep.subr.mxu0 0.0
    %3353 = vmatpush1.msra.mxu0 0.0
    %3354 = vmatprep.subr.mxu0 0.0
    %3355 = vmatpush1.msra.mxu0 0.0
    %3356 = vmatprep.subr.mxu0 0.0
    %3357 = vmatpush1.msra.mxu0 0.0
    %3358 = vmatprep.subr.mxu0 0.0
    %3359 = vmatpush1.msra.mxu0 0.0
    %3360 = vmatprep.subr.mxu0 0.0
    %3361 = vmatpush1.msra.mxu0 0.0
    %3362 = vmatprep.subr.mxu0 0.0
    %3363 = vmatpush1.msra.mxu0 0.0
    %3364 = vmatprep.subr.mxu0 0.0
    %3365 = vmatpush1.msra.mxu0 0.0
    %3366 = vmatprep.subr.mxu0 0.0
    %3367 = vmatpush1.msra.mxu0 0.0
    %3368 = vmatprep.mubr.f32.mxu0 0.0
    %v3369 = vand.u32 %v1655, 4294901760
    %3370 = vmatmul.mubr.f32.gmra.mrb[0].mxu0 %v3369
    %v3371 = vpop.f32.mrb[0].mxu0
    %v3372 = vadd.f32 %v3140, %v3371
    %v3373 = vpop.f32.mrb[0].mxu0
    %v3374 = vadd.f32 %v3142, %v3373
    %3375 = vdwg.mxu0
    %v3376 = vand.u32 %v1721, 4294901760
    %v3377 = vsub.f32 %v1721, %v3376
    %3378 = vmatprep.subr.mxu0 %v3377
    %v3379 = vand.u32 %v1720, 4294901760
    %v3380 = vsub.f32 %v1720, %v3379
    %3381 = vmatpush1.msra.mxu0 %v3380
    %v3382 = vand.u32 %v1723, 4294901760
    %v3383 = vsub.f32 %v1723, %v3382
    %3384 = vmatprep.subr.mxu0 %v3383
    %v3385 = vand.u32 %v1722, 4294901760
    %v3386 = vsub.f32 %v1722, %v3385
    %3387 = vmatpush1.msra.mxu0 %v3386
    %v3388 = vand.u32 %v1725, 4294901760
    %v3389 = vsub.f32 %v1725, %v3388
    %3390 = vmatprep.subr.mxu0 %v3389
    %v3391 = vand.u32 %v1724, 4294901760
    %v3392 = vsub.f32 %v1724, %v3391
    %3393 = vmatpush1.msra.mxu0 %v3392
    %v3394 = vand.u32 %v1727, 4294901760
    %v3395 = vsub.f32 %v1727, %v3394
    %3396 = vmatprep.subr.mxu0 %v3395
    %v3397 = vand.u32 %v1726, 4294901760
    %v3398 = vsub.f32 %v1726, %v3397
    %3399 = vmatpush1.msra.mxu0 %v3398
    %v3400 = vand.u32 %v1729, 4294901760
    %v3401 = vsub.f32 %v1729, %v3400
    %3402 = vmatprep.subr.mxu0 %v3401
    %v3403 = vand.u32 %v1728, 4294901760
    %v3404 = vsub.f32 %v1728, %v3403
    %3405 = vmatpush1.msra.mxu0 %v3404
    %v3406 = vand.u32 %v1731, 4294901760
    %v3407 = vsub.f32 %v1731, %v3406
    %3408 = vmatprep.subr.mxu0 %v3407
    %v3409 = vand.u32 %v1730, 4294901760
    %v3410 = vsub.f32 %v1730, %v3409
    %3411 = vmatpush1.msra.mxu0 %v3410
    %v3412 = vand.u32 %v1733, 4294901760
    %v3413 = vsub.f32 %v1733, %v3412
    %3414 = vmatprep.subr.mxu0 %v3413
    %v3415 = vand.u32 %v1732, 4294901760
    %v3416 = vsub.f32 %v1732, %v3415
    %3417 = vmatpush1.msra.mxu0 %v3416
    %v3418 = vand.u32 %v1735, 4294901760
    %v3419 = vsub.f32 %v1735, %v3418
    %3420 = vmatprep.subr.mxu0 %v3419
    %v3421 = vand.u32 %v1734, 4294901760
    %v3422 = vsub.f32 %v1734, %v3421
    %3423 = vmatpush1.msra.mxu0 %v3422
    %v3424 = vand.u32 %v1737, 4294901760
    %v3425 = vsub.f32 %v1737, %v3424
    %3426 = vmatprep.subr.mxu0 %v3425
    %v3427 = vand.u32 %v1736, 4294901760
    %v3428 = vsub.f32 %v1736, %v3427
    %3429 = vmatpush1.msra.mxu0 %v3428
    %v3430 = vand.u32 %v1739, 4294901760
    %v3431 = vsub.f32 %v1739, %v3430
    %3432 = vmatprep.subr.mxu0 %v3431
    %v3433 = vand.u32 %v1738, 4294901760
    %v3434 = vsub.f32 %v1738, %v3433
    %3435 = vmatpush1.msra.mxu0 %v3434
    %v3436 = vand.u32 %v1741, 4294901760
    %v3437 = vsub.f32 %v1741, %v3436
    %3438 = vmatprep.subr.mxu0 %v3437
    %v3439 = vand.u32 %v1740, 4294901760
    %v3440 = vsub.f32 %v1740, %v3439
    %3441 = vmatpush1.msra.mxu0 %v3440
    %v3442 = vand.u32 %v1743, 4294901760
    %v3443 = vsub.f32 %v1743, %v3442
    %3444 = vmatprep.subr.mxu0 %v3443
    %v3445 = vand.u32 %v1742, 4294901760
    %v3446 = vsub.f32 %v1742, %v3445
    %3447 = vmatpush1.msra.mxu0 %v3446
    %v3448 = vand.u32 %v1745, 4294901760
    %v3449 = vsub.f32 %v1745, %v3448
    %3450 = vmatprep.subr.mxu0 %v3449
    %v3451 = vand.u32 %v1744, 4294901760
    %v3452 = vsub.f32 %v1744, %v3451
    %3453 = vmatpush1.msra.mxu0 %v3452
    %v3454 = vand.u32 %v1747, 4294901760
    %v3455 = vsub.f32 %v1747, %v3454
    %3456 = vmatprep.subr.mxu0 %v3455
    %v3457 = vand.u32 %v1746, 4294901760
    %v3458 = vsub.f32 %v1746, %v3457
    %3459 = vmatpush1.msra.mxu0 %v3458
    %v3460 = vand.u32 %v1749, 4294901760
    %v3461 = vsub.f32 %v1749, %v3460
    %3462 = vmatprep.subr.mxu0 %v3461
    %v3463 = vand.u32 %v1748, 4294901760
    %v3464 = vsub.f32 %v1748, %v3463
    %3465 = vmatpush1.msra.mxu0 %v3464
    %v3466 = vand.u32 %v1751, 4294901760
    %v3467 = vsub.f32 %v1751, %v3466
    %3468 = vmatprep.subr.mxu0 %v3467
    %v3469 = vand.u32 %v1750, 4294901760
    %v3470 = vsub.f32 %v1750, %v3469
    %3471 = vmatpush1.msra.mxu0 %v3470
    %3472 = vmatprep.subr.mxu0 0.0
    %3473 = vmatpush1.msra.mxu0 0.0
    %3474 = vmatprep.subr.mxu0 0.0
    %3475 = vmatpush1.msra.mxu0 0.0
    %3476 = vmatprep.subr.mxu0 0.0
    %3477 = vmatpush1.msra.mxu0 0.0
    %3478 = vmatprep.subr.mxu0 0.0
    %3479 = vmatpush1.msra.mxu0 0.0
    %3480 = vmatprep.subr.mxu0 0.0
    %3481 = vmatpush1.msra.mxu0 0.0
    %3482 = vmatprep.subr.mxu0 0.0
    %3483 = vmatpush1.msra.mxu0 0.0
    %3484 = vmatprep.subr.mxu0 0.0
    %3485 = vmatpush1.msra.mxu0 0.0
    %3486 = vmatprep.subr.mxu0 0.0
    %3487 = vmatpush1.msra.mxu0 0.0
    %3488 = vmatprep.subr.mxu0 0.0
    %3489 = vmatpush1.msra.mxu0 0.0
    %3490 = vmatprep.subr.mxu0 0.0
    %3491 = vmatpush1.msra.mxu0 0.0
    %3492 = vmatprep.subr.mxu0 0.0
    %3493 = vmatpush1.msra.mxu0 0.0
    %3494 = vmatprep.subr.mxu0 0.0
    %3495 = vmatpush1.msra.mxu0 0.0
    %3496 = vmatprep.subr.mxu0 0.0
    %3497 = vmatpush1.msra.mxu0 0.0
    %3498 = vmatprep.subr.mxu0 0.0
    %3499 = vmatpush1.msra.mxu0 0.0
    %3500 = vmatprep.subr.mxu0 0.0
    %3501 = vmatpush1.msra.mxu0 0.0
    %3502 = vmatprep.subr.mxu0 0.0
    %3503 = vmatpush1.msra.mxu0 0.0
    %3504 = vmatprep.mubr.f32.mxu0 0.0
    %v3505 = vand.u32 %v1655, 4294901760
    %v3506 = vsub.f32 %v1655, %v3505
    %3507 = vmatmul.mubr.f32.gmra.mrb[0].mxu0 %v3506
    %v3508 = vpop.f32.mrb[0].mxu0
    %v3509 = vadd.f32 %v3372, %v3508
    %v3510 = vpop.f32.mrb[0].mxu0
    %v3511 = vadd.f32 %v3374, %v3510
    %3512 = vdwg.mxu0
    %v3513 = vand.u32 %v1721, 4294901760
    %3514 = vmatprep.subr.mxu0 %v3513
    %v3515 = vand.u32 %v1720, 4294901760
    %3516 = vmatpush1.msra.mxu0 %v3515
    %v3517 = vand.u32 %v1723, 4294901760
    %3518 = vmatprep.subr.mxu0 %v3517
    %v3519 = vand.u32 %v1722, 4294901760
    %3520 = vmatpush1.msra.mxu0 %v3519
    %v3521 = vand.u32 %v1725, 4294901760
    %3522 = vmatprep.subr.mxu0 %v3521
    %v3523 = vand.u32 %v1724, 4294901760
    %3524 = vmatpush1.msra.mxu0 %v3523
    %v3525 = vand.u32 %v1727, 4294901760
    %3526 = vmatprep.subr.mxu0 %v3525
    %v3527 = vand.u32 %v1726, 4294901760
    %3528 = vmatpush1.msra.mxu0 %v3527
    %v3529 = vand.u32 %v1729, 4294901760
    %3530 = vmatprep.subr.mxu0 %v3529
    %v3531 = vand.u32 %v1728, 4294901760
    %3532 = vmatpush1.msra.mxu0 %v3531
    %v3533 = vand.u32 %v1731, 4294901760
    %3534 = vmatprep.subr.mxu0 %v3533
    %v3535 = vand.u32 %v1730, 4294901760
    %3536 = vmatpush1.msra.mxu0 %v3535
    %v3537 = vand.u32 %v1733, 4294901760
    %3538 = vmatprep.subr.mxu0 %v3537
    %v3539 = vand.u32 %v1732, 4294901760
    %3540 = vmatpush1.msra.mxu0 %v3539
    %v3541 = vand.u32 %v1735, 4294901760
    %3542 = vmatprep.subr.mxu0 %v3541
    %v3543 = vand.u32 %v1734, 4294901760
    %3544 = vmatpush1.msra.mxu0 %v3543
    %v3545 = vand.u32 %v1737, 4294901760
    %3546 = vmatprep.subr.mxu0 %v3545
    %v3547 = vand.u32 %v1736, 4294901760
    %3548 = vmatpush1.msra.mxu0 %v3547
    %v3549 = vand.u32 %v1739, 4294901760
    %3550 = vmatprep.subr.mxu0 %v3549
    %v3551 = vand.u32 %v1738, 4294901760
    %3552 = vmatpush1.msra.mxu0 %v3551
    %v3553 = vand.u32 %v1741, 4294901760
    %3554 = vmatprep.subr.mxu0 %v3553
    %v3555 = vand.u32 %v1740, 4294901760
    %3556 = vmatpush1.msra.mxu0 %v3555
    %v3557 = vand.u32 %v1743, 4294901760
    %3558 = vmatprep.subr.mxu0 %v3557
    %v3559 = vand.u32 %v1742, 4294901760
    %3560 = vmatpush1.msra.mxu0 %v3559
    %v3561 = vand.u32 %v1745, 4294901760
    %3562 = vmatprep.subr.mxu0 %v3561
    %v3563 = vand.u32 %v1744, 4294901760
    %3564 = vmatpush1.msra.mxu0 %v3563
    %v3565 = vand.u32 %v1747, 4294901760
    %3566 = vmatprep.subr.mxu0 %v3565
    %v3567 = vand.u32 %v1746, 4294901760
    %3568 = vmatpush1.msra.mxu0 %v3567
    %v3569 = vand.u32 %v1749, 4294901760
    %3570 = vmatprep.subr.mxu0 %v3569
    %v3571 = vand.u32 %v1748, 4294901760
    %3572 = vmatpush1.msra.mxu0 %v3571
    %v3573 = vand.u32 %v1751, 4294901760
    %3574 = vmatprep.subr.mxu0 %v3573
    %v3575 = vand.u32 %v1750, 4294901760
    %3576 = vmatpush1.msra.mxu0 %v3575
    %3577 = vmatprep.subr.mxu0 0.0
    %3578 = vmatpush1.msra.mxu0 0.0
    %3579 = vmatprep.subr.mxu0 0.0
    %3580 = vmatpush1.msra.mxu0 0.0
    %3581 = vmatprep.subr.mxu0 0.0
    %3582 = vmatpush1.msra.mxu0 0.0
    %3583 = vmatprep.subr.mxu0 0.0
    %3584 = vmatpush1.msra.mxu0 0.0
    %3585 = vmatprep.subr.mxu0 0.0
    %3586 = vmatpush1.msra.mxu0 0.0
    %3587 = vmatprep.subr.mxu0 0.0
    %3588 = vmatpush1.msra.mxu0 0.0
    %3589 = vmatprep.subr.mxu0 0.0
    %3590 = vmatpush1.msra.mxu0 0.0
    %3591 = vmatprep.subr.mxu0 0.0
    %3592 = vmatpush1.msra.mxu0 0.0
    %3593 = vmatprep.subr.mxu0 0.0
    %3594 = vmatpush1.msra.mxu0 0.0
    %3595 = vmatprep.subr.mxu0 0.0
    %3596 = vmatpush1.msra.mxu0 0.0
    %3597 = vmatprep.subr.mxu0 0.0
    %3598 = vmatpush1.msra.mxu0 0.0
    %3599 = vmatprep.subr.mxu0 0.0
    %3600 = vmatpush1.msra.mxu0 0.0
    %3601 = vmatprep.subr.mxu0 0.0
    %3602 = vmatpush1.msra.mxu0 0.0
    %3603 = vmatprep.subr.mxu0 0.0
    %3604 = vmatpush1.msra.mxu0 0.0
    %3605 = vmatprep.subr.mxu0 0.0
    %3606 = vmatpush1.msra.mxu0 0.0
    %3607 = vmatprep.subr.mxu0 0.0
    %3608 = vmatpush1.msra.mxu0 0.0
    %3609 = vmatprep.mubr.f32.mxu0 0.0
    %v3610 = vand.u32 %v1655, 4294901760
    %v3611 = vsub.f32 %v1655, %v3610
    %v3612 = vand.u32 %v3611, 4294901760
    %3613 = vmatmul.mubr.f32.gmra.mrb[0].mxu0 %v3612
    %v3614 = vpop.f32.mrb[0].mxu0
    %v3615 = vadd.f32 %v3509, %v3614
    %v3616 = vpop.f32.mrb[0].mxu0
    %v3617 = vadd.f32 %v3511, %v3616
    %3618 = vdwg.mxu0
    %v3619 = vand.u32 %v1721, 4294901760
    %v3620 = vsub.f32 %v1721, %v3619
    %v3621 = vand.u32 %v3620, 4294901760
    %3622 = vmatprep.subr.mxu0 %v3621
    %v3623 = vand.u32 %v1720, 4294901760
    %v3624 = vsub.f32 %v1720, %v3623
    %v3625 = vand.u32 %v3624, 4294901760
    %3626 = vmatpush1.msra.mxu0 %v3625
    %v3627 = vand.u32 %v1723, 4294901760
    %v3628 = vsub.f32 %v1723, %v3627
    %v3629 = vand.u32 %v3628, 4294901760
    %3630 = vmatprep.subr.mxu0 %v3629
    %v3631 = vand.u32 %v1722, 4294901760
    %v3632 = vsub.f32 %v1722, %v3631
    %v3633 = vand.u32 %v3632, 4294901760
    %3634 = vmatpush1.msra.mxu0 %v3633
    %v3635 = vand.u32 %v1725, 4294901760
    %v3636 = vsub.f32 %v1725, %v3635
    %v3637 = vand.u32 %v3636, 4294901760
    %3638 = vmatprep.subr.mxu0 %v3637
    %v3639 = vand.u32 %v1724, 4294901760
    %v3640 = vsub.f32 %v1724, %v3639
    %v3641 = vand.u32 %v3640, 4294901760
    %3642 = vmatpush1.msra.mxu0 %v3641
    %v3643 = vand.u32 %v1727, 4294901760
    %v3644 = vsub.f32 %v1727, %v3643
    %v3645 = vand.u32 %v3644, 4294901760
    %3646 = vmatprep.subr.mxu0 %v3645
    %v3647 = vand.u32 %v1726, 4294901760
    %v3648 = vsub.f32 %v1726, %v3647
    %v3649 = vand.u32 %v3648, 4294901760
    %3650 = vmatpush1.msra.mxu0 %v3649
    %v3651 = vand.u32 %v1729, 4294901760
    %v3652 = vsub.f32 %v1729, %v3651
    %v3653 = vand.u32 %v3652, 4294901760
    %3654 = vmatprep.subr.mxu0 %v3653
    %v3655 = vand.u32 %v1728, 4294901760
    %v3656 = vsub.f32 %v1728, %v3655
    %v3657 = vand.u32 %v3656, 4294901760
    %3658 = vmatpush1.msra.mxu0 %v3657
    %v3659 = vand.u32 %v1731, 4294901760
    %v3660 = vsub.f32 %v1731, %v3659
    %v3661 = vand.u32 %v3660, 4294901760
    %3662 = vmatprep.subr.mxu0 %v3661
    %v3663 = vand.u32 %v1730, 4294901760
    %v3664 = vsub.f32 %v1730, %v3663
    %v3665 = vand.u32 %v3664, 4294901760
    %3666 = vmatpush1.msra.mxu0 %v3665
    %v3667 = vand.u32 %v1733, 4294901760
    %v3668 = vsub.f32 %v1733, %v3667
    %v3669 = vand.u32 %v3668, 4294901760
    %3670 = vmatprep.subr.mxu0 %v3669
    %v3671 = vand.u32 %v1732, 4294901760
    %v3672 = vsub.f32 %v1732, %v3671
    %v3673 = vand.u32 %v3672, 4294901760
    %3674 = vmatpush1.msra.mxu0 %v3673
    %v3675 = vand.u32 %v1735, 4294901760
    %v3676 = vsub.f32 %v1735, %v3675
    %v3677 = vand.u32 %v3676, 4294901760
    %3678 = vmatprep.subr.mxu0 %v3677
    %v3679 = vand.u32 %v1734, 4294901760
    %v3680 = vsub.f32 %v1734, %v3679
    %v3681 = vand.u32 %v3680, 4294901760
    %3682 = vmatpush1.msra.mxu0 %v3681
    %v3683 = vand.u32 %v1737, 4294901760
    %v3684 = vsub.f32 %v1737, %v3683
    %v3685 = vand.u32 %v3684, 4294901760
    %3686 = vmatprep.subr.mxu0 %v3685
    %v3687 = vand.u32 %v1736, 4294901760
    %v3688 = vsub.f32 %v1736, %v3687
    %v3689 = vand.u32 %v3688, 4294901760
    %3690 = vmatpush1.msra.mxu0 %v3689
    %v3691 = vand.u32 %v1739, 4294901760
    %v3692 = vsub.f32 %v1739, %v3691
    %v3693 = vand.u32 %v3692, 4294901760
    %3694 = vmatprep.subr.mxu0 %v3693
    %v3695 = vand.u32 %v1738, 4294901760
    %v3696 = vsub.f32 %v1738, %v3695
    %v3697 = vand.u32 %v3696, 4294901760
    %3698 = vmatpush1.msra.mxu0 %v3697
    %v3699 = vand.u32 %v1741, 4294901760
    %v3700 = vsub.f32 %v1741, %v3699
    %v3701 = vand.u32 %v3700, 4294901760
    %3702 = vmatprep.subr.mxu0 %v3701
    %v3703 = vand.u32 %v1740, 4294901760
    %v3704 = vsub.f32 %v1740, %v3703
    %v3705 = vand.u32 %v3704, 4294901760
    %3706 = vmatpush1.msra.mxu0 %v3705
    %v3707 = vand.u32 %v1743, 4294901760
    %v3708 = vsub.f32 %v1743, %v3707
    %v3709 = vand.u32 %v3708, 4294901760
    %3710 = vmatprep.subr.mxu0 %v3709
    %v3711 = vand.u32 %v1742, 4294901760
    %v3712 = vsub.f32 %v1742, %v3711
    %v3713 = vand.u32 %v3712, 4294901760
    %3714 = vmatpush1.msra.mxu0 %v3713
    %v3715 = vand.u32 %v1745, 4294901760
    %v3716 = vsub.f32 %v1745, %v3715
    %v3717 = vand.u32 %v3716, 4294901760
    %3718 = vmatprep.subr.mxu0 %v3717
    %v3719 = vand.u32 %v1744, 4294901760
    %v3720 = vsub.f32 %v1744, %v3719
    %v3721 = vand.u32 %v3720, 4294901760
    %3722 = vmatpush1.msra.mxu0 %v3721
    %v3723 = vand.u32 %v1747, 4294901760
    %v3724 = vsub.f32 %v1747, %v3723
    %v3725 = vand.u32 %v3724, 4294901760
    %3726 = vmatprep.subr.mxu0 %v3725
    %v3727 = vand.u32 %v1746, 4294901760
    %v3728 = vsub.f32 %v1746, %v3727
    %v3729 = vand.u32 %v3728, 4294901760
    %3730 = vmatpush1.msra.mxu0 %v3729
    %v3731 = vand.u32 %v1749, 4294901760
    %v3732 = vsub.f32 %v1749, %v3731
    %v3733 = vand.u32 %v3732, 4294901760
    %3734 = vmatprep.subr.mxu0 %v3733
    %v3735 = vand.u32 %v1748, 4294901760
    %v3736 = vsub.f32 %v1748, %v3735
    %v3737 = vand.u32 %v3736, 4294901760
    %3738 = vmatpush1.msra.mxu0 %v3737
    %v3739 = vand.u32 %v1751, 4294901760
    %v3740 = vsub.f32 %v1751, %v3739
    %v3741 = vand.u32 %v3740, 4294901760
    %3742 = vmatprep.subr.mxu0 %v3741
    %v3743 = vand.u32 %v1750, 4294901760
    %v3744 = vsub.f32 %v1750, %v3743
    %v3745 = vand.u32 %v3744, 4294901760
    %3746 = vmatpush1.msra.mxu0 %v3745
    %3747 = vmatprep.subr.mxu0 0.0
    %3748 = vmatpush1.msra.mxu0 0.0
    %3749 = vmatprep.subr.mxu0 0.0
    %3750 = vmatpush1.msra.mxu0 0.0
    %3751 = vmatprep.subr.mxu0 0.0
    %3752 = vmatpush1.msra.mxu0 0.0
    %3753 = vmatprep.subr.mxu0 0.0
    %3754 = vmatpush1.msra.mxu0 0.0
    %3755 = vmatprep.subr.mxu0 0.0
    %3756 = vmatpush1.msra.mxu0 0.0
    %3757 = vmatprep.subr.mxu0 0.0
    %3758 = vmatpush1.msra.mxu0 0.0
    %3759 = vmatprep.subr.mxu0 0.0
    %3760 = vmatpush1.msra.mxu0 0.0
    %3761 = vmatprep.subr.mxu0 0.0
    %3762 = vmatpush1.msra.mxu0 0.0
    %3763 = vmatprep.subr.mxu0 0.0
    %3764 = vmatpush1.msra.mxu0 0.0
    %3765 = vmatprep.subr.mxu0 0.0
    %3766 = vmatpush1.msra.mxu0 0.0
    %3767 = vmatprep.subr.mxu0 0.0
    %3768 = vmatpush1.msra.mxu0 0.0
    %3769 = vmatprep.subr.mxu0 0.0
    %3770 = vmatpush1.msra.mxu0 0.0
    %3771 = vmatprep.subr.mxu0 0.0
    %3772 = vmatpush1.msra.mxu0 0.0
    %3773 = vmatprep.subr.mxu0 0.0
    %3774 = vmatpush1.msra.mxu0 0.0
    %3775 = vmatprep.subr.mxu0 0.0
    %3776 = vmatpush1.msra.mxu0 0.0
    %3777 = vmatprep.subr.mxu0 0.0
    %3778 = vmatpush1.msra.mxu0 0.0
    %3779 = vmatprep.mubr.f32.mxu0 0.0
    %v3780 = vand.u32 %v1655, 4294901760
    %3781 = vmatmul.mubr.f32.gmra.mrb[0].mxu0 %v3780
    %v3782 = vpop.f32.mrb[0].mxu0
    %v3783 = vadd.f32 %v3615, %v3782
    %v3784 = vpop.f32.mrb[0].mxu0
    %v3785 = vadd.f32 %v3617, %v3784
    %3786 = vdwg.mxu0
    %v3787 = vand.u32 %v1721, 4294901760
    %3788 = vmatprep.subr.mxu0 %v3787
    %v3789 = vand.u32 %v1720, 4294901760
    %3790 = vmatpush1.msra.mxu0 %v3789
    %v3791 = vand.u32 %v1723, 4294901760
    %3792 = vmatprep.subr.mxu0 %v3791
    %v3793 = vand.u32 %v1722, 4294901760
    %3794 = vmatpush1.msra.mxu0 %v3793
    %v3795 = vand.u32 %v1725, 4294901760
    %3796 = vmatprep.subr.mxu0 %v3795
    %v3797 = vand.u32 %v1724, 4294901760
    %3798 = vmatpush1.msra.mxu0 %v3797
    %v3799 = vand.u32 %v1727, 4294901760
    %3800 = vmatprep.subr.mxu0 %v3799
    %v3801 = vand.u32 %v1726, 4294901760
    %3802 = vmatpush1.msra.mxu0 %v3801
    %v3803 = vand.u32 %v1729, 4294901760
    %3804 = vmatprep.subr.mxu0 %v3803
    %v3805 = vand.u32 %v1728, 4294901760
    %3806 = vmatpush1.msra.mxu0 %v3805
    %v3807 = vand.u32 %v1731, 4294901760
    %3808 = vmatprep.subr.mxu0 %v3807
    %v3809 = vand.u32 %v1730, 4294901760
    %3810 = vmatpush1.msra.mxu0 %v3809
    %v3811 = vand.u32 %v1733, 4294901760
    %3812 = vmatprep.subr.mxu0 %v3811
    %v3813 = vand.u32 %v1732, 4294901760
    %3814 = vmatpush1.msra.mxu0 %v3813
    %v3815 = vand.u32 %v1735, 4294901760
    %3816 = vmatprep.subr.mxu0 %v3815
    %v3817 = vand.u32 %v1734, 4294901760
    %3818 = vmatpush1.msra.mxu0 %v3817
    %v3819 = vand.u32 %v1737, 4294901760
    %3820 = vmatprep.subr.mxu0 %v3819
    %v3821 = vand.u32 %v1736, 4294901760
    %3822 = vmatpush1.msra.mxu0 %v3821
    %v3823 = vand.u32 %v1739, 4294901760
    %3824 = vmatprep.subr.mxu0 %v3823
    %v3825 = vand.u32 %v1738, 4294901760
    %3826 = vmatpush1.msra.mxu0 %v3825
    %v3827 = vand.u32 %v1741, 4294901760
    %3828 = vmatprep.subr.mxu0 %v3827
    %v3829 = vand.u32 %v1740, 4294901760
    %3830 = vmatpush1.msra.mxu0 %v3829
    %v3831 = vand.u32 %v1743, 4294901760
    %3832 = vmatprep.subr.mxu0 %v3831
    %v3833 = vand.u32 %v1742, 4294901760
    %3834 = vmatpush1.msra.mxu0 %v3833
    %v3835 = vand.u32 %v1745, 4294901760
    %3836 = vmatprep.subr.mxu0 %v3835
    %v3837 = vand.u32 %v1744, 4294901760
    %3838 = vmatpush1.msra.mxu0 %v3837
    %v3839 = vand.u32 %v1747, 4294901760
    %3840 = vmatprep.subr.mxu0 %v3839
    %v3841 = vand.u32 %v1746, 4294901760
    %3842 = vmatpush1.msra.mxu0 %v3841
    %v3843 = vand.u32 %v1749, 4294901760
    %3844 = vmatprep.subr.mxu0 %v3843
    %v3845 = vand.u32 %v1748, 4294901760
    %3846 = vmatpush1.msra.mxu0 %v3845
    %v3847 = vand.u32 %v1751, 4294901760
    %3848 = vmatprep.subr.mxu0 %v3847
    %v3849 = vand.u32 %v1750, 4294901760
    %3850 = vmatpush1.msra.mxu0 %v3849
    %3851 = vmatprep.subr.mxu0 0.0
    %3852 = vmatpush1.msra.mxu0 0.0
    %3853 = vmatprep.subr.mxu0 0.0
    %3854 = vmatpush1.msra.mxu0 0.0
    %3855 = vmatprep.subr.mxu0 0.0
    %3856 = vmatpush1.msra.mxu0 0.0
    %3857 = vmatprep.subr.mxu0 0.0
    %3858 = vmatpush1.msra.mxu0 0.0
    %3859 = vmatprep.subr.mxu0 0.0
    %3860 = vmatpush1.msra.mxu0 0.0
    %3861 = vmatprep.subr.mxu0 0.0
    %3862 = vmatpush1.msra.mxu0 0.0
    %3863 = vmatprep.subr.mxu0 0.0
    %3864 = vmatpush1.msra.mxu0 0.0
    %3865 = vmatprep.subr.mxu0 0.0
    %3866 = vmatpush1.msra.mxu0 0.0
    %3867 = vmatprep.subr.mxu0 0.0
    %3868 = vmatpush1.msra.mxu0 0.0
    %3869 = vmatprep.subr.mxu0 0.0
    %3870 = vmatpush1.msra.mxu0 0.0
    %3871 = vmatprep.subr.mxu0 0.0
    %3872 = vmatpush1.msra.mxu0 0.0
    %3873 = vmatprep.subr.mxu0 0.0
    %3874 = vmatpush1.msra.mxu0 0.0
    %3875 = vmatprep.subr.mxu0 0.0
    %3876 = vmatpush1.msra.mxu0 0.0
    %3877 = vmatprep.subr.mxu0 0.0
    %3878 = vmatpush1.msra.mxu0 0.0
    %3879 = vmatprep.subr.mxu0 0.0
    %3880 = vmatpush1.msra.mxu0 0.0
    %3881 = vmatprep.subr.mxu0 0.0
    %3882 = vmatpush1.msra.mxu0 0.0
    %3883 = vmatprep.mubr.f32.mxu0 0.0
    %v3884 = vand.u32 %v1655, 4294901760
    %3885 = vmatmul.mubr.f32.gmra.mrb[0].mxu0 %v3884
    %v3886 = vpop.f32.mrb[0].mxu0
    %v3887 = vadd.f32 %v3783, %v3886
    %v3888 = vpop.f32.mrb[0].mxu0
    %v3889 = vadd.f32 %v3785, %v3888
    %3890 = vdwg.mxu0
    %v3891 = vmax.f32 %v3887, 0.0
    %v3892 = vmax.f32 %v3889, 0.0
    %v3893 = vld [vmem:[#allocation6] sm:$0xff]
    %v3894 = vld [vmem:[#allocation6 + $0x8] sm:$0xff]
    %v3895 = vld [vmem:[#allocation6 + $0x10] sm:$0xff]
    %v3896 = vld [vmem:[#allocation6 + $0x18] sm:$0xff]
    %v3897 = vld [vmem:[#allocation6 + $0x20] sm:$0xff]
    %v3898 = vld [vmem:[#allocation6 + $0x28] sm:$0xff]
    %v3899 = vld [vmem:[#allocation6 + $0x30] sm:$0xff]
    %v3900 = vld [vmem:[#allocation6 + $0x38] sm:$0xff]
    %v3901 = vld [vmem:[#allocation6 + $0x40] sm:$0xff]
    %v3902 = vld [vmem:[#allocation6 + $0x48] sm:$0xff]
    %v3903 = vld [vmem:[#allocation6 + $0x50] sm:$0xff]
    %v3904 = vld [vmem:[#allocation6 + $0x58] sm:$0xff]
    %v3905 = vld [vmem:[#allocation6 + $0x60] sm:$0xff]
    %v3906 = vld [vmem:[#allocation6 + $0x68] sm:$0xff]
    %v3907 = vld [vmem:[#allocation6 + $0x70] sm:$0xff]
    %v3908 = vld [vmem:[#allocation6 + $0x78] sm:$0xff]
    %v3909 = vld [vmem:[#allocation6 + $0x80] sm:$0xff]
    %v3910 = vld [vmem:[#allocation6 + $0x88] sm:$0xff]
    %v3911 = vld [vmem:[#allocation6 + $0x90] sm:$0xff]
    %v3912 = vld [vmem:[#allocation6 + $0x98] sm:$0xff]
    %v3913 = vld [vmem:[#allocation6 + $0xa0] sm:$0xff]
    %v3914 = vld [vmem:[#allocation6 + $0xa8] sm:$0xff]
    %v3915 = vld [vmem:[#allocation6 + $0xb0] sm:$0xff]
    %v3916 = vld [vmem:[#allocation6 + $0xb8] sm:$0xff]
    %v3917 = vld [vmem:[#allocation6 + $0xc0] sm:$0xff]
    %v3918 = vld [vmem:[#allocation6 + $0xc8] sm:$0xff]
    %v3919 = vld [vmem:[#allocation6 + $0xd0] sm:$0xff]
    %v3920 = vld [vmem:[#allocation6 + $0xd8] sm:$0xff]
    %v3921 = vld [vmem:[#allocation6 + $0xe0] sm:$0xff]
    %v3922 = vld [vmem:[#allocation6 + $0xe8] sm:$0xff]
    %v3923 = vld [vmem:[#allocation6 + $0xf0] sm:$0xff]
    %v3924 = vld [vmem:[#allocation6 + $0xf8] sm:$0xff]
    %3925 = vmatprep.subr.mxu0 0.0
    %v3926 = vand.u32 %v3893, 4294901760
    %3927 = vmatpush1.msra.mxu0 %v3926
    %3928 = vmatprep.subr.mxu0 0.0
    %v3929 = vand.u32 %v3894, 4294901760
    %3930 = vmatpush1.msra.mxu0 %v3929
    %3931 = vmatprep.subr.mxu0 0.0
    %v3932 = vand.u32 %v3895, 4294901760
    %3933 = vmatpush1.msra.mxu0 %v3932
    %3934 = vmatprep.subr.mxu0 0.0
    %v3935 = vand.u32 %v3896, 4294901760
    %3936 = vmatpush1.msra.mxu0 %v3935
    %3937 = vmatprep.subr.mxu0 0.0
    %v3938 = vand.u32 %v3897, 4294901760
    %3939 = vmatpush1.msra.mxu0 %v3938
    %3940 = vmatprep.subr.mxu0 0.0
    %v3941 = vand.u32 %v3898, 4294901760
    %3942 = vmatpush1.msra.mxu0 %v3941
    %3943 = vmatprep.subr.mxu0 0.0
    %v3944 = vand.u32 %v3899, 4294901760
    %3945 = vmatpush1.msra.mxu0 %v3944
    %3946 = vmatprep.subr.mxu0 0.0
    %v3947 = vand.u32 %v3900, 4294901760
    %3948 = vmatpush1.msra.mxu0 %v3947
    %3949 = vmatprep.subr.mxu0 0.0
    %v3950 = vand.u32 %v3901, 4294901760
    %3951 = vmatpush1.msra.mxu0 %v3950
    %3952 = vmatprep.subr.mxu0 0.0
    %v3953 = vand.u32 %v3902, 4294901760
    %3954 = vmatpush1.msra.mxu0 %v3953
    %3955 = vmatprep.subr.mxu0 0.0
    %v3956 = vand.u32 %v3903, 4294901760
    %3957 = vmatpush1.msra.mxu0 %v3956
    %3958 = vmatprep.subr.mxu0 0.0
    %v3959 = vand.u32 %v3904, 4294901760
    %3960 = vmatpush1.msra.mxu0 %v3959
    %3961 = vmatprep.subr.mxu0 0.0
    %v3962 = vand.u32 %v3905, 4294901760
    %3963 = vmatpush1.msra.mxu0 %v3962
    %3964 = vmatprep.subr.mxu0 0.0
    %v3965 = vand.u32 %v3906, 4294901760
    %3966 = vmatpush1.msra.mxu0 %v3965
    %3967 = vmatprep.subr.mxu0 0.0
    %v3968 = vand.u32 %v3907, 4294901760
    %3969 = vmatpush1.msra.mxu0 %v3968
    %3970 = vmatprep.subr.mxu0 0.0
    %v3971 = vand.u32 %v3908, 4294901760
    %3972 = vmatpush1.msra.mxu0 %v3971
    %3973 = vmatprep.subr.mxu0 0.0
    %v3974 = vand.u32 %v3909, 4294901760
    %3975 = vmatpush1.msra.mxu0 %v3974
    %3976 = vmatprep.subr.mxu0 0.0
    %v3977 = vand.u32 %v3910, 4294901760
    %3978 = vmatpush1.msra.mxu0 %v3977
    %3979 = vmatprep.subr.mxu0 0.0
    %v3980 = vand.u32 %v3911, 4294901760
    %3981 = vmatpush1.msra.mxu0 %v3980
    %3982 = vmatprep.subr.mxu0 0.0
    %v3983 = vand.u32 %v3912, 4294901760
    %3984 = vmatpush1.msra.mxu0 %v3983
    %3985 = vmatprep.subr.mxu0 0.0
    %v3986 = vand.u32 %v3913, 4294901760
    %3987 = vmatpush1.msra.mxu0 %v3986
    %3988 = vmatprep.subr.mxu0 0.0
    %v3989 = vand.u32 %v3914, 4294901760
    %3990 = vmatpush1.msra.mxu0 %v3989
    %3991 = vmatprep.subr.mxu0 0.0
    %v3992 = vand.u32 %v3915, 4294901760
    %3993 = vmatpush1.msra.mxu0 %v3992
    %3994 = vmatprep.subr.mxu0 0.0
    %v3995 = vand.u32 %v3916, 4294901760
    %3996 = vmatpush1.msra.mxu0 %v3995
    %3997 = vmatprep.subr.mxu0 0.0
    %v3998 = vand.u32 %v3917, 4294901760
    %3999 = vmatpush1.msra.mxu0 %v3998
    %4000 = vmatprep.subr.mxu0 0.0
    %v4001 = vand.u32 %v3918, 4294901760
    %4002 = vmatpush1.msra.mxu0 %v4001
    %4003 = vmatprep.subr.mxu0 0.0
    %v4004 = vand.u32 %v3919, 4294901760
    %4005 = vmatpush1.msra.mxu0 %v4004
    %4006 = vmatprep.subr.mxu0 0.0
    %v4007 = vand.u32 %v3920, 4294901760
    %4008 = vmatpush1.msra.mxu0 %v4007
    %4009 = vmatprep.subr.mxu0 0.0
    %v4010 = vand.u32 %v3921, 4294901760
    %4011 = vmatpush1.msra.mxu0 %v4010
    %4012 = vmatprep.subr.mxu0 0.0
    %v4013 = vand.u32 %v3922, 4294901760
    %4014 = vmatpush1.msra.mxu0 %v4013
    %4015 = vmatprep.subr.mxu0 0.0
    %v4016 = vand.u32 %v3923, 4294901760
    %4017 = vmatpush1.msra.mxu0 %v4016
    %4018 = vmatprep.subr.mxu0 0.0
    %v4019 = vand.u32 %v3924, 4294901760
    %4020 = vmatpush1.msra.mxu0 %v4019
    %v4021 = vand.u32 %v3892, 4294901760
    %v4022 = vsub.f32 %v3892, %v4021
    %v4023 = vand.u32 %v4022, 4294901760
    %v4024 = vsub.f32 %v4022, %v4023
    %v4025 = vand.u32 %v4024, 4294901760
    %4026 = vmatprep.mubr.f32.mxu0 %v4025
    %v4027 = vand.u32 %v3891, 4294901760
    %v4028 = vsub.f32 %v3891, %v4027
    %v4029 = vand.u32 %v4028, 4294901760
    %v4030 = vsub.f32 %v4028, %v4029
    %v4031 = vand.u32 %v4030, 4294901760
    %4032 = vmatmul.mubr.f32.gmra.mrb[0].mxu0 %v4031
    %v4033 = vpop.f32.mrb[0].mxu0
    %v4034 = vadd.f32 0.0, %v4033
    %v4035 = vpop.f32.mrb[0].mxu0
    %4036 = vdwg.mxu0
    %4037 = vmatprep.subr.mxu0 0.0
    %v4038 = vand.u32 %v3893, 4294901760
    %v4039 = vsub.f32 %v3893, %v4038
    %v4040 = vand.u32 %v4039, 4294901760
    %v4041 = vsub.f32 %v4039, %v4040
    %v4042 = vand.u32 %v4041, 4294901760
    %4043 = vmatpush1.msra.mxu0 %v4042
    %4044 = vmatprep.subr.mxu0 0.0
    %v4045 = vand.u32 %v3894, 4294901760
    %v4046 = vsub.f32 %v3894, %v4045
    %v4047 = vand.u32 %v4046, 4294901760
    %v4048 = vsub.f32 %v4046, %v4047
    %v4049 = vand.u32 %v4048, 4294901760
    %4050 = vmatpush1.msra.mxu0 %v4049
    %4051 = vmatprep.subr.mxu0 0.0
    %v4052 = vand.u32 %v3895, 4294901760
    %v4053 = vsub.f32 %v3895, %v4052
    %v4054 = vand.u32 %v4053, 4294901760
    %v4055 = vsub.f32 %v4053, %v4054
    %v4056 = vand.u32 %v4055, 4294901760
    %4057 = vmatpush1.msra.mxu0 %v4056
    %4058 = vmatprep.subr.mxu0 0.0
    %v4059 = vand.u32 %v3896, 4294901760
    %v4060 = vsub.f32 %v3896, %v4059
    %v4061 = vand.u32 %v4060, 4294901760
    %v4062 = vsub.f32 %v4060, %v4061
    %v4063 = vand.u32 %v4062, 4294901760
    %4064 = vmatpush1.msra.mxu0 %v4063
    %4065 = vmatprep.subr.mxu0 0.0
    %v4066 = vand.u32 %v3897, 4294901760
    %v4067 = vsub.f32 %v3897, %v4066
    %v4068 = vand.u32 %v4067, 4294901760
    %v4069 = vsub.f32 %v4067, %v4068
    %v4070 = vand.u32 %v4069, 4294901760
    %4071 = vmatpush1.msra.mxu0 %v4070
    %4072 = vmatprep.subr.mxu0 0.0
    %v4073 = vand.u32 %v3898, 4294901760
    %v4074 = vsub.f32 %v3898, %v4073
    %v4075 = vand.u32 %v4074, 4294901760
    %v4076 = vsub.f32 %v4074, %v4075
    %v4077 = vand.u32 %v4076, 4294901760
    %4078 = vmatpush1.msra.mxu0 %v4077
    %4079 = vmatprep.subr.mxu0 0.0
    %v4080 = vand.u32 %v3899, 4294901760
    %v4081 = vsub.f32 %v3899, %v4080
    %v4082 = vand.u32 %v4081, 4294901760
    %v4083 = vsub.f32 %v4081, %v4082
    %v4084 = vand.u32 %v4083, 4294901760
    %4085 = vmatpush1.msra.mxu0 %v4084
    %4086 = vmatprep.subr.mxu0 0.0
    %v4087 = vand.u32 %v3900, 4294901760
    %v4088 = vsub.f32 %v3900, %v4087
    %v4089 = vand.u32 %v4088, 4294901760
    %v4090 = vsub.f32 %v4088, %v4089
    %v4091 = vand.u32 %v4090, 4294901760
    %4092 = vmatpush1.msra.mxu0 %v4091
    %4093 = vmatprep.subr.mxu0 0.0
    %v4094 = vand.u32 %v3901, 4294901760
    %v4095 = vsub.f32 %v3901, %v4094
    %v4096 = vand.u32 %v4095, 4294901760
    %v4097 = vsub.f32 %v4095, %v4096
    %v4098 = vand.u32 %v4097, 4294901760
    %4099 = vmatpush1.msra.mxu0 %v4098
    %4100 = vmatprep.subr.mxu0 0.0
    %v4101 = vand.u32 %v3902, 4294901760
    %v4102 = vsub.f32 %v3902, %v4101
    %v4103 = vand.u32 %v4102, 4294901760
    %v4104 = vsub.f32 %v4102, %v4103
    %v4105 = vand.u32 %v4104, 4294901760
    %4106 = vmatpush1.msra.mxu0 %v4105
    %4107 = vmatprep.subr.mxu0 0.0
    %v4108 = vand.u32 %v3903, 4294901760
    %v4109 = vsub.f32 %v3903, %v4108
    %v4110 = vand.u32 %v4109, 4294901760
    %v4111 = vsub.f32 %v4109, %v4110
    %v4112 = vand.u32 %v4111, 4294901760
    %4113 = vmatpush1.msra.mxu0 %v4112
    %4114 = vmatprep.subr.mxu0 0.0
    %v4115 = vand.u32 %v3904, 4294901760
    %v4116 = vsub.f32 %v3904, %v4115
    %v4117 = vand.u32 %v4116, 4294901760
    %v4118 = vsub.f32 %v4116, %v4117
    %v4119 = vand.u32 %v4118, 4294901760
    %4120 = vmatpush1.msra.mxu0 %v4119
    %4121 = vmatprep.subr.mxu0 0.0
    %v4122 = vand.u32 %v3905, 4294901760
    %v4123 = vsub.f32 %v3905, %v4122
    %v4124 = vand.u32 %v4123, 4294901760
    %v4125 = vsub.f32 %v4123, %v4124
    %v4126 = vand.u32 %v4125, 4294901760
    %4127 = vmatpush1.msra.mxu0 %v4126
    %4128 = vmatprep.subr.mxu0 0.0
    %v4129 = vand.u32 %v3906, 4294901760
    %v4130 = vsub.f32 %v3906, %v4129
    %v4131 = vand.u32 %v4130, 4294901760
    %v4132 = vsub.f32 %v4130, %v4131
    %v4133 = vand.u32 %v4132, 4294901760
    %4134 = vmatpush1.msra.mxu0 %v4133
    %4135 = vmatprep.subr.mxu0 0.0
    %v4136 = vand.u32 %v3907, 4294901760
    %v4137 = vsub.f32 %v3907, %v4136
    %v4138 = vand.u32 %v4137, 4294901760
    %v4139 = vsub.f32 %v4137, %v4138
    %v4140 = vand.u32 %v4139, 4294901760
    %4141 = vmatpush1.msra.mxu0 %v4140
    %4142 = vmatprep.subr.mxu0 0.0
    %v4143 = vand.u32 %v3908, 4294901760
    %v4144 = vsub.f32 %v3908, %v4143
    %v4145 = vand.u32 %v4144, 4294901760
    %v4146 = vsub.f32 %v4144, %v4145
    %v4147 = vand.u32 %v4146, 4294901760
    %4148 = vmatpush1.msra.mxu0 %v4147
    %4149 = vmatprep.subr.mxu0 0.0
    %v4150 = vand.u32 %v3909, 4294901760
    %v4151 = vsub.f32 %v3909, %v4150
    %v4152 = vand.u32 %v4151, 4294901760
    %v4153 = vsub.f32 %v4151, %v4152
    %v4154 = vand.u32 %v4153, 4294901760
    %4155 = vmatpush1.msra.mxu0 %v4154
    %4156 = vmatprep.subr.mxu0 0.0
    %v4157 = vand.u32 %v3910, 4294901760
    %v4158 = vsub.f32 %v3910, %v4157
    %v4159 = vand.u32 %v4158, 4294901760
    %v4160 = vsub.f32 %v4158, %v4159
    %v4161 = vand.u32 %v4160, 4294901760
    %4162 = vmatpush1.msra.mxu0 %v4161
    %4163 = vmatprep.subr.mxu0 0.0
    %v4164 = vand.u32 %v3911, 4294901760
    %v4165 = vsub.f32 %v3911, %v4164
    %v4166 = vand.u32 %v4165, 4294901760
    %v4167 = vsub.f32 %v4165, %v4166
    %v4168 = vand.u32 %v4167, 4294901760
    %4169 = vmatpush1.msra.mxu0 %v4168
    %4170 = vmatprep.subr.mxu0 0.0
    %v4171 = vand.u32 %v3912, 4294901760
    %v4172 = vsub.f32 %v3912, %v4171
    %v4173 = vand.u32 %v4172, 4294901760
    %v4174 = vsub.f32 %v4172, %v4173
    %v4175 = vand.u32 %v4174, 4294901760
    %4176 = vmatpush1.msra.mxu0 %v4175
    %4177 = vmatprep.subr.mxu0 0.0
    %v4178 = vand.u32 %v3913, 4294901760
    %v4179 = vsub.f32 %v3913, %v4178
    %v4180 = vand.u32 %v4179, 4294901760
    %v4181 = vsub.f32 %v4179, %v4180
    %v4182 = vand.u32 %v4181, 4294901760
    %4183 = vmatpush1.msra.mxu0 %v4182
    %4184 = vmatprep.subr.mxu0 0.0
    %v4185 = vand.u32 %v3914, 4294901760
    %v4186 = vsub.f32 %v3914, %v4185
    %v4187 = vand.u32 %v4186, 4294901760
    %v4188 = vsub.f32 %v4186, %v4187
    %v4189 = vand.u32 %v4188, 4294901760
    %4190 = vmatpush1.msra.mxu0 %v4189
    %4191 = vmatprep.subr.mxu0 0.0
    %v4192 = vand.u32 %v3915, 4294901760
    %v4193 = vsub.f32 %v3915, %v4192
    %v4194 = vand.u32 %v4193, 4294901760
    %v4195 = vsub.f32 %v4193, %v4194
    %v4196 = vand.u32 %v4195, 4294901760
    %4197 = vmatpush1.msra.mxu0 %v4196
    %4198 = vmatprep.subr.mxu0 0.0
    %v4199 = vand.u32 %v3916, 4294901760
    %v4200 = vsub.f32 %v3916, %v4199
    %v4201 = vand.u32 %v4200, 4294901760
    %v4202 = vsub.f32 %v4200, %v4201
    %v4203 = vand.u32 %v4202, 4294901760
    %4204 = vmatpush1.msra.mxu0 %v4203
    %4205 = vmatprep.subr.mxu0 0.0
    %v4206 = vand.u32 %v3917, 4294901760
    %v4207 = vsub.f32 %v3917, %v4206
    %v4208 = vand.u32 %v4207, 4294901760
    %v4209 = vsub.f32 %v4207, %v4208
    %v4210 = vand.u32 %v4209, 4294901760
    %4211 = vmatpush1.msra.mxu0 %v4210
    %4212 = vmatprep.subr.mxu0 0.0
    %v4213 = vand.u32 %v3918, 4294901760
    %v4214 = vsub.f32 %v3918, %v4213
    %v4215 = vand.u32 %v4214, 4294901760
    %v4216 = vsub.f32 %v4214, %v4215
    %v4217 = vand.u32 %v4216, 4294901760
    %4218 = vmatpush1.msra.mxu0 %v4217
    %4219 = vmatprep.subr.mxu0 0.0
    %v4220 = vand.u32 %v3919, 4294901760
    %v4221 = vsub.f32 %v3919, %v4220
    %v4222 = vand.u32 %v4221, 4294901760
    %v4223 = vsub.f32 %v4221, %v4222
    %v4224 = vand.u32 %v4223, 4294901760
    %4225 = vmatpush1.msra.mxu0 %v4224
    %4226 = vmatprep.subr.mxu0 0.0
    %v4227 = vand.u32 %v3920, 4294901760
    %v4228 = vsub.f32 %v3920, %v4227
    %v4229 = vand.u32 %v4228, 4294901760
    %v4230 = vsub.f32 %v4228, %v4229
    %v4231 = vand.u32 %v4230, 4294901760
    %4232 = vmatpush1.msra.mxu0 %v4231
    %4233 = vmatprep.subr.mxu0 0.0
    %v4234 = vand.u32 %v3921, 4294901760
    %v4235 = vsub.f32 %v3921, %v4234
    %v4236 = vand.u32 %v4235, 4294901760
    %v4237 = vsub.f32 %v4235, %v4236
    %v4238 = vand.u32 %v4237, 4294901760
    %4239 = vmatpush1.msra.mxu0 %v4238
    %4240 = vmatprep.subr.mxu0 0.0
    %v4241 = vand.u32 %v3922, 4294901760
    %v4242 = vsub.f32 %v3922, %v4241
    %v4243 = vand.u32 %v4242, 4294901760
    %v4244 = vsub.f32 %v4242, %v4243
    %v4245 = vand.u32 %v4244, 4294901760
    %4246 = vmatpush1.msra.mxu0 %v4245
    %4247 = vmatprep.subr.mxu0 0.0
    %v4248 = vand.u32 %v3923, 4294901760
    %v4249 = vsub.f32 %v3923, %v4248
    %v4250 = vand.u32 %v4249, 4294901760
    %v4251 = vsub.f32 %v4249, %v4250
    %v4252 = vand.u32 %v4251, 4294901760
    %4253 = vmatpush1.msra.mxu0 %v4252
    %4254 = vmatprep.subr.mxu0 0.0
    %v4255 = vand.u32 %v3924, 4294901760
    %v4256 = vsub.f32 %v3924, %v4255
    %v4257 = vand.u32 %v4256, 4294901760
    %v4258 = vsub.f32 %v4256, %v4257
    %v4259 = vand.u32 %v4258, 4294901760
    %4260 = vmatpush1.msra.mxu0 %v4259
    %v4261 = vand.u32 %v3892, 4294901760
    %4262 = vmatprep.mubr.f32.mxu0 %v4261
    %v4263 = vand.u32 %v3891, 4294901760
    %4264 = vmatmul.mubr.f32.gmra.mrb[0].mxu0 %v4263
    %v4265 = vpop.f32.mrb[0].mxu0
    %v4266 = vadd.f32 %v4034, %v4265
    %v4267 = vpop.f32.mrb[0].mxu0
    %4268 = vdwg.mxu0
    %4269 = vmatprep.subr.mxu0 0.0
    %v4270 = vand.u32 %v3893, 4294901760
    %v4271 = vsub.f32 %v3893, %v4270
    %4272 = vmatpush1.msra.mxu0 %v4271
    %4273 = vmatprep.subr.mxu0 0.0
    %v4274 = vand.u32 %v3894, 4294901760
    %v4275 = vsub.f32 %v3894, %v4274
    %4276 = vmatpush1.msra.mxu0 %v4275
    %4277 = vmatprep.subr.mxu0 0.0
    %v4278 = vand.u32 %v3895, 4294901760
    %v4279 = vsub.f32 %v3895, %v4278
    %4280 = vmatpush1.msra.mxu0 %v4279
    %4281 = vmatprep.subr.mxu0 0.0
    %v4282 = vand.u32 %v3896, 4294901760
    %v4283 = vsub.f32 %v3896, %v4282
    %4284 = vmatpush1.msra.mxu0 %v4283
    %4285 = vmatprep.subr.mxu0 0.0
    %v4286 = vand.u32 %v3897, 4294901760
    %v4287 = vsub.f32 %v3897, %v4286
    %4288 = vmatpush1.msra.mxu0 %v4287
    %4289 = vmatprep.subr.mxu0 0.0
    %v4290 = vand.u32 %v3898, 4294901760
    %v4291 = vsub.f32 %v3898, %v4290
    %4292 = vmatpush1.msra.mxu0 %v4291
    %4293 = vmatprep.subr.mxu0 0.0
    %v4294 = vand.u32 %v3899, 4294901760
    %v4295 = vsub.f32 %v3899, %v4294
    %4296 = vmatpush1.msra.mxu0 %v4295
    %4297 = vmatprep.subr.mxu0 0.0
    %v4298 = vand.u32 %v3900, 4294901760
    %v4299 = vsub.f32 %v3900, %v4298
    %4300 = vmatpush1.msra.mxu0 %v4299
    %4301 = vmatprep.subr.mxu0 0.0
    %v4302 = vand.u32 %v3901, 4294901760
    %v4303 = vsub.f32 %v3901, %v4302
    %4304 = vmatpush1.msra.mxu0 %v4303
    %4305 = vmatprep.subr.mxu0 0.0
    %v4306 = vand.u32 %v3902, 4294901760
    %v4307 = vsub.f32 %v3902, %v4306
    %4308 = vmatpush1.msra.mxu0 %v4307
    %4309 = vmatprep.subr.mxu0 0.0
    %v4310 = vand.u32 %v3903, 4294901760
    %v4311 = vsub.f32 %v3903, %v4310
    %4312 = vmatpush1.msra.mxu0 %v4311
    %4313 = vmatprep.subr.mxu0 0.0
    %v4314 = vand.u32 %v3904, 4294901760
    %v4315 = vsub.f32 %v3904, %v4314
    %4316 = vmatpush1.msra.mxu0 %v4315
    %4317 = vmatprep.subr.mxu0 0.0
    %v4318 = vand.u32 %v3905, 4294901760
    %v4319 = vsub.f32 %v3905, %v4318
    %4320 = vmatpush1.msra.mxu0 %v4319
    %4321 = vmatprep.subr.mxu0 0.0
    %v4322 = vand.u32 %v3906, 4294901760
    %v4323 = vsub.f32 %v3906, %v4322
    %4324 = vmatpush1.msra.mxu0 %v4323
    %4325 = vmatprep.subr.mxu0 0.0
    %v4326 = vand.u32 %v3907, 4294901760
    %v4327 = vsub.f32 %v3907, %v4326
    %4328 = vmatpush1.msra.mxu0 %v4327
    %4329 = vmatprep.subr.mxu0 0.0
    %v4330 = vand.u32 %v3908, 4294901760
    %v4331 = vsub.f32 %v3908, %v4330
    %4332 = vmatpush1.msra.mxu0 %v4331
    %4333 = vmatprep.subr.mxu0 0.0
    %v4334 = vand.u32 %v3909, 4294901760
    %v4335 = vsub.f32 %v3909, %v4334
    %4336 = vmatpush1.msra.mxu0 %v4335
    %4337 = vmatprep.subr.mxu0 0.0
    %v4338 = vand.u32 %v3910, 4294901760
    %v4339 = vsub.f32 %v3910, %v4338
    %4340 = vmatpush1.msra.mxu0 %v4339
    %4341 = vmatprep.subr.mxu0 0.0
    %v4342 = vand.u32 %v3911, 4294901760
    %v4343 = vsub.f32 %v3911, %v4342
    %4344 = vmatpush1.msra.mxu0 %v4343
    %4345 = vmatprep.subr.mxu0 0.0
    %v4346 = vand.u32 %v3912, 4294901760
    %v4347 = vsub.f32 %v3912, %v4346
    %4348 = vmatpush1.msra.mxu0 %v4347
    %4349 = vmatprep.subr.mxu0 0.0
    %v4350 = vand.u32 %v3913, 4294901760
    %v4351 = vsub.f32 %v3913, %v4350
    %4352 = vmatpush1.msra.mxu0 %v4351
    %4353 = vmatprep.subr.mxu0 0.0
    %v4354 = vand.u32 %v3914, 4294901760
    %v4355 = vsub.f32 %v3914, %v4354
    %4356 = vmatpush1.msra.mxu0 %v4355
    %4357 = vmatprep.subr.mxu0 0.0
    %v4358 = vand.u32 %v3915, 4294901760
    %v4359 = vsub.f32 %v3915, %v4358
    %4360 = vmatpush1.msra.mxu0 %v4359
    %4361 = vmatprep.subr.mxu0 0.0
    %v4362 = vand.u32 %v3916, 4294901760
    %v4363 = vsub.f32 %v3916, %v4362
    %4364 = vmatpush1.msra.mxu0 %v4363
    %4365 = vmatprep.subr.mxu0 0.0
    %v4366 = vand.u32 %v3917, 4294901760
    %v4367 = vsub.f32 %v3917, %v4366
    %4368 = vmatpush1.msra.mxu0 %v4367
    %4369 = vmatprep.subr.mxu0 0.0
    %v4370 = vand.u32 %v3918, 4294901760
    %v4371 = vsub.f32 %v3918, %v4370
    %4372 = vmatpush1.msra.mxu0 %v4371
    %4373 = vmatprep.subr.mxu0 0.0
    %v4374 = vand.u32 %v3919, 4294901760
    %v4375 = vsub.f32 %v3919, %v4374
    %4376 = vmatpush1.msra.mxu0 %v4375
    %4377 = vmatprep.subr.mxu0 0.0
    %v4378 = vand.u32 %v3920, 4294901760
    %v4379 = vsub.f32 %v3920, %v4378
    %4380 = vmatpush1.msra.mxu0 %v4379
    %4381 = vmatprep.subr.mxu0 0.0
    %v4382 = vand.u32 %v3921, 4294901760
    %v4383 = vsub.f32 %v3921, %v4382
    %4384 = vmatpush1.msra.mxu0 %v4383
    %4385 = vmatprep.subr.mxu0 0.0
    %v4386 = vand.u32 %v3922, 4294901760
    %v4387 = vsub.f32 %v3922, %v4386
    %4388 = vmatpush1.msra.mxu0 %v4387
    %4389 = vmatprep.subr.mxu0 0.0
    %v4390 = vand.u32 %v3923, 4294901760
    %v4391 = vsub.f32 %v3923, %v4390
    %4392 = vmatpush1.msra.mxu0 %v4391
    %4393 = vmatprep.subr.mxu0 0.0
    %v4394 = vand.u32 %v3924, 4294901760
    %v4395 = vsub.f32 %v3924, %v4394
    %4396 = vmatpush1.msra.mxu0 %v4395
    %v4397 = vand.u32 %v3892, 4294901760
    %v4398 = vsub.f32 %v3892, %v4397
    %4399 = vmatprep.mubr.f32.mxu0 %v4398
    %v4400 = vand.u32 %v3891, 4294901760
    %v4401 = vsub.f32 %v3891, %v4400
    %4402 = vmatmul.mubr.f32.gmra.mrb[0].mxu0 %v4401
    %v4403 = vpop.f32.mrb[0].mxu0
    %v4404 = vadd.f32 %v4266, %v4403
    %v4405 = vpop.f32.mrb[0].mxu0
    %4406 = vdwg.mxu0
    %4407 = vmatprep.subr.mxu0 0.0
    %v4408 = vand.u32 %v3893, 4294901760
    %4409 = vmatpush1.msra.mxu0 %v4408
    %4410 = vmatprep.subr.mxu0 0.0
    %v4411 = vand.u32 %v3894, 4294901760
    %4412 = vmatpush1.msra.mxu0 %v4411
    %4413 = vmatprep.subr.mxu0 0.0
    %v4414 = vand.u32 %v3895, 4294901760
    %4415 = vmatpush1.msra.mxu0 %v4414
    %4416 = vmatprep.subr.mxu0 0.0
    %v4417 = vand.u32 %v3896, 4294901760
    %4418 = vmatpush1.msra.mxu0 %v4417
    %4419 = vmatprep.subr.mxu0 0.0
    %v4420 = vand.u32 %v3897, 4294901760
    %4421 = vmatpush1.msra.mxu0 %v4420
    %4422 = vmatprep.subr.mxu0 0.0
    %v4423 = vand.u32 %v3898, 4294901760
    %4424 = vmatpush1.msra.mxu0 %v4423
    %4425 = vmatprep.subr.mxu0 0.0
    %v4426 = vand.u32 %v3899, 4294901760
    %4427 = vmatpush1.msra.mxu0 %v4426
    %4428 = vmatprep.subr.mxu0 0.0
    %v4429 = vand.u32 %v3900, 4294901760
    %4430 = vmatpush1.msra.mxu0 %v4429
    %4431 = vmatprep.subr.mxu0 0.0
    %v4432 = vand.u32 %v3901, 4294901760
    %4433 = vmatpush1.msra.mxu0 %v4432
    %4434 = vmatprep.subr.mxu0 0.0
    %v4435 = vand.u32 %v3902, 4294901760
    %4436 = vmatpush1.msra.mxu0 %v4435
    %4437 = vmatprep.subr.mxu0 0.0
    %v4438 = vand.u32 %v3903, 4294901760
    %4439 = vmatpush1.msra.mxu0 %v4438
    %4440 = vmatprep.subr.mxu0 0.0
    %v4441 = vand.u32 %v3904, 4294901760
    %4442 = vmatpush1.msra.mxu0 %v4441
    %4443 = vmatprep.subr.mxu0 0.0
    %v4444 = vand.u32 %v3905, 4294901760
    %4445 = vmatpush1.msra.mxu0 %v4444
    %4446 = vmatprep.subr.mxu0 0.0
    %v4447 = vand.u32 %v3906, 4294901760
    %4448 = vmatpush1.msra.mxu0 %v4447
    %4449 = vmatprep.subr.mxu0 0.0
    %v4450 = vand.u32 %v3907, 4294901760
    %4451 = vmatpush1.msra.mxu0 %v4450
    %4452 = vmatprep.subr.mxu0 0.0
    %v4453 = vand.u32 %v3908, 4294901760
    %4454 = vmatpush1.msra.mxu0 %v4453
    %4455 = vmatprep.subr.mxu0 0.0
    %v4456 = vand.u32 %v3909, 4294901760
    %4457 = vmatpush1.msra.mxu0 %v4456
    %4458 = vmatprep.subr.mxu0 0.0
    %v4459 = vand.u32 %v3910, 4294901760
    %4460 = vmatpush1.msra.mxu0 %v4459
    %4461 = vmatprep.subr.mxu0 0.0
    %v4462 = vand.u32 %v3911, 4294901760
    %4463 = vmatpush1.msra.mxu0 %v4462
    %4464 = vmatprep.subr.mxu0 0.0
    %v4465 = vand.u32 %v3912, 4294901760
    %4466 = vmatpush1.msra.mxu0 %v4465
    %4467 = vmatprep.subr.mxu0 0.0
    %v4468 = vand.u32 %v3913, 4294901760
    %4469 = vmatpush1.msra.mxu0 %v4468
    %4470 = vmatprep.subr.mxu0 0.0
    %v4471 = vand.u32 %v3914, 4294901760
    %4472 = vmatpush1.msra.mxu0 %v4471
    %4473 = vmatprep.subr.mxu0 0.0
    %v4474 = vand.u32 %v3915, 4294901760
    %4475 = vmatpush1.msra.mxu0 %v4474
    %4476 = vmatprep.subr.mxu0 0.0
    %v4477 = vand.u32 %v3916, 4294901760
    %4478 = vmatpush1.msra.mxu0 %v4477
    %4479 = vmatprep.subr.mxu0 0.0
    %v4480 = vand.u32 %v3917, 4294901760
    %4481 = vmatpush1.msra.mxu0 %v4480
    %4482 = vmatprep.subr.mxu0 0.0
    %v4483 = vand.u32 %v3918, 4294901760
    %4484 = vmatpush1.msra.mxu0 %v4483
    %4485 = vmatprep.subr.mxu0 0.0
    %v4486 = vand.u32 %v3919, 4294901760
    %4487 = vmatpush1.msra.mxu0 %v4486
    %4488 = vmatprep.subr.mxu0 0.0
    %v4489 = vand.u32 %v3920, 4294901760
    %4490 = vmatpush1.msra.mxu0 %v4489
    %4491 = vmatprep.subr.mxu0 0.0
    %v4492 = vand.u32 %v3921, 4294901760
    %4493 = vmatpush1.msra.mxu0 %v4492
    %4494 = vmatprep.subr.mxu0 0.0
    %v4495 = vand.u32 %v3922, 4294901760
    %4496 = vmatpush1.msra.mxu0 %v4495
    %4497 = vmatprep.subr.mxu0 0.0
    %v4498 = vand.u32 %v3923, 4294901760
    %4499 = vmatpush1.msra.mxu0 %v4498
    %4500 = vmatprep.subr.mxu0 0.0
    %v4501 = vand.u32 %v3924, 4294901760
    %4502 = vmatpush1.msra.mxu0 %v4501
    %v4503 = vand.u32 %v3892, 4294901760
    %v4504 = vsub.f32 %v3892, %v4503
    %v4505 = vand.u32 %v4504, 4294901760
    %4506 = vmatprep.mubr.f32.mxu0 %v4505
    %v4507 = vand.u32 %v3891, 4294901760
    %v4508 = vsub.f32 %v3891, %v4507
    %v4509 = vand.u32 %v4508, 4294901760
    %4510 = vmatmul.mubr.f32.gmra.mrb[0].mxu0 %v4509
    %v4511 = vpop.f32.mrb[0].mxu0
    %v4512 = vadd.f32 %v4404, %v4511
    %v4513 = vpop.f32.mrb[0].mxu0
    %4514 = vdwg.mxu0
    %4515 = vmatprep.subr.mxu0 0.0
    %v4516 = vand.u32 %v3893, 4294901760
    %v4517 = vsub.f32 %v3893, %v4516
    %v4518 = vand.u32 %v4517, 4294901760
    %4519 = vmatpush1.msra.mxu0 %v4518
    %4520 = vmatprep.subr.mxu0 0.0
    %v4521 = vand.u32 %v3894, 4294901760
    %v4522 = vsub.f32 %v3894, %v4521
    %v4523 = vand.u32 %v4522, 4294901760
    %4524 = vmatpush1.msra.mxu0 %v4523
    %4525 = vmatprep.subr.mxu0 0.0
    %v4526 = vand.u32 %v3895, 4294901760
    %v4527 = vsub.f32 %v3895, %v4526
    %v4528 = vand.u32 %v4527, 4294901760
    %4529 = vmatpush1.msra.mxu0 %v4528
    %4530 = vmatprep.subr.mxu0 0.0
    %v4531 = vand.u32 %v3896, 4294901760
    %v4532 = vsub.f32 %v3896, %v4531
    %v4533 = vand.u32 %v4532, 4294901760
    %4534 = vmatpush1.msra.mxu0 %v4533
    %4535 = vmatprep.subr.mxu0 0.0
    %v4536 = vand.u32 %v3897, 4294901760
    %v4537 = vsub.f32 %v3897, %v4536
    %v4538 = vand.u32 %v4537, 4294901760
    %4539 = vmatpush1.msra.mxu0 %v4538
    %4540 = vmatprep.subr.mxu0 0.0
    %v4541 = vand.u32 %v3898, 4294901760
    %v4542 = vsub.f32 %v3898, %v4541
    %v4543 = vand.u32 %v4542, 4294901760
    %4544 = vmatpush1.msra.mxu0 %v4543
    %4545 = vmatprep.subr.mxu0 0.0
    %v4546 = vand.u32 %v3899, 4294901760
    %v4547 = vsub.f32 %v3899, %v4546
    %v4548 = vand.u32 %v4547, 4294901760
    %4549 = vmatpush1.msra.mxu0 %v4548
    %4550 = vmatprep.subr.mxu0 0.0
    %v4551 = vand.u32 %v3900, 4294901760
    %v4552 = vsub.f32 %v3900, %v4551
    %v4553 = vand.u32 %v4552, 4294901760
    %4554 = vmatpush1.msra.mxu0 %v4553
    %4555 = vmatprep.subr.mxu0 0.0
    %v4556 = vand.u32 %v3901, 4294901760
    %v4557 = vsub.f32 %v3901, %v4556
    %v4558 = vand.u32 %v4557, 4294901760
    %4559 = vmatpush1.msra.mxu0 %v4558
    %4560 = vmatprep.subr.mxu0 0.0
    %v4561 = vand.u32 %v3902, 4294901760
    %v4562 = vsub.f32 %v3902, %v4561
    %v4563 = vand.u32 %v4562, 4294901760
    %4564 = vmatpush1.msra.mxu0 %v4563
    %4565 = vmatprep.subr.mxu0 0.0
    %v4566 = vand.u32 %v3903, 4294901760
    %v4567 = vsub.f32 %v3903, %v4566
    %v4568 = vand.u32 %v4567, 4294901760
    %4569 = vmatpush1.msra.mxu0 %v4568
    %4570 = vmatprep.subr.mxu0 0.0
    %v4571 = vand.u32 %v3904, 4294901760
    %v4572 = vsub.f32 %v3904, %v4571
    %v4573 = vand.u32 %v4572, 4294901760
    %4574 = vmatpush1.msra.mxu0 %v4573
    %4575 = vmatprep.subr.mxu0 0.0
    %v4576 = vand.u32 %v3905, 4294901760
    %v4577 = vsub.f32 %v3905, %v4576
    %v4578 = vand.u32 %v4577, 4294901760
    %4579 = vmatpush1.msra.mxu0 %v4578
    %4580 = vmatprep.subr.mxu0 0.0
    %v4581 = vand.u32 %v3906, 4294901760
    %v4582 = vsub.f32 %v3906, %v4581
    %v4583 = vand.u32 %v4582, 4294901760
    %4584 = vmatpush1.msra.mxu0 %v4583
    %4585 = vmatprep.subr.mxu0 0.0
    %v4586 = vand.u32 %v3907, 4294901760
    %v4587 = vsub.f32 %v3907, %v4586
    %v4588 = vand.u32 %v4587, 4294901760
    %4589 = vmatpush1.msra.mxu0 %v4588
    %4590 = vmatprep.subr.mxu0 0.0
    %v4591 = vand.u32 %v3908, 4294901760
    %v4592 = vsub.f32 %v3908, %v4591
    %v4593 = vand.u32 %v4592, 4294901760
    %4594 = vmatpush1.msra.mxu0 %v4593
    %4595 = vmatprep.subr.mxu0 0.0
    %v4596 = vand.u32 %v3909, 4294901760
    %v4597 = vsub.f32 %v3909, %v4596
    %v4598 = vand.u32 %v4597, 4294901760
    %4599 = vmatpush1.msra.mxu0 %v4598
    %4600 = vmatprep.subr.mxu0 0.0
    %v4601 = vand.u32 %v3910, 4294901760
    %v4602 = vsub.f32 %v3910, %v4601
    %v4603 = vand.u32 %v4602, 4294901760
    %4604 = vmatpush1.msra.mxu0 %v4603
    %4605 = vmatprep.subr.mxu0 0.0
    %v4606 = vand.u32 %v3911, 4294901760
    %v4607 = vsub.f32 %v3911, %v4606
    %v4608 = vand.u32 %v4607, 4294901760
    %4609 = vmatpush1.msra.mxu0 %v4608
    %4610 = vmatprep.subr.mxu0 0.0
    %v4611 = vand.u32 %v3912, 4294901760
    %v4612 = vsub.f32 %v3912, %v4611
    %v4613 = vand.u32 %v4612, 4294901760
    %4614 = vmatpush1.msra.mxu0 %v4613
    %4615 = vmatprep.subr.mxu0 0.0
    %v4616 = vand.u32 %v3913, 4294901760
    %v4617 = vsub.f32 %v3913, %v4616
    %v4618 = vand.u32 %v4617, 4294901760
    %4619 = vmatpush1.msra.mxu0 %v4618
    %4620 = vmatprep.subr.mxu0 0.0
    %v4621 = vand.u32 %v3914, 4294901760
    %v4622 = vsub.f32 %v3914, %v4621
    %v4623 = vand.u32 %v4622, 4294901760
    %4624 = vmatpush1.msra.mxu0 %v4623
    %4625 = vmatprep.subr.mxu0 0.0
    %v4626 = vand.u32 %v3915, 4294901760
    %v4627 = vsub.f32 %v3915, %v4626
    %v4628 = vand.u32 %v4627, 4294901760
    %4629 = vmatpush1.msra.mxu0 %v4628
    %4630 = vmatprep.subr.mxu0 0.0
    %v4631 = vand.u32 %v3916, 4294901760
    %v4632 = vsub.f32 %v3916, %v4631
    %v4633 = vand.u32 %v4632, 4294901760
    %4634 = vmatpush1.msra.mxu0 %v4633
    %4635 = vmatprep.subr.mxu0 0.0
    %v4636 = vand.u32 %v3917, 4294901760
    %v4637 = vsub.f32 %v3917, %v4636
    %v4638 = vand.u32 %v4637, 4294901760
    %4639 = vmatpush1.msra.mxu0 %v4638
    %4640 = vmatprep.subr.mxu0 0.0
    %v4641 = vand.u32 %v3918, 4294901760
    %v4642 = vsub.f32 %v3918, %v4641
    %v4643 = vand.u32 %v4642, 4294901760
    %4644 = vmatpush1.msra.mxu0 %v4643
    %4645 = vmatprep.subr.mxu0 0.0
    %v4646 = vand.u32 %v3919, 4294901760
    %v4647 = vsub.f32 %v3919, %v4646
    %v4648 = vand.u32 %v4647, 4294901760
    %4649 = vmatpush1.msra.mxu0 %v4648
    %4650 = vmatprep.subr.mxu0 0.0
    %v4651 = vand.u32 %v3920, 4294901760
    %v4652 = vsub.f32 %v3920, %v4651
    %v4653 = vand.u32 %v4652, 4294901760
    %4654 = vmatpush1.msra.mxu0 %v4653
    %4655 = vmatprep.subr.mxu0 0.0
    %v4656 = vand.u32 %v3921, 4294901760
    %v4657 = vsub.f32 %v3921, %v4656
    %v4658 = vand.u32 %v4657, 4294901760
    %4659 = vmatpush1.msra.mxu0 %v4658
    %4660 = vmatprep.subr.mxu0 0.0
    %v4661 = vand.u32 %v3922, 4294901760
    %v4662 = vsub.f32 %v3922, %v4661
    %v4663 = vand.u32 %v4662, 4294901760
    %4664 = vmatpush1.msra.mxu0 %v4663
    %4665 = vmatprep.subr.mxu0 0.0
    %v4666 = vand.u32 %v3923, 4294901760
    %v4667 = vsub.f32 %v3923, %v4666
    %v4668 = vand.u32 %v4667, 4294901760
    %4669 = vmatpush1.msra.mxu0 %v4668
    %4670 = vmatprep.subr.mxu0 0.0
    %v4671 = vand.u32 %v3924, 4294901760
    %v4672 = vsub.f32 %v3924, %v4671
    %v4673 = vand.u32 %v4672, 4294901760
    %4674 = vmatpush1.msra.mxu0 %v4673
    %v4675 = vand.u32 %v3892, 4294901760
    %4676 = vmatprep.mubr.f32.mxu0 %v4675
    %v4677 = vand.u32 %v3891, 4294901760
    %4678 = vmatmul.mubr.f32.gmra.mrb[0].mxu0 %v4677
    %v4679 = vpop.f32.mrb[0].mxu0
    %v4680 = vadd.f32 %v4512, %v4679
    %v4681 = vpop.f32.mrb[0].mxu0
    %4682 = vdwg.mxu0
    %4683 = vmatprep.subr.mxu0 0.0
    %v4684 = vand.u32 %v3893, 4294901760
    %4685 = vmatpush1.msra.mxu0 %v4684
    %4686 = vmatprep.subr.mxu0 0.0
    %v4687 = vand.u32 %v3894, 4294901760
    %4688 = vmatpush1.msra.mxu0 %v4687
    %4689 = vmatprep.subr.mxu0 0.0
    %v4690 = vand.u32 %v3895, 4294901760
    %4691 = vmatpush1.msra.mxu0 %v4690
    %4692 = vmatprep.subr.mxu0 0.0
    %v4693 = vand.u32 %v3896, 4294901760
    %4694 = vmatpush1.msra.mxu0 %v4693
    %4695 = vmatprep.subr.mxu0 0.0
    %v4696 = vand.u32 %v3897, 4294901760
    %4697 = vmatpush1.msra.mxu0 %v4696
    %4698 = vmatprep.subr.mxu0 0.0
    %v4699 = vand.u32 %v3898, 4294901760
    %4700 = vmatpush1.msra.mxu0 %v4699
    %4701 = vmatprep.subr.mxu0 0.0
    %v4702 = vand.u32 %v3899, 4294901760
    %4703 = vmatpush1.msra.mxu0 %v4702
    %4704 = vmatprep.subr.mxu0 0.0
    %v4705 = vand.u32 %v3900, 4294901760
    %4706 = vmatpush1.msra.mxu0 %v4705
    %4707 = vmatprep.subr.mxu0 0.0
    %v4708 = vand.u32 %v3901, 4294901760
    %4709 = vmatpush1.msra.mxu0 %v4708
    %4710 = vmatprep.subr.mxu0 0.0
    %v4711 = vand.u32 %v3902, 4294901760
    %4712 = vmatpush1.msra.mxu0 %v4711
    %4713 = vmatprep.subr.mxu0 0.0
    %v4714 = vand.u32 %v3903, 4294901760
    %4715 = vmatpush1.msra.mxu0 %v4714
    %4716 = vmatprep.subr.mxu0 0.0
    %v4717 = vand.u32 %v3904, 4294901760
    %4718 = vmatpush1.msra.mxu0 %v4717
    %4719 = vmatprep.subr.mxu0 0.0
    %v4720 = vand.u32 %v3905, 4294901760
    %4721 = vmatpush1.msra.mxu0 %v4720
    %4722 = vmatprep.subr.mxu0 0.0
    %v4723 = vand.u32 %v3906, 4294901760
    %4724 = vmatpush1.msra.mxu0 %v4723
    %4725 = vmatprep.subr.mxu0 0.0
    %v4726 = vand.u32 %v3907, 4294901760
    %4727 = vmatpush1.msra.mxu0 %v4726
    %4728 = vmatprep.subr.mxu0 0.0
    %v4729 = vand.u32 %v3908, 4294901760
    %4730 = vmatpush1.msra.mxu0 %v4729
    %4731 = vmatprep.subr.mxu0 0.0
    %v4732 = vand.u32 %v3909, 4294901760
    %4733 = vmatpush1.msra.mxu0 %v4732
    %4734 = vmatprep.subr.mxu0 0.0
    %v4735 = vand.u32 %v3910, 4294901760
    %4736 = vmatpush1.msra.mxu0 %v4735
    %4737 = vmatprep.subr.mxu0 0.0
    %v4738 = vand.u32 %v3911, 4294901760
    %4739 = vmatpush1.msra.mxu0 %v4738
    %4740 = vmatprep.subr.mxu0 0.0
    %v4741 = vand.u32 %v3912, 4294901760
    %4742 = vmatpush1.msra.mxu0 %v4741
    %4743 = vmatprep.subr.mxu0 0.0
    %v4744 = vand.u32 %v3913, 4294901760
    %4745 = vmatpush1.msra.mxu0 %v4744
    %4746 = vmatprep.subr.mxu0 0.0
    %v4747 = vand.u32 %v3914, 4294901760
    %4748 = vmatpush1.msra.mxu0 %v4747
    %4749 = vmatprep.subr.mxu0 0.0
    %v4750 = vand.u32 %v3915, 4294901760
    %4751 = vmatpush1.msra.mxu0 %v4750
    %4752 = vmatprep.subr.mxu0 0.0
    %v4753 = vand.u32 %v3916, 4294901760
    %4754 = vmatpush1.msra.mxu0 %v4753
    %4755 = vmatprep.subr.mxu0 0.0
    %v4756 = vand.u32 %v3917, 4294901760
    %4757 = vmatpush1.msra.mxu0 %v4756
    %4758 = vmatprep.subr.mxu0 0.0
    %v4759 = vand.u32 %v3918, 4294901760
    %4760 = vmatpush1.msra.mxu0 %v4759
    %4761 = vmatprep.subr.mxu0 0.0
    %v4762 = vand.u32 %v3919, 4294901760
    %4763 = vmatpush1.msra.mxu0 %v4762
    %4764 = vmatprep.subr.mxu0 0.0
    %v4765 = vand.u32 %v3920, 4294901760
    %4766 = vmatpush1.msra.mxu0 %v4765
    %4767 = vmatprep.subr.mxu0 0.0
    %v4768 = vand.u32 %v3921, 4294901760
    %4769 = vmatpush1.msra.mxu0 %v4768
    %4770 = vmatprep.subr.mxu0 0.0
    %v4771 = vand.u32 %v3922, 4294901760
    %4772 = vmatpush1.msra.mxu0 %v4771
    %4773 = vmatprep.subr.mxu0 0.0
    %v4774 = vand.u32 %v3923, 4294901760
    %4775 = vmatpush1.msra.mxu0 %v4774
    %4776 = vmatprep.subr.mxu0 0.0
    %v4777 = vand.u32 %v3924, 4294901760
    %4778 = vmatpush1.msra.mxu0 %v4777
    %v4779 = vand.u32 %v3892, 4294901760
    %4780 = vmatprep.mubr.f32.mxu0 %v4779
    %v4781 = vand.u32 %v3891, 4294901760
    %4782 = vmatmul.mubr.f32.gmra.mrb[0].mxu0 %v4781
    %v4783 = vpop.f32.mrb[0].mxu0
    %v4784 = vadd.f32 %v4680, %v4783
    %v4785 = vpop.f32.mrb[0].mxu0
    %4786 = vdwg.mxu0
    %v4787 = vmax.f32 %v4784, 0.0
    %v4788 = vld [vmem:[#allocation7] sm:$0xff]
    %v4789 = vld [vmem:[#allocation7 + $0x8] sm:$0xff]
    %v4790 = vld [vmem:[#allocation7 + $0x10] sm:$0xff]
    %v4791 = vld [vmem:[#allocation7 + $0x18] sm:$0xff]
    %v4792 = vld [vmem:[#allocation7 + $0x20] sm:$0xff]
    %v4793 = vld [vmem:[#allocation7 + $0x28] sm:$0xff]
    %v4794 = vld [vmem:[#allocation7 + $0x30] sm:$0xff]
    %v4795 = vld [vmem:[#allocation7 + $0x38] sm:$0xff]
    %v4796 = vld [vmem:[#allocation7 + $0x40] sm:$0xff]
    %v4797 = vld [vmem:[#allocation7 + $0x48] sm:$0xff]
    %v4798 = vld [vmem:[#allocation7 + $0x50] sm:$0xff]
    %v4799 = vld [vmem:[#allocation7 + $0x58] sm:$0xff]
    %v4800 = vld [vmem:[#allocation7 + $0x60] sm:$0xff]
    %v4801 = vld [vmem:[#allocation7 + $0x68] sm:$0xff]
    %v4802 = vld [vmem:[#allocation7 + $0x70] sm:$0xff]
    %v4803 = vld [vmem:[#allocation7 + $0x78] sm:$0xff]
    %4804 = vmatprep.subr.mxu0 0.0
    %v4805 = vand.u32 %v4788, 4294901760
    %4806 = vmatpush1.msra.mxu0 %v4805
    %4807 = vmatprep.subr.mxu0 0.0
    %v4808 = vand.u32 %v4789, 4294901760
    %4809 = vmatpush1.msra.mxu0 %v4808
    %4810 = vmatprep.subr.mxu0 0.0
    %v4811 = vand.u32 %v4790, 4294901760
    %4812 = vmatpush1.msra.mxu0 %v4811
    %4813 = vmatprep.subr.mxu0 0.0
    %v4814 = vand.u32 %v4791, 4294901760
    %4815 = vmatpush1.msra.mxu0 %v4814
    %4816 = vmatprep.subr.mxu0 0.0
    %v4817 = vand.u32 %v4792, 4294901760
    %4818 = vmatpush1.msra.mxu0 %v4817
    %4819 = vmatprep.subr.mxu0 0.0
    %v4820 = vand.u32 %v4793, 4294901760
    %4821 = vmatpush1.msra.mxu0 %v4820
    %4822 = vmatprep.subr.mxu0 0.0
    %v4823 = vand.u32 %v4794, 4294901760
    %4824 = vmatpush1.msra.mxu0 %v4823
    %4825 = vmatprep.subr.mxu0 0.0
    %v4826 = vand.u32 %v4795, 4294901760
    %4827 = vmatpush1.msra.mxu0 %v4826
    %4828 = vmatprep.subr.mxu0 0.0
    %v4829 = vand.u32 %v4796, 4294901760
    %4830 = vmatpush1.msra.mxu0 %v4829
    %4831 = vmatprep.subr.mxu0 0.0
    %v4832 = vand.u32 %v4797, 4294901760
    %4833 = vmatpush1.msra.mxu0 %v4832
    %4834 = vmatprep.subr.mxu0 0.0
    %v4835 = vand.u32 %v4798, 4294901760
    %4836 = vmatpush1.msra.mxu0 %v4835
    %4837 = vmatprep.subr.mxu0 0.0
    %v4838 = vand.u32 %v4799, 4294901760
    %4839 = vmatpush1.msra.mxu0 %v4838
    %4840 = vmatprep.subr.mxu0 0.0
    %v4841 = vand.u32 %v4800, 4294901760
    %4842 = vmatpush1.msra.mxu0 %v4841
    %4843 = vmatprep.subr.mxu0 0.0
    %v4844 = vand.u32 %v4801, 4294901760
    %4845 = vmatpush1.msra.mxu0 %v4844
    %4846 = vmatprep.subr.mxu0 0.0
    %v4847 = vand.u32 %v4802, 4294901760
    %4848 = vmatpush1.msra.mxu0 %v4847
    %4849 = vmatprep.subr.mxu0 0.0
    %v4850 = vand.u32 %v4803, 4294901760
    %4851 = vmatpush1.msra.mxu0 %v4850
    %4852 = vmatprep.subr.mxu0 0.0
    %4853 = vmatpush1.msra.mxu0 0.0
    %4854 = vmatprep.subr.mxu0 0.0
    %4855 = vmatpush1.msra.mxu0 0.0
    %4856 = vmatprep.subr.mxu0 0.0
    %4857 = vmatpush1.msra.mxu0 0.0
    %4858 = vmatprep.subr.mxu0 0.0
    %4859 = vmatpush1.msra.mxu0 0.0
    %4860 = vmatprep.subr.mxu0 0.0
    %4861 = vmatpush1.msra.mxu0 0.0
    %4862 = vmatprep.subr.mxu0 0.0
    %4863 = vmatpush1.msra.mxu0 0.0
    %4864 = vmatprep.subr.mxu0 0.0
    %4865 = vmatpush1.msra.mxu0 0.0
    %4866 = vmatprep.subr.mxu0 0.0
    %4867 = vmatpush1.msra.mxu0 0.0
    %4868 = vmatprep.subr.mxu0 0.0
    %4869 = vmatpush1.msra.mxu0 0.0
    %4870 = vmatprep.subr.mxu0 0.0
    %4871 = vmatpush1.msra.mxu0 0.0
    %4872 = vmatprep.subr.mxu0 0.0
    %4873 = vmatpush1.msra.mxu0 0.0
    %4874 = vmatprep.subr.mxu0 0.0
    %4875 = vmatpush1.msra.mxu0 0.0
    %4876 = vmatprep.subr.mxu0 0.0
    %4877 = vmatpush1.msra.mxu0 0.0
    %4878 = vmatprep.subr.mxu0 0.0
    %4879 = vmatpush1.msra.mxu0 0.0
    %4880 = vmatprep.subr.mxu0 0.0
    %4881 = vmatpush1.msra.mxu0 0.0
    %4882 = vmatprep.subr.mxu0 0.0
    %4883 = vmatpush1.msra.mxu0 0.0
    %4884 = vmatprep.mubr.f32.mxu0 0.0
    %v4885 = vand.u32 %v4787, 4294901760
    %v4886 = vsub.f32 %v4787, %v4885
    %v4887 = vand.u32 %v4886, 4294901760
    %v4888 = vsub.f32 %v4886, %v4887
    %v4889 = vand.u32 %v4888, 4294901760
    %4890 = vmatmul.mubr.f32.gmra.mrb[0].mxu0 %v4889
    %v4891 = vpop.f32.mrb[0].mxu0
    %v4892 = vadd.f32 0.0, %v4891
    %v4893 = vpop.f32.mrb[0].mxu0
    %4894 = vdwg.mxu0
    %4895 = vmatprep.subr.mxu0 0.0
    %v4896 = vand.u32 %v4788, 4294901760
    %v4897 = vsub.f32 %v4788, %v4896
    %v4898 = vand.u32 %v4897, 4294901760
    %v4899 = vsub.f32 %v4897, %v4898
    %v4900 = vand.u32 %v4899, 4294901760
    %4901 = vmatpush1.msra.mxu0 %v4900
    %4902 = vmatprep.subr.mxu0 0.0
    %v4903 = vand.u32 %v4789, 4294901760
    %v4904 = vsub.f32 %v4789, %v4903
    %v4905 = vand.u32 %v4904, 4294901760
    %v4906 = vsub.f32 %v4904, %v4905
    %v4907 = vand.u32 %v4906, 4294901760
    %4908 = vmatpush1.msra.mxu0 %v4907
    %4909 = vmatprep.subr.mxu0 0.0
    %v4910 = vand.u32 %v4790, 4294901760
    %v4911 = vsub.f32 %v4790, %v4910
    %v4912 = vand.u32 %v4911, 4294901760
    %v4913 = vsub.f32 %v4911, %v4912
    %v4914 = vand.u32 %v4913, 4294901760
    %4915 = vmatpush1.msra.mxu0 %v4914
    %4916 = vmatprep.subr.mxu0 0.0
    %v4917 = vand.u32 %v4791, 4294901760
    %v4918 = vsub.f32 %v4791, %v4917
    %v4919 = vand.u32 %v4918, 4294901760
    %v4920 = vsub.f32 %v4918, %v4919
    %v4921 = vand.u32 %v4920, 4294901760
    %4922 = vmatpush1.msra.mxu0 %v4921
    %4923 = vmatprep.subr.mxu0 0.0
    %v4924 = vand.u32 %v4792, 4294901760
    %v4925 = vsub.f32 %v4792, %v4924
    %v4926 = vand.u32 %v4925, 4294901760
    %v4927 = vsub.f32 %v4925, %v4926
    %v4928 = vand.u32 %v4927, 4294901760
    %4929 = vmatpush1.msra.mxu0 %v4928
    %4930 = vmatprep.subr.mxu0 0.0
    %v4931 = vand.u32 %v4793, 4294901760
    %v4932 = vsub.f32 %v4793, %v4931
    %v4933 = vand.u32 %v4932, 4294901760
    %v4934 = vsub.f32 %v4932, %v4933
    %v4935 = vand.u32 %v4934, 4294901760
    %4936 = vmatpush1.msra.mxu0 %v4935
    %4937 = vmatprep.subr.mxu0 0.0
    %v4938 = vand.u32 %v4794, 4294901760
    %v4939 = vsub.f32 %v4794, %v4938
    %v4940 = vand.u32 %v4939, 4294901760
    %v4941 = vsub.f32 %v4939, %v4940
    %v4942 = vand.u32 %v4941, 4294901760
    %4943 = vmatpush1.msra.mxu0 %v4942
    %4944 = vmatprep.subr.mxu0 0.0
    %v4945 = vand.u32 %v4795, 4294901760
    %v4946 = vsub.f32 %v4795, %v4945
    %v4947 = vand.u32 %v4946, 4294901760
    %v4948 = vsub.f32 %v4946, %v4947
    %v4949 = vand.u32 %v4948, 4294901760
    %4950 = vmatpush1.msra.mxu0 %v4949
    %4951 = vmatprep.subr.mxu0 0.0
    %v4952 = vand.u32 %v4796, 4294901760
    %v4953 = vsub.f32 %v4796, %v4952
    %v4954 = vand.u32 %v4953, 4294901760
    %v4955 = vsub.f32 %v4953, %v4954
    %v4956 = vand.u32 %v4955, 4294901760
    %4957 = vmatpush1.msra.mxu0 %v4956
    %4958 = vmatprep.subr.mxu0 0.0
    %v4959 = vand.u32 %v4797, 4294901760
    %v4960 = vsub.f32 %v4797, %v4959
    %v4961 = vand.u32 %v4960, 4294901760
    %v4962 = vsub.f32 %v4960, %v4961
    %v4963 = vand.u32 %v4962, 4294901760
    %4964 = vmatpush1.msra.mxu0 %v4963
    %4965 = vmatprep.subr.mxu0 0.0
    %v4966 = vand.u32 %v4798, 4294901760
    %v4967 = vsub.f32 %v4798, %v4966
    %v4968 = vand.u32 %v4967, 4294901760
    %v4969 = vsub.f32 %v4967, %v4968
    %v4970 = vand.u32 %v4969, 4294901760
    %4971 = vmatpush1.msra.mxu0 %v4970
    %4972 = vmatprep.subr.mxu0 0.0
    %v4973 = vand.u32 %v4799, 4294901760
    %v4974 = vsub.f32 %v4799, %v4973
    %v4975 = vand.u32 %v4974, 4294901760
    %v4976 = vsub.f32 %v4974, %v4975
    %v4977 = vand.u32 %v4976, 4294901760
    %4978 = vmatpush1.msra.mxu0 %v4977
    %4979 = vmatprep.subr.mxu0 0.0
    %v4980 = vand.u32 %v4800, 4294901760
    %v4981 = vsub.f32 %v4800, %v4980
    %v4982 = vand.u32 %v4981, 4294901760
    %v4983 = vsub.f32 %v4981, %v4982
    %v4984 = vand.u32 %v4983, 4294901760
    %4985 = vmatpush1.msra.mxu0 %v4984
    %4986 = vmatprep.subr.mxu0 0.0
    %v4987 = vand.u32 %v4801, 4294901760
    %v4988 = vsub.f32 %v4801, %v4987
    %v4989 = vand.u32 %v4988, 4294901760
    %v4990 = vsub.f32 %v4988, %v4989
    %v4991 = vand.u32 %v4990, 4294901760
    %4992 = vmatpush1.msra.mxu0 %v4991
    %4993 = vmatprep.subr.mxu0 0.0
    %v4994 = vand.u32 %v4802, 4294901760
    %v4995 = vsub.f32 %v4802, %v4994
    %v4996 = vand.u32 %v4995, 4294901760
    %v4997 = vsub.f32 %v4995, %v4996
    %v4998 = vand.u32 %v4997, 4294901760
    %4999 = vmatpush1.msra.mxu0 %v4998
    %5000 = vmatprep.subr.mxu0 0.0
    %v5001 = vand.u32 %v4803, 4294901760
    %v5002 = vsub.f32 %v4803, %v5001
    %v5003 = vand.u32 %v5002, 4294901760
    %v5004 = vsub.f32 %v5002, %v5003
    %v5005 = vand.u32 %v5004, 4294901760
    %5006 = vmatpush1.msra.mxu0 %v5005
    %5007 = vmatprep.subr.mxu0 0.0
    %5008 = vmatpush1.msra.mxu0 0.0
    %5009 = vmatprep.subr.mxu0 0.0
    %5010 = vmatpush1.msra.mxu0 0.0
    %5011 = vmatprep.subr.mxu0 0.0
    %5012 = vmatpush1.msra.mxu0 0.0
    %5013 = vmatprep.subr.mxu0 0.0
    %5014 = vmatpush1.msra.mxu0 0.0
    %5015 = vmatprep.subr.mxu0 0.0
    %5016 = vmatpush1.msra.mxu0 0.0
    %5017 = vmatprep.subr.mxu0 0.0
    %5018 = vmatpush1.msra.mxu0 0.0
    %5019 = vmatprep.subr.mxu0 0.0
    %5020 = vmatpush1.msra.mxu0 0.0
    %5021 = vmatprep.subr.mxu0 0.0
    %5022 = vmatpush1.msra.mxu0 0.0
    %5023 = vmatprep.subr.mxu0 0.0
    %5024 = vmatpush1.msra.mxu0 0.0
    %5025 = vmatprep.subr.mxu0 0.0
    %5026 = vmatpush1.msra.mxu0 0.0
    %5027 = vmatprep.subr.mxu0 0.0
    %5028 = vmatpush1.msra.mxu0 0.0
    %5029 = vmatprep.subr.mxu0 0.0
    %5030 = vmatpush1.msra.mxu0 0.0
    %5031 = vmatprep.subr.mxu0 0.0
    %5032 = vmatpush1.msra.mxu0 0.0
    %5033 = vmatprep.subr.mxu0 0.0
    %5034 = vmatpush1.msra.mxu0 0.0
    %5035 = vmatprep.subr.mxu0 0.0
    %5036 = vmatpush1.msra.mxu0 0.0
    %5037 = vmatprep.subr.mxu0 0.0
    %5038 = vmatpush1.msra.mxu0 0.0
    %5039 = vmatprep.mubr.f32.mxu0 0.0
    %v5040 = vand.u32 %v4787, 4294901760
    %5041 = vmatmul.mubr.f32.gmra.mrb[0].mxu0 %v5040
    %v5042 = vpop.f32.mrb[0].mxu0
    %v5043 = vadd.f32 %v4892, %v5042
    %v5044 = vpop.f32.mrb[0].mxu0
    %5045 = vdwg.mxu0
    %5046 = vmatprep.subr.mxu0 0.0
    %v5047 = vand.u32 %v4788, 4294901760
    %v5048 = vsub.f32 %v4788, %v5047
    %5049 = vmatpush1.msra.mxu0 %v5048
    %5050 = vmatprep.subr.mxu0 0.0
    %v5051 = vand.u32 %v4789, 4294901760
    %v5052 = vsub.f32 %v4789, %v5051
    %5053 = vmatpush1.msra.mxu0 %v5052
    %5054 = vmatprep.subr.mxu0 0.0
    %v5055 = vand.u32 %v4790, 4294901760
    %v5056 = vsub.f32 %v4790, %v5055
    %5057 = vmatpush1.msra.mxu0 %v5056
    %5058 = vmatprep.subr.mxu0 0.0
    %v5059 = vand.u32 %v4791, 4294901760
    %v5060 = vsub.f32 %v4791, %v5059
    %5061 = vmatpush1.msra.mxu0 %v5060
    %5062 = vmatprep.subr.mxu0 0.0
    %v5063 = vand.u32 %v4792, 4294901760
    %v5064 = vsub.f32 %v4792, %v5063
    %5065 = vmatpush1.msra.mxu0 %v5064
    %5066 = vmatprep.subr.mxu0 0.0
    %v5067 = vand.u32 %v4793, 4294901760
    %v5068 = vsub.f32 %v4793, %v5067
    %5069 = vmatpush1.msra.mxu0 %v5068
    %5070 = vmatprep.subr.mxu0 0.0
    %v5071 = vand.u32 %v4794, 4294901760
    %v5072 = vsub.f32 %v4794, %v5071
    %5073 = vmatpush1.msra.mxu0 %v5072
    %5074 = vmatprep.subr.mxu0 0.0
    %v5075 = vand.u32 %v4795, 4294901760
    %v5076 = vsub.f32 %v4795, %v5075
    %5077 = vmatpush1.msra.mxu0 %v5076
    %5078 = vmatprep.subr.mxu0 0.0
    %v5079 = vand.u32 %v4796, 4294901760
    %v5080 = vsub.f32 %v4796, %v5079
    %5081 = vmatpush1.msra.mxu0 %v5080
    %5082 = vmatprep.subr.mxu0 0.0
    %v5083 = vand.u32 %v4797, 4294901760
    %v5084 = vsub.f32 %v4797, %v5083
    %5085 = vmatpush1.msra.mxu0 %v5084
    %5086 = vmatprep.subr.mxu0 0.0
    %v5087 = vand.u32 %v4798, 4294901760
    %v5088 = vsub.f32 %v4798, %v5087
    %5089 = vmatpush1.msra.mxu0 %v5088
    %5090 = vmatprep.subr.mxu0 0.0
    %v5091 = vand.u32 %v4799, 4294901760
    %v5092 = vsub.f32 %v4799, %v5091
    %5093 = vmatpush1.msra.mxu0 %v5092
    %5094 = vmatprep.subr.mxu0 0.0
    %v5095 = vand.u32 %v4800, 4294901760
    %v5096 = vsub.f32 %v4800, %v5095
    %5097 = vmatpush1.msra.mxu0 %v5096
    %5098 = vmatprep.subr.mxu0 0.0
    %v5099 = vand.u32 %v4801, 4294901760
    %v5100 = vsub.f32 %v4801, %v5099
    %5101 = vmatpush1.msra.mxu0 %v5100
    %5102 = vmatprep.subr.mxu0 0.0
    %v5103 = vand.u32 %v4802, 4294901760
    %v5104 = vsub.f32 %v4802, %v5103
    %5105 = vmatpush1.msra.mxu0 %v5104
    %5106 = vmatprep.subr.mxu0 0.0
    %v5107 = vand.u32 %v4803, 4294901760
    %v5108 = vsub.f32 %v4803, %v5107
    %5109 = vmatpush1.msra.mxu0 %v5108
    %5110 = vmatprep.subr.mxu0 0.0
    %5111 = vmatpush1.msra.mxu0 0.0
    %5112 = vmatprep.subr.mxu0 0.0
    %5113 = vmatpush1.msra.mxu0 0.0
    %5114 = vmatprep.subr.mxu0 0.0
    %5115 = vmatpush1.msra.mxu0 0.0
    %5116 = vmatprep.subr.mxu0 0.0
    %5117 = vmatpush1.msra.mxu0 0.0
    %5118 = vmatprep.subr.mxu0 0.0
    %5119 = vmatpush1.msra.mxu0 0.0
    %5120 = vmatprep.subr.mxu0 0.0
    %5121 = vmatpush1.msra.mxu0 0.0
    %5122 = vmatprep.subr.mxu0 0.0
    %5123 = vmatpush1.msra.mxu0 0.0
    %5124 = vmatprep.subr.mxu0 0.0
    %5125 = vmatpush1.msra.mxu0 0.0
    %5126 = vmatprep.subr.mxu0 0.0
    %5127 = vmatpush1.msra.mxu0 0.0
    %5128 = vmatprep.subr.mxu0 0.0
    %5129 = vmatpush1.msra.mxu0 0.0
    %5130 = vmatprep.subr.mxu0 0.0
    %5131 = vmatpush1.msra.mxu0 0.0
    %5132 = vmatprep.subr.mxu0 0.0
    %5133 = vmatpush1.msra.mxu0 0.0
    %5134 = vmatprep.subr.mxu0 0.0
    %5135 = vmatpush1.msra.mxu0 0.0
    %5136 = vmatprep.subr.mxu0 0.0
    %5137 = vmatpush1.msra.mxu0 0.0
    %5138 = vmatprep.subr.mxu0 0.0
    %5139 = vmatpush1.msra.mxu0 0.0
    %5140 = vmatprep.subr.mxu0 0.0
    %5141 = vmatpush1.msra.mxu0 0.0
    %5142 = vmatprep.mubr.f32.mxu0 0.0
    %v5143 = vand.u32 %v4787, 4294901760
    %v5144 = vsub.f32 %v4787, %v5143
    %5145 = vmatmul.mubr.f32.gmra.mrb[0].mxu0 %v5144
    %v5146 = vpop.f32.mrb[0].mxu0
    %v5147 = vadd.f32 %v5043, %v5146
    %v5148 = vpop.f32.mrb[0].mxu0
    %5149 = vdwg.mxu0
    %5150 = vmatprep.subr.mxu0 0.0
    %v5151 = vand.u32 %v4788, 4294901760
    %5152 = vmatpush1.msra.mxu0 %v5151
    %5153 = vmatprep.subr.mxu0 0.0
    %v5154 = vand.u32 %v4789, 4294901760
    %5155 = vmatpush1.msra.mxu0 %v5154
    %5156 = vmatprep.subr.mxu0 0.0
    %v5157 = vand.u32 %v4790, 4294901760
    %5158 = vmatpush1.msra.mxu0 %v5157
    %5159 = vmatprep.subr.mxu0 0.0
    %v5160 = vand.u32 %v4791, 4294901760
    %5161 = vmatpush1.msra.mxu0 %v5160
    %5162 = vmatprep.subr.mxu0 0.0
    %v5163 = vand.u32 %v4792, 4294901760
    %5164 = vmatpush1.msra.mxu0 %v5163
    %5165 = vmatprep.subr.mxu0 0.0
    %v5166 = vand.u32 %v4793, 4294901760
    %5167 = vmatpush1.msra.mxu0 %v5166
    %5168 = vmatprep.subr.mxu0 0.0
    %v5169 = vand.u32 %v4794, 4294901760
    %5170 = vmatpush1.msra.mxu0 %v5169
    %5171 = vmatprep.subr.mxu0 0.0
    %v5172 = vand.u32 %v4795, 4294901760
    %5173 = vmatpush1.msra.mxu0 %v5172
    %5174 = vmatprep.subr.mxu0 0.0
    %v5175 = vand.u32 %v4796, 4294901760
    %5176 = vmatpush1.msra.mxu0 %v5175
    %5177 = vmatprep.subr.mxu0 0.0
    %v5178 = vand.u32 %v4797, 4294901760
    %5179 = vmatpush1.msra.mxu0 %v5178
    %5180 = vmatprep.subr.mxu0 0.0
    %v5181 = vand.u32 %v4798, 4294901760
    %5182 = vmatpush1.msra.mxu0 %v5181
    %5183 = vmatprep.subr.mxu0 0.0
    %v5184 = vand.u32 %v4799, 4294901760
    %5185 = vmatpush1.msra.mxu0 %v5184
    %5186 = vmatprep.subr.mxu0 0.0
    %v5187 = vand.u32 %v4800, 4294901760
    %5188 = vmatpush1.msra.mxu0 %v5187
    %5189 = vmatprep.subr.mxu0 0.0
    %v5190 = vand.u32 %v4801, 4294901760
    %5191 = vmatpush1.msra.mxu0 %v5190
    %5192 = vmatprep.subr.mxu0 0.0
    %v5193 = vand.u32 %v4802, 4294901760
    %5194 = vmatpush1.msra.mxu0 %v5193
    %5195 = vmatprep.subr.mxu0 0.0
    %v5196 = vand.u32 %v4803, 4294901760
    %5197 = vmatpush1.msra.mxu0 %v5196
    %5198 = vmatprep.subr.mxu0 0.0
    %5199 = vmatpush1.msra.mxu0 0.0
    %5200 = vmatprep.subr.mxu0 0.0
    %5201 = vmatpush1.msra.mxu0 0.0
    %5202 = vmatprep.subr.mxu0 0.0
    %5203 = vmatpush1.msra.mxu0 0.0
    %5204 = vmatprep.subr.mxu0 0.0
    %5205 = vmatpush1.msra.mxu0 0.0
    %5206 = vmatprep.subr.mxu0 0.0
    %5207 = vmatpush1.msra.mxu0 0.0
    %5208 = vmatprep.subr.mxu0 0.0
    %5209 = vmatpush1.msra.mxu0 0.0
    %5210 = vmatprep.subr.mxu0 0.0
    %5211 = vmatpush1.msra.mxu0 0.0
    %5212 = vmatprep.subr.mxu0 0.0
    %5213 = vmatpush1.msra.mxu0 0.0
    %5214 = vmatprep.subr.mxu0 0.0
    %5215 = vmatpush1.msra.mxu0 0.0
    %5216 = vmatprep.subr.mxu0 0.0
    %5217 = vmatpush1.msra.mxu0 0.0
    %5218 = vmatprep.subr.mxu0 0.0
    %5219 = vmatpush1.msra.mxu0 0.0
    %5220 = vmatprep.subr.mxu0 0.0
    %5221 = vmatpush1.msra.mxu0 0.0
    %5222 = vmatprep.subr.mxu0 0.0
    %5223 = vmatpush1.msra.mxu0 0.0
    %5224 = vmatprep.subr.mxu0 0.0
    %5225 = vmatpush1.msra.mxu0 0.0
    %5226 = vmatprep.subr.mxu0 0.0
    %5227 = vmatpush1.msra.mxu0 0.0
    %5228 = vmatprep.subr.mxu0 0.0
    %5229 = vmatpush1.msra.mxu0 0.0
    %5230 = vmatprep.mubr.f32.mxu0 0.0
    %v5231 = vand.u32 %v4787, 4294901760
    %v5232 = vsub.f32 %v4787, %v5231
    %v5233 = vand.u32 %v5232, 4294901760
    %5234 = vmatmul.mubr.f32.gmra.mrb[0].mxu0 %v5233
    %v5235 = vpop.f32.mrb[0].mxu0
    %v5236 = vadd.f32 %v5147, %v5235
    %v5237 = vpop.f32.mrb[0].mxu0
    %5238 = vdwg.mxu0
    %5239 = vmatprep.subr.mxu0 0.0
    %v5240 = vand.u32 %v4788, 4294901760
    %v5241 = vsub.f32 %v4788, %v5240
    %v5242 = vand.u32 %v5241, 4294901760
    %5243 = vmatpush1.msra.mxu0 %v5242
    %5244 = vmatprep.subr.mxu0 0.0
    %v5245 = vand.u32 %v4789, 4294901760
    %v5246 = vsub.f32 %v4789, %v5245
    %v5247 = vand.u32 %v5246, 4294901760
    %5248 = vmatpush1.msra.mxu0 %v5247
    %5249 = vmatprep.subr.mxu0 0.0
    %v5250 = vand.u32 %v4790, 4294901760
    %v5251 = vsub.f32 %v4790, %v5250
    %v5252 = vand.u32 %v5251, 4294901760
    %5253 = vmatpush1.msra.mxu0 %v5252
    %5254 = vmatprep.subr.mxu0 0.0
    %v5255 = vand.u32 %v4791, 4294901760
    %v5256 = vsub.f32 %v4791, %v5255
    %v5257 = vand.u32 %v5256, 4294901760
    %5258 = vmatpush1.msra.mxu0 %v5257
    %5259 = vmatprep.subr.mxu0 0.0
    %v5260 = vand.u32 %v4792, 4294901760
    %v5261 = vsub.f32 %v4792, %v5260
    %v5262 = vand.u32 %v5261, 4294901760
    %5263 = vmatpush1.msra.mxu0 %v5262
    %5264 = vmatprep.subr.mxu0 0.0
    %v5265 = vand.u32 %v4793, 4294901760
    %v5266 = vsub.f32 %v4793, %v5265
    %v5267 = vand.u32 %v5266, 4294901760
    %5268 = vmatpush1.msra.mxu0 %v5267
    %5269 = vmatprep.subr.mxu0 0.0
    %v5270 = vand.u32 %v4794, 4294901760
    %v5271 = vsub.f32 %v4794, %v5270
    %v5272 = vand.u32 %v5271, 4294901760
    %5273 = vmatpush1.msra.mxu0 %v5272
    %5274 = vmatprep.subr.mxu0 0.0
    %v5275 = vand.u32 %v4795, 4294901760
    %v5276 = vsub.f32 %v4795, %v5275
    %v5277 = vand.u32 %v5276, 4294901760
    %5278 = vmatpush1.msra.mxu0 %v5277
    %5279 = vmatprep.subr.mxu0 0.0
    %v5280 = vand.u32 %v4796, 4294901760
    %v5281 = vsub.f32 %v4796, %v5280
    %v5282 = vand.u32 %v5281, 4294901760
    %5283 = vmatpush1.msra.mxu0 %v5282
    %5284 = vmatprep.subr.mxu0 0.0
    %v5285 = vand.u32 %v4797, 4294901760
    %v5286 = vsub.f32 %v4797, %v5285
    %v5287 = vand.u32 %v5286, 4294901760
    %5288 = vmatpush1.msra.mxu0 %v5287
    %5289 = vmatprep.subr.mxu0 0.0
    %v5290 = vand.u32 %v4798, 4294901760
    %v5291 = vsub.f32 %v4798, %v5290
    %v5292 = vand.u32 %v5291, 4294901760
    %5293 = vmatpush1.msra.mxu0 %v5292
    %5294 = vmatprep.subr.mxu0 0.0
    %v5295 = vand.u32 %v4799, 4294901760
    %v5296 = vsub.f32 %v4799, %v5295
    %v5297 = vand.u32 %v5296, 4294901760
    %5298 = vmatpush1.msra.mxu0 %v5297
    %5299 = vmatprep.subr.mxu0 0.0
    %v5300 = vand.u32 %v4800, 4294901760
    %v5301 = vsub.f32 %v4800, %v5300
    %v5302 = vand.u32 %v5301, 4294901760
    %5303 = vmatpush1.msra.mxu0 %v5302
    %5304 = vmatprep.subr.mxu0 0.0
    %v5305 = vand.u32 %v4801, 4294901760
    %v5306 = vsub.f32 %v4801, %v5305
    %v5307 = vand.u32 %v5306, 4294901760
    %5308 = vmatpush1.msra.mxu0 %v5307
    %5309 = vmatprep.subr.mxu0 0.0
    %v5310 = vand.u32 %v4802, 4294901760
    %v5311 = vsub.f32 %v4802, %v5310
    %v5312 = vand.u32 %v5311, 4294901760
    %5313 = vmatpush1.msra.mxu0 %v5312
    %5314 = vmatprep.subr.mxu0 0.0
    %v5315 = vand.u32 %v4803, 4294901760
    %v5316 = vsub.f32 %v4803, %v5315
    %v5317 = vand.u32 %v5316, 4294901760
    %5318 = vmatpush1.msra.mxu0 %v5317
    %5319 = vmatprep.subr.mxu0 0.0
    %5320 = vmatpush1.msra.mxu0 0.0
    %5321 = vmatprep.subr.mxu0 0.0
    %5322 = vmatpush1.msra.mxu0 0.0
    %5323 = vmatprep.subr.mxu0 0.0
    %5324 = vmatpush1.msra.mxu0 0.0
    %5325 = vmatprep.subr.mxu0 0.0
    %5326 = vmatpush1.msra.mxu0 0.0
    %5327 = vmatprep.subr.mxu0 0.0
    %5328 = vmatpush1.msra.mxu0 0.0
    %5329 = vmatprep.subr.mxu0 0.0
    %5330 = vmatpush1.msra.mxu0 0.0
    %5331 = vmatprep.subr.mxu0 0.0
    %5332 = vmatpush1.msra.mxu0 0.0
    %5333 = vmatprep.subr.mxu0 0.0
    %5334 = vmatpush1.msra.mxu0 0.0
    %5335 = vmatprep.subr.mxu0 0.0
    %5336 = vmatpush1.msra.mxu0 0.0
    %5337 = vmatprep.subr.mxu0 0.0
    %5338 = vmatpush1.msra.mxu0 0.0
    %5339 = vmatprep.subr.mxu0 0.0
    %5340 = vmatpush1.msra.mxu0 0.0
    %5341 = vmatprep.subr.mxu0 0.0
    %5342 = vmatpush1.msra.mxu0 0.0
    %5343 = vmatprep.subr.mxu0 0.0
    %5344 = vmatpush1.msra.mxu0 0.0
    %5345 = vmatprep.subr.mxu0 0.0
    %5346 = vmatpush1.msra.mxu0 0.0
    %5347 = vmatprep.subr.mxu0 0.0
    %5348 = vmatpush1.msra.mxu0 0.0
    %5349 = vmatprep.subr.mxu0 0.0
    %5350 = vmatpush1.msra.mxu0 0.0
    %5351 = vmatprep.mubr.f32.mxu0 0.0
    %v5352 = vand.u32 %v4787, 4294901760
    %5353 = vmatmul.mubr.f32.gmra.mrb[0].mxu0 %v5352
    %v5354 = vpop.f32.mrb[0].mxu0
    %v5355 = vadd.f32 %v5236, %v5354
    %v5356 = vpop.f32.mrb[0].mxu0
    %5357 = vdwg.mxu0
    %5358 = vmatprep.subr.mxu0 0.0
    %v5359 = vand.u32 %v4788, 4294901760
    %5360 = vmatpush1.msra.mxu0 %v5359
    %5361 = vmatprep.subr.mxu0 0.0
    %v5362 = vand.u32 %v4789, 4294901760
    %5363 = vmatpush1.msra.mxu0 %v5362
    %5364 = vmatprep.subr.mxu0 0.0
    %v5365 = vand.u32 %v4790, 4294901760
    %5366 = vmatpush1.msra.mxu0 %v5365
    %5367 = vmatprep.subr.mxu0 0.0
    %v5368 = vand.u32 %v4791, 4294901760
    %5369 = vmatpush1.msra.mxu0 %v5368
    %5370 = vmatprep.subr.mxu0 0.0
    %v5371 = vand.u32 %v4792, 4294901760
    %5372 = vmatpush1.msra.mxu0 %v5371
    %5373 = vmatprep.subr.mxu0 0.0
    %v5374 = vand.u32 %v4793, 4294901760
    %5375 = vmatpush1.msra.mxu0 %v5374
    %5376 = vmatprep.subr.mxu0 0.0
    %v5377 = vand.u32 %v4794, 4294901760
    %5378 = vmatpush1.msra.mxu0 %v5377
    %5379 = vmatprep.subr.mxu0 0.0
    %v5380 = vand.u32 %v4795, 4294901760
    %5381 = vmatpush1.msra.mxu0 %v5380
    %5382 = vmatprep.subr.mxu0 0.0
    %v5383 = vand.u32 %v4796, 4294901760
    %5384 = vmatpush1.msra.mxu0 %v5383
    %5385 = vmatprep.subr.mxu0 0.0
    %v5386 = vand.u32 %v4797, 4294901760
    %5387 = vmatpush1.msra.mxu0 %v5386
    %5388 = vmatprep.subr.mxu0 0.0
    %v5389 = vand.u32 %v4798, 4294901760
    %5390 = vmatpush1.msra.mxu0 %v5389
    %5391 = vmatprep.subr.mxu0 0.0
    %v5392 = vand.u32 %v4799, 4294901760
    %5393 = vmatpush1.msra.mxu0 %v5392
    %5394 = vmatprep.subr.mxu0 0.0
    %v5395 = vand.u32 %v4800, 4294901760
    %5396 = vmatpush1.msra.mxu0 %v5395
    %5397 = vmatprep.subr.mxu0 0.0
    %v5398 = vand.u32 %v4801, 4294901760
    %5399 = vmatpush1.msra.mxu0 %v5398
    %5400 = vmatprep.subr.mxu0 0.0
    %v5401 = vand.u32 %v4802, 4294901760
    %5402 = vmatpush1.msra.mxu0 %v5401
    %5403 = vmatprep.subr.mxu0 0.0
    %v5404 = vand.u32 %v4803, 4294901760
    %5405 = vmatpush1.msra.mxu0 %v5404
    %5406 = vmatprep.subr.mxu0 0.0
    %5407 = vmatpush1.msra.mxu0 0.0
    %5408 = vmatprep.subr.mxu0 0.0
    %5409 = vmatpush1.msra.mxu0 0.0
    %5410 = vmatprep.subr.mxu0 0.0
    %5411 = vmatpush1.msra.mxu0 0.0
    %5412 = vmatprep.subr.mxu0 0.0
    %5413 = vmatpush1.msra.mxu0 0.0
    %5414 = vmatprep.subr.mxu0 0.0
    %5415 = vmatpush1.msra.mxu0 0.0
    %5416 = vmatprep.subr.mxu0 0.0
    %5417 = vmatpush1.msra.mxu0 0.0
    %5418 = vmatprep.subr.mxu0 0.0
    %5419 = vmatpush1.msra.mxu0 0.0
    %5420 = vmatprep.subr.mxu0 0.0
    %5421 = vmatpush1.msra.mxu0 0.0
    %5422 = vmatprep.subr.mxu0 0.0
    %5423 = vmatpush1.msra.mxu0 0.0
    %5424 = vmatprep.subr.mxu0 0.0
    %5425 = vmatpush1.msra.mxu0 0.0
    %5426 = vmatprep.subr.mxu0 0.0
    %5427 = vmatpush1.msra.mxu0 0.0
    %5428 = vmatprep.subr.mxu0 0.0
    %5429 = vmatpush1.msra.mxu0 0.0
    %5430 = vmatprep.subr.mxu0 0.0
    %5431 = vmatpush1.msra.mxu0 0.0
    %5432 = vmatprep.subr.mxu0 0.0
    %5433 = vmatpush1.msra.mxu0 0.0
    %5434 = vmatprep.subr.mxu0 0.0
    %5435 = vmatpush1.msra.mxu0 0.0
    %5436 = vmatprep.subr.mxu0 0.0
    %5437 = vmatpush1.msra.mxu0 0.0
    %5438 = vmatprep.mubr.f32.mxu0 0.0
    %v5439 = vand.u32 %v4787, 4294901760
    %5440 = vmatmul.mubr.f32.gmra.mrb[0].mxu0 %v5439
    %v5441 = vpop.f32.mrb[0].mxu0
    %v5442 = vadd.f32 %v5355, %v5441
    %v5443 = vpop.f32.mrb[0].mxu0
    %5444 = vdwg.mxu0
    %v5445 = vmax.f32 %v5442, 0.0
    %v5446 = vld [vmem:[#allocation9] sm:$0xff]
    %v5447 = vld [vmem:[#allocation9 + $0x8] sm:$0xff]
    %v5448 = vld [vmem:[#allocation9 + $0x10] sm:$0xff]
    %v5449 = vld [vmem:[#allocation9 + $0x18] sm:$0xff]
    %v5450 = vld [vmem:[#allocation9 + $0x20] sm:$0xff]
    %v5451 = vld [vmem:[#allocation9 + $0x28] sm:$0xff]
    %v5452 = vld [vmem:[#allocation9 + $0x30] sm:$0xff]
    %v5453 = vld [vmem:[#allocation9 + $0x38] sm:$0xff]
    %v5454 = vld [vmem:[#allocation9 + $0x40] sm:$0xff]
    %v5455 = vld [vmem:[#allocation9 + $0x48] sm:$0xff]
    %v5456 = vld [vmem:[#allocation9 + $0x50] sm:$0xff]
    %v5457 = vld [vmem:[#allocation9 + $0x58] sm:$0xff]
    %v5458 = vld [vmem:[#allocation9 + $0x60] sm:$0xff]
    %v5459 = vld [vmem:[#allocation9 + $0x68] sm:$0xff]
    %v5460 = vld [vmem:[#allocation9 + $0x70] sm:$0xff]
    %v5461 = vld [vmem:[#allocation9 + $0x78] sm:$0xff]
    %v5462 = vld [vmem:[#allocation9 + $0x80] sm:$0xff]
    %v5463 = vld [vmem:[#allocation9 + $0x88] sm:$0xff]
    %v5464 = vld [vmem:[#allocation9 + $0x90] sm:$0xff]
    %v5465 = vld [vmem:[#allocation9 + $0x98] sm:$0xff]
    %v5466 = vld [vmem:[#allocation9 + $0xa0] sm:$0xff]
    %v5467 = vld [vmem:[#allocation9 + $0xa8] sm:$0xff]
    %v5468 = vld [vmem:[#allocation9 + $0xb0] sm:$0xff]
    %v5469 = vld [vmem:[#allocation9 + $0xb8] sm:$0xff]
    %v5470 = vld [vmem:[#allocation9 + $0xc0] sm:$0xff]
    %v5471 = vld [vmem:[#allocation9 + $0xc8] sm:$0xff]
    %v5472 = vld [vmem:[#allocation9 + $0xd0] sm:$0xff]
    %v5473 = vld [vmem:[#allocation9 + $0xd8] sm:$0xff]
    %v5474 = vld [vmem:[#allocation9 + $0xe0] sm:$0xff]
    %v5475 = vld [vmem:[#allocation9 + $0xe8] sm:$0xff]
    %v5476 = vld [vmem:[#allocation9 + $0xf0] sm:$0xff]
    %v5477 = vld [vmem:[#allocation9 + $0xf8] sm:$0xff]
    %v5478 = vand.u32 %v5447, 4294901760
    %5479 = vmatprep.subr.mxu0 %v5478
    %v5480 = vand.u32 %v5446, 4294901760
    %5481 = vmatpush1.msra.mxu0 %v5480
    %v5482 = vand.u32 %v5449, 4294901760
    %5483 = vmatprep.subr.mxu0 %v5482
    %v5484 = vand.u32 %v5448, 4294901760
    %5485 = vmatpush1.msra.mxu0 %v5484
    %v5486 = vand.u32 %v5451, 4294901760
    %5487 = vmatprep.subr.mxu0 %v5486
    %v5488 = vand.u32 %v5450, 4294901760
    %5489 = vmatpush1.msra.mxu0 %v5488
    %v5490 = vand.u32 %v5453, 4294901760
    %5491 = vmatprep.subr.mxu0 %v5490
    %v5492 = vand.u32 %v5452, 4294901760
    %5493 = vmatpush1.msra.mxu0 %v5492
    %v5494 = vand.u32 %v5455, 4294901760
    %5495 = vmatprep.subr.mxu0 %v5494
    %v5496 = vand.u32 %v5454, 4294901760
    %5497 = vmatpush1.msra.mxu0 %v5496
    %v5498 = vand.u32 %v5457, 4294901760
    %5499 = vmatprep.subr.mxu0 %v5498
    %v5500 = vand.u32 %v5456, 4294901760
    %5501 = vmatpush1.msra.mxu0 %v5500
    %v5502 = vand.u32 %v5459, 4294901760
    %5503 = vmatprep.subr.mxu0 %v5502
    %v5504 = vand.u32 %v5458, 4294901760
    %5505 = vmatpush1.msra.mxu0 %v5504
    %v5506 = vand.u32 %v5461, 4294901760
    %5507 = vmatprep.subr.mxu0 %v5506
    %v5508 = vand.u32 %v5460, 4294901760
    %5509 = vmatpush1.msra.mxu0 %v5508
    %v5510 = vand.u32 %v5463, 4294901760
    %5511 = vmatprep.subr.mxu0 %v5510
    %v5512 = vand.u32 %v5462, 4294901760
    %5513 = vmatpush1.msra.mxu0 %v5512
    %v5514 = vand.u32 %v5465, 4294901760
    %5515 = vmatprep.subr.mxu0 %v5514
    %v5516 = vand.u32 %v5464, 4294901760
    %5517 = vmatpush1.msra.mxu0 %v5516
    %v5518 = vand.u32 %v5467, 4294901760
    %5519 = vmatprep.subr.mxu0 %v5518
    %v5520 = vand.u32 %v5466, 4294901760
    %5521 = vmatpush1.msra.mxu0 %v5520
    %v5522 = vand.u32 %v5469, 4294901760
    %5523 = vmatprep.subr.mxu0 %v5522
    %v5524 = vand.u32 %v5468, 4294901760
    %5525 = vmatpush1.msra.mxu0 %v5524
    %v5526 = vand.u32 %v5471, 4294901760
    %5527 = vmatprep.subr.mxu0 %v5526
    %v5528 = vand.u32 %v5470, 4294901760
    %5529 = vmatpush1.msra.mxu0 %v5528
    %v5530 = vand.u32 %v5473, 4294901760
    %5531 = vmatprep.subr.mxu0 %v5530
    %v5532 = vand.u32 %v5472, 4294901760
    %5533 = vmatpush1.msra.mxu0 %v5532
    %v5534 = vand.u32 %v5475, 4294901760
    %5535 = vmatprep.subr.mxu0 %v5534
    %v5536 = vand.u32 %v5474, 4294901760
    %5537 = vmatpush1.msra.mxu0 %v5536
    %v5538 = vand.u32 %v5477, 4294901760
    %5539 = vmatprep.subr.mxu0 %v5538
    %v5540 = vand.u32 %v5476, 4294901760
    %5541 = vmatpush1.msra.mxu0 %v5540
    %5542 = vmatprep.subr.mxu0 0.0
    %5543 = vmatpush1.msra.mxu0 0.0
    %5544 = vmatprep.subr.mxu0 0.0
    %5545 = vmatpush1.msra.mxu0 0.0
    %5546 = vmatprep.subr.mxu0 0.0
    %5547 = vmatpush1.msra.mxu0 0.0
    %5548 = vmatprep.subr.mxu0 0.0
    %5549 = vmatpush1.msra.mxu0 0.0
    %5550 = vmatprep.subr.mxu0 0.0
    %5551 = vmatpush1.msra.mxu0 0.0
    %5552 = vmatprep.subr.mxu0 0.0
    %5553 = vmatpush1.msra.mxu0 0.0
    %5554 = vmatprep.subr.mxu0 0.0
    %5555 = vmatpush1.msra.mxu0 0.0
    %5556 = vmatprep.subr.mxu0 0.0
    %5557 = vmatpush1.msra.mxu0 0.0
    %5558 = vmatprep.subr.mxu0 0.0
    %5559 = vmatpush1.msra.mxu0 0.0
    %5560 = vmatprep.subr.mxu0 0.0
    %5561 = vmatpush1.msra.mxu0 0.0
    %5562 = vmatprep.subr.mxu0 0.0
    %5563 = vmatpush1.msra.mxu0 0.0
    %5564 = vmatprep.subr.mxu0 0.0
    %5565 = vmatpush1.msra.mxu0 0.0
    %5566 = vmatprep.subr.mxu0 0.0
    %5567 = vmatpush1.msra.mxu0 0.0
    %5568 = vmatprep.subr.mxu0 0.0
    %5569 = vmatpush1.msra.mxu0 0.0
    %5570 = vmatprep.subr.mxu0 0.0
    %5571 = vmatpush1.msra.mxu0 0.0
    %5572 = vmatprep.subr.mxu0 0.0
    %5573 = vmatpush1.msra.mxu0 0.0
    %5574 = vmatprep.mubr.f32.mxu0 0.0
    %v5575 = vand.u32 %v5445, 4294901760
    %v5576 = vsub.f32 %v5445, %v5575
    %v5577 = vand.u32 %v5576, 4294901760
    %v5578 = vsub.f32 %v5576, %v5577
    %v5579 = vand.u32 %v5578, 4294901760
    %5580 = vmatmul.mubr.f32.gmra.mrb[0].mxu0 %v5579
    %v5581 = vpop.f32.mrb[0].mxu0
    %v5582 = vadd.f32 0.0, %v5581
    %v5583 = vpop.f32.mrb[0].mxu0
    %v5584 = vadd.f32 0.0, %v5583
    %5585 = vdwg.mxu0
    %v5586 = vand.u32 %v5447, 4294901760
    %v5587 = vsub.f32 %v5447, %v5586
    %v5588 = vand.u32 %v5587, 4294901760
    %v5589 = vsub.f32 %v5587, %v5588
    %v5590 = vand.u32 %v5589, 4294901760
    %5591 = vmatprep.subr.mxu0 %v5590
    %v5592 = vand.u32 %v5446, 4294901760
    %v5593 = vsub.f32 %v5446, %v5592
    %v5594 = vand.u32 %v5593, 4294901760
    %v5595 = vsub.f32 %v5593, %v5594
    %v5596 = vand.u32 %v5595, 4294901760
    %5597 = vmatpush1.msra.mxu0 %v5596
    %v5598 = vand.u32 %v5449, 4294901760
    %v5599 = vsub.f32 %v5449, %v5598
    %v5600 = vand.u32 %v5599, 4294901760
    %v5601 = vsub.f32 %v5599, %v5600
    %v5602 = vand.u32 %v5601, 4294901760
    %5603 = vmatprep.subr.mxu0 %v5602
    %v5604 = vand.u32 %v5448, 4294901760
    %v5605 = vsub.f32 %v5448, %v5604
    %v5606 = vand.u32 %v5605, 4294901760
    %v5607 = vsub.f32 %v5605, %v5606
    %v5608 = vand.u32 %v5607, 4294901760
    %5609 = vmatpush1.msra.mxu0 %v5608
    %v5610 = vand.u32 %v5451, 4294901760
    %v5611 = vsub.f32 %v5451, %v5610
    %v5612 = vand.u32 %v5611, 4294901760
    %v5613 = vsub.f32 %v5611, %v5612
    %v5614 = vand.u32 %v5613, 4294901760
    %5615 = vmatprep.subr.mxu0 %v5614
    %v5616 = vand.u32 %v5450, 4294901760
    %v5617 = vsub.f32 %v5450, %v5616
    %v5618 = vand.u32 %v5617, 4294901760
    %v5619 = vsub.f32 %v5617, %v5618
    %v5620 = vand.u32 %v5619, 4294901760
    %5621 = vmatpush1.msra.mxu0 %v5620
    %v5622 = vand.u32 %v5453, 4294901760
    %v5623 = vsub.f32 %v5453, %v5622
    %v5624 = vand.u32 %v5623, 4294901760
    %v5625 = vsub.f32 %v5623, %v5624
    %v5626 = vand.u32 %v5625, 4294901760
    %5627 = vmatprep.subr.mxu0 %v5626
    %v5628 = vand.u32 %v5452, 4294901760
    %v5629 = vsub.f32 %v5452, %v5628
    %v5630 = vand.u32 %v5629, 4294901760
    %v5631 = vsub.f32 %v5629, %v5630
    %v5632 = vand.u32 %v5631, 4294901760
    %5633 = vmatpush1.msra.mxu0 %v5632
    %v5634 = vand.u32 %v5455, 4294901760
    %v5635 = vsub.f32 %v5455, %v5634
    %v5636 = vand.u32 %v5635, 4294901760
    %v5637 = vsub.f32 %v5635, %v5636
    %v5638 = vand.u32 %v5637, 4294901760
    %5639 = vmatprep.subr.mxu0 %v5638
    %v5640 = vand.u32 %v5454, 4294901760
    %v5641 = vsub.f32 %v5454, %v5640
    %v5642 = vand.u32 %v5641, 4294901760
    %v5643 = vsub.f32 %v5641, %v5642
    %v5644 = vand.u32 %v5643, 4294901760
    %5645 = vmatpush1.msra.mxu0 %v5644
    %v5646 = vand.u32 %v5457, 4294901760
    %v5647 = vsub.f32 %v5457, %v5646
    %v5648 = vand.u32 %v5647, 4294901760
    %v5649 = vsub.f32 %v5647, %v5648
    %v5650 = vand.u32 %v5649, 4294901760
    %5651 = vmatprep.subr.mxu0 %v5650
    %v5652 = vand.u32 %v5456, 4294901760
    %v5653 = vsub.f32 %v5456, %v5652
    %v5654 = vand.u32 %v5653, 4294901760
    %v5655 = vsub.f32 %v5653, %v5654
    %v5656 = vand.u32 %v5655, 4294901760
    %5657 = vmatpush1.msra.mxu0 %v5656
    %v5658 = vand.u32 %v5459, 4294901760
    %v5659 = vsub.f32 %v5459, %v5658
    %v5660 = vand.u32 %v5659, 4294901760
    %v5661 = vsub.f32 %v5659, %v5660
    %v5662 = vand.u32 %v5661, 4294901760
    %5663 = vmatprep.subr.mxu0 %v5662
    %v5664 = vand.u32 %v5458, 4294901760
    %v5665 = vsub.f32 %v5458, %v5664
    %v5666 = vand.u32 %v5665, 4294901760
    %v5667 = vsub.f32 %v5665, %v5666
    %v5668 = vand.u32 %v5667, 4294901760
    %5669 = vmatpush1.msra.mxu0 %v5668
    %v5670 = vand.u32 %v5461, 4294901760
    %v5671 = vsub.f32 %v5461, %v5670
    %v5672 = vand.u32 %v5671, 4294901760
    %v5673 = vsub.f32 %v5671, %v5672
    %v5674 = vand.u32 %v5673, 4294901760
    %5675 = vmatprep.subr.mxu0 %v5674
    %v5676 = vand.u32 %v5460, 4294901760
    %v5677 = vsub.f32 %v5460, %v5676
    %v5678 = vand.u32 %v5677, 4294901760
    %v5679 = vsub.f32 %v5677, %v5678
    %v5680 = vand.u32 %v5679, 4294901760
    %5681 = vmatpush1.msra.mxu0 %v5680
    %v5682 = vand.u32 %v5463, 4294901760
    %v5683 = vsub.f32 %v5463, %v5682
    %v5684 = vand.u32 %v5683, 4294901760
    %v5685 = vsub.f32 %v5683, %v5684
    %v5686 = vand.u32 %v5685, 4294901760
    %5687 = vmatprep.subr.mxu0 %v5686
    %v5688 = vand.u32 %v5462, 4294901760
    %v5689 = vsub.f32 %v5462, %v5688
    %v5690 = vand.u32 %v5689, 4294901760
    %v5691 = vsub.f32 %v5689, %v5690
    %v5692 = vand.u32 %v5691, 4294901760
    %5693 = vmatpush1.msra.mxu0 %v5692
    %v5694 = vand.u32 %v5465, 4294901760
    %v5695 = vsub.f32 %v5465, %v5694
    %v5696 = vand.u32 %v5695, 4294901760
    %v5697 = vsub.f32 %v5695, %v5696
    %v5698 = vand.u32 %v5697, 4294901760
    %5699 = vmatprep.subr.mxu0 %v5698
    %v5700 = vand.u32 %v5464, 4294901760
    %v5701 = vsub.f32 %v5464, %v5700
    %v5702 = vand.u32 %v5701, 4294901760
    %v5703 = vsub.f32 %v5701, %v5702
    %v5704 = vand.u32 %v5703, 4294901760
    %5705 = vmatpush1.msra.mxu0 %v5704
    %v5706 = vand.u32 %v5467, 4294901760
    %v5707 = vsub.f32 %v5467, %v5706
    %v5708 = vand.u32 %v5707, 4294901760
    %v5709 = vsub.f32 %v5707, %v5708
    %v5710 = vand.u32 %v5709, 4294901760
    %5711 = vmatprep.subr.mxu0 %v5710
    %v5712 = vand.u32 %v5466, 4294901760
    %v5713 = vsub.f32 %v5466, %v5712
    %v5714 = vand.u32 %v5713, 4294901760
    %v5715 = vsub.f32 %v5713, %v5714
    %v5716 = vand.u32 %v5715, 4294901760
    %5717 = vmatpush1.msra.mxu0 %v5716
    %v5718 = vand.u32 %v5469, 4294901760
    %v5719 = vsub.f32 %v5469, %v5718
    %v5720 = vand.u32 %v5719, 4294901760
    %v5721 = vsub.f32 %v5719, %v5720
    %v5722 = vand.u32 %v5721, 4294901760
    %5723 = vmatprep.subr.mxu0 %v5722
    %v5724 = vand.u32 %v5468, 4294901760
    %v5725 = vsub.f32 %v5468, %v5724
    %v5726 = vand.u32 %v5725, 4294901760
    %v5727 = vsub.f32 %v5725, %v5726
    %v5728 = vand.u32 %v5727, 4294901760
    %5729 = vmatpush1.msra.mxu0 %v5728
    %v5730 = vand.u32 %v5471, 4294901760
    %v5731 = vsub.f32 %v5471, %v5730
    %v5732 = vand.u32 %v5731, 4294901760
    %v5733 = vsub.f32 %v5731, %v5732
    %v5734 = vand.u32 %v5733, 4294901760
    %5735 = vmatprep.subr.mxu0 %v5734
    %v5736 = vand.u32 %v5470, 4294901760
    %v5737 = vsub.f32 %v5470, %v5736
    %v5738 = vand.u32 %v5737, 4294901760
    %v5739 = vsub.f32 %v5737, %v5738
    %v5740 = vand.u32 %v5739, 4294901760
    %5741 = vmatpush1.msra.mxu0 %v5740
    %v5742 = vand.u32 %v5473, 4294901760
    %v5743 = vsub.f32 %v5473, %v5742
    %v5744 = vand.u32 %v5743, 4294901760
    %v5745 = vsub.f32 %v5743, %v5744
    %v5746 = vand.u32 %v5745, 4294901760
    %5747 = vmatprep.subr.mxu0 %v5746
    %v5748 = vand.u32 %v5472, 4294901760
    %v5749 = vsub.f32 %v5472, %v5748
    %v5750 = vand.u32 %v5749, 4294901760
    %v5751 = vsub.f32 %v5749, %v5750
    %v5752 = vand.u32 %v5751, 4294901760
    %5753 = vmatpush1.msra.mxu0 %v5752
    %v5754 = vand.u32 %v5475, 4294901760
    %v5755 = vsub.f32 %v5475, %v5754
    %v5756 = vand.u32 %v5755, 4294901760
    %v5757 = vsub.f32 %v5755, %v5756
    %v5758 = vand.u32 %v5757, 4294901760
    %5759 = vmatprep.subr.mxu0 %v5758
    %v5760 = vand.u32 %v5474, 4294901760
    %v5761 = vsub.f32 %v5474, %v5760
    %v5762 = vand.u32 %v5761, 4294901760
    %v5763 = vsub.f32 %v5761, %v5762
    %v5764 = vand.u32 %v5763, 4294901760
    %5765 = vmatpush1.msra.mxu0 %v5764
    %v5766 = vand.u32 %v5477, 4294901760
    %v5767 = vsub.f32 %v5477, %v5766
    %v5768 = vand.u32 %v5767, 4294901760
    %v5769 = vsub.f32 %v5767, %v5768
    %v5770 = vand.u32 %v5769, 4294901760
    %5771 = vmatprep.subr.mxu0 %v5770
    %v5772 = vand.u32 %v5476, 4294901760
    %v5773 = vsub.f32 %v5476, %v5772
    %v5774 = vand.u32 %v5773, 4294901760
    %v5775 = vsub.f32 %v5773, %v5774
    %v5776 = vand.u32 %v5775, 4294901760
    %5777 = vmatpush1.msra.mxu0 %v5776
    %5778 = vmatprep.subr.mxu0 0.0
    %5779 = vmatpush1.msra.mxu0 0.0
    %5780 = vmatprep.subr.mxu0 0.0
    %5781 = vmatpush1.msra.mxu0 0.0
    %5782 = vmatprep.subr.mxu0 0.0
    %5783 = vmatpush1.msra.mxu0 0.0
    %5784 = vmatprep.subr.mxu0 0.0
    %5785 = vmatpush1.msra.mxu0 0.0
    %5786 = vmatprep.subr.mxu0 0.0
    %5787 = vmatpush1.msra.mxu0 0.0
    %5788 = vmatprep.subr.mxu0 0.0
    %5789 = vmatpush1.msra.mxu0 0.0
    %5790 = vmatprep.subr.mxu0 0.0
    %5791 = vmatpush1.msra.mxu0 0.0
    %5792 = vmatprep.subr.mxu0 0.0
    %5793 = vmatpush1.msra.mxu0 0.0
    %5794 = vmatprep.subr.mxu0 0.0
    %5795 = vmatpush1.msra.mxu0 0.0
    %5796 = vmatprep.subr.mxu0 0.0
    %5797 = vmatpush1.msra.mxu0 0.0
    %5798 = vmatprep.subr.mxu0 0.0
    %5799 = vmatpush1.msra.mxu0 0.0
    %5800 = vmatprep.subr.mxu0 0.0
    %5801 = vmatpush1.msra.mxu0 0.0
    %5802 = vmatprep.subr.mxu0 0.0
    %5803 = vmatpush1.msra.mxu0 0.0
    %5804 = vmatprep.subr.mxu0 0.0
    %5805 = vmatpush1.msra.mxu0 0.0
    %5806 = vmatprep.subr.mxu0 0.0
    %5807 = vmatpush1.msra.mxu0 0.0
    %5808 = vmatprep.subr.mxu0 0.0
    %5809 = vmatpush1.msra.mxu0 0.0
    %5810 = vmatprep.mubr.f32.mxu0 0.0
    %v5811 = vand.u32 %v5445, 4294901760
    %5812 = vmatmul.mubr.f32.gmra.mrb[0].mxu0 %v5811
    %v5813 = vpop.f32.mrb[0].mxu0
    %v5814 = vadd.f32 %v5582, %v5813
    %v5815 = vpop.f32.mrb[0].mxu0
    %v5816 = vadd.f32 %v5584, %v5815
    %5817 = vdwg.mxu0
    %v5818 = vand.u32 %v5447, 4294901760
    %v5819 = vsub.f32 %v5447, %v5818
    %5820 = vmatprep.subr.mxu0 %v5819
    %v5821 = vand.u32 %v5446, 4294901760
    %v5822 = vsub.f32 %v5446, %v5821
    %5823 = vmatpush1.msra.mxu0 %v5822
    %v5824 = vand.u32 %v5449, 4294901760
    %v5825 = vsub.f32 %v5449, %v5824
    %5826 = vmatprep.subr.mxu0 %v5825
    %v5827 = vand.u32 %v5448, 4294901760
    %v5828 = vsub.f32 %v5448, %v5827
    %5829 = vmatpush1.msra.mxu0 %v5828
    %v5830 = vand.u32 %v5451, 4294901760
    %v5831 = vsub.f32 %v5451, %v5830
    %5832 = vmatprep.subr.mxu0 %v5831
    %v5833 = vand.u32 %v5450, 4294901760
    %v5834 = vsub.f32 %v5450, %v5833
    %5835 = vmatpush1.msra.mxu0 %v5834
    %v5836 = vand.u32 %v5453, 4294901760
    %v5837 = vsub.f32 %v5453, %v5836
    %5838 = vmatprep.subr.mxu0 %v5837
    %v5839 = vand.u32 %v5452, 4294901760
    %v5840 = vsub.f32 %v5452, %v5839
    %5841 = vmatpush1.msra.mxu0 %v5840
    %v5842 = vand.u32 %v5455, 4294901760
    %v5843 = vsub.f32 %v5455, %v5842
    %5844 = vmatprep.subr.mxu0 %v5843
    %v5845 = vand.u32 %v5454, 4294901760
    %v5846 = vsub.f32 %v5454, %v5845
    %5847 = vmatpush1.msra.mxu0 %v5846
    %v5848 = vand.u32 %v5457, 4294901760
    %v5849 = vsub.f32 %v5457, %v5848
    %5850 = vmatprep.subr.mxu0 %v5849
    %v5851 = vand.u32 %v5456, 4294901760
    %v5852 = vsub.f32 %v5456, %v5851
    %5853 = vmatpush1.msra.mxu0 %v5852
    %v5854 = vand.u32 %v5459, 4294901760
    %v5855 = vsub.f32 %v5459, %v5854
    %5856 = vmatprep.subr.mxu0 %v5855
    %v5857 = vand.u32 %v5458, 4294901760
    %v5858 = vsub.f32 %v5458, %v5857
    %5859 = vmatpush1.msra.mxu0 %v5858
    %v5860 = vand.u32 %v5461, 4294901760
    %v5861 = vsub.f32 %v5461, %v5860
    %5862 = vmatprep.subr.mxu0 %v5861
    %v5863 = vand.u32 %v5460, 4294901760
    %v5864 = vsub.f32 %v5460, %v5863
    %5865 = vmatpush1.msra.mxu0 %v5864
    %v5866 = vand.u32 %v5463, 4294901760
    %v5867 = vsub.f32 %v5463, %v5866
    %5868 = vmatprep.subr.mxu0 %v5867
    %v5869 = vand.u32 %v5462, 4294901760
    %v5870 = vsub.f32 %v5462, %v5869
    %5871 = vmatpush1.msra.mxu0 %v5870
    %v5872 = vand.u32 %v5465, 4294901760
    %v5873 = vsub.f32 %v5465, %v5872
    %5874 = vmatprep.subr.mxu0 %v5873
    %v5875 = vand.u32 %v5464, 4294901760
    %v5876 = vsub.f32 %v5464, %v5875
    %5877 = vmatpush1.msra.mxu0 %v5876
    %v5878 = vand.u32 %v5467, 4294901760
    %v5879 = vsub.f32 %v5467, %v5878
    %5880 = vmatprep.subr.mxu0 %v5879
    %v5881 = vand.u32 %v5466, 4294901760
    %v5882 = vsub.f32 %v5466, %v5881
    %5883 = vmatpush1.msra.mxu0 %v5882
    %v5884 = vand.u32 %v5469, 4294901760
    %v5885 = vsub.f32 %v5469, %v5884
    %5886 = vmatprep.subr.mxu0 %v5885
    %v5887 = vand.u32 %v5468, 4294901760
    %v5888 = vsub.f32 %v5468, %v5887
    %5889 = vmatpush1.msra.mxu0 %v5888
    %v5890 = vand.u32 %v5471, 4294901760
    %v5891 = vsub.f32 %v5471, %v5890
    %5892 = vmatprep.subr.mxu0 %v5891
    %v5893 = vand.u32 %v5470, 4294901760
    %v5894 = vsub.f32 %v5470, %v5893
    %5895 = vmatpush1.msra.mxu0 %v5894
    %v5896 = vand.u32 %v5473, 4294901760
    %v5897 = vsub.f32 %v5473, %v5896
    %5898 = vmatprep.subr.mxu0 %v5897
    %v5899 = vand.u32 %v5472, 4294901760
    %v5900 = vsub.f32 %v5472, %v5899
    %5901 = vmatpush1.msra.mxu0 %v5900
    %v5902 = vand.u32 %v5475, 4294901760
    %v5903 = vsub.f32 %v5475, %v5902
    %5904 = vmatprep.subr.mxu0 %v5903
    %v5905 = vand.u32 %v5474, 4294901760
    %v5906 = vsub.f32 %v5474, %v5905
    %5907 = vmatpush1.msra.mxu0 %v5906
    %v5908 = vand.u32 %v5477, 4294901760
    %v5909 = vsub.f32 %v5477, %v5908
    %5910 = vmatprep.subr.mxu0 %v5909
    %v5911 = vand.u32 %v5476, 4294901760
    %v5912 = vsub.f32 %v5476, %v5911
    %5913 = vmatpush1.msra.mxu0 %v5912
    %5914 = vmatprep.subr.mxu0 0.0
    %5915 = vmatpush1.msra.mxu0 0.0
    %5916 = vmatprep.subr.mxu0 0.0
    %5917 = vmatpush1.msra.mxu0 0.0
    %5918 = vmatprep.subr.mxu0 0.0
    %5919 = vmatpush1.msra.mxu0 0.0
    %5920 = vmatprep.subr.mxu0 0.0
    %5921 = vmatpush1.msra.mxu0 0.0
    %5922 = vmatprep.subr.mxu0 0.0
    %5923 = vmatpush1.msra.mxu0 0.0
    %5924 = vmatprep.subr.mxu0 0.0
    %5925 = vmatpush1.msra.mxu0 0.0
    %5926 = vmatprep.subr.mxu0 0.0
    %5927 = vmatpush1.msra.mxu0 0.0
    %5928 = vmatprep.subr.mxu0 0.0
    %5929 = vmatpush1.msra.mxu0 0.0
    %5930 = vmatprep.subr.mxu0 0.0
    %5931 = vmatpush1.msra.mxu0 0.0
    %5932 = vmatprep.subr.mxu0 0.0
    %5933 = vmatpush1.msra.mxu0 0.0
    %5934 = vmatprep.subr.mxu0 0.0
    %5935 = vmatpush1.msra.mxu0 0.0
    %5936 = vmatprep.subr.mxu0 0.0
    %5937 = vmatpush1.msra.mxu0 0.0
    %5938 = vmatprep.subr.mxu0 0.0
    %5939 = vmatpush1.msra.mxu0 0.0
    %5940 = vmatprep.subr.mxu0 0.0
    %5941 = vmatpush1.msra.mxu0 0.0
    %5942 = vmatprep.subr.mxu0 0.0
    %5943 = vmatpush1.msra.mxu0 0.0
    %5944 = vmatprep.subr.mxu0 0.0
    %5945 = vmatpush1.msra.mxu0 0.0
    %5946 = vmatprep.mubr.f32.mxu0 0.0
    %v5947 = vand.u32 %v5445, 4294901760
    %v5948 = vsub.f32 %v5445, %v5947
    %5949 = vmatmul.mubr.f32.gmra.mrb[0].mxu0 %v5948
    %v5950 = vpop.f32.mrb[0].mxu0
    %v5951 = vadd.f32 %v5814, %v5950
    %v5952 = vpop.f32.mrb[0].mxu0
    %v5953 = vadd.f32 %v5816, %v5952
    %5954 = vdwg.mxu0
    %v5955 = vand.u32 %v5447, 4294901760
    %5956 = vmatprep.subr.mxu0 %v5955
    %v5957 = vand.u32 %v5446, 4294901760
    %5958 = vmatpush1.msra.mxu0 %v5957
    %v5959 = vand.u32 %v5449, 4294901760
    %5960 = vmatprep.subr.mxu0 %v5959
    %v5961 = vand.u32 %v5448, 4294901760
    %5962 = vmatpush1.msra.mxu0 %v5961
    %v5963 = vand.u32 %v5451, 4294901760
    %5964 = vmatprep.subr.mxu0 %v5963
    %v5965 = vand.u32 %v5450, 4294901760
    %5966 = vmatpush1.msra.mxu0 %v5965
    %v5967 = vand.u32 %v5453, 4294901760
    %5968 = vmatprep.subr.mxu0 %v5967
    %v5969 = vand.u32 %v5452, 4294901760
    %5970 = vmatpush1.msra.mxu0 %v5969
    %v5971 = vand.u32 %v5455, 4294901760
    %5972 = vmatprep.subr.mxu0 %v5971
    %v5973 = vand.u32 %v5454, 4294901760
    %5974 = vmatpush1.msra.mxu0 %v5973
    %v5975 = vand.u32 %v5457, 4294901760
    %5976 = vmatprep.subr.mxu0 %v5975
    %v5977 = vand.u32 %v5456, 4294901760
    %5978 = vmatpush1.msra.mxu0 %v5977
    %v5979 = vand.u32 %v5459, 4294901760
    %5980 = vmatprep.subr.mxu0 %v5979
    %v5981 = vand.u32 %v5458, 4294901760
    %5982 = vmatpush1.msra.mxu0 %v5981
    %v5983 = vand.u32 %v5461, 4294901760
    %5984 = vmatprep.subr.mxu0 %v5983
    %v5985 = vand.u32 %v5460, 4294901760
    %5986 = vmatpush1.msra.mxu0 %v5985
    %v5987 = vand.u32 %v5463, 4294901760
    %5988 = vmatprep.subr.mxu0 %v5987
    %v5989 = vand.u32 %v5462, 4294901760
    %5990 = vmatpush1.msra.mxu0 %v5989
    %v5991 = vand.u32 %v5465, 4294901760
    %5992 = vmatprep.subr.mxu0 %v5991
    %v5993 = vand.u32 %v5464, 4294901760
    %5994 = vmatpush1.msra.mxu0 %v5993
    %v5995 = vand.u32 %v5467, 4294901760
    %5996 = vmatprep.subr.mxu0 %v5995
    %v5997 = vand.u32 %v5466, 4294901760
    %5998 = vmatpush1.msra.mxu0 %v5997
    %v5999 = vand.u32 %v5469, 4294901760
    %6000 = vmatprep.subr.mxu0 %v5999
    %v6001 = vand.u32 %v5468, 4294901760
    %6002 = vmatpush1.msra.mxu0 %v6001
    %v6003 = vand.u32 %v5471, 4294901760
    %6004 = vmatprep.subr.mxu0 %v6003
    %v6005 = vand.u32 %v5470, 4294901760
    %6006 = vmatpush1.msra.mxu0 %v6005
    %v6007 = vand.u32 %v5473, 4294901760
    %6008 = vmatprep.subr.mxu0 %v6007
    %v6009 = vand.u32 %v5472, 4294901760
    %6010 = vmatpush1.msra.mxu0 %v6009
    %v6011 = vand.u32 %v5475, 4294901760
    %6012 = vmatprep.subr.mxu0 %v6011
    %v6013 = vand.u32 %v5474, 4294901760
    %6014 = vmatpush1.msra.mxu0 %v6013
    %v6015 = vand.u32 %v5477, 4294901760
    %6016 = vmatprep.subr.mxu0 %v6015
    %v6017 = vand.u32 %v5476, 4294901760
    %6018 = vmatpush1.msra.mxu0 %v6017
    %6019 = vmatprep.subr.mxu0 0.0
    %6020 = vmatpush1.msra.mxu0 0.0
    %6021 = vmatprep.subr.mxu0 0.0
    %6022 = vmatpush1.msra.mxu0 0.0
    %6023 = vmatprep.subr.mxu0 0.0
    %6024 = vmatpush1.msra.mxu0 0.0
    %6025 = vmatprep.subr.mxu0 0.0
    %6026 = vmatpush1.msra.mxu0 0.0
    %6027 = vmatprep.subr.mxu0 0.0
    %6028 = vmatpush1.msra.mxu0 0.0
    %6029 = vmatprep.subr.mxu0 0.0
    %6030 = vmatpush1.msra.mxu0 0.0
    %6031 = vmatprep.subr.mxu0 0.0
    %6032 = vmatpush1.msra.mxu0 0.0
    %6033 = vmatprep.subr.mxu0 0.0
    %6034 = vmatpush1.msra.mxu0 0.0
    %6035 = vmatprep.subr.mxu0 0.0
    %6036 = vmatpush1.msra.mxu0 0.0
    %6037 = vmatprep.subr.mxu0 0.0
    %6038 = vmatpush1.msra.mxu0 0.0
    %6039 = vmatprep.subr.mxu0 0.0
    %6040 = vmatpush1.msra.mxu0 0.0
    %6041 = vmatprep.subr.mxu0 0.0
    %6042 = vmatpush1.msra.mxu0 0.0
    %6043 = vmatprep.subr.mxu0 0.0
    %6044 = vmatpush1.msra.mxu0 0.0
    %6045 = vmatprep.subr.mxu0 0.0
    %6046 = vmatpush1.msra.mxu0 0.0
    %6047 = vmatprep.subr.mxu0 0.0
    %6048 = vmatpush1.msra.mxu0 0.0
    %6049 = vmatprep.subr.mxu0 0.0
    %6050 = vmatpush1.msra.mxu0 0.0
    %6051 = vmatprep.mubr.f32.mxu0 0.0
    %v6052 = vand.u32 %v5445, 4294901760
    %v6053 = vsub.f32 %v5445, %v6052
    %v6054 = vand.u32 %v6053, 4294901760
    %6055 = vmatmul.mubr.f32.gmra.mrb[0].mxu0 %v6054
    %v6056 = vpop.f32.mrb[0].mxu0
    %v6057 = vadd.f32 %v5951, %v6056
    %v6058 = vpop.f32.mrb[0].mxu0
    %v6059 = vadd.f32 %v5953, %v6058
    %6060 = vdwg.mxu0
    %v6061 = vand.u32 %v5447, 4294901760
    %v6062 = vsub.f32 %v5447, %v6061
    %v6063 = vand.u32 %v6062, 4294901760
    %6064 = vmatprep.subr.mxu0 %v6063
    %v6065 = vand.u32 %v5446, 4294901760
    %v6066 = vsub.f32 %v5446, %v6065
    %v6067 = vand.u32 %v6066, 4294901760
    %6068 = vmatpush1.msra.mxu0 %v6067
    %v6069 = vand.u32 %v5449, 4294901760
    %v6070 = vsub.f32 %v5449, %v6069
    %v6071 = vand.u32 %v6070, 4294901760
    %6072 = vmatprep.subr.mxu0 %v6071
    %v6073 = vand.u32 %v5448, 4294901760
    %v6074 = vsub.f32 %v5448, %v6073
    %v6075 = vand.u32 %v6074, 4294901760
    %6076 = vmatpush1.msra.mxu0 %v6075
    %v6077 = vand.u32 %v5451, 4294901760
    %v6078 = vsub.f32 %v5451, %v6077
    %v6079 = vand.u32 %v6078, 4294901760
    %6080 = vmatprep.subr.mxu0 %v6079
    %v6081 = vand.u32 %v5450, 4294901760
    %v6082 = vsub.f32 %v5450, %v6081
    %v6083 = vand.u32 %v6082, 4294901760
    %6084 = vmatpush1.msra.mxu0 %v6083
    %v6085 = vand.u32 %v5453, 4294901760
    %v6086 = vsub.f32 %v5453, %v6085
    %v6087 = vand.u32 %v6086, 4294901760
    %6088 = vmatprep.subr.mxu0 %v6087
    %v6089 = vand.u32 %v5452, 4294901760
    %v6090 = vsub.f32 %v5452, %v6089
    %v6091 = vand.u32 %v6090, 4294901760
    %6092 = vmatpush1.msra.mxu0 %v6091
    %v6093 = vand.u32 %v5455, 4294901760
    %v6094 = vsub.f32 %v5455, %v6093
    %v6095 = vand.u32 %v6094, 4294901760
    %6096 = vmatprep.subr.mxu0 %v6095
    %v6097 = vand.u32 %v5454, 4294901760
    %v6098 = vsub.f32 %v5454, %v6097
    %v6099 = vand.u32 %v6098, 4294901760
    %6100 = vmatpush1.msra.mxu0 %v6099
    %v6101 = vand.u32 %v5457, 4294901760
    %v6102 = vsub.f32 %v5457, %v6101
    %v6103 = vand.u32 %v6102, 4294901760
    %6104 = vmatprep.subr.mxu0 %v6103
    %v6105 = vand.u32 %v5456, 4294901760
    %v6106 = vsub.f32 %v5456, %v6105
    %v6107 = vand.u32 %v6106, 4294901760
    %6108 = vmatpush1.msra.mxu0 %v6107
    %v6109 = vand.u32 %v5459, 4294901760
    %v6110 = vsub.f32 %v5459, %v6109
    %v6111 = vand.u32 %v6110, 4294901760
    %6112 = vmatprep.subr.mxu0 %v6111
    %v6113 = vand.u32 %v5458, 4294901760
    %v6114 = vsub.f32 %v5458, %v6113
    %v6115 = vand.u32 %v6114, 4294901760
    %6116 = vmatpush1.msra.mxu0 %v6115
    %v6117 = vand.u32 %v5461, 4294901760
    %v6118 = vsub.f32 %v5461, %v6117
    %v6119 = vand.u32 %v6118, 4294901760
    %6120 = vmatprep.subr.mxu0 %v6119
    %v6121 = vand.u32 %v5460, 4294901760
    %v6122 = vsub.f32 %v5460, %v6121
    %v6123 = vand.u32 %v6122, 4294901760
    %6124 = vmatpush1.msra.mxu0 %v6123
    %v6125 = vand.u32 %v5463, 4294901760
    %v6126 = vsub.f32 %v5463, %v6125
    %v6127 = vand.u32 %v6126, 4294901760
    %6128 = vmatprep.subr.mxu0 %v6127
    %v6129 = vand.u32 %v5462, 4294901760
    %v6130 = vsub.f32 %v5462, %v6129
    %v6131 = vand.u32 %v6130, 4294901760
    %6132 = vmatpush1.msra.mxu0 %v6131
    %v6133 = vand.u32 %v5465, 4294901760
    %v6134 = vsub.f32 %v5465, %v6133
    %v6135 = vand.u32 %v6134, 4294901760
    %6136 = vmatprep.subr.mxu0 %v6135
    %v6137 = vand.u32 %v5464, 4294901760
    %v6138 = vsub.f32 %v5464, %v6137
    %v6139 = vand.u32 %v6138, 4294901760
    %6140 = vmatpush1.msra.mxu0 %v6139
    %v6141 = vand.u32 %v5467, 4294901760
    %v6142 = vsub.f32 %v5467, %v6141
    %v6143 = vand.u32 %v6142, 4294901760
    %6144 = vmatprep.subr.mxu0 %v6143
    %v6145 = vand.u32 %v5466, 4294901760
    %v6146 = vsub.f32 %v5466, %v6145
    %v6147 = vand.u32 %v6146, 4294901760
    %6148 = vmatpush1.msra.mxu0 %v6147
    %v6149 = vand.u32 %v5469, 4294901760
    %v6150 = vsub.f32 %v5469, %v6149
    %v6151 = vand.u32 %v6150, 4294901760
    %6152 = vmatprep.subr.mxu0 %v6151
    %v6153 = vand.u32 %v5468, 4294901760
    %v6154 = vsub.f32 %v5468, %v6153
    %v6155 = vand.u32 %v6154, 4294901760
    %6156 = vmatpush1.msra.mxu0 %v6155
    %v6157 = vand.u32 %v5471, 4294901760
    %v6158 = vsub.f32 %v5471, %v6157
    %v6159 = vand.u32 %v6158, 4294901760
    %6160 = vmatprep.subr.mxu0 %v6159
    %v6161 = vand.u32 %v5470, 4294901760
    %v6162 = vsub.f32 %v5470, %v6161
    %v6163 = vand.u32 %v6162, 4294901760
    %6164 = vmatpush1.msra.mxu0 %v6163
    %v6165 = vand.u32 %v5473, 4294901760
    %v6166 = vsub.f32 %v5473, %v6165
    %v6167 = vand.u32 %v6166, 4294901760
    %6168 = vmatprep.subr.mxu0 %v6167
    %v6169 = vand.u32 %v5472, 4294901760
    %v6170 = vsub.f32 %v5472, %v6169
    %v6171 = vand.u32 %v6170, 4294901760
    %6172 = vmatpush1.msra.mxu0 %v6171
    %v6173 = vand.u32 %v5475, 4294901760
    %v6174 = vsub.f32 %v5475, %v6173
    %v6175 = vand.u32 %v6174, 4294901760
    %6176 = vmatprep.subr.mxu0 %v6175
    %v6177 = vand.u32 %v5474, 4294901760
    %v6178 = vsub.f32 %v5474, %v6177
    %v6179 = vand.u32 %v6178, 4294901760
    %6180 = vmatpush1.msra.mxu0 %v6179
    %v6181 = vand.u32 %v5477, 4294901760
    %v6182 = vsub.f32 %v5477, %v6181
    %v6183 = vand.u32 %v6182, 4294901760
    %6184 = vmatprep.subr.mxu0 %v6183
    %v6185 = vand.u32 %v5476, 4294901760
    %v6186 = vsub.f32 %v5476, %v6185
    %v6187 = vand.u32 %v6186, 4294901760
    %6188 = vmatpush1.msra.mxu0 %v6187
    %6189 = vmatprep.subr.mxu0 0.0
    %6190 = vmatpush1.msra.mxu0 0.0
    %6191 = vmatprep.subr.mxu0 0.0
    %6192 = vmatpush1.msra.mxu0 0.0
    %6193 = vmatprep.subr.mxu0 0.0
    %6194 = vmatpush1.msra.mxu0 0.0
    %6195 = vmatprep.subr.mxu0 0.0
    %6196 = vmatpush1.msra.mxu0 0.0
    %6197 = vmatprep.subr.mxu0 0.0
    %6198 = vmatpush1.msra.mxu0 0.0
    %6199 = vmatprep.subr.mxu0 0.0
    %6200 = vmatpush1.msra.mxu0 0.0
    %6201 = vmatprep.subr.mxu0 0.0
    %6202 = vmatpush1.msra.mxu0 0.0
    %6203 = vmatprep.subr.mxu0 0.0
    %6204 = vmatpush1.msra.mxu0 0.0
    %6205 = vmatprep.subr.mxu0 0.0
    %6206 = vmatpush1.msra.mxu0 0.0
    %6207 = vmatprep.subr.mxu0 0.0
    %6208 = vmatpush1.msra.mxu0 0.0
    %6209 = vmatprep.subr.mxu0 0.0
    %6210 = vmatpush1.msra.mxu0 0.0
    %6211 = vmatprep.subr.mxu0 0.0
    %6212 = vmatpush1.msra.mxu0 0.0
    %6213 = vmatprep.subr.mxu0 0.0
    %6214 = vmatpush1.msra.mxu0 0.0
    %6215 = vmatprep.subr.mxu0 0.0
    %6216 = vmatpush1.msra.mxu0 0.0
    %6217 = vmatprep.subr.mxu0 0.0
    %6218 = vmatpush1.msra.mxu0 0.0
    %6219 = vmatprep.subr.mxu0 0.0
    %6220 = vmatpush1.msra.mxu0 0.0
    %6221 = vmatprep.mubr.f32.mxu0 0.0
    %v6222 = vand.u32 %v5445, 4294901760
    %6223 = vmatmul.mubr.f32.gmra.mrb[0].mxu0 %v6222
    %v6224 = vpop.f32.mrb[0].mxu0
    %v6225 = vadd.f32 %v6057, %v6224
    %v6226 = vpop.f32.mrb[0].mxu0
    %v6227 = vadd.f32 %v6059, %v6226
    %6228 = vdwg.mxu0
    %v6229 = vand.u32 %v5447, 4294901760
    %6230 = vmatprep.subr.mxu0 %v6229
    %v6231 = vand.u32 %v5446, 4294901760
    %6232 = vmatpush1.msra.mxu0 %v6231
    %v6233 = vand.u32 %v5449, 4294901760
    %6234 = vmatprep.subr.mxu0 %v6233
    %v6235 = vand.u32 %v5448, 4294901760
    %6236 = vmatpush1.msra.mxu0 %v6235
    %v6237 = vand.u32 %v5451, 4294901760
    %6238 = vmatprep.subr.mxu0 %v6237
    %v6239 = vand.u32 %v5450, 4294901760
    %6240 = vmatpush1.msra.mxu0 %v6239
    %v6241 = vand.u32 %v5453, 4294901760
    %6242 = vmatprep.subr.mxu0 %v6241
    %v6243 = vand.u32 %v5452, 4294901760
    %6244 = vmatpush1.msra.mxu0 %v6243
    %v6245 = vand.u32 %v5455, 4294901760
    %6246 = vmatprep.subr.mxu0 %v6245
    %v6247 = vand.u32 %v5454, 4294901760
    %6248 = vmatpush1.msra.mxu0 %v6247
    %v6249 = vand.u32 %v5457, 4294901760
    %6250 = vmatprep.subr.mxu0 %v6249
    %v6251 = vand.u32 %v5456, 4294901760
    %6252 = vmatpush1.msra.mxu0 %v6251
    %v6253 = vand.u32 %v5459, 4294901760
    %6254 = vmatprep.subr.mxu0 %v6253
    %v6255 = vand.u32 %v5458, 4294901760
    %6256 = vmatpush1.msra.mxu0 %v6255
    %v6257 = vand.u32 %v5461, 4294901760
    %6258 = vmatprep.subr.mxu0 %v6257
    %v6259 = vand.u32 %v5460, 4294901760
    %6260 = vmatpush1.msra.mxu0 %v6259
    %v6261 = vand.u32 %v5463, 4294901760
    %6262 = vmatprep.subr.mxu0 %v6261
    %v6263 = vand.u32 %v5462, 4294901760
    %6264 = vmatpush1.msra.mxu0 %v6263
    %v6265 = vand.u32 %v5465, 4294901760
    %6266 = vmatprep.subr.mxu0 %v6265
    %v6267 = vand.u32 %v5464, 4294901760
    %6268 = vmatpush1.msra.mxu0 %v6267
    %v6269 = vand.u32 %v5467, 4294901760
    %6270 = vmatprep.subr.mxu0 %v6269
    %v6271 = vand.u32 %v5466, 4294901760
    %6272 = vmatpush1.msra.mxu0 %v6271
    %v6273 = vand.u32 %v5469, 4294901760
    %6274 = vmatprep.subr.mxu0 %v6273
    %v6275 = vand.u32 %v5468, 4294901760
    %6276 = vmatpush1.msra.mxu0 %v6275
    %v6277 = vand.u32 %v5471, 4294901760
    %6278 = vmatprep.subr.mxu0 %v6277
    %v6279 = vand.u32 %v5470, 4294901760
    %6280 = vmatpush1.msra.mxu0 %v6279
    %v6281 = vand.u32 %v5473, 4294901760
    %6282 = vmatprep.subr.mxu0 %v6281
    %v6283 = vand.u32 %v5472, 4294901760
    %6284 = vmatpush1.msra.mxu0 %v6283
    %v6285 = vand.u32 %v5475, 4294901760
    %6286 = vmatprep.subr.mxu0 %v6285
    %v6287 = vand.u32 %v5474, 4294901760
    %6288 = vmatpush1.msra.mxu0 %v6287
    %v6289 = vand.u32 %v5477, 4294901760
    %6290 = vmatprep.subr.mxu0 %v6289
    %v6291 = vand.u32 %v5476, 4294901760
    %6292 = vmatpush1.msra.mxu0 %v6291
    %6293 = vmatprep.subr.mxu0 0.0
    %6294 = vmatpush1.msra.mxu0 0.0
    %6295 = vmatprep.subr.mxu0 0.0
    %6296 = vmatpush1.msra.mxu0 0.0
    %6297 = vmatprep.subr.mxu0 0.0
    %6298 = vmatpush1.msra.mxu0 0.0
    %6299 = vmatprep.subr.mxu0 0.0
    %6300 = vmatpush1.msra.mxu0 0.0
    %6301 = vmatprep.subr.mxu0 0.0
    %6302 = vmatpush1.msra.mxu0 0.0
    %6303 = vmatprep.subr.mxu0 0.0
    %6304 = vmatpush1.msra.mxu0 0.0
    %6305 = vmatprep.subr.mxu0 0.0
    %6306 = vmatpush1.msra.mxu0 0.0
    %6307 = vmatprep.subr.mxu0 0.0
    %6308 = vmatpush1.msra.mxu0 0.0
    %6309 = vmatprep.subr.mxu0 0.0
    %6310 = vmatpush1.msra.mxu0 0.0
    %6311 = vmatprep.subr.mxu0 0.0
    %6312 = vmatpush1.msra.mxu0 0.0
    %6313 = vmatprep.subr.mxu0 0.0
    %6314 = vmatpush1.msra.mxu0 0.0
    %6315 = vmatprep.subr.mxu0 0.0
    %6316 = vmatpush1.msra.mxu0 0.0
    %6317 = vmatprep.subr.mxu0 0.0
    %6318 = vmatpush1.msra.mxu0 0.0
    %6319 = vmatprep.subr.mxu0 0.0
    %6320 = vmatpush1.msra.mxu0 0.0
    %6321 = vmatprep.subr.mxu0 0.0
    %6322 = vmatpush1.msra.mxu0 0.0
    %6323 = vmatprep.subr.mxu0 0.0
    %6324 = vmatpush1.msra.mxu0 0.0
    %6325 = vmatprep.mubr.f32.mxu0 0.0
    %v6326 = vand.u32 %v5445, 4294901760
    %6327 = vmatmul.mubr.f32.gmra.mrb[0].mxu0 %v6326
    %v6328 = vpop.f32.mrb[0].mxu0
    %v6329 = vadd.f32 %v6225, %v6328
    %v6330 = vpop.f32.mrb[0].mxu0
    %v6331 = vadd.f32 %v6227, %v6330
    %6332 = vdwg.mxu0
    %v6333 = vmax.f32 %v6329, 0.0
    %v6334 = vmax.f32 %v6331, 0.0
    %v6335 = vld [vmem:[#allocation10] sm:$0xff]
    %v6336 = vld [vmem:[#allocation10 + $0x8] sm:$0xff]
    %v6337 = vld [vmem:[#allocation10 + $0x10] sm:$0xff]
    %v6338 = vld [vmem:[#allocation10 + $0x18] sm:$0xff]
    %v6339 = vld [vmem:[#allocation10 + $0x20] sm:$0xff]
    %v6340 = vld [vmem:[#allocation10 + $0x28] sm:$0xff]
    %v6341 = vld [vmem:[#allocation10 + $0x30] sm:$0xff]
    %v6342 = vld [vmem:[#allocation10 + $0x38] sm:$0xff]
    %v6343 = vld [vmem:[#allocation10 + $0x40] sm:$0xff]
    %v6344 = vld [vmem:[#allocation10 + $0x48] sm:$0xff]
    %v6345 = vld [vmem:[#allocation10 + $0x50] sm:$0xff]
    %v6346 = vld [vmem:[#allocation10 + $0x58] sm:$0xff]
    %v6347 = vld [vmem:[#allocation10 + $0x60] sm:$0xff]
    %v6348 = vld [vmem:[#allocation10 + $0x68] sm:$0xff]
    %v6349 = vld [vmem:[#allocation10 + $0x70] sm:$0xff]
    %v6350 = vld [vmem:[#allocation10 + $0x78] sm:$0xff]
    %v6351 = vld [vmem:[#allocation10 + $0x80] sm:$0xff]
    %v6352 = vld [vmem:[#allocation10 + $0x88] sm:$0xff]
    %v6353 = vld [vmem:[#allocation10 + $0x90] sm:$0xff]
    %v6354 = vld [vmem:[#allocation10 + $0x98] sm:$0xff]
    %v6355 = vld [vmem:[#allocation10 + $0xa0] sm:$0xff]
    %v6356 = vld [vmem:[#allocation10 + $0xa8] sm:$0xff]
    %v6357 = vld [vmem:[#allocation10 + $0xb0] sm:$0xff]
    %v6358 = vld [vmem:[#allocation10 + $0xb8] sm:$0xff]
    %v6359 = vld [vmem:[#allocation10 + $0xc0] sm:$0xff]
    %v6360 = vld [vmem:[#allocation10 + $0xc8] sm:$0xff]
    %v6361 = vld [vmem:[#allocation10 + $0xd0] sm:$0xff]
    %v6362 = vld [vmem:[#allocation10 + $0xd8] sm:$0xff]
    %v6363 = vld [vmem:[#allocation10 + $0xe0] sm:$0xff]
    %v6364 = vld [vmem:[#allocation10 + $0xe8] sm:$0xff]
    %v6365 = vld [vmem:[#allocation10 + $0xf0] sm:$0xff]
    %v6366 = vld [vmem:[#allocation10 + $0xf8] sm:$0xff]
    %6367 = vmatprep.subr.mxu0 0.0
    %v6368 = vand.u32 %v6335, 4294901760
    %6369 = vmatpush1.msra.mxu0 %v6368
    %6370 = vmatprep.subr.mxu0 0.0
    %v6371 = vand.u32 %v6336, 4294901760
    %6372 = vmatpush1.msra.mxu0 %v6371
    %6373 = vmatprep.subr.mxu0 0.0
    %v6374 = vand.u32 %v6337, 4294901760
    %6375 = vmatpush1.msra.mxu0 %v6374
    %6376 = vmatprep.subr.mxu0 0.0
    %v6377 = vand.u32 %v6338, 4294901760
    %6378 = vmatpush1.msra.mxu0 %v6377
    %6379 = vmatprep.subr.mxu0 0.0
    %v6380 = vand.u32 %v6339, 4294901760
    %6381 = vmatpush1.msra.mxu0 %v6380
    %6382 = vmatprep.subr.mxu0 0.0
    %v6383 = vand.u32 %v6340, 4294901760
    %6384 = vmatpush1.msra.mxu0 %v6383
    %6385 = vmatprep.subr.mxu0 0.0
    %v6386 = vand.u32 %v6341, 4294901760
    %6387 = vmatpush1.msra.mxu0 %v6386
    %6388 = vmatprep.subr.mxu0 0.0
    %v6389 = vand.u32 %v6342, 4294901760
    %6390 = vmatpush1.msra.mxu0 %v6389
    %6391 = vmatprep.subr.mxu0 0.0
    %v6392 = vand.u32 %v6343, 4294901760
    %6393 = vmatpush1.msra.mxu0 %v6392
    %6394 = vmatprep.subr.mxu0 0.0
    %v6395 = vand.u32 %v6344, 4294901760
    %6396 = vmatpush1.msra.mxu0 %v6395
    %6397 = vmatprep.subr.mxu0 0.0
    %v6398 = vand.u32 %v6345, 4294901760
    %6399 = vmatpush1.msra.mxu0 %v6398
    %6400 = vmatprep.subr.mxu0 0.0
    %v6401 = vand.u32 %v6346, 4294901760
    %6402 = vmatpush1.msra.mxu0 %v6401
    %6403 = vmatprep.subr.mxu0 0.0
    %v6404 = vand.u32 %v6347, 4294901760
    %6405 = vmatpush1.msra.mxu0 %v6404
    %6406 = vmatprep.subr.mxu0 0.0
    %v6407 = vand.u32 %v6348, 4294901760
    %6408 = vmatpush1.msra.mxu0 %v6407
    %6409 = vmatprep.subr.mxu0 0.0
    %v6410 = vand.u32 %v6349, 4294901760
    %6411 = vmatpush1.msra.mxu0 %v6410
    %6412 = vmatprep.subr.mxu0 0.0
    %v6413 = vand.u32 %v6350, 4294901760
    %6414 = vmatpush1.msra.mxu0 %v6413
    %6415 = vmatprep.subr.mxu0 0.0
    %v6416 = vand.u32 %v6351, 4294901760
    %6417 = vmatpush1.msra.mxu0 %v6416
    %6418 = vmatprep.subr.mxu0 0.0
    %v6419 = vand.u32 %v6352, 4294901760
    %6420 = vmatpush1.msra.mxu0 %v6419
    %6421 = vmatprep.subr.mxu0 0.0
    %v6422 = vand.u32 %v6353, 4294901760
    %6423 = vmatpush1.msra.mxu0 %v6422
    %6424 = vmatprep.subr.mxu0 0.0
    %v6425 = vand.u32 %v6354, 4294901760
    %6426 = vmatpush1.msra.mxu0 %v6425
    %6427 = vmatprep.subr.mxu0 0.0
    %v6428 = vand.u32 %v6355, 4294901760
    %6429 = vmatpush1.msra.mxu0 %v6428
    %6430 = vmatprep.subr.mxu0 0.0
    %v6431 = vand.u32 %v6356, 4294901760
    %6432 = vmatpush1.msra.mxu0 %v6431
    %6433 = vmatprep.subr.mxu0 0.0
    %v6434 = vand.u32 %v6357, 4294901760
    %6435 = vmatpush1.msra.mxu0 %v6434
    %6436 = vmatprep.subr.mxu0 0.0
    %v6437 = vand.u32 %v6358, 4294901760
    %6438 = vmatpush1.msra.mxu0 %v6437
    %6439 = vmatprep.subr.mxu0 0.0
    %v6440 = vand.u32 %v6359, 4294901760
    %6441 = vmatpush1.msra.mxu0 %v6440
    %6442 = vmatprep.subr.mxu0 0.0
    %v6443 = vand.u32 %v6360, 4294901760
    %6444 = vmatpush1.msra.mxu0 %v6443
    %6445 = vmatprep.subr.mxu0 0.0
    %v6446 = vand.u32 %v6361, 4294901760
    %6447 = vmatpush1.msra.mxu0 %v6446
    %6448 = vmatprep.subr.mxu0 0.0
    %v6449 = vand.u32 %v6362, 4294901760
    %6450 = vmatpush1.msra.mxu0 %v6449
    %6451 = vmatprep.subr.mxu0 0.0
    %v6452 = vand.u32 %v6363, 4294901760
    %6453 = vmatpush1.msra.mxu0 %v6452
    %6454 = vmatprep.subr.mxu0 0.0
    %v6455 = vand.u32 %v6364, 4294901760
    %6456 = vmatpush1.msra.mxu0 %v6455
    %6457 = vmatprep.subr.mxu0 0.0
    %v6458 = vand.u32 %v6365, 4294901760
    %6459 = vmatpush1.msra.mxu0 %v6458
    %6460 = vmatprep.subr.mxu0 0.0
    %v6461 = vand.u32 %v6366, 4294901760
    %6462 = vmatpush1.msra.mxu0 %v6461
    %v6463 = vand.u32 %v6334, 4294901760
    %v6464 = vsub.f32 %v6334, %v6463
    %v6465 = vand.u32 %v6464, 4294901760
    %v6466 = vsub.f32 %v6464, %v6465
    %v6467 = vand.u32 %v6466, 4294901760
    %6468 = vmatprep.mubr.f32.mxu0 %v6467
    %v6469 = vand.u32 %v6333, 4294901760
    %v6470 = vsub.f32 %v6333, %v6469
    %v6471 = vand.u32 %v6470, 4294901760
    %v6472 = vsub.f32 %v6470, %v6471
    %v6473 = vand.u32 %v6472, 4294901760
    %6474 = vmatmul.mubr.f32.gmra.mrb[0].mxu0 %v6473
    %v6475 = vpop.f32.mrb[0].mxu0
    %v6476 = vadd.f32 0.0, %v6475
    %v6477 = vpop.f32.mrb[0].mxu0
    %6478 = vdwg.mxu0
    %6479 = vmatprep.subr.mxu0 0.0
    %v6480 = vand.u32 %v6335, 4294901760
    %v6481 = vsub.f32 %v6335, %v6480
    %v6482 = vand.u32 %v6481, 4294901760
    %v6483 = vsub.f32 %v6481, %v6482
    %v6484 = vand.u32 %v6483, 4294901760
    %6485 = vmatpush1.msra.mxu0 %v6484
    %6486 = vmatprep.subr.mxu0 0.0
    %v6487 = vand.u32 %v6336, 4294901760
    %v6488 = vsub.f32 %v6336, %v6487
    %v6489 = vand.u32 %v6488, 4294901760
    %v6490 = vsub.f32 %v6488, %v6489
    %v6491 = vand.u32 %v6490, 4294901760
    %6492 = vmatpush1.msra.mxu0 %v6491
    %6493 = vmatprep.subr.mxu0 0.0
    %v6494 = vand.u32 %v6337, 4294901760
    %v6495 = vsub.f32 %v6337, %v6494
    %v6496 = vand.u32 %v6495, 4294901760
    %v6497 = vsub.f32 %v6495, %v6496
    %v6498 = vand.u32 %v6497, 4294901760
    %6499 = vmatpush1.msra.mxu0 %v6498
    %6500 = vmatprep.subr.mxu0 0.0
    %v6501 = vand.u32 %v6338, 4294901760
    %v6502 = vsub.f32 %v6338, %v6501
    %v6503 = vand.u32 %v6502, 4294901760
    %v6504 = vsub.f32 %v6502, %v6503
    %v6505 = vand.u32 %v6504, 4294901760
    %6506 = vmatpush1.msra.mxu0 %v6505
    %6507 = vmatprep.subr.mxu0 0.0
    %v6508 = vand.u32 %v6339, 4294901760
    %v6509 = vsub.f32 %v6339, %v6508
    %v6510 = vand.u32 %v6509, 4294901760
    %v6511 = vsub.f32 %v6509, %v6510
    %v6512 = vand.u32 %v6511, 4294901760
    %6513 = vmatpush1.msra.mxu0 %v6512
    %6514 = vmatprep.subr.mxu0 0.0
    %v6515 = vand.u32 %v6340, 4294901760
    %v6516 = vsub.f32 %v6340, %v6515
    %v6517 = vand.u32 %v6516, 4294901760
    %v6518 = vsub.f32 %v6516, %v6517
    %v6519 = vand.u32 %v6518, 4294901760
    %6520 = vmatpush1.msra.mxu0 %v6519
    %6521 = vmatprep.subr.mxu0 0.0
    %v6522 = vand.u32 %v6341, 4294901760
    %v6523 = vsub.f32 %v6341, %v6522
    %v6524 = vand.u32 %v6523, 4294901760
    %v6525 = vsub.f32 %v6523, %v6524
    %v6526 = vand.u32 %v6525, 4294901760
    %6527 = vmatpush1.msra.mxu0 %v6526
    %6528 = vmatprep.subr.mxu0 0.0
    %v6529 = vand.u32 %v6342, 4294901760
    %v6530 = vsub.f32 %v6342, %v6529
    %v6531 = vand.u32 %v6530, 4294901760
    %v6532 = vsub.f32 %v6530, %v6531
    %v6533 = vand.u32 %v6532, 4294901760
    %6534 = vmatpush1.msra.mxu0 %v6533
    %6535 = vmatprep.subr.mxu0 0.0
    %v6536 = vand.u32 %v6343, 4294901760
    %v6537 = vsub.f32 %v6343, %v6536
    %v6538 = vand.u32 %v6537, 4294901760
    %v6539 = vsub.f32 %v6537, %v6538
    %v6540 = vand.u32 %v6539, 4294901760
    %6541 = vmatpush1.msra.mxu0 %v6540
    %6542 = vmatprep.subr.mxu0 0.0
    %v6543 = vand.u32 %v6344, 4294901760
    %v6544 = vsub.f32 %v6344, %v6543
    %v6545 = vand.u32 %v6544, 4294901760
    %v6546 = vsub.f32 %v6544, %v6545
    %v6547 = vand.u32 %v6546, 4294901760
    %6548 = vmatpush1.msra.mxu0 %v6547
    %6549 = vmatprep.subr.mxu0 0.0
    %v6550 = vand.u32 %v6345, 4294901760
    %v6551 = vsub.f32 %v6345, %v6550
    %v6552 = vand.u32 %v6551, 4294901760
    %v6553 = vsub.f32 %v6551, %v6552
    %v6554 = vand.u32 %v6553, 4294901760
    %6555 = vmatpush1.msra.mxu0 %v6554
    %6556 = vmatprep.subr.mxu0 0.0
    %v6557 = vand.u32 %v6346, 4294901760
    %v6558 = vsub.f32 %v6346, %v6557
    %v6559 = vand.u32 %v6558, 4294901760
    %v6560 = vsub.f32 %v6558, %v6559
    %v6561 = vand.u32 %v6560, 4294901760
    %6562 = vmatpush1.msra.mxu0 %v6561
    %6563 = vmatprep.subr.mxu0 0.0
    %v6564 = vand.u32 %v6347, 4294901760
    %v6565 = vsub.f32 %v6347, %v6564
    %v6566 = vand.u32 %v6565, 4294901760
    %v6567 = vsub.f32 %v6565, %v6566
    %v6568 = vand.u32 %v6567, 4294901760
    %6569 = vmatpush1.msra.mxu0 %v6568
    %6570 = vmatprep.subr.mxu0 0.0
    %v6571 = vand.u32 %v6348, 4294901760
    %v6572 = vsub.f32 %v6348, %v6571
    %v6573 = vand.u32 %v6572, 4294901760
    %v6574 = vsub.f32 %v6572, %v6573
    %v6575 = vand.u32 %v6574, 4294901760
    %6576 = vmatpush1.msra.mxu0 %v6575
    %6577 = vmatprep.subr.mxu0 0.0
    %v6578 = vand.u32 %v6349, 4294901760
    %v6579 = vsub.f32 %v6349, %v6578
    %v6580 = vand.u32 %v6579, 4294901760
    %v6581 = vsub.f32 %v6579, %v6580
    %v6582 = vand.u32 %v6581, 4294901760
    %6583 = vmatpush1.msra.mxu0 %v6582
    %6584 = vmatprep.subr.mxu0 0.0
    %v6585 = vand.u32 %v6350, 4294901760
    %v6586 = vsub.f32 %v6350, %v6585
    %v6587 = vand.u32 %v6586, 4294901760
    %v6588 = vsub.f32 %v6586, %v6587
    %v6589 = vand.u32 %v6588, 4294901760
    %6590 = vmatpush1.msra.mxu0 %v6589
    %6591 = vmatprep.subr.mxu0 0.0
    %v6592 = vand.u32 %v6351, 4294901760
    %v6593 = vsub.f32 %v6351, %v6592
    %v6594 = vand.u32 %v6593, 4294901760
    %v6595 = vsub.f32 %v6593, %v6594
    %v6596 = vand.u32 %v6595, 4294901760
    %6597 = vmatpush1.msra.mxu0 %v6596
    %6598 = vmatprep.subr.mxu0 0.0
    %v6599 = vand.u32 %v6352, 4294901760
    %v6600 = vsub.f32 %v6352, %v6599
    %v6601 = vand.u32 %v6600, 4294901760
    %v6602 = vsub.f32 %v6600, %v6601
    %v6603 = vand.u32 %v6602, 4294901760
    %6604 = vmatpush1.msra.mxu0 %v6603
    %6605 = vmatprep.subr.mxu0 0.0
    %v6606 = vand.u32 %v6353, 4294901760
    %v6607 = vsub.f32 %v6353, %v6606
    %v6608 = vand.u32 %v6607, 4294901760
    %v6609 = vsub.f32 %v6607, %v6608
    %v6610 = vand.u32 %v6609, 4294901760
    %6611 = vmatpush1.msra.mxu0 %v6610
    %6612 = vmatprep.subr.mxu0 0.0
    %v6613 = vand.u32 %v6354, 4294901760
    %v6614 = vsub.f32 %v6354, %v6613
    %v6615 = vand.u32 %v6614, 4294901760
    %v6616 = vsub.f32 %v6614, %v6615
    %v6617 = vand.u32 %v6616, 4294901760
    %6618 = vmatpush1.msra.mxu0 %v6617
    %6619 = vmatprep.subr.mxu0 0.0
    %v6620 = vand.u32 %v6355, 4294901760
    %v6621 = vsub.f32 %v6355, %v6620
    %v6622 = vand.u32 %v6621, 4294901760
    %v6623 = vsub.f32 %v6621, %v6622
    %v6624 = vand.u32 %v6623, 4294901760
    %6625 = vmatpush1.msra.mxu0 %v6624
    %6626 = vmatprep.subr.mxu0 0.0
    %v6627 = vand.u32 %v6356, 4294901760
    %v6628 = vsub.f32 %v6356, %v6627
    %v6629 = vand.u32 %v6628, 4294901760
    %v6630 = vsub.f32 %v6628, %v6629
    %v6631 = vand.u32 %v6630, 4294901760
    %6632 = vmatpush1.msra.mxu0 %v6631
    %6633 = vmatprep.subr.mxu0 0.0
    %v6634 = vand.u32 %v6357, 4294901760
    %v6635 = vsub.f32 %v6357, %v6634
    %v6636 = vand.u32 %v6635, 4294901760
    %v6637 = vsub.f32 %v6635, %v6636
    %v6638 = vand.u32 %v6637, 4294901760
    %6639 = vmatpush1.msra.mxu0 %v6638
    %6640 = vmatprep.subr.mxu0 0.0
    %v6641 = vand.u32 %v6358, 4294901760
    %v6642 = vsub.f32 %v6358, %v6641
    %v6643 = vand.u32 %v6642, 4294901760
    %v6644 = vsub.f32 %v6642, %v6643
    %v6645 = vand.u32 %v6644, 4294901760
    %6646 = vmatpush1.msra.mxu0 %v6645
    %6647 = vmatprep.subr.mxu0 0.0
    %v6648 = vand.u32 %v6359, 4294901760
    %v6649 = vsub.f32 %v6359, %v6648
    %v6650 = vand.u32 %v6649, 4294901760
    %v6651 = vsub.f32 %v6649, %v6650
    %v6652 = vand.u32 %v6651, 4294901760
    %6653 = vmatpush1.msra.mxu0 %v6652
    %6654 = vmatprep.subr.mxu0 0.0
    %v6655 = vand.u32 %v6360, 4294901760
    %v6656 = vsub.f32 %v6360, %v6655
    %v6657 = vand.u32 %v6656, 4294901760
    %v6658 = vsub.f32 %v6656, %v6657
    %v6659 = vand.u32 %v6658, 4294901760
    %6660 = vmatpush1.msra.mxu0 %v6659
    %6661 = vmatprep.subr.mxu0 0.0
    %v6662 = vand.u32 %v6361, 4294901760
    %v6663 = vsub.f32 %v6361, %v6662
    %v6664 = vand.u32 %v6663, 4294901760
    %v6665 = vsub.f32 %v6663, %v6664
    %v6666 = vand.u32 %v6665, 4294901760
    %6667 = vmatpush1.msra.mxu0 %v6666
    %6668 = vmatprep.subr.mxu0 0.0
    %v6669 = vand.u32 %v6362, 4294901760
    %v6670 = vsub.f32 %v6362, %v6669
    %v6671 = vand.u32 %v6670, 4294901760
    %v6672 = vsub.f32 %v6670, %v6671
    %v6673 = vand.u32 %v6672, 4294901760
    %6674 = vmatpush1.msra.mxu0 %v6673
    %6675 = vmatprep.subr.mxu0 0.0
    %v6676 = vand.u32 %v6363, 4294901760
    %v6677 = vsub.f32 %v6363, %v6676
    %v6678 = vand.u32 %v6677, 4294901760
    %v6679 = vsub.f32 %v6677, %v6678
    %v6680 = vand.u32 %v6679, 4294901760
    %6681 = vmatpush1.msra.mxu0 %v6680
    %6682 = vmatprep.subr.mxu0 0.0
    %v6683 = vand.u32 %v6364, 4294901760
    %v6684 = vsub.f32 %v6364, %v6683
    %v6685 = vand.u32 %v6684, 4294901760
    %v6686 = vsub.f32 %v6684, %v6685
    %v6687 = vand.u32 %v6686, 4294901760
    %6688 = vmatpush1.msra.mxu0 %v6687
    %6689 = vmatprep.subr.mxu0 0.0
    %v6690 = vand.u32 %v6365, 4294901760
    %v6691 = vsub.f32 %v6365, %v6690
    %v6692 = vand.u32 %v6691, 4294901760
    %v6693 = vsub.f32 %v6691, %v6692
    %v6694 = vand.u32 %v6693, 4294901760
    %6695 = vmatpush1.msra.mxu0 %v6694
    %6696 = vmatprep.subr.mxu0 0.0
    %v6697 = vand.u32 %v6366, 4294901760
    %v6698 = vsub.f32 %v6366, %v6697
    %v6699 = vand.u32 %v6698, 4294901760
    %v6700 = vsub.f32 %v6698, %v6699
    %v6701 = vand.u32 %v6700, 4294901760
    %6702 = vmatpush1.msra.mxu0 %v6701
    %v6703 = vand.u32 %v6334, 4294901760
    %6704 = vmatprep.mubr.f32.mxu0 %v6703
    %v6705 = vand.u32 %v6333, 4294901760
    %6706 = vmatmul.mubr.f32.gmra.mrb[0].mxu0 %v6705
    %v6707 = vpop.f32.mrb[0].mxu0
    %v6708 = vadd.f32 %v6476, %v6707
    %v6709 = vpop.f32.mrb[0].mxu0
    %6710 = vdwg.mxu0
    %6711 = vmatprep.subr.mxu0 0.0
    %v6712 = vand.u32 %v6335, 4294901760
    %v6713 = vsub.f32 %v6335, %v6712
    %6714 = vmatpush1.msra.mxu0 %v6713
    %6715 = vmatprep.subr.mxu0 0.0
    %v6716 = vand.u32 %v6336, 4294901760
    %v6717 = vsub.f32 %v6336, %v6716
    %6718 = vmatpush1.msra.mxu0 %v6717
    %6719 = vmatprep.subr.mxu0 0.0
    %v6720 = vand.u32 %v6337, 4294901760
    %v6721 = vsub.f32 %v6337, %v6720
    %6722 = vmatpush1.msra.mxu0 %v6721
    %6723 = vmatprep.subr.mxu0 0.0
    %v6724 = vand.u32 %v6338, 4294901760
    %v6725 = vsub.f32 %v6338, %v6724
    %6726 = vmatpush1.msra.mxu0 %v6725
    %6727 = vmatprep.subr.mxu0 0.0
    %v6728 = vand.u32 %v6339, 4294901760
    %v6729 = vsub.f32 %v6339, %v6728
    %6730 = vmatpush1.msra.mxu0 %v6729
    %6731 = vmatprep.subr.mxu0 0.0
    %v6732 = vand.u32 %v6340, 4294901760
    %v6733 = vsub.f32 %v6340, %v6732
    %6734 = vmatpush1.msra.mxu0 %v6733
    %6735 = vmatprep.subr.mxu0 0.0
    %v6736 = vand.u32 %v6341, 4294901760
    %v6737 = vsub.f32 %v6341, %v6736
    %6738 = vmatpush1.msra.mxu0 %v6737
    %6739 = vmatprep.subr.mxu0 0.0
    %v6740 = vand.u32 %v6342, 4294901760
    %v6741 = vsub.f32 %v6342, %v6740
    %6742 = vmatpush1.msra.mxu0 %v6741
    %6743 = vmatprep.subr.mxu0 0.0
    %v6744 = vand.u32 %v6343, 4294901760
    %v6745 = vsub.f32 %v6343, %v6744
    %6746 = vmatpush1.msra.mxu0 %v6745
    %6747 = vmatprep.subr.mxu0 0.0
    %v6748 = vand.u32 %v6344, 4294901760
    %v6749 = vsub.f32 %v6344, %v6748
    %6750 = vmatpush1.msra.mxu0 %v6749
    %6751 = vmatprep.subr.mxu0 0.0
    %v6752 = vand.u32 %v6345, 4294901760
    %v6753 = vsub.f32 %v6345, %v6752
    %6754 = vmatpush1.msra.mxu0 %v6753
    %6755 = vmatprep.subr.mxu0 0.0
    %v6756 = vand.u32 %v6346, 4294901760
    %v6757 = vsub.f32 %v6346, %v6756
    %6758 = vmatpush1.msra.mxu0 %v6757
    %6759 = vmatprep.subr.mxu0 0.0
    %v6760 = vand.u32 %v6347, 4294901760
    %v6761 = vsub.f32 %v6347, %v6760
    %6762 = vmatpush1.msra.mxu0 %v6761
    %6763 = vmatprep.subr.mxu0 0.0
    %v6764 = vand.u32 %v6348, 4294901760
    %v6765 = vsub.f32 %v6348, %v6764
    %6766 = vmatpush1.msra.mxu0 %v6765
    %6767 = vmatprep.subr.mxu0 0.0
    %v6768 = vand.u32 %v6349, 4294901760
    %v6769 = vsub.f32 %v6349, %v6768
    %6770 = vmatpush1.msra.mxu0 %v6769
    %6771 = vmatprep.subr.mxu0 0.0
    %v6772 = vand.u32 %v6350, 4294901760
    %v6773 = vsub.f32 %v6350, %v6772
    %6774 = vmatpush1.msra.mxu0 %v6773
    %6775 = vmatprep.subr.mxu0 0.0
    %v6776 = vand.u32 %v6351, 4294901760
    %v6777 = vsub.f32 %v6351, %v6776
    %6778 = vmatpush1.msra.mxu0 %v6777
    %6779 = vmatprep.subr.mxu0 0.0
    %v6780 = vand.u32 %v6352, 4294901760
    %v6781 = vsub.f32 %v6352, %v6780
    %6782 = vmatpush1.msra.mxu0 %v6781
    %6783 = vmatprep.subr.mxu0 0.0
    %v6784 = vand.u32 %v6353, 4294901760
    %v6785 = vsub.f32 %v6353, %v6784
    %6786 = vmatpush1.msra.mxu0 %v6785
    %6787 = vmatprep.subr.mxu0 0.0
    %v6788 = vand.u32 %v6354, 4294901760
    %v6789 = vsub.f32 %v6354, %v6788
    %6790 = vmatpush1.msra.mxu0 %v6789
    %6791 = vmatprep.subr.mxu0 0.0
    %v6792 = vand.u32 %v6355, 4294901760
    %v6793 = vsub.f32 %v6355, %v6792
    %6794 = vmatpush1.msra.mxu0 %v6793
    %6795 = vmatprep.subr.mxu0 0.0
    %v6796 = vand.u32 %v6356, 4294901760
    %v6797 = vsub.f32 %v6356, %v6796
    %6798 = vmatpush1.msra.mxu0 %v6797
    %6799 = vmatprep.subr.mxu0 0.0
    %v6800 = vand.u32 %v6357, 4294901760
    %v6801 = vsub.f32 %v6357, %v6800
    %6802 = vmatpush1.msra.mxu0 %v6801
    %6803 = vmatprep.subr.mxu0 0.0
    %v6804 = vand.u32 %v6358, 4294901760
    %v6805 = vsub.f32 %v6358, %v6804
    %6806 = vmatpush1.msra.mxu0 %v6805
    %6807 = vmatprep.subr.mxu0 0.0
    %v6808 = vand.u32 %v6359, 4294901760
    %v6809 = vsub.f32 %v6359, %v6808
    %6810 = vmatpush1.msra.mxu0 %v6809
    %6811 = vmatprep.subr.mxu0 0.0
    %v6812 = vand.u32 %v6360, 4294901760
    %v6813 = vsub.f32 %v6360, %v6812
    %6814 = vmatpush1.msra.mxu0 %v6813
    %6815 = vmatprep.subr.mxu0 0.0
    %v6816 = vand.u32 %v6361, 4294901760
    %v6817 = vsub.f32 %v6361, %v6816
    %6818 = vmatpush1.msra.mxu0 %v6817
    %6819 = vmatprep.subr.mxu0 0.0
    %v6820 = vand.u32 %v6362, 4294901760
    %v6821 = vsub.f32 %v6362, %v6820
    %6822 = vmatpush1.msra.mxu0 %v6821
    %6823 = vmatprep.subr.mxu0 0.0
    %v6824 = vand.u32 %v6363, 4294901760
    %v6825 = vsub.f32 %v6363, %v6824
    %6826 = vmatpush1.msra.mxu0 %v6825
    %6827 = vmatprep.subr.mxu0 0.0
    %v6828 = vand.u32 %v6364, 4294901760
    %v6829 = vsub.f32 %v6364, %v6828
    %6830 = vmatpush1.msra.mxu0 %v6829
    %6831 = vmatprep.subr.mxu0 0.0
    %v6832 = vand.u32 %v6365, 4294901760
    %v6833 = vsub.f32 %v6365, %v6832
    %6834 = vmatpush1.msra.mxu0 %v6833
    %6835 = vmatprep.subr.mxu0 0.0
    %v6836 = vand.u32 %v6366, 4294901760
    %v6837 = vsub.f32 %v6366, %v6836
    %6838 = vmatpush1.msra.mxu0 %v6837
    %v6839 = vand.u32 %v6334, 4294901760
    %v6840 = vsub.f32 %v6334, %v6839
    %6841 = vmatprep.mubr.f32.mxu0 %v6840
    %v6842 = vand.u32 %v6333, 4294901760
    %v6843 = vsub.f32 %v6333, %v6842
    %6844 = vmatmul.mubr.f32.gmra.mrb[0].mxu0 %v6843
    %v6845 = vpop.f32.mrb[0].mxu0
    %v6846 = vadd.f32 %v6708, %v6845
    %v6847 = vpop.f32.mrb[0].mxu0
    %6848 = vdwg.mxu0
    %6849 = vmatprep.subr.mxu0 0.0
    %v6850 = vand.u32 %v6335, 4294901760
    %6851 = vmatpush1.msra.mxu0 %v6850
    %6852 = vmatprep.subr.mxu0 0.0
    %v6853 = vand.u32 %v6336, 4294901760
    %6854 = vmatpush1.msra.mxu0 %v6853
    %6855 = vmatprep.subr.mxu0 0.0
    %v6856 = vand.u32 %v6337, 4294901760
    %6857 = vmatpush1.msra.mxu0 %v6856
    %6858 = vmatprep.subr.mxu0 0.0
    %v6859 = vand.u32 %v6338, 4294901760
    %6860 = vmatpush1.msra.mxu0 %v6859
    %6861 = vmatprep.subr.mxu0 0.0
    %v6862 = vand.u32 %v6339, 4294901760
    %6863 = vmatpush1.msra.mxu0 %v6862
    %6864 = vmatprep.subr.mxu0 0.0
    %v6865 = vand.u32 %v6340, 4294901760
    %6866 = vmatpush1.msra.mxu0 %v6865
    %6867 = vmatprep.subr.mxu0 0.0
    %v6868 = vand.u32 %v6341, 4294901760
    %6869 = vmatpush1.msra.mxu0 %v6868
    %6870 = vmatprep.subr.mxu0 0.0
    %v6871 = vand.u32 %v6342, 4294901760
    %6872 = vmatpush1.msra.mxu0 %v6871
    %6873 = vmatprep.subr.mxu0 0.0
    %v6874 = vand.u32 %v6343, 4294901760
    %6875 = vmatpush1.msra.mxu0 %v6874
    %6876 = vmatprep.subr.mxu0 0.0
    %v6877 = vand.u32 %v6344, 4294901760
    %6878 = vmatpush1.msra.mxu0 %v6877
    %6879 = vmatprep.subr.mxu0 0.0
    %v6880 = vand.u32 %v6345, 4294901760
    %6881 = vmatpush1.msra.mxu0 %v6880
    %6882 = vmatprep.subr.mxu0 0.0
    %v6883 = vand.u32 %v6346, 4294901760
    %6884 = vmatpush1.msra.mxu0 %v6883
    %6885 = vmatprep.subr.mxu0 0.0
    %v6886 = vand.u32 %v6347, 4294901760
    %6887 = vmatpush1.msra.mxu0 %v6886
    %6888 = vmatprep.subr.mxu0 0.0
    %v6889 = vand.u32 %v6348, 4294901760
    %6890 = vmatpush1.msra.mxu0 %v6889
    %6891 = vmatprep.subr.mxu0 0.0
    %v6892 = vand.u32 %v6349, 4294901760
    %6893 = vmatpush1.msra.mxu0 %v6892
    %6894 = vmatprep.subr.mxu0 0.0
    %v6895 = vand.u32 %v6350, 4294901760
    %6896 = vmatpush1.msra.mxu0 %v6895
    %6897 = vmatprep.subr.mxu0 0.0
    %v6898 = vand.u32 %v6351, 4294901760
    %6899 = vmatpush1.msra.mxu0 %v6898
    %6900 = vmatprep.subr.mxu0 0.0
    %v6901 = vand.u32 %v6352, 4294901760
    %6902 = vmatpush1.msra.mxu0 %v6901
    %6903 = vmatprep.subr.mxu0 0.0
    %v6904 = vand.u32 %v6353, 4294901760
    %6905 = vmatpush1.msra.mxu0 %v6904
    %6906 = vmatprep.subr.mxu0 0.0
    %v6907 = vand.u32 %v6354, 4294901760
    %6908 = vmatpush1.msra.mxu0 %v6907
    %6909 = vmatprep.subr.mxu0 0.0
    %v6910 = vand.u32 %v6355, 4294901760
    %6911 = vmatpush1.msra.mxu0 %v6910
    %6912 = vmatprep.subr.mxu0 0.0
    %v6913 = vand.u32 %v6356, 4294901760
    %6914 = vmatpush1.msra.mxu0 %v6913
    %6915 = vmatprep.subr.mxu0 0.0
    %v6916 = vand.u32 %v6357, 4294901760
    %6917 = vmatpush1.msra.mxu0 %v6916
    %6918 = vmatprep.subr.mxu0 0.0
    %v6919 = vand.u32 %v6358, 4294901760
    %6920 = vmatpush1.msra.mxu0 %v6919
    %6921 = vmatprep.subr.mxu0 0.0
    %v6922 = vand.u32 %v6359, 4294901760
    %6923 = vmatpush1.msra.mxu0 %v6922
    %6924 = vmatprep.subr.mxu0 0.0
    %v6925 = vand.u32 %v6360, 4294901760
    %6926 = vmatpush1.msra.mxu0 %v6925
    %6927 = vmatprep.subr.mxu0 0.0
    %v6928 = vand.u32 %v6361, 4294901760
    %6929 = vmatpush1.msra.mxu0 %v6928
    %6930 = vmatprep.subr.mxu0 0.0
    %v6931 = vand.u32 %v6362, 4294901760
    %6932 = vmatpush1.msra.mxu0 %v6931
    %6933 = vmatprep.subr.mxu0 0.0
    %v6934 = vand.u32 %v6363, 4294901760
    %6935 = vmatpush1.msra.mxu0 %v6934
    %6936 = vmatprep.subr.mxu0 0.0
    %v6937 = vand.u32 %v6364, 4294901760
    %6938 = vmatpush1.msra.mxu0 %v6937
    %6939 = vmatprep.subr.mxu0 0.0
    %v6940 = vand.u32 %v6365, 4294901760
    %6941 = vmatpush1.msra.mxu0 %v6940
    %6942 = vmatprep.subr.mxu0 0.0
    %v6943 = vand.u32 %v6366, 4294901760
    %6944 = vmatpush1.msra.mxu0 %v6943
    %v6945 = vand.u32 %v6334, 4294901760
    %v6946 = vsub.f32 %v6334, %v6945
    %v6947 = vand.u32 %v6946, 4294901760
    %6948 = vmatprep.mubr.f32.mxu0 %v6947
    %v6949 = vand.u32 %v6333, 4294901760
    %v6950 = vsub.f32 %v6333, %v6949
    %v6951 = vand.u32 %v6950, 4294901760
    %6952 = vmatmul.mubr.f32.gmra.mrb[0].mxu0 %v6951
    %v6953 = vpop.f32.mrb[0].mxu0
    %v6954 = vadd.f32 %v6846, %v6953
    %v6955 = vpop.f32.mrb[0].mxu0
    %6956 = vdwg.mxu0
    %6957 = vmatprep.subr.mxu0 0.0
    %v6958 = vand.u32 %v6335, 4294901760
    %v6959 = vsub.f32 %v6335, %v6958
    %v6960 = vand.u32 %v6959, 4294901760
    %6961 = vmatpush1.msra.mxu0 %v6960
    %6962 = vmatprep.subr.mxu0 0.0
    %v6963 = vand.u32 %v6336, 4294901760
    %v6964 = vsub.f32 %v6336, %v6963
    %v6965 = vand.u32 %v6964, 4294901760
    %6966 = vmatpush1.msra.mxu0 %v6965
    %6967 = vmatprep.subr.mxu0 0.0
    %v6968 = vand.u32 %v6337, 4294901760
    %v6969 = vsub.f32 %v6337, %v6968
    %v6970 = vand.u32 %v6969, 4294901760
    %6971 = vmatpush1.msra.mxu0 %v6970
    %6972 = vmatprep.subr.mxu0 0.0
    %v6973 = vand.u32 %v6338, 4294901760
    %v6974 = vsub.f32 %v6338, %v6973
    %v6975 = vand.u32 %v6974, 4294901760
    %6976 = vmatpush1.msra.mxu0 %v6975
    %6977 = vmatprep.subr.mxu0 0.0
    %v6978 = vand.u32 %v6339, 4294901760
    %v6979 = vsub.f32 %v6339, %v6978
    %v6980 = vand.u32 %v6979, 4294901760
    %6981 = vmatpush1.msra.mxu0 %v6980
    %6982 = vmatprep.subr.mxu0 0.0
    %v6983 = vand.u32 %v6340, 4294901760
    %v6984 = vsub.f32 %v6340, %v6983
    %v6985 = vand.u32 %v6984, 4294901760
    %6986 = vmatpush1.msra.mxu0 %v6985
    %6987 = vmatprep.subr.mxu0 0.0
    %v6988 = vand.u32 %v6341, 4294901760
    %v6989 = vsub.f32 %v6341, %v6988
    %v6990 = vand.u32 %v6989, 4294901760
    %6991 = vmatpush1.msra.mxu0 %v6990
    %6992 = vmatprep.subr.mxu0 0.0
    %v6993 = vand.u32 %v6342, 4294901760
    %v6994 = vsub.f32 %v6342, %v6993
    %v6995 = vand.u32 %v6994, 4294901760
    %6996 = vmatpush1.msra.mxu0 %v6995
    %6997 = vmatprep.subr.mxu0 0.0
    %v6998 = vand.u32 %v6343, 4294901760
    %v6999 = vsub.f32 %v6343, %v6998
    %v7000 = vand.u32 %v6999, 4294901760
    %7001 = vmatpush1.msra.mxu0 %v7000
    %7002 = vmatprep.subr.mxu0 0.0
    %v7003 = vand.u32 %v6344, 4294901760
    %v7004 = vsub.f32 %v6344, %v7003
    %v7005 = vand.u32 %v7004, 4294901760
    %7006 = vmatpush1.msra.mxu0 %v7005
    %7007 = vmatprep.subr.mxu0 0.0
    %v7008 = vand.u32 %v6345, 4294901760
    %v7009 = vsub.f32 %v6345, %v7008
    %v7010 = vand.u32 %v7009, 4294901760
    %7011 = vmatpush1.msra.mxu0 %v7010
    %7012 = vmatprep.subr.mxu0 0.0
    %v7013 = vand.u32 %v6346, 4294901760
    %v7014 = vsub.f32 %v6346, %v7013
    %v7015 = vand.u32 %v7014, 4294901760
    %7016 = vmatpush1.msra.mxu0 %v7015
    %7017 = vmatprep.subr.mxu0 0.0
    %v7018 = vand.u32 %v6347, 4294901760
    %v7019 = vsub.f32 %v6347, %v7018
    %v7020 = vand.u32 %v7019, 4294901760
    %7021 = vmatpush1.msra.mxu0 %v7020
    %7022 = vmatprep.subr.mxu0 0.0
    %v7023 = vand.u32 %v6348, 4294901760
    %v7024 = vsub.f32 %v6348, %v7023
    %v7025 = vand.u32 %v7024, 4294901760
    %7026 = vmatpush1.msra.mxu0 %v7025
    %7027 = vmatprep.subr.mxu0 0.0
    %v7028 = vand.u32 %v6349, 4294901760
    %v7029 = vsub.f32 %v6349, %v7028
    %v7030 = vand.u32 %v7029, 4294901760
    %7031 = vmatpush1.msra.mxu0 %v7030
    %7032 = vmatprep.subr.mxu0 0.0
    %v7033 = vand.u32 %v6350, 4294901760
    %v7034 = vsub.f32 %v6350, %v7033
    %v7035 = vand.u32 %v7034, 4294901760
    %7036 = vmatpush1.msra.mxu0 %v7035
    %7037 = vmatprep.subr.mxu0 0.0
    %v7038 = vand.u32 %v6351, 4294901760
    %v7039 = vsub.f32 %v6351, %v7038
    %v7040 = vand.u32 %v7039, 4294901760
    %7041 = vmatpush1.msra.mxu0 %v7040
    %7042 = vmatprep.subr.mxu0 0.0
    %v7043 = vand.u32 %v6352, 4294901760
    %v7044 = vsub.f32 %v6352, %v7043
    %v7045 = vand.u32 %v7044, 4294901760
    %7046 = vmatpush1.msra.mxu0 %v7045
    %7047 = vmatprep.subr.mxu0 0.0
    %v7048 = vand.u32 %v6353, 4294901760
    %v7049 = vsub.f32 %v6353, %v7048
    %v7050 = vand.u32 %v7049, 4294901760
    %7051 = vmatpush1.msra.mxu0 %v7050
    %7052 = vmatprep.subr.mxu0 0.0
    %v7053 = vand.u32 %v6354, 4294901760
    %v7054 = vsub.f32 %v6354, %v7053
    %v7055 = vand.u32 %v7054, 4294901760
    %7056 = vmatpush1.msra.mxu0 %v7055
    %7057 = vmatprep.subr.mxu0 0.0
    %v7058 = vand.u32 %v6355, 4294901760
    %v7059 = vsub.f32 %v6355, %v7058
    %v7060 = vand.u32 %v7059, 4294901760
    %7061 = vmatpush1.msra.mxu0 %v7060
    %7062 = vmatprep.subr.mxu0 0.0
    %v7063 = vand.u32 %v6356, 4294901760
    %v7064 = vsub.f32 %v6356, %v7063
    %v7065 = vand.u32 %v7064, 4294901760
    %7066 = vmatpush1.msra.mxu0 %v7065
    %7067 = vmatprep.subr.mxu0 0.0
    %v7068 = vand.u32 %v6357, 4294901760
    %v7069 = vsub.f32 %v6357, %v7068
    %v7070 = vand.u32 %v7069, 4294901760
    %7071 = vmatpush1.msra.mxu0 %v7070
    %7072 = vmatprep.subr.mxu0 0.0
    %v7073 = vand.u32 %v6358, 4294901760
    %v7074 = vsub.f32 %v6358, %v7073
    %v7075 = vand.u32 %v7074, 4294901760
    %7076 = vmatpush1.msra.mxu0 %v7075
    %7077 = vmatprep.subr.mxu0 0.0
    %v7078 = vand.u32 %v6359, 4294901760
    %v7079 = vsub.f32 %v6359, %v7078
    %v7080 = vand.u32 %v7079, 4294901760
    %7081 = vmatpush1.msra.mxu0 %v7080
    %7082 = vmatprep.subr.mxu0 0.0
    %v7083 = vand.u32 %v6360, 4294901760
    %v7084 = vsub.f32 %v6360, %v7083
    %v7085 = vand.u32 %v7084, 4294901760
    %7086 = vmatpush1.msra.mxu0 %v7085
    %7087 = vmatprep.subr.mxu0 0.0
    %v7088 = vand.u32 %v6361, 4294901760
    %v7089 = vsub.f32 %v6361, %v7088
    %v7090 = vand.u32 %v7089, 4294901760
    %7091 = vmatpush1.msra.mxu0 %v7090
    %7092 = vmatprep.subr.mxu0 0.0
    %v7093 = vand.u32 %v6362, 4294901760
    %v7094 = vsub.f32 %v6362, %v7093
    %v7095 = vand.u32 %v7094, 4294901760
    %7096 = vmatpush1.msra.mxu0 %v7095
    %7097 = vmatprep.subr.mxu0 0.0
    %v7098 = vand.u32 %v6363, 4294901760
    %v7099 = vsub.f32 %v6363, %v7098
    %v7100 = vand.u32 %v7099, 4294901760
    %7101 = vmatpush1.msra.mxu0 %v7100
    %7102 = vmatprep.subr.mxu0 0.0
    %v7103 = vand.u32 %v6364, 4294901760
    %v7104 = vsub.f32 %v6364, %v7103
    %v7105 = vand.u32 %v7104, 4294901760
    %7106 = vmatpush1.msra.mxu0 %v7105
    %7107 = vmatprep.subr.mxu0 0.0
    %v7108 = vand.u32 %v6365, 4294901760
    %v7109 = vsub.f32 %v6365, %v7108
    %v7110 = vand.u32 %v7109, 4294901760
    %7111 = vmatpush1.msra.mxu0 %v7110
    %7112 = vmatprep.subr.mxu0 0.0
    %v7113 = vand.u32 %v6366, 4294901760
    %v7114 = vsub.f32 %v6366, %v7113
    %v7115 = vand.u32 %v7114, 4294901760
    %7116 = vmatpush1.msra.mxu0 %v7115
    %v7117 = vand.u32 %v6334, 4294901760
    %7118 = vmatprep.mubr.f32.mxu0 %v7117
    %v7119 = vand.u32 %v6333, 4294901760
    %7120 = vmatmul.mubr.f32.gmra.mrb[0].mxu0 %v7119
    %v7121 = vpop.f32.mrb[0].mxu0
    %v7122 = vadd.f32 %v6954, %v7121
    %v7123 = vpop.f32.mrb[0].mxu0
    %7124 = vdwg.mxu0
    %7125 = vmatprep.subr.mxu0 0.0
    %v7126 = vand.u32 %v6335, 4294901760
    %7127 = vmatpush1.msra.mxu0 %v7126
    %7128 = vmatprep.subr.mxu0 0.0
    %v7129 = vand.u32 %v6336, 4294901760
    %7130 = vmatpush1.msra.mxu0 %v7129
    %7131 = vmatprep.subr.mxu0 0.0
    %v7132 = vand.u32 %v6337, 4294901760
    %7133 = vmatpush1.msra.mxu0 %v7132
    %7134 = vmatprep.subr.mxu0 0.0
    %v7135 = vand.u32 %v6338, 4294901760
    %7136 = vmatpush1.msra.mxu0 %v7135
    %7137 = vmatprep.subr.mxu0 0.0
    %v7138 = vand.u32 %v6339, 4294901760
    %7139 = vmatpush1.msra.mxu0 %v7138
    %7140 = vmatprep.subr.mxu0 0.0
    %v7141 = vand.u32 %v6340, 4294901760
    %7142 = vmatpush1.msra.mxu0 %v7141
    %7143 = vmatprep.subr.mxu0 0.0
    %v7144 = vand.u32 %v6341, 4294901760
    %7145 = vmatpush1.msra.mxu0 %v7144
    %7146 = vmatprep.subr.mxu0 0.0
    %v7147 = vand.u32 %v6342, 4294901760
    %7148 = vmatpush1.msra.mxu0 %v7147
    %7149 = vmatprep.subr.mxu0 0.0
    %v7150 = vand.u32 %v6343, 4294901760
    %7151 = vmatpush1.msra.mxu0 %v7150
    %7152 = vmatprep.subr.mxu0 0.0
    %v7153 = vand.u32 %v6344, 4294901760
    %7154 = vmatpush1.msra.mxu0 %v7153
    %7155 = vmatprep.subr.mxu0 0.0
    %v7156 = vand.u32 %v6345, 4294901760
    %7157 = vmatpush1.msra.mxu0 %v7156
    %7158 = vmatprep.subr.mxu0 0.0
    %v7159 = vand.u32 %v6346, 4294901760
    %7160 = vmatpush1.msra.mxu0 %v7159
    %7161 = vmatprep.subr.mxu0 0.0
    %v7162 = vand.u32 %v6347, 4294901760
    %7163 = vmatpush1.msra.mxu0 %v7162
    %7164 = vmatprep.subr.mxu0 0.0
    %v7165 = vand.u32 %v6348, 4294901760
    %7166 = vmatpush1.msra.mxu0 %v7165
    %7167 = vmatprep.subr.mxu0 0.0
    %v7168 = vand.u32 %v6349, 4294901760
    %7169 = vmatpush1.msra.mxu0 %v7168
    %7170 = vmatprep.subr.mxu0 0.0
    %v7171 = vand.u32 %v6350, 4294901760
    %7172 = vmatpush1.msra.mxu0 %v7171
    %7173 = vmatprep.subr.mxu0 0.0
    %v7174 = vand.u32 %v6351, 4294901760
    %7175 = vmatpush1.msra.mxu0 %v7174
    %7176 = vmatprep.subr.mxu0 0.0
    %v7177 = vand.u32 %v6352, 4294901760
    %7178 = vmatpush1.msra.mxu0 %v7177
    %7179 = vmatprep.subr.mxu0 0.0
    %v7180 = vand.u32 %v6353, 4294901760
    %7181 = vmatpush1.msra.mxu0 %v7180
    %7182 = vmatprep.subr.mxu0 0.0
    %v7183 = vand.u32 %v6354, 4294901760
    %7184 = vmatpush1.msra.mxu0 %v7183
    %7185 = vmatprep.subr.mxu0 0.0
    %v7186 = vand.u32 %v6355, 4294901760
    %7187 = vmatpush1.msra.mxu0 %v7186
    %7188 = vmatprep.subr.mxu0 0.0
    %v7189 = vand.u32 %v6356, 4294901760
    %7190 = vmatpush1.msra.mxu0 %v7189
    %7191 = vmatprep.subr.mxu0 0.0
    %v7192 = vand.u32 %v6357, 4294901760
    %7193 = vmatpush1.msra.mxu0 %v7192
    %7194 = vmatprep.subr.mxu0 0.0
    %v7195 = vand.u32 %v6358, 4294901760
    %7196 = vmatpush1.msra.mxu0 %v7195
    %7197 = vmatprep.subr.mxu0 0.0
    %v7198 = vand.u32 %v6359, 4294901760
    %7199 = vmatpush1.msra.mxu0 %v7198
    %7200 = vmatprep.subr.mxu0 0.0
    %v7201 = vand.u32 %v6360, 4294901760
    %7202 = vmatpush1.msra.mxu0 %v7201
    %7203 = vmatprep.subr.mxu0 0.0
    %v7204 = vand.u32 %v6361, 4294901760
    %7205 = vmatpush1.msra.mxu0 %v7204
    %7206 = vmatprep.subr.mxu0 0.0
    %v7207 = vand.u32 %v6362, 4294901760
    %7208 = vmatpush1.msra.mxu0 %v7207
    %7209 = vmatprep.subr.mxu0 0.0
    %v7210 = vand.u32 %v6363, 4294901760
    %7211 = vmatpush1.msra.mxu0 %v7210
    %7212 = vmatprep.subr.mxu0 0.0
    %v7213 = vand.u32 %v6364, 4294901760
    %7214 = vmatpush1.msra.mxu0 %v7213
    %7215 = vmatprep.subr.mxu0 0.0
    %v7216 = vand.u32 %v6365, 4294901760
    %7217 = vmatpush1.msra.mxu0 %v7216
    %7218 = vmatprep.subr.mxu0 0.0
    %v7219 = vand.u32 %v6366, 4294901760
    %7220 = vmatpush1.msra.mxu0 %v7219
    %v7221 = vand.u32 %v6334, 4294901760
    %7222 = vmatprep.mubr.f32.mxu0 %v7221
    %v7223 = vand.u32 %v6333, 4294901760
    %7224 = vmatmul.mubr.f32.gmra.mrb[0].mxu0 %v7223
    %v7225 = vpop.f32.mrb[0].mxu0
    %v7226 = vadd.f32 %v7122, %v7225
    %v7227 = vpop.f32.mrb[0].mxu0
    %7228 = vdwg.mxu0
    %7229 = vst [vmem:[%s7] sm:$0xff] %v7226
    // Predicated region
    $region54: #{fused_forward.1} parent=1 // pred_check
      _
    $region55: #{fused_forward.1} parent=1 // pred_check_branch
      %7231 = sbr.rel (0) target = $region57
    $region56: #{fused_forward.1} parent=1 // pred_region
      _
    $region57: #{fused_forward.1} parent=1 // pred_fallthru
      _
    // Predicated region
    $region58: #{fused_forward.1} parent=1 // pred_check
      _
    $region59: #{fused_forward.1} parent=1 // pred_check_branch
      %7233 = sbr.rel (0) target = $region61
    $region60: #{fused_forward.1} parent=1 // pred_region
      _
    $region61: #{fused_forward.1} parent=1 // pred_fallthru
      _
    %7234 = vsyncpa [#allocation3], 1
    %7235 = vsyncpa [#allocation5], 1
    %7236 = vsyncpa [#allocation8], 1
    %7237 = vsyncpa [#allocation11], 1

</llo_original>
